<compile_context>
chip_gen: v6e
topology: v6e:2x2x1
jax: 0.10.0
libtpu: 0.0.40
codegen_flags: <defaults>
</compile_context>

<pallas_src>
import jax
import jax.numpy as jnp
from jax.experimental import pallas as pl
from jax.experimental.pallas import tpu as pltpu

# Logical layer sizes (encoder then decoder).
DIMS = [28 * 28, 512, 256, 128, 32, 128, 256, 512, 28 * 28]
N_LAYERS = len(DIMS) - 1          # 8 Linear+ReLU layers
ENCODED_LAYER = 4                 # output of layer index 3 (0-based) is the 32-d code


def _round_up(x, m):
    return ((x + m - 1) // m) * m


# Lane-padded layer sizes (multiples of 128): 784 -> 896, 32 -> 128.
PDIMS = [_round_up(d, 128) for d in DIMS]

MAX_TILE_B = 512                  # MXU-friendly max batch tile (multiple of 128)


def _choose_tile(batch, max_tile=MAX_TILE_B):
    """Adaptive batch tile: never bigger than the (128-aligned) batch, capped at
    max_tile, and split into >=2 tiles when that costs no extra row padding so
    v7x megacore gets both TensorCores busy."""
    b128 = _round_up(max(batch, 1), 128)
    n_tiles = (b128 + max_tile - 1) // max_tile
    if n_tiles < 2 and b128 >= 256 and b128 % 256 == 0:
        n_tiles = 2
    tile = _round_up((b128 + n_tiles - 1) // n_tiles, 128)
    return tile


def _autoencoder_kernel(x_ref, *refs):
    """refs = (w0..w7 [bf16], b0..b7 [bf16, (1,out)], encoded_ref, decoded_ref)."""
    w_refs = refs[0:N_LAYERS]
    b_refs = refs[N_LAYERS:2 * N_LAYERS]
    encoded_ref = refs[2 * N_LAYERS]
    decoded_ref = refs[2 * N_LAYERS + 1]

    h = x_ref[...]                                     # bf16 (tile_b, 896), no cast needed
    for li in range(N_LAYERS):
        # bf16 MXU inputs, f32 accumulation.
        acc = jnp.dot(h, w_refs[li][...], preferred_element_type=jnp.float32)
        # Bias-add + ReLU in bf16: half the vreg/ld-st traffic on v6e/v7x bf16 VPU;
        # on v5e this elementwise work is hidden under the MXU.
        h = jnp.maximum(acc.astype(jnp.bfloat16) + b_refs[li][...], 0.0)
        if li == ENCODED_LAYER - 1:
            encoded_ref[...] = h.astype(encoded_ref.dtype)
    decoded_ref[...] = h.astype(decoded_ref.dtype)


def prepare_params(weights, biases):
    """One-time parameter prep (hoisted out of the forward path): lane-pad every
    weight/bias to 128-multiples and cast to bf16.  Call once, reuse the result.

    weights[i]: [DIMS[i], DIMS[i+1]]  (PyTorch weight.T), biases[i]: [DIMS[i+1]].
    """
    wp, bp = [], []
    for i in range(N_LAYERS):
        assert weights[i].shape == (DIMS[i], DIMS[i + 1]), (
            f"layer {i}: expected [in,out]={DIMS[i], DIMS[i+1]}, got {weights[i].shape} "
            "(pass PyTorch weight.T)")
        assert biases[i].shape == (DIMS[i + 1],), biases[i].shape
        w = jnp.zeros((PDIMS[i], PDIMS[i + 1]), jnp.float32)
        w = w.at[:DIMS[i], :DIMS[i + 1]].set(weights[i].astype(jnp.float32))
        b = jnp.zeros((1, PDIMS[i + 1]), jnp.float32)
        b = b.at[0, :DIMS[i + 1]].set(biases[i].astype(jnp.float32))
        wp.append(w.astype(jnp.bfloat16))
        bp.append(b.astype(jnp.bfloat16))
    return tuple(wp), tuple(bp)


def autoencoder_forward(x, params, *, max_tile_b=MAX_TILE_B, out_dtype=jnp.bfloat16):
    """x: [B, 784]; params = prepare_params(weights, biases).
    Returns (encoded [B, 32], decoded [B, 784]) in out_dtype (bf16 by default;
    pass out_dtype=jnp.float32 for f32 stores at ~2x the output HBM traffic)."""
    assert x.ndim == 2 and x.shape[1] == DIMS[0], x.shape
    wp, bp = params

    batch = x.shape[0]
    tile_b = _choose_tile(batch, max_tile_b)
    b_pad = _round_up(max(batch, 1), tile_b)
    n_tiles = b_pad // tile_b

    # Zero-pad batch rows, lane-pad 784 -> 896, and cast to bf16 once (the first
    # matmul only ever consumes x as bf16): halves the per-tile x DMA.
    xp = jnp.zeros((b_pad, PDIMS[0]), jnp.bfloat16)
    xp = xp.at[:batch, :DIMS[0]].set(x.astype(jnp.bfloat16))

    x_spec = pl.BlockSpec((tile_b, PDIMS[0]), lambda i: (i, 0))
    # Constant index_map -> weight/bias blocks stay VMEM-resident across the grid.
    w_specs = [pl.BlockSpec((PDIMS[i], PDIMS[i + 1]), lambda i_: (0, 0))
               for i in range(N_LAYERS)]
    b_specs = [pl.BlockSpec((1, PDIMS[i + 1]), lambda i_: (0, 0))
               for i in range(N_LAYERS)]
    out_specs = (
        pl.BlockSpec((tile_b, PDIMS[ENCODED_LAYER]), lambda i: (i, 0)),
        pl.BlockSpec((tile_b, PDIMS[-1]), lambda i: (i, 0)),
    )
    out_shapes = (
        jax.ShapeDtypeStruct((b_pad, PDIMS[ENCODED_LAYER]), out_dtype),   # encoded (padded)
        jax.ShapeDtypeStruct((b_pad, PDIMS[-1]), out_dtype),              # decoded (padded)
    )

    # Advisory cost estimate for XLA's scheduler.
    n_w = sum(PDIMS[i] * PDIMS[i + 1] for i in range(N_LAYERS))
    flops = 2 * b_pad * n_w
    out_bytes = jnp.dtype(out_dtype).itemsize
    bytes_accessed = (n_w * 2                                              # bf16 weights
                      + sum(PDIMS[1:]) * 2                                 # bf16 biases
                      + b_pad * PDIMS[0] * 2                               # bf16 input
                      + b_pad * (PDIMS[ENCODED_LAYER] + PDIMS[-1]) * out_bytes)
    cost = pl.CostEstimate(flops=flops, transcendentals=0,
                           bytes_accessed=bytes_accessed)

    encoded_p, decoded_p = pl.pallas_call(
        _autoencoder_kernel,
        out_shape=out_shapes,
        grid=(n_tiles,),
        in_specs=[x_spec] + w_specs + b_specs,
        out_specs=out_specs,
        compiler_params=pltpu.CompilerParams(
            dimension_semantics=("parallel",),       # shard batch tiles across TCs (v7x)
            vmem_limit_bytes=32 * 1024 * 1024,       # ~15 MB footprint at tile_b=512
        ),
        cost_estimate=cost,
    )(xp, *wp, *bp)

    encoded = encoded_p[:batch, :DIMS[ENCODED_LAYER]]
    decoded = decoded_p[:batch, :DIMS[-1]]
    return encoded, decoded


def init_params(key):
    """Deterministic init mimicking PyTorch's default Linear init
    (uniform(-1/sqrt(fan_in), 1/sqrt(fan_in))). Weights stored as [in, out]."""
    weights, biases = [], []
    for i in range(N_LAYERS):
        fan_in, fan_out = DIMS[i], DIMS[i + 1]
        key, kw, kb = jax.random.split(key, 3)
        bound = 1.0 / (fan_in ** 0.5)
        w = jax.random.uniform(kw, (fan_in, fan_out), jnp.float32, -bound, bound)
        b = jax.random.uniform(kb, (fan_out,), jnp.float32, -bound, bound)
        weights.append(w)
        biases.append(b)
    return weights, biases


def reference_forward(x, weights, biases):
    """Plain-JAX reference mirroring the kernel's precision policy (bf16 matmul
    inputs, f32 accumulation, bf16 bias-add/ReLU).  Returns (encoded, decoded) f32."""
    h = x.astype(jnp.bfloat16)
    encoded = None
    for li, (w, b) in enumerate(zip(weights, biases)):
        acc = jnp.dot(h, w.astype(jnp.bfloat16), preferred_element_type=jnp.float32)
        h = jnp.maximum(acc.astype(jnp.bfloat16) + b.astype(jnp.bfloat16), 0.0)
        if li == ENCODED_LAYER - 1:
            encoded = h
    return encoded.astype(jnp.float32), h.astype(jnp.float32)


if __name__ == "__main__":
    key = jax.random.PRNGKey(0)
    key, kx = jax.random.split(key)

    batch = 8
    x = jax.random.normal(kx, (batch, 28 * 28), dtype=jnp.float32)
    weights, biases = init_params(key)

    # One-time parameter prep (padding + bf16 cast hoisted out of the forward path).
    params = prepare_params(weights, biases)
    jax.block_until_ready(params)

    encoded, decoded = autoencoder_forward(x, params)
    jax.block_until_ready((encoded, decoded))

    enc_ref, dec_ref = reference_forward(x, weights, biases)
    assert encoded.shape == (batch, 32)
    assert decoded.shape == (batch, 28 * 28)
    assert jnp.allclose(encoded.astype(jnp.float32), enc_ref, atol=2e-2, rtol=2e-2)
    assert jnp.allclose(decoded.astype(jnp.float32), dec_ref, atol=2e-2, rtol=2e-2)

    # NOTE: the PyTorch forward() has no `return` (returns None); we return
    # (encoded, decoded) since those are the values it computes.
    print("KERNEL_OK")
</pallas_src>

<mosaic_0001>
module attributes {stable_mosaic.version = 11 : i64} {
  func.func @_autoencoder_kernel(%arg0: i32, %arg1: memref<128x896xbf16, #tpu.memory_space<vmem>>, %arg2: memref<896x512xbf16, #tpu.memory_space<vmem>>, %arg3: memref<512x256xbf16, #tpu.memory_space<vmem>>, %arg4: memref<256x128xbf16, #tpu.memory_space<vmem>>, %arg5: memref<128x128xbf16, #tpu.memory_space<vmem>>, %arg6: memref<128x128xbf16, #tpu.memory_space<vmem>>, %arg7: memref<128x256xbf16, #tpu.memory_space<vmem>>, %arg8: memref<256x512xbf16, #tpu.memory_space<vmem>>, %arg9: memref<512x896xbf16, #tpu.memory_space<vmem>>, %arg10: memref<1x512xbf16, #tpu.memory_space<vmem>>, %arg11: memref<1x256xbf16, #tpu.memory_space<vmem>>, %arg12: memref<1x128xbf16, #tpu.memory_space<vmem>>, %arg13: memref<1x128xbf16, #tpu.memory_space<vmem>>, %arg14: memref<1x128xbf16, #tpu.memory_space<vmem>>, %arg15: memref<1x256xbf16, #tpu.memory_space<vmem>>, %arg16: memref<1x512xbf16, #tpu.memory_space<vmem>>, %arg17: memref<1x896xbf16, #tpu.memory_space<vmem>>, %arg18: memref<128x128xbf16, #tpu.memory_space<vmem>>, %arg19: memref<128x896xbf16, #tpu.memory_space<vmem>>) attributes {dimension_semantics = [#tpu.dimension_semantics<parallel>], iteration_bounds = array<i64: 1>, scalar_prefetch = 0 : i64, scratch_operands = 0 : i64, tpu.core_type = #tpu.core_type<tc>, window_params = [{transform_indices = @transform_0, window_bounds = array<i64: 128, 896>}, {pipeline_mode = #tpu.pipeline_mode<synchronous>, transform_indices = @transform_1, window_bounds = array<i64: 896, 512>}, {pipeline_mode = #tpu.pipeline_mode<synchronous>, transform_indices = @transform_2, window_bounds = array<i64: 512, 256>}, {pipeline_mode = #tpu.pipeline_mode<synchronous>, transform_indices = @transform_3, window_bounds = array<i64: 256, 128>}, {pipeline_mode = #tpu.pipeline_mode<synchronous>, transform_indices = @transform_4, window_bounds = array<i64: 128, 128>}, {pipeline_mode = #tpu.pipeline_mode<synchronous>, transform_indices = @transform_5, window_bounds = array<i64: 128, 128>}, {pipeline_mode = #tpu.pipeline_mode<synchronous>, transform_indices = @transform_6, window_bounds = array<i64: 128, 256>}, {pipeline_mode = #tpu.pipeline_mode<synchronous>, transform_indices = @transform_7, window_bounds = array<i64: 256, 512>}, {pipeline_mode = #tpu.pipeline_mode<synchronous>, transform_indices = @transform_8, window_bounds = array<i64: 512, 896>}, {pipeline_mode = #tpu.pipeline_mode<synchronous>, transform_indices = @transform_9, window_bounds = array<i64: 1, 512>}, {pipeline_mode = #tpu.pipeline_mode<synchronous>, transform_indices = @transform_10, window_bounds = array<i64: 1, 256>}, {pipeline_mode = #tpu.pipeline_mode<synchronous>, transform_indices = @transform_11, window_bounds = array<i64: 1, 128>}, {pipeline_mode = #tpu.pipeline_mode<synchronous>, transform_indices = @transform_12, window_bounds = array<i64: 1, 128>}, {pipeline_mode = #tpu.pipeline_mode<synchronous>, transform_indices = @transform_13, window_bounds = array<i64: 1, 128>}, {pipeline_mode = #tpu.pipeline_mode<synchronous>, transform_indices = @transform_14, window_bounds = array<i64: 1, 256>}, {pipeline_mode = #tpu.pipeline_mode<synchronous>, transform_indices = @transform_15, window_bounds = array<i64: 1, 512>}, {pipeline_mode = #tpu.pipeline_mode<synchronous>, transform_indices = @transform_16, window_bounds = array<i64: 1, 896>}, {transform_indices = @transform_17, window_bounds = array<i64: 128, 128>}, {transform_indices = @transform_18, window_bounds = array<i64: 128, 896>}]} {
    %c0 = arith.constant 0 : index
    %c0_0 = arith.constant 0 : index
    %0 = vector.load %arg1[%c0, %c0_0] : memref<128x896xbf16, #tpu.memory_space<vmem>>, vector<128x896xbf16>
    %c0_1 = arith.constant 0 : index
    %c0_2 = arith.constant 0 : index
    %1 = vector.load %arg2[%c0_1, %c0_2] : memref<896x512xbf16, #tpu.memory_space<vmem>>, vector<896x512xbf16>
    %cst = arith.constant dense<0.000000e+00> : vector<128x512xf32>
    %2 = tpu.matmul %0, %1, %cst {dimension_numbers = #tpu.dot_dimension_numbers<[1], [0], [0], [1], [0, 0, 1, 1], [], []>} : vector<128x896xbf16>, vector<896x512xbf16>, vector<128x512xf32> -> vector<128x512xf32>
    %3 = arith.truncf %2 : vector<128x512xf32> to vector<128x512xbf16>
    %c0_3 = arith.constant 0 : index
    %c0_4 = arith.constant 0 : index
    %4 = vector.load %arg10[%c0_3, %c0_4] : memref<1x512xbf16, #tpu.memory_space<vmem>>, vector<1x512xbf16>
    %5 = vector.broadcast %4 : vector<1x512xbf16> to vector<128x512xbf16>
    %6 = arith.addf %3, %5 : vector<128x512xbf16>
    %cst_5 = arith.constant 0.000000e+00 : bf16
    %7 = vector.broadcast %cst_5 : bf16 to vector<128x512xbf16>
    %8 = arith.maximumf %6, %7 : vector<128x512xbf16>
    %c0_6 = arith.constant 0 : index
    %c0_7 = arith.constant 0 : index
    %9 = vector.load %arg3[%c0_6, %c0_7] : memref<512x256xbf16, #tpu.memory_space<vmem>>, vector<512x256xbf16>
    %cst_8 = arith.constant dense<0.000000e+00> : vector<128x256xf32>
    %10 = tpu.matmul %8, %9, %cst_8 {dimension_numbers = #tpu.dot_dimension_numbers<[1], [0], [0], [1], [0, 0, 1, 1], [], []>} : vector<128x512xbf16>, vector<512x256xbf16>, vector<128x256xf32> -> vector<128x256xf32>
    %11 = arith.truncf %10 : vector<128x256xf32> to vector<128x256xbf16>
    %c0_9 = arith.constant 0 : index
    %c0_10 = arith.constant 0 : index
    %12 = vector.load %arg11[%c0_9, %c0_10] : memref<1x256xbf16, #tpu.memory_space<vmem>>, vector<1x256xbf16>
    %13 = vector.broadcast %12 : vector<1x256xbf16> to vector<128x256xbf16>
    %14 = arith.addf %11, %13 : vector<128x256xbf16>
    %cst_11 = arith.constant 0.000000e+00 : bf16
    %15 = vector.broadcast %cst_11 : bf16 to vector<128x256xbf16>
    %16 = arith.maximumf %14, %15 : vector<128x256xbf16>
    %c0_12 = arith.constant 0 : index
    %c0_13 = arith.constant 0 : index
    %17 = vector.load %arg4[%c0_12, %c0_13] : memref<256x128xbf16, #tpu.memory_space<vmem>>, vector<256x128xbf16>
    %cst_14 = arith.constant dense<0.000000e+00> : vector<128x128xf32>
    %18 = tpu.matmul %16, %17, %cst_14 {dimension_numbers = #tpu.dot_dimension_numbers<[1], [0], [0], [1], [0, 0, 1, 1], [], []>} : vector<128x256xbf16>, vector<256x128xbf16>, vector<128x128xf32> -> vector<128x128xf32>
    %19 = arith.truncf %18 : vector<128x128xf32> to vector<128x128xbf16>
    %c0_15 = arith.constant 0 : index
    %c0_16 = arith.constant 0 : index
    %20 = vector.load %arg12[%c0_15, %c0_16] : memref<1x128xbf16, #tpu.memory_space<vmem>>, vector<1x128xbf16>
    %21 = vector.broadcast %20 : vector<1x128xbf16> to vector<128x128xbf16>
    %22 = arith.addf %19, %21 : vector<128x128xbf16>
    %cst_17 = arith.constant 0.000000e+00 : bf16
    %23 = vector.broadcast %cst_17 : bf16 to vector<128x128xbf16>
    %24 = arith.maximumf %22, %23 : vector<128x128xbf16>
    %c0_18 = arith.constant 0 : index
    %c0_19 = arith.constant 0 : index
    %25 = vector.load %arg5[%c0_18, %c0_19] : memref<128x128xbf16, #tpu.memory_space<vmem>>, vector<128x128xbf16>
    %cst_20 = arith.constant dense<0.000000e+00> : vector<128x128xf32>
    %26 = tpu.matmul %24, %25, %cst_20 {dimension_numbers = #tpu.dot_dimension_numbers<[1], [0], [0], [1], [0, 0, 1, 1], [], []>} : vector<128x128xbf16>, vector<128x128xbf16>, vector<128x128xf32> -> vector<128x128xf32>
    %27 = arith.truncf %26 : vector<128x128xf32> to vector<128x128xbf16>
    %c0_21 = arith.constant 0 : index
    %c0_22 = arith.constant 0 : index
    %28 = vector.load %arg13[%c0_21, %c0_22] : memref<1x128xbf16, #tpu.memory_space<vmem>>, vector<1x128xbf16>
    %29 = vector.broadcast %28 : vector<1x128xbf16> to vector<128x128xbf16>
    %30 = arith.addf %27, %29 : vector<128x128xbf16>
    %cst_23 = arith.constant 0.000000e+00 : bf16
    %31 = vector.broadcast %cst_23 : bf16 to vector<128x128xbf16>
    %32 = arith.maximumf %30, %31 : vector<128x128xbf16>
    %c0_24 = arith.constant 0 : index
    %c0_25 = arith.constant 0 : index
    %33 = vector.load %arg18[%c0_24, %c0_25] : memref<128x128xbf16, #tpu.memory_space<vmem>>, vector<128x128xbf16>
    tpu.vector_store %arg18[%c0_24, %c0_25], %32 {strides = array<i32>} : memref<128x128xbf16, #tpu.memory_space<vmem>>, vector<128x128xbf16>,
    %c0_26 = arith.constant 0 : index
    %c0_27 = arith.constant 0 : index
    %34 = vector.load %arg6[%c0_26, %c0_27] : memref<128x128xbf16, #tpu.memory_space<vmem>>, vector<128x128xbf16>
    %cst_28 = arith.constant dense<0.000000e+00> : vector<128x128xf32>
    %35 = tpu.matmul %32, %34, %cst_28 {dimension_numbers = #tpu.dot_dimension_numbers<[1], [0], [0], [1], [0, 0, 1, 1], [], []>} : vector<128x128xbf16>, vector<128x128xbf16>, vector<128x128xf32> -> vector<128x128xf32>
    %36 = arith.truncf %35 : vector<128x128xf32> to vector<128x128xbf16>
    %c0_29 = arith.constant 0 : index
    %c0_30 = arith.constant 0 : index
    %37 = vector.load %arg14[%c0_29, %c0_30] : memref<1x128xbf16, #tpu.memory_space<vmem>>, vector<1x128xbf16>
    %38 = vector.broadcast %37 : vector<1x128xbf16> to vector<128x128xbf16>
    %39 = arith.addf %36, %38 : vector<128x128xbf16>
    %cst_31 = arith.constant 0.000000e+00 : bf16
    %40 = vector.broadcast %cst_31 : bf16 to vector<128x128xbf16>
    %41 = arith.maximumf %39, %40 : vector<128x128xbf16>
    %c0_32 = arith.constant 0 : index
    %c0_33 = arith.constant 0 : index
    %42 = vector.load %arg7[%c0_32, %c0_33] : memref<128x256xbf16, #tpu.memory_space<vmem>>, vector<128x256xbf16>
    %cst_34 = arith.constant dense<0.000000e+00> : vector<128x256xf32>
    %43 = tpu.matmul %41, %42, %cst_34 {dimension_numbers = #tpu.dot_dimension_numbers<[1], [0], [0], [1], [0, 0, 1, 1], [], []>} : vector<128x128xbf16>, vector<128x256xbf16>, vector<128x256xf32> -> vector<128x256xf32>
    %44 = arith.truncf %43 : vector<128x256xf32> to vector<128x256xbf16>
    %c0_35 = arith.constant 0 : index
    %c0_36 = arith.constant 0 : index
    %45 = vector.load %arg15[%c0_35, %c0_36] : memref<1x256xbf16, #tpu.memory_space<vmem>>, vector<1x256xbf16>
    %46 = vector.broadcast %45 : vector<1x256xbf16> to vector<128x256xbf16>
    %47 = arith.addf %44, %46 : vector<128x256xbf16>
    %cst_37 = arith.constant 0.000000e+00 : bf16
    %48 = vector.broadcast %cst_37 : bf16 to vector<128x256xbf16>
    %49 = arith.maximumf %47, %48 : vector<128x256xbf16>
    %c0_38 = arith.constant 0 : index
    %c0_39 = arith.constant 0 : index
    %50 = vector.load %arg8[%c0_38, %c0_39] : memref<256x512xbf16, #tpu.memory_space<vmem>>, vector<256x512xbf16>
    %cst_40 = arith.constant dense<0.000000e+00> : vector<128x512xf32>
    %51 = tpu.matmul %49, %50, %cst_40 {dimension_numbers = #tpu.dot_dimension_numbers<[1], [0], [0], [1], [0, 0, 1, 1], [], []>} : vector<128x256xbf16>, vector<256x512xbf16>, vector<128x512xf32> -> vector<128x512xf32>
    %52 = arith.truncf %51 : vector<128x512xf32> to vector<128x512xbf16>
    %c0_41 = arith.constant 0 : index
    %c0_42 = arith.constant 0 : index
    %53 = vector.load %arg16[%c0_41, %c0_42] : memref<1x512xbf16, #tpu.memory_space<vmem>>, vector<1x512xbf16>
    %54 = vector.broadcast %53 : vector<1x512xbf16> to vector<128x512xbf16>
    %55 = arith.addf %52, %54 : vector<128x512xbf16>
    %cst_43 = arith.constant 0.000000e+00 : bf16
    %56 = vector.broadcast %cst_43 : bf16 to vector<128x512xbf16>
    %57 = arith.maximumf %55, %56 : vector<128x512xbf16>
    %c0_44 = arith.constant 0 : index
    %c0_45 = arith.constant 0 : index
    %58 = vector.load %arg9[%c0_44, %c0_45] : memref<512x896xbf16, #tpu.memory_space<vmem>>, vector<512x896xbf16>
    %cst_46 = arith.constant dense<0.000000e+00> : vector<128x896xf32>
    %59 = tpu.matmul %57, %58, %cst_46 {dimension_numbers = #tpu.dot_dimension_numbers<[1], [0], [0], [1], [0, 0, 1, 1], [], []>} : vector<128x512xbf16>, vector<512x896xbf16>, vector<128x896xf32> -> vector<128x896xf32>
    %60 = arith.truncf %59 : vector<128x896xf32> to vector<128x896xbf16>
    %c0_47 = arith.constant 0 : index
    %c0_48 = arith.constant 0 : index
    %61 = vector.load %arg17[%c0_47, %c0_48] : memref<1x896xbf16, #tpu.memory_space<vmem>>, vector<1x896xbf16>
    %62 = vector.broadcast %61 : vector<1x896xbf16> to vector<128x896xbf16>
    %63 = arith.addf %60, %62 : vector<128x896xbf16>
    %cst_49 = arith.constant 0.000000e+00 : bf16
    %64 = vector.broadcast %cst_49 : bf16 to vector<128x896xbf16>
    %65 = arith.maximumf %63, %64 : vector<128x896xbf16>
    %c0_50 = arith.constant 0 : index
    %c0_51 = arith.constant 0 : index
    %66 = vector.load %arg19[%c0_50, %c0_51] : memref<128x896xbf16, #tpu.memory_space<vmem>>, vector<128x896xbf16>
    tpu.vector_store %arg19[%c0_50, %c0_51], %65 {strides = array<i32>} : memref<128x896xbf16, #tpu.memory_space<vmem>>, vector<128x896xbf16>,
    return
  }
  func.func @transform_0(%arg0: i32) -> (i32, i32) {
    %c0_i32 = arith.constant 0 : i32
    %c0_i32_0 = arith.constant 0 : i32
    return %arg0, %c0_i32 : i32, i32
  }
  func.func @transform_1(%arg0: i32) -> (i32, i32) {
    %c0_i32 = arith.constant 0 : i32
    %c0_i32_0 = arith.constant 0 : i32
    %c0_i32_1 = arith.constant 0 : i32
    return %c0_i32, %c0_i32_0 : i32, i32
  }
  func.func @transform_2(%arg0: i32) -> (i32, i32) {
    %c0_i32 = arith.constant 0 : i32
    %c0_i32_0 = arith.constant 0 : i32
    %c0_i32_1 = arith.constant 0 : i32
    return %c0_i32, %c0_i32_0 : i32, i32
  }
  func.func @transform_3(%arg0: i32) -> (i32, i32) {
    %c0_i32 = arith.constant 0 : i32
    %c0_i32_0 = arith.constant 0 : i32
    %c0_i32_1 = arith.constant 0 : i32
    return %c0_i32, %c0_i32_0 : i32, i32
  }
  func.func @transform_4(%arg0: i32) -> (i32, i32) {
    %c0_i32 = arith.constant 0 : i32
    %c0_i32_0 = arith.constant 0 : i32
    %c0_i32_1 = arith.constant 0 : i32
    return %c0_i32, %c0_i32_0 : i32, i32
  }
  func.func @transform_5(%arg0: i32) -> (i32, i32) {
    %c0_i32 = arith.constant 0 : i32
    %c0_i32_0 = arith.constant 0 : i32
    %c0_i32_1 = arith.constant 0 : i32
    return %c0_i32, %c0_i32_0 : i32, i32
  }
  func.func @transform_6(%arg0: i32) -> (i32, i32) {
    %c0_i32 = arith.constant 0 : i32
    %c0_i32_0 = arith.constant 0 : i32
    %c0_i32_1 = arith.constant 0 : i32
    return %c0_i32, %c0_i32_0 : i32, i32
  }
  func.func @transform_7(%arg0: i32) -> (i32, i32) {
    %c0_i32 = arith.constant 0 : i32
    %c0_i32_0 = arith.constant 0 : i32
    %c0_i32_1 = arith.constant 0 : i32
    return %c0_i32, %c0_i32_0 : i32, i32
  }
  func.func @transform_8(%arg0: i32) -> (i32, i32) {
    %c0_i32 = arith.constant 0 : i32
    %c0_i32_0 = arith.constant 0 : i32
    %c0_i32_1 = arith.constant 0 : i32
    return %c0_i32, %c0_i32_0 : i32, i32
  }
  func.func @transform_9(%arg0: i32) -> (i32, i32) {
    %c0_i32 = arith.constant 0 : i32
    %c0_i32_0 = arith.constant 0 : i32
    %c0_i32_1 = arith.constant 0 : i32
    return %c0_i32, %c0_i32_0 : i32, i32
  }
  func.func @transform_10(%arg0: i32) -> (i32, i32) {
    %c0_i32 = arith.constant 0 : i32
    %c0_i32_0 = arith.constant 0 : i32
    %c0_i32_1 = arith.constant 0 : i32
    return %c0_i32, %c0_i32_0 : i32, i32
  }
  func.func @transform_11(%arg0: i32) -> (i32, i32) {
    %c0_i32 = arith.constant 0 : i32
    %c0_i32_0 = arith.constant 0 : i32
    %c0_i32_1 = arith.constant 0 : i32
    return %c0_i32, %c0_i32_0 : i32, i32
  }
  func.func @transform_12(%arg0: i32) -> (i32, i32) {
    %c0_i32 = arith.constant 0 : i32
    %c0_i32_0 = arith.constant 0 : i32
    %c0_i32_1 = arith.constant 0 : i32
    return %c0_i32, %c0_i32_0 : i32, i32
  }
  func.func @transform_13(%arg0: i32) -> (i32, i32) {
    %c0_i32 = arith.constant 0 : i32
    %c0_i32_0 = arith.constant 0 : i32
    %c0_i32_1 = arith.constant 0 : i32
    return %c0_i32, %c0_i32_0 : i32, i32
  }
  func.func @transform_14(%arg0: i32) -> (i32, i32) {
    %c0_i32 = arith.constant 0 : i32
    %c0_i32_0 = arith.constant 0 : i32
    %c0_i32_1 = arith.constant 0 : i32
    return %c0_i32, %c0_i32_0 : i32, i32
  }
  func.func @transform_15(%arg0: i32) -> (i32, i32) {
    %c0_i32 = arith.constant 0 : i32
    %c0_i32_0 = arith.constant 0 : i32
    %c0_i32_1 = arith.constant 0 : i32
    return %c0_i32, %c0_i32_0 : i32, i32
  }
  func.func @transform_16(%arg0: i32) -> (i32, i32) {
    %c0_i32 = arith.constant 0 : i32
    %c0_i32_0 = arith.constant 0 : i32
    %c0_i32_1 = arith.constant 0 : i32
    return %c0_i32, %c0_i32_0 : i32, i32
  }
  func.func @transform_17(%arg0: i32) -> (i32, i32) {
    %c0_i32 = arith.constant 0 : i32
    %c0_i32_0 = arith.constant 0 : i32
    return %arg0, %c0_i32 : i32, i32
  }
  func.func @transform_18(%arg0: i32) -> (i32, i32) {
    %c0_i32 = arith.constant 0 : i32
    %c0_i32_0 = arith.constant 0 : i32
    return %arg0, %c0_i32 : i32, i32
  }
}

</mosaic_0001>

<llo_original>
// kernel: tpu_custom_call.1
$region0: #{tpu_custom_call.1}
  #allocation0 [shape = 'u32[]', space=smem, size = 0x4, offset = 0x4, fixed_abs, tag = 'smem constant byte address 0x4 - core index']
  #allocation1 [shape = 'u32[144,128]{1,0:T(1,128)}', space=vmem, size = 0x12000, scoped, tag = 'internal scratch']
  %s0 = inlined_call_operand.hbm [shape: bf16[128,896], index: 0, kind: input, shape index: {}]
  %s1 = inlined_call_operand.hbm [shape: bf16[896,512], index: 1, kind: input, shape index: {}]
  %s2 = inlined_call_operand.hbm [shape: bf16[512,256], index: 2, kind: input, shape index: {}]
  %s3 = inlined_call_operand.hbm [shape: bf16[256,128], index: 3, kind: input, shape index: {}]
  %s4 = inlined_call_operand.hbm [shape: bf16[128,128], index: 4, kind: input, shape index: {}]
  %s5 = inlined_call_operand.hbm [shape: bf16[128,128], index: 5, kind: input, shape index: {}]
  %s6 = inlined_call_operand.hbm [shape: bf16[128,256], index: 6, kind: input, shape index: {}]
  %s7 = inlined_call_operand.hbm [shape: bf16[256,512], index: 7, kind: input, shape index: {}]
  %s8 = inlined_call_operand.hbm [shape: bf16[512,896], index: 8, kind: input, shape index: {}]
  %s9 = inlined_call_operand.vmem [shape: bf16[1,512], index: 9, kind: input, shape index: {}]
  %s10 = inlined_call_operand.vmem [shape: bf16[1,256], index: 10, kind: input, shape index: {}]
  %s11 = inlined_call_operand.vmem [shape: bf16[1,128], index: 11, kind: input, shape index: {}]
  %s12 = inlined_call_operand.vmem [shape: bf16[1,128], index: 12, kind: input, shape index: {}]
  %s13 = inlined_call_operand.vmem [shape: bf16[1,128], index: 13, kind: input, shape index: {}]
  %s14 = inlined_call_operand.vmem [shape: bf16[1,256], index: 14, kind: input, shape index: {}]
  %s15 = inlined_call_operand.vmem [shape: bf16[1,512], index: 15, kind: input, shape index: {}]
  %s16 = inlined_call_operand.vmem [shape: bf16[1,896], index: 16, kind: input, shape index: {}]
  %s17 = inlined_call_operand.hbm [shape: bf16[128,128], index: 17, kind: output, shape index: {0}]
  %s18 = inlined_call_operand.hbm [shape: bf16[128,896], index: 18, kind: output, shape index: {1}]
  %19 = xla_tuple %s17, %s18
  %s20 = sld [smem:[#allocation0]]
  $region122: #{tpu_custom_call.1} parent=0
    _
  %s22 = ssub.s32 1, %s20
  %s23 = scalar_select 0, %s22, %s20
  $region1: #{tpu_custom_call.1} parent=0
    #allocation2 [shape = 'u8[229376]{0}', space=vmem, size = 0x38000, scoped, tag = 'input window, operand 0, single buffered']
    #allocation3 [shape = 's32[1]{0}', space=sflag, size = 0x4, scoped, tag = 'scoped memory for tpu_custom_call.1']
    #allocation4 [shape = 's32[1]{0}', space=sflag, size = 0x4, scoped, tag = 'scoped memory for tpu_custom_call.1']
    #allocation5 [shape = 'u8[917504]{0}', space=vmem, size = 0xe0000, scoped, tag = 'input window, operand 1, single buffered']
    #allocation6 [shape = 's32[1]{0}', space=sflag, size = 0x4, scoped, tag = 'scoped memory for tpu_custom_call.1']
    #allocation7 [shape = 'u8[262144]{0}', space=vmem, size = 0x40000, scoped, tag = 'input window, operand 2, single buffered']
    #allocation8 [shape = 'u8[65536]{0}', space=vmem, size = 0x10000, scoped, tag = 'input window, operand 3, single buffered']
    #allocation9 [shape = 's32[1]{0}', space=sflag, size = 0x4, scoped, tag = 'scoped memory for tpu_custom_call.1']
    #allocation10 [shape = 'u8[32768]{0}', space=vmem, size = 0x8000, scoped, tag = 'input window, operand 4, single buffered']
    #allocation11 [shape = 'u8[32768]{0}', space=vmem, size = 0x8000, scoped, tag = 'input window, operand 5, single buffered']
    #allocation12 [shape = 's32[1]{0}', space=sflag, size = 0x4, scoped, tag = 'scoped memory for tpu_custom_call.1']
    #allocation13 [shape = 'u8[65536]{0}', space=vmem, size = 0x10000, scoped, tag = 'input window, operand 6, single buffered']
    #allocation14 [shape = 'u8[262144]{0}', space=vmem, size = 0x40000, scoped, tag = 'input window, operand 7, single buffered']
    #allocation15 [shape = 's32[1]{0}', space=sflag, size = 0x4, scoped, tag = 'scoped memory for tpu_custom_call.1']
    #allocation16 [shape = 'u8[917504]{0}', space=vmem, size = 0xe0000, scoped, tag = 'input window, operand 8, single buffered']
    #allocation17 [shape = 'u8[32768]{0}', space=vmem, size = 0x8000, scoped, tag = 'output window, operand 0, single buffered']
    #allocation18 [shape = 'u8[229376]{0}', space=vmem, size = 0x38000, scoped, tag = 'output window, operand 1, single buffered']
    #allocation19 [shape = 's32[1]{0}', space=sflag, size = 0x4, scoped, tag = 'scoped memory for tpu_custom_call.1']
    %24 = vsyncpa [#allocation3], 0
    %25 = vsyncpa [#allocation6], 0
    %26 = vsyncpa [#allocation9], 0
    %27 = vsyncpa [#allocation12], 0
    %28 = vsyncpa [#allocation15], 0
    %29 = vsyncpa [#allocation4], 0
    %30 = vsyncpa [#allocation19], 0
    // Predicated region
    $region2: #{tpu_custom_call.1} parent=1 // pred_check
      _
    $region3: #{tpu_custom_call.1} parent=1 // pred_check_branch
      %32 = sbr.rel (0) target = $region5
    $region4: #{tpu_custom_call.1} parent=1 // pred_region
      %s34 = ssub.s32 7168, 7168
      %35 = vsyncadd [#allocation3], %s34
      %s36 = sshll.u32 [#allocation2], 4
      %s37 = int_to_ptr.vmem [resolvable:$true] %s36
      %42 = dma.hbm_to_vmem [thread:$0]  %s0, 7168, %s37, [#allocation3], 448, 448, 28
    $region5: #{tpu_custom_call.1} parent=1 // pred_fallthru
      _
    // Predicated region
    $region6: #{tpu_custom_call.1} parent=1 // pred_check
      _
    $region7: #{tpu_custom_call.1} parent=1 // pred_check_branch
      %44 = sbr.rel (0) target = $region9
    $region8: #{tpu_custom_call.1} parent=1 // pred_region
      %s46 = ssub.s32 28672, 28672
      %47 = vsyncadd [#allocation6], %s46
      %s48 = sshll.u32 [#allocation5], 4
      %s49 = int_to_ptr.vmem [resolvable:$true] %s48
      %54 = dma.hbm_to_vmem [thread:$0]  %s1, 28672, %s49, [#allocation6], 256, 256, 16
    $region9: #{tpu_custom_call.1} parent=1 // pred_fallthru
      _
    // Predicated region
    $region10: #{tpu_custom_call.1} parent=1 // pred_check
      _
    $region11: #{tpu_custom_call.1} parent=1 // pred_check_branch
      %56 = sbr.rel (0) target = $region13
    $region12: #{tpu_custom_call.1} parent=1 // pred_region
      %s58 = ssub.s32 8192, 8192
      %59 = vsyncadd [#allocation6], %s58
      %s60 = sshll.u32 [#allocation7], 4
      %s61 = int_to_ptr.vmem [resolvable:$true] %s60
      %66 = dma.hbm_to_vmem [thread:$0]  %s2, 8192, %s61, [#allocation6], 128, 128, 8
    $region13: #{tpu_custom_call.1} parent=1 // pred_fallthru
      _
    // Predicated region
    $region14: #{tpu_custom_call.1} parent=1 // pred_check
      _
    $region15: #{tpu_custom_call.1} parent=1 // pred_check_branch
      %68 = sbr.rel (0) target = $region17
    $region16: #{tpu_custom_call.1} parent=1 // pred_region
      %s70 = ssub.s32 2048, 2048
      %71 = vsyncadd [#allocation9], %s70
      %s72 = sshll.u32 [#allocation8], 4
      %s73 = int_to_ptr.vmem [resolvable:$true] %s72
      %78 = dma.hbm_to_vmem [thread:$0]  %s3, 2048, %s73, [#allocation9], 64, 64, 4
    $region17: #{tpu_custom_call.1} parent=1 // pred_fallthru
      _
    // Predicated region
    $region18: #{tpu_custom_call.1} parent=1 // pred_check
      _
    $region19: #{tpu_custom_call.1} parent=1 // pred_check_branch
      %80 = sbr.rel (0) target = $region21
    $region20: #{tpu_custom_call.1} parent=1 // pred_region
      %s82 = ssub.s32 1024, 1024
      %83 = vsyncadd [#allocation9], %s82
      %s84 = sshll.u32 [#allocation10], 4
      %s85 = int_to_ptr.vmem [resolvable:$true] %s84
      %90 = dma.hbm_to_vmem [thread:$0]  %s4, 1024, %s85, [#allocation9], 64, 64, 4
    $region21: #{tpu_custom_call.1} parent=1 // pred_fallthru
      _
    // Predicated region
    $region22: #{tpu_custom_call.1} parent=1 // pred_check
      _
    $region23: #{tpu_custom_call.1} parent=1 // pred_check_branch
      %92 = sbr.rel (0) target = $region25
    $region24: #{tpu_custom_call.1} parent=1 // pred_region
      %s94 = ssub.s32 1024, 1024
      %95 = vsyncadd [#allocation12], %s94
      %s96 = sshll.u32 [#allocation11], 4
      %s97 = int_to_ptr.vmem [resolvable:$true] %s96
      %102 = dma.hbm_to_vmem [thread:$0]  %s5, 1024, %s97, [#allocation12], 64, 64, 4
    $region25: #{tpu_custom_call.1} parent=1 // pred_fallthru
      _
    // Predicated region
    $region26: #{tpu_custom_call.1} parent=1 // pred_check
      _
    $region27: #{tpu_custom_call.1} parent=1 // pred_check_branch
      %104 = sbr.rel (0) target = $region29
    $region28: #{tpu_custom_call.1} parent=1 // pred_region
      %s106 = ssub.s32 2048, 2048
      %107 = vsyncadd [#allocation12], %s106
      %s108 = sshll.u32 [#allocation13], 4
      %s109 = int_to_ptr.vmem [resolvable:$true] %s108
      %114 = dma.hbm_to_vmem [thread:$0]  %s6, 2048, %s109, [#allocation12], 128, 128, 8
    $region29: #{tpu_custom_call.1} parent=1 // pred_fallthru
      _
    // Predicated region
    $region30: #{tpu_custom_call.1} parent=1 // pred_check
      _
    $region31: #{tpu_custom_call.1} parent=1 // pred_check_branch
      %116 = sbr.rel (0) target = $region33
    $region32: #{tpu_custom_call.1} parent=1 // pred_region
      %s118 = ssub.s32 8192, 8192
      %119 = vsyncadd [#allocation15], %s118
      %s120 = sshll.u32 [#allocation14], 4
      %s121 = int_to_ptr.vmem [resolvable:$true] %s120
      %126 = dma.hbm_to_vmem [thread:$0]  %s7, 8192, %s121, [#allocation15], 256, 256, 16
    $region33: #{tpu_custom_call.1} parent=1 // pred_fallthru
      _
    // Predicated region
    $region34: #{tpu_custom_call.1} parent=1 // pred_check
      _
    $region35: #{tpu_custom_call.1} parent=1 // pred_check_branch
      %128 = sbr.rel (0) target = $region37
    $region36: #{tpu_custom_call.1} parent=1 // pred_region
      %s130 = ssub.s32 28672, 28672
      %131 = vsyncadd [#allocation15], %s130
      %s132 = sshll.u32 [#allocation16], 4
      %s133 = int_to_ptr.vmem [resolvable:$true] %s132
      %138 = dma.hbm_to_vmem [thread:$0]  %s8, 28672, %s133, [#allocation15], 448, 448, 28
    $region37: #{tpu_custom_call.1} parent=1 // pred_fallthru
      _
    // Predicated region
    $region38: #{tpu_custom_call.1} parent=1 // pred_check
      _
    $region39: #{tpu_custom_call.1} parent=1 // pred_check_branch
      %140 = sbr.rel (0) target = $region41
    $region40: #{tpu_custom_call.1} parent=1 // pred_region
      _
    $region41: #{tpu_custom_call.1} parent=1 // pred_fallthru
      _
    // Predicated region
    $region42: #{tpu_custom_call.1} parent=1 // pred_check
      _
    $region43: #{tpu_custom_call.1} parent=1 // pred_check_branch
      %142 = sbr.rel (0) target = $region45
    $region44: #{tpu_custom_call.1} parent=1 // pred_region
      _
    $region45: #{tpu_custom_call.1} parent=1 // pred_fallthru
      _
    // Predicated region
    $region46: #{tpu_custom_call.1} parent=1 // pred_check
      _
    $region47: #{tpu_custom_call.1} parent=1 // pred_check_branch
      %144 = sbr.rel (0) target = $region49
    $region48: #{tpu_custom_call.1} parent=1 // pred_region
      _
    $region49: #{tpu_custom_call.1} parent=1 // pred_fallthru
      _
    // Predicated region
    $region50: #{tpu_custom_call.1} parent=1 // pred_check
      _
    $region51: #{tpu_custom_call.1} parent=1 // pred_check_branch
      %146 = sbr.rel (0) target = $region53
    $region52: #{tpu_custom_call.1} parent=1 // pred_region
      _
    $region53: #{tpu_custom_call.1} parent=1 // pred_fallthru
      _
    // Predicated region
    $region54: #{tpu_custom_call.1} parent=1 // pred_check
      _
    $region55: #{tpu_custom_call.1} parent=1 // pred_check_branch
      %148 = sbr.rel (0) target = $region57
    $region56: #{tpu_custom_call.1} parent=1 // pred_region
      _
    $region57: #{tpu_custom_call.1} parent=1 // pred_fallthru
      _
    // Predicated region
    $region58: #{tpu_custom_call.1} parent=1 // pred_check
      _
    $region59: #{tpu_custom_call.1} parent=1 // pred_check_branch
      %150 = sbr.rel (0) target = $region61
    $region60: #{tpu_custom_call.1} parent=1 // pred_region
      _
    $region61: #{tpu_custom_call.1} parent=1 // pred_fallthru
      _
    // Predicated region
    $region62: #{tpu_custom_call.1} parent=1 // pred_check
      _
    $region63: #{tpu_custom_call.1} parent=1 // pred_check_branch
      %152 = sbr.rel (0) target = $region65
    $region64: #{tpu_custom_call.1} parent=1 // pred_region
      _
    $region65: #{tpu_custom_call.1} parent=1 // pred_fallthru
      _
    // Predicated region
    $region66: #{tpu_custom_call.1} parent=1 // pred_check
      _
    $region67: #{tpu_custom_call.1} parent=1 // pred_check_branch
      %154 = sbr.rel (0) target = $region69
    $region68: #{tpu_custom_call.1} parent=1 // pred_region
      _
    $region69: #{tpu_custom_call.1} parent=1 // pred_fallthru
      _
    // Predicated region
    $region70: #{tpu_custom_call.1} parent=1 // pred_check
      _
    $region71: #{tpu_custom_call.1} parent=1 // pred_check_branch
      %156 = sbr.rel (0) target = $region73
    $region72: #{tpu_custom_call.1} parent=1 // pred_region
      %157 = dma.done [#allocation3], 7168
    $region73: #{tpu_custom_call.1} parent=1 // pred_fallthru
      _
    // Predicated region
    $region74: #{tpu_custom_call.1} parent=1 // pred_check
      _
    $region75: #{tpu_custom_call.1} parent=1 // pred_check_branch
      %159 = sbr.rel (0) target = $region77
    $region76: #{tpu_custom_call.1} parent=1 // pred_region
      %160 = dma.done [#allocation6], 28672
    $region77: #{tpu_custom_call.1} parent=1 // pred_fallthru
      _
    // Predicated region
    $region78: #{tpu_custom_call.1} parent=1 // pred_check
      _
    $region79: #{tpu_custom_call.1} parent=1 // pred_check_branch
      %162 = sbr.rel (0) target = $region81
    $region80: #{tpu_custom_call.1} parent=1 // pred_region
      %163 = dma.done [#allocation6], 8192
    $region81: #{tpu_custom_call.1} parent=1 // pred_fallthru
      _
    // Predicated region
    $region82: #{tpu_custom_call.1} parent=1 // pred_check
      _
    $region83: #{tpu_custom_call.1} parent=1 // pred_check_branch
      %165 = sbr.rel (0) target = $region85
    $region84: #{tpu_custom_call.1} parent=1 // pred_region
      %166 = dma.done [#allocation9], 2048
    $region85: #{tpu_custom_call.1} parent=1 // pred_fallthru
      _
    // Predicated region
    $region86: #{tpu_custom_call.1} parent=1 // pred_check
      _
    $region87: #{tpu_custom_call.1} parent=1 // pred_check_branch
      %168 = sbr.rel (0) target = $region89
    $region88: #{tpu_custom_call.1} parent=1 // pred_region
      %169 = dma.done [#allocation9], 1024
    $region89: #{tpu_custom_call.1} parent=1 // pred_fallthru
      _
    // Predicated region
    $region90: #{tpu_custom_call.1} parent=1 // pred_check
      _
    $region91: #{tpu_custom_call.1} parent=1 // pred_check_branch
      %171 = sbr.rel (0) target = $region93
    $region92: #{tpu_custom_call.1} parent=1 // pred_region
      %172 = dma.done [#allocation12], 1024
    $region93: #{tpu_custom_call.1} parent=1 // pred_fallthru
      _
    // Predicated region
    $region94: #{tpu_custom_call.1} parent=1 // pred_check
      _
    $region95: #{tpu_custom_call.1} parent=1 // pred_check_branch
      %174 = sbr.rel (0) target = $region97
    $region96: #{tpu_custom_call.1} parent=1 // pred_region
      %175 = dma.done [#allocation12], 2048
    $region97: #{tpu_custom_call.1} parent=1 // pred_fallthru
      _
    // Predicated region
    $region98: #{tpu_custom_call.1} parent=1 // pred_check
      _
    $region99: #{tpu_custom_call.1} parent=1 // pred_check_branch
      %177 = sbr.rel (0) target = $region101
    $region100: #{tpu_custom_call.1} parent=1 // pred_region
      %178 = dma.done [#allocation15], 8192
    $region101: #{tpu_custom_call.1} parent=1 // pred_fallthru
      _
    // Predicated region
    $region102: #{tpu_custom_call.1} parent=1 // pred_check
      _
    $region103: #{tpu_custom_call.1} parent=1 // pred_check_branch
      %180 = sbr.rel (0) target = $region105
    $region104: #{tpu_custom_call.1} parent=1 // pred_region
      %181 = dma.done [#allocation15], 28672
    $region105: #{tpu_custom_call.1} parent=1 // pred_fallthru
      _
    %v183 = vld [vmem:[#allocation2] sm:$0xff]
    %v184 = vld [vmem:[#allocation2 + $0x8] sm:$0xff]
    %v185 = vld [vmem:[#allocation2 + $0x10] sm:$0xff]
    %v186 = vld [vmem:[#allocation2 + $0x18] sm:$0xf]
    %v187 = vld [vmem:[#allocation2 + $0x1c] sm:$0xff]
    %v188 = vld [vmem:[#allocation2 + $0x24] sm:$0xff]
    %v189 = vld [vmem:[#allocation2 + $0x2c] sm:$0xff]
    %v190 = vld [vmem:[#allocation2 + $0x34] sm:$0xf]
    %v191 = vld [vmem:[#allocation2 + $0x38] sm:$0xff]
    %v192 = vld [vmem:[#allocation2 + $0x40] sm:$0xff]
    %v193 = vld [vmem:[#allocation2 + $0x48] sm:$0xff]
    %v194 = vld [vmem:[#allocation2 + $0x50] sm:$0xf]
    %v195 = vld [vmem:[#allocation2 + $0x54] sm:$0xff]
    %v196 = vld [vmem:[#allocation2 + $0x5c] sm:$0xff]
    %v197 = vld [vmem:[#allocation2 + $0x64] sm:$0xff]
    %v198 = vld [vmem:[#allocation2 + $0x6c] sm:$0xf]
    %v199 = vld [vmem:[#allocation2 + $0x70] sm:$0xff]
    %v200 = vld [vmem:[#allocation2 + $0x78] sm:$0xff]
    %v201 = vld [vmem:[#allocation2 + $0x80] sm:$0xff]
    %v202 = vld [vmem:[#allocation2 + $0x88] sm:$0xf]
    %v203 = vld [vmem:[#allocation2 + $0x8c] sm:$0xff]
    %v204 = vld [vmem:[#allocation2 + $0x94] sm:$0xff]
    %v205 = vld [vmem:[#allocation2 + $0x9c] sm:$0xff]
    %v206 = vld [vmem:[#allocation2 + $0xa4] sm:$0xf]
    %v207 = vld [vmem:[#allocation2 + $0xa8] sm:$0xff]
    %v208 = vld [vmem:[#allocation2 + $0xb0] sm:$0xff]
    %v209 = vld [vmem:[#allocation2 + $0xb8] sm:$0xff]
    %v210 = vld [vmem:[#allocation2 + $0xc0] sm:$0xf]
    %v211 = vld [vmem:[#allocation2 + $0xc4] sm:$0xff]
    %v212 = vld [vmem:[#allocation2 + $0xcc] sm:$0xff]
    %v213 = vld [vmem:[#allocation2 + $0xd4] sm:$0xff]
    %v214 = vld [vmem:[#allocation2 + $0xdc] sm:$0xf]
    %v215 = vld [vmem:[#allocation2 + $0xe0] sm:$0xff]
    %v216 = vld [vmem:[#allocation2 + $0xe8] sm:$0xff]
    %v217 = vld [vmem:[#allocation2 + $0xf0] sm:$0xff]
    %v218 = vld [vmem:[#allocation2 + $0xf8] sm:$0xf]
    %v219 = vld [vmem:[#allocation2 + $0xfc] sm:$0xff]
    %v220 = vld [vmem:[#allocation2 + $0x104] sm:$0xff]
    %v221 = vld [vmem:[#allocation2 + $0x10c] sm:$0xff]
    %v222 = vld [vmem:[#allocation2 + $0x114] sm:$0xf]
    %v223 = vld [vmem:[#allocation2 + $0x118] sm:$0xff]
    %v224 = vld [vmem:[#allocation2 + $0x120] sm:$0xff]
    %v225 = vld [vmem:[#allocation2 + $0x128] sm:$0xff]
    %v226 = vld [vmem:[#allocation2 + $0x130] sm:$0xf]
    %v227 = vld [vmem:[#allocation2 + $0x134] sm:$0xff]
    %v228 = vld [vmem:[#allocation2 + $0x13c] sm:$0xff]
    %v229 = vld [vmem:[#allocation2 + $0x144] sm:$0xff]
    %v230 = vld [vmem:[#allocation2 + $0x14c] sm:$0xf]
    %v231 = vld [vmem:[#allocation2 + $0x150] sm:$0xff]
    %v232 = vld [vmem:[#allocation2 + $0x158] sm:$0xff]
    %v233 = vld [vmem:[#allocation2 + $0x160] sm:$0xff]
    %v234 = vld [vmem:[#allocation2 + $0x168] sm:$0xf]
    %v235 = vld [vmem:[#allocation2 + $0x16c] sm:$0xff]
    %v236 = vld [vmem:[#allocation2 + $0x174] sm:$0xff]
    %v237 = vld [vmem:[#allocation2 + $0x17c] sm:$0xff]
    %v238 = vld [vmem:[#allocation2 + $0x184] sm:$0xf]
    %v239 = vld [vmem:[#allocation2 + $0x188] sm:$0xff]
    %v240 = vld [vmem:[#allocation2 + $0x190] sm:$0xff]
    %v241 = vld [vmem:[#allocation2 + $0x198] sm:$0xff]
    %v242 = vld [vmem:[#allocation2 + $0x1a0] sm:$0xf]
    %v243 = vld [vmem:[#allocation2 + $0x1a4] sm:$0xff]
    %v244 = vld [vmem:[#allocation2 + $0x1ac] sm:$0xff]
    %v245 = vld [vmem:[#allocation2 + $0x1b4] sm:$0xff]
    %v246 = vld [vmem:[#allocation2 + $0x1bc] sm:$0xf]
    %v247 = vld [vmem:[#allocation5] sm:$0xff]
    %v248 = vld [vmem:[#allocation5 + $0x8] sm:$0xff]
    %v249 = vld [vmem:[#allocation5 + $0x10] sm:$0xff]
    %v250 = vld [vmem:[#allocation5 + $0x18] sm:$0xff]
    %v251 = vld [vmem:[#allocation5 + $0x20] sm:$0xff]
    %v252 = vld [vmem:[#allocation5 + $0x28] sm:$0xff]
    %v253 = vld [vmem:[#allocation5 + $0x30] sm:$0xff]
    %v254 = vld [vmem:[#allocation5 + $0x38] sm:$0xff]
    %v255 = vld [vmem:[#allocation5 + $0x40] sm:$0xff]
    %v256 = vld [vmem:[#allocation5 + $0x48] sm:$0xff]
    %v257 = vld [vmem:[#allocation5 + $0x50] sm:$0xff]
    %v258 = vld [vmem:[#allocation5 + $0x58] sm:$0xff]
    %v259 = vld [vmem:[#allocation5 + $0x60] sm:$0xff]
    %v260 = vld [vmem:[#allocation5 + $0x68] sm:$0xff]
    %v261 = vld [vmem:[#allocation5 + $0x70] sm:$0xff]
    %v262 = vld [vmem:[#allocation5 + $0x78] sm:$0xff]
    %v263 = vld [vmem:[#allocation5 + $0x80] sm:$0xff]
    %v264 = vld [vmem:[#allocation5 + $0x88] sm:$0xff]
    %v265 = vld [vmem:[#allocation5 + $0x90] sm:$0xff]
    %v266 = vld [vmem:[#allocation5 + $0x98] sm:$0xff]
    %v267 = vld [vmem:[#allocation5 + $0xa0] sm:$0xff]
    %v268 = vld [vmem:[#allocation5 + $0xa8] sm:$0xff]
    %v269 = vld [vmem:[#allocation5 + $0xb0] sm:$0xff]
    %v270 = vld [vmem:[#allocation5 + $0xb8] sm:$0xff]
    %v271 = vld [vmem:[#allocation5 + $0xc0] sm:$0xff]
    %v272 = vld [vmem:[#allocation5 + $0xc8] sm:$0xff]
    %v273 = vld [vmem:[#allocation5 + $0xd0] sm:$0xff]
    %v274 = vld [vmem:[#allocation5 + $0xd8] sm:$0xff]
    %v275 = vld [vmem:[#allocation5 + $0xe0] sm:$0xff]
    %v276 = vld [vmem:[#allocation5 + $0xe8] sm:$0xff]
    %v277 = vld [vmem:[#allocation5 + $0xf0] sm:$0xff]
    %v278 = vld [vmem:[#allocation5 + $0xf8] sm:$0xff]
    %v279 = vld [vmem:[#allocation5 + $0x100] sm:$0xff]
    %v280 = vld [vmem:[#allocation5 + $0x108] sm:$0xff]
    %v281 = vld [vmem:[#allocation5 + $0x110] sm:$0xff]
    %v282 = vld [vmem:[#allocation5 + $0x118] sm:$0xff]
    %v283 = vld [vmem:[#allocation5 + $0x120] sm:$0xff]
    %v284 = vld [vmem:[#allocation5 + $0x128] sm:$0xff]
    %v285 = vld [vmem:[#allocation5 + $0x130] sm:$0xff]
    %v286 = vld [vmem:[#allocation5 + $0x138] sm:$0xff]
    %v287 = vld [vmem:[#allocation5 + $0x140] sm:$0xff]
    %v288 = vld [vmem:[#allocation5 + $0x148] sm:$0xff]
    %v289 = vld [vmem:[#allocation5 + $0x150] sm:$0xff]
    %v290 = vld [vmem:[#allocation5 + $0x158] sm:$0xff]
    %v291 = vld [vmem:[#allocation5 + $0x160] sm:$0xff]
    %v292 = vld [vmem:[#allocation5 + $0x168] sm:$0xff]
    %v293 = vld [vmem:[#allocation5 + $0x170] sm:$0xff]
    %v294 = vld [vmem:[#allocation5 + $0x178] sm:$0xff]
    %v295 = vld [vmem:[#allocation5 + $0x180] sm:$0xff]
    %v296 = vld [vmem:[#allocation5 + $0x188] sm:$0xff]
    %v297 = vld [vmem:[#allocation5 + $0x190] sm:$0xff]
    %v298 = vld [vmem:[#allocation5 + $0x198] sm:$0xff]
    %v299 = vld [vmem:[#allocation5 + $0x1a0] sm:$0xff]
    %v300 = vld [vmem:[#allocation5 + $0x1a8] sm:$0xff]
    %v301 = vld [vmem:[#allocation5 + $0x1b0] sm:$0xff]
    %v302 = vld [vmem:[#allocation5 + $0x1b8] sm:$0xff]
    %v303 = vld [vmem:[#allocation5 + $0x1c0] sm:$0xff]
    %v304 = vld [vmem:[#allocation5 + $0x1c8] sm:$0xff]
    %v305 = vld [vmem:[#allocation5 + $0x1d0] sm:$0xff]
    %v306 = vld [vmem:[#allocation5 + $0x1d8] sm:$0xff]
    %v307 = vld [vmem:[#allocation5 + $0x1e0] sm:$0xff]
    %v308 = vld [vmem:[#allocation5 + $0x1e8] sm:$0xff]
    %v309 = vld [vmem:[#allocation5 + $0x1f0] sm:$0xff]
    %v310 = vld [vmem:[#allocation5 + $0x1f8] sm:$0xff]
    %v311 = vld [vmem:[#allocation5 + $0x200] sm:$0xff]
    %v312 = vld [vmem:[#allocation5 + $0x208] sm:$0xff]
    %v313 = vld [vmem:[#allocation5 + $0x210] sm:$0xff]
    %v314 = vld [vmem:[#allocation5 + $0x218] sm:$0xff]
    %v315 = vld [vmem:[#allocation5 + $0x220] sm:$0xff]
    %v316 = vld [vmem:[#allocation5 + $0x228] sm:$0xff]
    %v317 = vld [vmem:[#allocation5 + $0x230] sm:$0xff]
    %v318 = vld [vmem:[#allocation5 + $0x238] sm:$0xff]
    %v319 = vld [vmem:[#allocation5 + $0x240] sm:$0xff]
    %v320 = vld [vmem:[#allocation5 + $0x248] sm:$0xff]
    %v321 = vld [vmem:[#allocation5 + $0x250] sm:$0xff]
    %v322 = vld [vmem:[#allocation5 + $0x258] sm:$0xff]
    %v323 = vld [vmem:[#allocation5 + $0x260] sm:$0xff]
    %v324 = vld [vmem:[#allocation5 + $0x268] sm:$0xff]
    %v325 = vld [vmem:[#allocation5 + $0x270] sm:$0xff]
    %v326 = vld [vmem:[#allocation5 + $0x278] sm:$0xff]
    %v327 = vld [vmem:[#allocation5 + $0x280] sm:$0xff]
    %v328 = vld [vmem:[#allocation5 + $0x288] sm:$0xff]
    %v329 = vld [vmem:[#allocation5 + $0x290] sm:$0xff]
    %v330 = vld [vmem:[#allocation5 + $0x298] sm:$0xff]
    %v331 = vld [vmem:[#allocation5 + $0x2a0] sm:$0xff]
    %v332 = vld [vmem:[#allocation5 + $0x2a8] sm:$0xff]
    %v333 = vld [vmem:[#allocation5 + $0x2b0] sm:$0xff]
    %v334 = vld [vmem:[#allocation5 + $0x2b8] sm:$0xff]
    %v335 = vld [vmem:[#allocation5 + $0x2c0] sm:$0xff]
    %v336 = vld [vmem:[#allocation5 + $0x2c8] sm:$0xff]
    %v337 = vld [vmem:[#allocation5 + $0x2d0] sm:$0xff]
    %v338 = vld [vmem:[#allocation5 + $0x2d8] sm:$0xff]
    %v339 = vld [vmem:[#allocation5 + $0x2e0] sm:$0xff]
    %v340 = vld [vmem:[#allocation5 + $0x2e8] sm:$0xff]
    %v341 = vld [vmem:[#allocation5 + $0x2f0] sm:$0xff]
    %v342 = vld [vmem:[#allocation5 + $0x2f8] sm:$0xff]
    %v343 = vld [vmem:[#allocation5 + $0x300] sm:$0xff]
    %v344 = vld [vmem:[#allocation5 + $0x308] sm:$0xff]
    %v345 = vld [vmem:[#allocation5 + $0x310] sm:$0xff]
    %v346 = vld [vmem:[#allocation5 + $0x318] sm:$0xff]
    %v347 = vld [vmem:[#allocation5 + $0x320] sm:$0xff]
    %v348 = vld [vmem:[#allocation5 + $0x328] sm:$0xff]
    %v349 = vld [vmem:[#allocation5 + $0x330] sm:$0xff]
    %v350 = vld [vmem:[#allocation5 + $0x338] sm:$0xff]
    %v351 = vld [vmem:[#allocation5 + $0x340] sm:$0xff]
    %v352 = vld [vmem:[#allocation5 + $0x348] sm:$0xff]
    %v353 = vld [vmem:[#allocation5 + $0x350] sm:$0xff]
    %v354 = vld [vmem:[#allocation5 + $0x358] sm:$0xff]
    %v355 = vld [vmem:[#allocation5 + $0x360] sm:$0xff]
    %v356 = vld [vmem:[#allocation5 + $0x368] sm:$0xff]
    %v357 = vld [vmem:[#allocation5 + $0x370] sm:$0xff]
    %v358 = vld [vmem:[#allocation5 + $0x378] sm:$0xff]
    %v359 = vld [vmem:[#allocation5 + $0x380] sm:$0xff]
    %v360 = vld [vmem:[#allocation5 + $0x388] sm:$0xff]
    %v361 = vld [vmem:[#allocation5 + $0x390] sm:$0xff]
    %v362 = vld [vmem:[#allocation5 + $0x398] sm:$0xff]
    %v363 = vld [vmem:[#allocation5 + $0x3a0] sm:$0xff]
    %v364 = vld [vmem:[#allocation5 + $0x3a8] sm:$0xff]
    %v365 = vld [vmem:[#allocation5 + $0x3b0] sm:$0xff]
    %v366 = vld [vmem:[#allocation5 + $0x3b8] sm:$0xff]
    %v367 = vld [vmem:[#allocation5 + $0x3c0] sm:$0xff]
    %v368 = vld [vmem:[#allocation5 + $0x3c8] sm:$0xff]
    %v369 = vld [vmem:[#allocation5 + $0x3d0] sm:$0xff]
    %v370 = vld [vmem:[#allocation5 + $0x3d8] sm:$0xff]
    %v371 = vld [vmem:[#allocation5 + $0x3e0] sm:$0xff]
    %v372 = vld [vmem:[#allocation5 + $0x3e8] sm:$0xff]
    %v373 = vld [vmem:[#allocation5 + $0x3f0] sm:$0xff]
    %v374 = vld [vmem:[#allocation5 + $0x3f8] sm:$0xff]
    %v375 = vld [vmem:[#allocation5 + $0x400] sm:$0xff]
    %v376 = vld [vmem:[#allocation5 + $0x408] sm:$0xff]
    %v377 = vld [vmem:[#allocation5 + $0x410] sm:$0xff]
    %v378 = vld [vmem:[#allocation5 + $0x418] sm:$0xff]
    %v379 = vld [vmem:[#allocation5 + $0x420] sm:$0xff]
    %v380 = vld [vmem:[#allocation5 + $0x428] sm:$0xff]
    %v381 = vld [vmem:[#allocation5 + $0x430] sm:$0xff]
    %v382 = vld [vmem:[#allocation5 + $0x438] sm:$0xff]
    %v383 = vld [vmem:[#allocation5 + $0x440] sm:$0xff]
    %v384 = vld [vmem:[#allocation5 + $0x448] sm:$0xff]
    %v385 = vld [vmem:[#allocation5 + $0x450] sm:$0xff]
    %v386 = vld [vmem:[#allocation5 + $0x458] sm:$0xff]
    %v387 = vld [vmem:[#allocation5 + $0x460] sm:$0xff]
    %v388 = vld [vmem:[#allocation5 + $0x468] sm:$0xff]
    %v389 = vld [vmem:[#allocation5 + $0x470] sm:$0xff]
    %v390 = vld [vmem:[#allocation5 + $0x478] sm:$0xff]
    %v391 = vld [vmem:[#allocation5 + $0x480] sm:$0xff]
    %v392 = vld [vmem:[#allocation5 + $0x488] sm:$0xff]
    %v393 = vld [vmem:[#allocation5 + $0x490] sm:$0xff]
    %v394 = vld [vmem:[#allocation5 + $0x498] sm:$0xff]
    %v395 = vld [vmem:[#allocation5 + $0x4a0] sm:$0xff]
    %v396 = vld [vmem:[#allocation5 + $0x4a8] sm:$0xff]
    %v397 = vld [vmem:[#allocation5 + $0x4b0] sm:$0xff]
    %v398 = vld [vmem:[#allocation5 + $0x4b8] sm:$0xff]
    %v399 = vld [vmem:[#allocation5 + $0x4c0] sm:$0xff]
    %v400 = vld [vmem:[#allocation5 + $0x4c8] sm:$0xff]
    %v401 = vld [vmem:[#allocation5 + $0x4d0] sm:$0xff]
    %v402 = vld [vmem:[#allocation5 + $0x4d8] sm:$0xff]
    %v403 = vld [vmem:[#allocation5 + $0x4e0] sm:$0xff]
    %v404 = vld [vmem:[#allocation5 + $0x4e8] sm:$0xff]
    %v405 = vld [vmem:[#allocation5 + $0x4f0] sm:$0xff]
    %v406 = vld [vmem:[#allocation5 + $0x4f8] sm:$0xff]
    %v407 = vld [vmem:[#allocation5 + $0x500] sm:$0xff]
    %v408 = vld [vmem:[#allocation5 + $0x508] sm:$0xff]
    %v409 = vld [vmem:[#allocation5 + $0x510] sm:$0xff]
    %v410 = vld [vmem:[#allocation5 + $0x518] sm:$0xff]
    %v411 = vld [vmem:[#allocation5 + $0x520] sm:$0xff]
    %v412 = vld [vmem:[#allocation5 + $0x528] sm:$0xff]
    %v413 = vld [vmem:[#allocation5 + $0x530] sm:$0xff]
    %v414 = vld [vmem:[#allocation5 + $0x538] sm:$0xff]
    %v415 = vld [vmem:[#allocation5 + $0x540] sm:$0xff]
    %v416 = vld [vmem:[#allocation5 + $0x548] sm:$0xff]
    %v417 = vld [vmem:[#allocation5 + $0x550] sm:$0xff]
    %v418 = vld [vmem:[#allocation5 + $0x558] sm:$0xff]
    %v419 = vld [vmem:[#allocation5 + $0x560] sm:$0xff]
    %v420 = vld [vmem:[#allocation5 + $0x568] sm:$0xff]
    %v421 = vld [vmem:[#allocation5 + $0x570] sm:$0xff]
    %v422 = vld [vmem:[#allocation5 + $0x578] sm:$0xff]
    %v423 = vld [vmem:[#allocation5 + $0x580] sm:$0xff]
    %v424 = vld [vmem:[#allocation5 + $0x588] sm:$0xff]
    %v425 = vld [vmem:[#allocation5 + $0x590] sm:$0xff]
    %v426 = vld [vmem:[#allocation5 + $0x598] sm:$0xff]
    %v427 = vld [vmem:[#allocation5 + $0x5a0] sm:$0xff]
    %v428 = vld [vmem:[#allocation5 + $0x5a8] sm:$0xff]
    %v429 = vld [vmem:[#allocation5 + $0x5b0] sm:$0xff]
    %v430 = vld [vmem:[#allocation5 + $0x5b8] sm:$0xff]
    %v431 = vld [vmem:[#allocation5 + $0x5c0] sm:$0xff]
    %v432 = vld [vmem:[#allocation5 + $0x5c8] sm:$0xff]
    %v433 = vld [vmem:[#allocation5 + $0x5d0] sm:$0xff]
    %v434 = vld [vmem:[#allocation5 + $0x5d8] sm:$0xff]
    %v435 = vld [vmem:[#allocation5 + $0x5e0] sm:$0xff]
    %v436 = vld [vmem:[#allocation5 + $0x5e8] sm:$0xff]
    %v437 = vld [vmem:[#allocation5 + $0x5f0] sm:$0xff]
    %v438 = vld [vmem:[#allocation5 + $0x5f8] sm:$0xff]
    %v439 = vld [vmem:[#allocation5 + $0x600] sm:$0xff]
    %v440 = vld [vmem:[#allocation5 + $0x608] sm:$0xff]
    %v441 = vld [vmem:[#allocation5 + $0x610] sm:$0xff]
    %v442 = vld [vmem:[#allocation5 + $0x618] sm:$0xff]
    %v443 = vld [vmem:[#allocation5 + $0x620] sm:$0xff]
    %v444 = vld [vmem:[#allocation5 + $0x628] sm:$0xff]
    %v445 = vld [vmem:[#allocation5 + $0x630] sm:$0xff]
    %v446 = vld [vmem:[#allocation5 + $0x638] sm:$0xff]
    %v447 = vld [vmem:[#allocation5 + $0x640] sm:$0xff]
    %v448 = vld [vmem:[#allocation5 + $0x648] sm:$0xff]
    %v449 = vld [vmem:[#allocation5 + $0x650] sm:$0xff]
    %v450 = vld [vmem:[#allocation5 + $0x658] sm:$0xff]
    %v451 = vld [vmem:[#allocation5 + $0x660] sm:$0xff]
    %v452 = vld [vmem:[#allocation5 + $0x668] sm:$0xff]
    %v453 = vld [vmem:[#allocation5 + $0x670] sm:$0xff]
    %v454 = vld [vmem:[#allocation5 + $0x678] sm:$0xff]
    %v455 = vld [vmem:[#allocation5 + $0x680] sm:$0xff]
    %v456 = vld [vmem:[#allocation5 + $0x688] sm:$0xff]
    %v457 = vld [vmem:[#allocation5 + $0x690] sm:$0xff]
    %v458 = vld [vmem:[#allocation5 + $0x698] sm:$0xff]
    %v459 = vld [vmem:[#allocation5 + $0x6a0] sm:$0xff]
    %v460 = vld [vmem:[#allocation5 + $0x6a8] sm:$0xff]
    %v461 = vld [vmem:[#allocation5 + $0x6b0] sm:$0xff]
    %v462 = vld [vmem:[#allocation5 + $0x6b8] sm:$0xff]
    %v463 = vld [vmem:[#allocation5 + $0x6c0] sm:$0xff]
    %v464 = vld [vmem:[#allocation5 + $0x6c8] sm:$0xff]
    %v465 = vld [vmem:[#allocation5 + $0x6d0] sm:$0xff]
    %v466 = vld [vmem:[#allocation5 + $0x6d8] sm:$0xff]
    %v467 = vld [vmem:[#allocation5 + $0x6e0] sm:$0xff]
    %v468 = vld [vmem:[#allocation5 + $0x6e8] sm:$0xff]
    %v469 = vld [vmem:[#allocation5 + $0x6f0] sm:$0xff]
    %v470 = vld [vmem:[#allocation5 + $0x6f8] sm:$0xff]
    %v535 = vunpack.c.l.b16 %v183
    %v536 = vunpack.c.h.b16 %v183
    %v537 = vunpack.c.l.b16 %v184
    %v538 = vunpack.c.h.b16 %v184
    %v539 = vunpack.c.l.b16 %v185
    %v540 = vunpack.c.h.b16 %v185
    %v541 = vunpack.c.l.b16 %v186
    %v542 = vunpack.c.l.b16 %v187
    %v543 = vunpack.c.h.b16 %v187
    %v544 = vunpack.c.l.b16 %v188
    %v545 = vunpack.c.h.b16 %v188
    %v546 = vunpack.c.l.b16 %v189
    %v547 = vunpack.c.h.b16 %v189
    %v548 = vunpack.c.l.b16 %v190
    %v549 = vunpack.c.l.b16 %v191
    %v550 = vunpack.c.h.b16 %v191
    %v551 = vunpack.c.l.b16 %v192
    %v552 = vunpack.c.h.b16 %v192
    %v553 = vunpack.c.l.b16 %v193
    %v554 = vunpack.c.h.b16 %v193
    %v555 = vunpack.c.l.b16 %v194
    %v556 = vunpack.c.l.b16 %v195
    %v557 = vunpack.c.h.b16 %v195
    %v558 = vunpack.c.l.b16 %v196
    %v559 = vunpack.c.h.b16 %v196
    %v560 = vunpack.c.l.b16 %v197
    %v561 = vunpack.c.h.b16 %v197
    %v562 = vunpack.c.l.b16 %v198
    %v563 = vunpack.c.l.b16 %v199
    %v564 = vunpack.c.h.b16 %v199
    %v565 = vunpack.c.l.b16 %v200
    %v566 = vunpack.c.h.b16 %v200
    %v567 = vunpack.c.l.b16 %v201
    %v568 = vunpack.c.h.b16 %v201
    %v569 = vunpack.c.l.b16 %v202
    %v570 = vunpack.c.l.b16 %v203
    %v571 = vunpack.c.h.b16 %v203
    %v572 = vunpack.c.l.b16 %v204
    %v573 = vunpack.c.h.b16 %v204
    %v574 = vunpack.c.l.b16 %v205
    %v575 = vunpack.c.h.b16 %v205
    %v576 = vunpack.c.l.b16 %v206
    %v577 = vunpack.c.l.b16 %v207
    %v578 = vunpack.c.h.b16 %v207
    %v579 = vunpack.c.l.b16 %v208
    %v580 = vunpack.c.h.b16 %v208
    %v581 = vunpack.c.l.b16 %v209
    %v582 = vunpack.c.h.b16 %v209
    %v583 = vunpack.c.l.b16 %v210
    %v584 = vunpack.c.l.b16 %v211
    %v585 = vunpack.c.h.b16 %v211
    %v586 = vunpack.c.l.b16 %v212
    %v587 = vunpack.c.h.b16 %v212
    %v588 = vunpack.c.l.b16 %v213
    %v589 = vunpack.c.h.b16 %v213
    %v590 = vunpack.c.l.b16 %v214
    %v591 = vunpack.c.l.b16 %v215
    %v592 = vunpack.c.h.b16 %v215
    %v593 = vunpack.c.l.b16 %v216
    %v594 = vunpack.c.h.b16 %v216
    %v595 = vunpack.c.l.b16 %v217
    %v596 = vunpack.c.h.b16 %v217
    %v597 = vunpack.c.l.b16 %v218
    %v598 = vunpack.c.l.b16 %v219
    %v599 = vunpack.c.h.b16 %v219
    %v600 = vunpack.c.l.b16 %v220
    %v601 = vunpack.c.h.b16 %v220
    %v602 = vunpack.c.l.b16 %v221
    %v603 = vunpack.c.h.b16 %v221
    %v604 = vunpack.c.l.b16 %v222
    %v605 = vunpack.c.l.b16 %v223
    %v606 = vunpack.c.h.b16 %v223
    %v607 = vunpack.c.l.b16 %v224
    %v608 = vunpack.c.h.b16 %v224
    %v609 = vunpack.c.l.b16 %v225
    %v610 = vunpack.c.h.b16 %v225
    %v611 = vunpack.c.l.b16 %v226
    %v612 = vunpack.c.l.b16 %v227
    %v613 = vunpack.c.h.b16 %v227
    %v614 = vunpack.c.l.b16 %v228
    %v615 = vunpack.c.h.b16 %v228
    %v616 = vunpack.c.l.b16 %v229
    %v617 = vunpack.c.h.b16 %v229
    %v618 = vunpack.c.l.b16 %v230
    %v619 = vunpack.c.l.b16 %v231
    %v620 = vunpack.c.h.b16 %v231
    %v621 = vunpack.c.l.b16 %v232
    %v622 = vunpack.c.h.b16 %v232
    %v623 = vunpack.c.l.b16 %v233
    %v624 = vunpack.c.h.b16 %v233
    %v625 = vunpack.c.l.b16 %v234
    %v626 = vunpack.c.l.b16 %v235
    %v627 = vunpack.c.h.b16 %v235
    %v628 = vunpack.c.l.b16 %v236
    %v629 = vunpack.c.h.b16 %v236
    %v630 = vunpack.c.l.b16 %v237
    %v631 = vunpack.c.h.b16 %v237
    %v632 = vunpack.c.l.b16 %v238
    %v633 = vunpack.c.l.b16 %v239
    %v634 = vunpack.c.h.b16 %v239
    %v635 = vunpack.c.l.b16 %v240
    %v636 = vunpack.c.h.b16 %v240
    %v637 = vunpack.c.l.b16 %v241
    %v638 = vunpack.c.h.b16 %v241
    %v639 = vunpack.c.l.b16 %v242
    %v640 = vunpack.c.l.b16 %v243
    %v641 = vunpack.c.h.b16 %v243
    %v642 = vunpack.c.l.b16 %v244
    %v643 = vunpack.c.h.b16 %v244
    %v644 = vunpack.c.l.b16 %v245
    %v645 = vunpack.c.h.b16 %v245
    %v646 = vunpack.c.l.b16 %v246
    %v647 = vpack.c.b16 %v542, %v535
    %v648 = vpack.c.b16 %v543, %v536
    %v649 = vpack.c.b16 %v544, %v537
    %v650 = vpack.c.b16 %v545, %v538
    %v651 = vpack.c.b16 %v546, %v539
    %v652 = vpack.c.b16 %v547, %v540
    %v653 = vpack.c.b16 %v548, %v541
    %v654 = vpack.c.b16 %v556, %v549
    %v655 = vpack.c.b16 %v557, %v550
    %v656 = vpack.c.b16 %v558, %v551
    %v657 = vpack.c.b16 %v559, %v552
    %v658 = vpack.c.b16 %v560, %v553
    %v659 = vpack.c.b16 %v561, %v554
    %v660 = vpack.c.b16 %v562, %v555
    %v661 = vpack.c.b16 %v570, %v563
    %v662 = vpack.c.b16 %v571, %v564
    %v663 = vpack.c.b16 %v572, %v565
    %v664 = vpack.c.b16 %v573, %v566
    %v665 = vpack.c.b16 %v574, %v567
    %v666 = vpack.c.b16 %v575, %v568
    %v667 = vpack.c.b16 %v576, %v569
    %v668 = vpack.c.b16 %v584, %v577
    %v669 = vpack.c.b16 %v585, %v578
    %v670 = vpack.c.b16 %v586, %v579
    %v671 = vpack.c.b16 %v587, %v580
    %v672 = vpack.c.b16 %v588, %v581
    %v673 = vpack.c.b16 %v589, %v582
    %v674 = vpack.c.b16 %v590, %v583
    %v675 = vpack.c.b16 %v598, %v591
    %v676 = vpack.c.b16 %v599, %v592
    %v677 = vpack.c.b16 %v600, %v593
    %v678 = vpack.c.b16 %v601, %v594
    %v679 = vpack.c.b16 %v602, %v595
    %v680 = vpack.c.b16 %v603, %v596
    %v681 = vpack.c.b16 %v604, %v597
    %v682 = vpack.c.b16 %v612, %v605
    %v683 = vpack.c.b16 %v613, %v606
    %v684 = vpack.c.b16 %v614, %v607
    %v685 = vpack.c.b16 %v615, %v608
    %v686 = vpack.c.b16 %v616, %v609
    %v687 = vpack.c.b16 %v617, %v610
    %v688 = vpack.c.b16 %v618, %v611
    %v689 = vpack.c.b16 %v626, %v619
    %v690 = vpack.c.b16 %v627, %v620
    %v691 = vpack.c.b16 %v628, %v621
    %v692 = vpack.c.b16 %v629, %v622
    %v693 = vpack.c.b16 %v630, %v623
    %v694 = vpack.c.b16 %v631, %v624
    %v695 = vpack.c.b16 %v632, %v625
    %v696 = vpack.c.b16 %v640, %v633
    %v697 = vpack.c.b16 %v641, %v634
    %v698 = vpack.c.b16 %v642, %v635
    %v699 = vpack.c.b16 %v643, %v636
    %v700 = vpack.c.b16 %v644, %v637
    %v701 = vpack.c.b16 %v645, %v638
    %v702 = vpack.c.b16 %v646, %v639
    %v983 = vunpack.c.l.b16 %v247
    %v984 = vunpack.c.h.b16 %v247
    %v985 = vunpack.c.l.b16 %v248
    %v986 = vunpack.c.h.b16 %v248
    %v987 = vunpack.c.l.b16 %v249
    %v988 = vunpack.c.h.b16 %v249
    %v989 = vunpack.c.l.b16 %v250
    %v990 = vunpack.c.h.b16 %v250
    %v991 = vunpack.c.l.b16 %v251
    %v992 = vunpack.c.h.b16 %v251
    %v993 = vunpack.c.l.b16 %v252
    %v994 = vunpack.c.h.b16 %v252
    %v995 = vunpack.c.l.b16 %v253
    %v996 = vunpack.c.h.b16 %v253
    %v997 = vunpack.c.l.b16 %v254
    %v998 = vunpack.c.h.b16 %v254
    %v999 = vunpack.c.l.b16 %v255
    %v1000 = vunpack.c.h.b16 %v255
    %v1001 = vunpack.c.l.b16 %v256
    %v1002 = vunpack.c.h.b16 %v256
    %v1003 = vunpack.c.l.b16 %v257
    %v1004 = vunpack.c.h.b16 %v257
    %v1005 = vunpack.c.l.b16 %v258
    %v1006 = vunpack.c.h.b16 %v258
    %v1007 = vunpack.c.l.b16 %v259
    %v1008 = vunpack.c.h.b16 %v259
    %v1009 = vunpack.c.l.b16 %v260
    %v1010 = vunpack.c.h.b16 %v260
    %v1011 = vunpack.c.l.b16 %v261
    %v1012 = vunpack.c.h.b16 %v261
    %v1013 = vunpack.c.l.b16 %v262
    %v1014 = vunpack.c.h.b16 %v262
    %v1015 = vunpack.c.l.b16 %v263
    %v1016 = vunpack.c.h.b16 %v263
    %v1017 = vunpack.c.l.b16 %v264
    %v1018 = vunpack.c.h.b16 %v264
    %v1019 = vunpack.c.l.b16 %v265
    %v1020 = vunpack.c.h.b16 %v265
    %v1021 = vunpack.c.l.b16 %v266
    %v1022 = vunpack.c.h.b16 %v266
    %v1023 = vunpack.c.l.b16 %v267
    %v1024 = vunpack.c.h.b16 %v267
    %v1025 = vunpack.c.l.b16 %v268
    %v1026 = vunpack.c.h.b16 %v268
    %v1027 = vunpack.c.l.b16 %v269
    %v1028 = vunpack.c.h.b16 %v269
    %v1029 = vunpack.c.l.b16 %v270
    %v1030 = vunpack.c.h.b16 %v270
    %v1031 = vunpack.c.l.b16 %v271
    %v1032 = vunpack.c.h.b16 %v271
    %v1033 = vunpack.c.l.b16 %v272
    %v1034 = vunpack.c.h.b16 %v272
    %v1035 = vunpack.c.l.b16 %v273
    %v1036 = vunpack.c.h.b16 %v273
    %v1037 = vunpack.c.l.b16 %v274
    %v1038 = vunpack.c.h.b16 %v274
    %v1039 = vunpack.c.l.b16 %v275
    %v1040 = vunpack.c.h.b16 %v275
    %v1041 = vunpack.c.l.b16 %v276
    %v1042 = vunpack.c.h.b16 %v276
    %v1043 = vunpack.c.l.b16 %v277
    %v1044 = vunpack.c.h.b16 %v277
    %v1045 = vunpack.c.l.b16 %v278
    %v1046 = vunpack.c.h.b16 %v278
    %v1047 = vunpack.c.l.b16 %v279
    %v1048 = vunpack.c.h.b16 %v279
    %v1049 = vunpack.c.l.b16 %v280
    %v1050 = vunpack.c.h.b16 %v280
    %v1051 = vunpack.c.l.b16 %v281
    %v1052 = vunpack.c.h.b16 %v281
    %v1053 = vunpack.c.l.b16 %v282
    %v1054 = vunpack.c.h.b16 %v282
    %v1055 = vunpack.c.l.b16 %v283
    %v1056 = vunpack.c.h.b16 %v283
    %v1057 = vunpack.c.l.b16 %v284
    %v1058 = vunpack.c.h.b16 %v284
    %v1059 = vunpack.c.l.b16 %v285
    %v1060 = vunpack.c.h.b16 %v285
    %v1061 = vunpack.c.l.b16 %v286
    %v1062 = vunpack.c.h.b16 %v286
    %v1063 = vunpack.c.l.b16 %v287
    %v1064 = vunpack.c.h.b16 %v287
    %v1065 = vunpack.c.l.b16 %v288
    %v1066 = vunpack.c.h.b16 %v288
    %v1067 = vunpack.c.l.b16 %v289
    %v1068 = vunpack.c.h.b16 %v289
    %v1069 = vunpack.c.l.b16 %v290
    %v1070 = vunpack.c.h.b16 %v290
    %v1071 = vunpack.c.l.b16 %v291
    %v1072 = vunpack.c.h.b16 %v291
    %v1073 = vunpack.c.l.b16 %v292
    %v1074 = vunpack.c.h.b16 %v292
    %v1075 = vunpack.c.l.b16 %v293
    %v1076 = vunpack.c.h.b16 %v293
    %v1077 = vunpack.c.l.b16 %v294
    %v1078 = vunpack.c.h.b16 %v294
    %v1079 = vunpack.c.l.b16 %v295
    %v1080 = vunpack.c.h.b16 %v295
    %v1081 = vunpack.c.l.b16 %v296
    %v1082 = vunpack.c.h.b16 %v296
    %v1083 = vunpack.c.l.b16 %v297
    %v1084 = vunpack.c.h.b16 %v297
    %v1085 = vunpack.c.l.b16 %v298
    %v1086 = vunpack.c.h.b16 %v298
    %v1087 = vunpack.c.l.b16 %v299
    %v1088 = vunpack.c.h.b16 %v299
    %v1089 = vunpack.c.l.b16 %v300
    %v1090 = vunpack.c.h.b16 %v300
    %v1091 = vunpack.c.l.b16 %v301
    %v1092 = vunpack.c.h.b16 %v301
    %v1093 = vunpack.c.l.b16 %v302
    %v1094 = vunpack.c.h.b16 %v302
    %v1095 = vunpack.c.l.b16 %v303
    %v1096 = vunpack.c.h.b16 %v303
    %v1097 = vunpack.c.l.b16 %v304
    %v1098 = vunpack.c.h.b16 %v304
    %v1099 = vunpack.c.l.b16 %v305
    %v1100 = vunpack.c.h.b16 %v305
    %v1101 = vunpack.c.l.b16 %v306
    %v1102 = vunpack.c.h.b16 %v306
    %v1103 = vunpack.c.l.b16 %v307
    %v1104 = vunpack.c.h.b16 %v307
    %v1105 = vunpack.c.l.b16 %v308
    %v1106 = vunpack.c.h.b16 %v308
    %v1107 = vunpack.c.l.b16 %v309
    %v1108 = vunpack.c.h.b16 %v309
    %v1109 = vunpack.c.l.b16 %v310
    %v1110 = vunpack.c.h.b16 %v310
    %v1111 = vunpack.c.l.b16 %v311
    %v1112 = vunpack.c.h.b16 %v311
    %v1113 = vunpack.c.l.b16 %v312
    %v1114 = vunpack.c.h.b16 %v312
    %v1115 = vunpack.c.l.b16 %v313
    %v1116 = vunpack.c.h.b16 %v313
    %v1117 = vunpack.c.l.b16 %v314
    %v1118 = vunpack.c.h.b16 %v314
    %v1119 = vunpack.c.l.b16 %v315
    %v1120 = vunpack.c.h.b16 %v315
    %v1121 = vunpack.c.l.b16 %v316
    %v1122 = vunpack.c.h.b16 %v316
    %v1123 = vunpack.c.l.b16 %v317
    %v1124 = vunpack.c.h.b16 %v317
    %v1125 = vunpack.c.l.b16 %v318
    %v1126 = vunpack.c.h.b16 %v318
    %v1127 = vunpack.c.l.b16 %v319
    %v1128 = vunpack.c.h.b16 %v319
    %v1129 = vunpack.c.l.b16 %v320
    %v1130 = vunpack.c.h.b16 %v320
    %v1131 = vunpack.c.l.b16 %v321
    %v1132 = vunpack.c.h.b16 %v321
    %v1133 = vunpack.c.l.b16 %v322
    %v1134 = vunpack.c.h.b16 %v322
    %v1135 = vunpack.c.l.b16 %v323
    %v1136 = vunpack.c.h.b16 %v323
    %v1137 = vunpack.c.l.b16 %v324
    %v1138 = vunpack.c.h.b16 %v324
    %v1139 = vunpack.c.l.b16 %v325
    %v1140 = vunpack.c.h.b16 %v325
    %v1141 = vunpack.c.l.b16 %v326
    %v1142 = vunpack.c.h.b16 %v326
    %v1143 = vunpack.c.l.b16 %v327
    %v1144 = vunpack.c.h.b16 %v327
    %v1145 = vunpack.c.l.b16 %v328
    %v1146 = vunpack.c.h.b16 %v328
    %v1147 = vunpack.c.l.b16 %v329
    %v1148 = vunpack.c.h.b16 %v329
    %v1149 = vunpack.c.l.b16 %v330
    %v1150 = vunpack.c.h.b16 %v330
    %v1151 = vunpack.c.l.b16 %v331
    %v1152 = vunpack.c.h.b16 %v331
    %v1153 = vunpack.c.l.b16 %v332
    %v1154 = vunpack.c.h.b16 %v332
    %v1155 = vunpack.c.l.b16 %v333
    %v1156 = vunpack.c.h.b16 %v333
    %v1157 = vunpack.c.l.b16 %v334
    %v1158 = vunpack.c.h.b16 %v334
    %v1159 = vunpack.c.l.b16 %v335
    %v1160 = vunpack.c.h.b16 %v335
    %v1161 = vunpack.c.l.b16 %v336
    %v1162 = vunpack.c.h.b16 %v336
    %v1163 = vunpack.c.l.b16 %v337
    %v1164 = vunpack.c.h.b16 %v337
    %v1165 = vunpack.c.l.b16 %v338
    %v1166 = vunpack.c.h.b16 %v338
    %v1167 = vunpack.c.l.b16 %v339
    %v1168 = vunpack.c.h.b16 %v339
    %v1169 = vunpack.c.l.b16 %v340
    %v1170 = vunpack.c.h.b16 %v340
    %v1171 = vunpack.c.l.b16 %v341
    %v1172 = vunpack.c.h.b16 %v341
    %v1173 = vunpack.c.l.b16 %v342
    %v1174 = vunpack.c.h.b16 %v342
    %v1175 = vunpack.c.l.b16 %v343
    %v1176 = vunpack.c.h.b16 %v343
    %v1177 = vunpack.c.l.b16 %v344
    %v1178 = vunpack.c.h.b16 %v344
    %v1179 = vunpack.c.l.b16 %v345
    %v1180 = vunpack.c.h.b16 %v345
    %v1181 = vunpack.c.l.b16 %v346
    %v1182 = vunpack.c.h.b16 %v346
    %v1183 = vunpack.c.l.b16 %v347
    %v1184 = vunpack.c.h.b16 %v347
    %v1185 = vunpack.c.l.b16 %v348
    %v1186 = vunpack.c.h.b16 %v348
    %v1187 = vunpack.c.l.b16 %v349
    %v1188 = vunpack.c.h.b16 %v349
    %v1189 = vunpack.c.l.b16 %v350
    %v1190 = vunpack.c.h.b16 %v350
    %v1191 = vunpack.c.l.b16 %v351
    %v1192 = vunpack.c.h.b16 %v351
    %v1193 = vunpack.c.l.b16 %v352
    %v1194 = vunpack.c.h.b16 %v352
    %v1195 = vunpack.c.l.b16 %v353
    %v1196 = vunpack.c.h.b16 %v353
    %v1197 = vunpack.c.l.b16 %v354
    %v1198 = vunpack.c.h.b16 %v354
    %v1199 = vunpack.c.l.b16 %v355
    %v1200 = vunpack.c.h.b16 %v355
    %v1201 = vunpack.c.l.b16 %v356
    %v1202 = vunpack.c.h.b16 %v356
    %v1203 = vunpack.c.l.b16 %v357
    %v1204 = vunpack.c.h.b16 %v357
    %v1205 = vunpack.c.l.b16 %v358
    %v1206 = vunpack.c.h.b16 %v358
    %v1207 = vunpack.c.l.b16 %v359
    %v1208 = vunpack.c.h.b16 %v359
    %v1209 = vunpack.c.l.b16 %v360
    %v1210 = vunpack.c.h.b16 %v360
    %v1211 = vunpack.c.l.b16 %v361
    %v1212 = vunpack.c.h.b16 %v361
    %v1213 = vunpack.c.l.b16 %v362
    %v1214 = vunpack.c.h.b16 %v362
    %v1215 = vunpack.c.l.b16 %v363
    %v1216 = vunpack.c.h.b16 %v363
    %v1217 = vunpack.c.l.b16 %v364
    %v1218 = vunpack.c.h.b16 %v364
    %v1219 = vunpack.c.l.b16 %v365
    %v1220 = vunpack.c.h.b16 %v365
    %v1221 = vunpack.c.l.b16 %v366
    %v1222 = vunpack.c.h.b16 %v366
    %v1223 = vunpack.c.l.b16 %v367
    %v1224 = vunpack.c.h.b16 %v367
    %v1225 = vunpack.c.l.b16 %v368
    %v1226 = vunpack.c.h.b16 %v368
    %v1227 = vunpack.c.l.b16 %v369
    %v1228 = vunpack.c.h.b16 %v369
    %v1229 = vunpack.c.l.b16 %v370
    %v1230 = vunpack.c.h.b16 %v370
    %v1231 = vunpack.c.l.b16 %v371
    %v1232 = vunpack.c.h.b16 %v371
    %v1233 = vunpack.c.l.b16 %v372
    %v1234 = vunpack.c.h.b16 %v372
    %v1235 = vunpack.c.l.b16 %v373
    %v1236 = vunpack.c.h.b16 %v373
    %v1237 = vunpack.c.l.b16 %v374
    %v1238 = vunpack.c.h.b16 %v374
    %v1239 = vunpack.c.l.b16 %v375
    %v1240 = vunpack.c.h.b16 %v375
    %v1241 = vunpack.c.l.b16 %v376
    %v1242 = vunpack.c.h.b16 %v376
    %v1243 = vunpack.c.l.b16 %v377
    %v1244 = vunpack.c.h.b16 %v377
    %v1245 = vunpack.c.l.b16 %v378
    %v1246 = vunpack.c.h.b16 %v378
    %v1247 = vunpack.c.l.b16 %v379
    %v1248 = vunpack.c.h.b16 %v379
    %v1249 = vunpack.c.l.b16 %v380
    %v1250 = vunpack.c.h.b16 %v380
    %v1251 = vunpack.c.l.b16 %v381
    %v1252 = vunpack.c.h.b16 %v381
    %v1253 = vunpack.c.l.b16 %v382
    %v1254 = vunpack.c.h.b16 %v382
    %v1255 = vunpack.c.l.b16 %v383
    %v1256 = vunpack.c.h.b16 %v383
    %v1257 = vunpack.c.l.b16 %v384
    %v1258 = vunpack.c.h.b16 %v384
    %v1259 = vunpack.c.l.b16 %v385
    %v1260 = vunpack.c.h.b16 %v385
    %v1261 = vunpack.c.l.b16 %v386
    %v1262 = vunpack.c.h.b16 %v386
    %v1263 = vunpack.c.l.b16 %v387
    %v1264 = vunpack.c.h.b16 %v387
    %v1265 = vunpack.c.l.b16 %v388
    %v1266 = vunpack.c.h.b16 %v388
    %v1267 = vunpack.c.l.b16 %v389
    %v1268 = vunpack.c.h.b16 %v389
    %v1269 = vunpack.c.l.b16 %v390
    %v1270 = vunpack.c.h.b16 %v390
    %v1271 = vunpack.c.l.b16 %v391
    %v1272 = vunpack.c.h.b16 %v391
    %v1273 = vunpack.c.l.b16 %v392
    %v1274 = vunpack.c.h.b16 %v392
    %v1275 = vunpack.c.l.b16 %v393
    %v1276 = vunpack.c.h.b16 %v393
    %v1277 = vunpack.c.l.b16 %v394
    %v1278 = vunpack.c.h.b16 %v394
    %v1279 = vunpack.c.l.b16 %v395
    %v1280 = vunpack.c.h.b16 %v395
    %v1281 = vunpack.c.l.b16 %v396
    %v1282 = vunpack.c.h.b16 %v396
    %v1283 = vunpack.c.l.b16 %v397
    %v1284 = vunpack.c.h.b16 %v397
    %v1285 = vunpack.c.l.b16 %v398
    %v1286 = vunpack.c.h.b16 %v398
    %v1287 = vunpack.c.l.b16 %v399
    %v1288 = vunpack.c.h.b16 %v399
    %v1289 = vunpack.c.l.b16 %v400
    %v1290 = vunpack.c.h.b16 %v400
    %v1291 = vunpack.c.l.b16 %v401
    %v1292 = vunpack.c.h.b16 %v401
    %v1293 = vunpack.c.l.b16 %v402
    %v1294 = vunpack.c.h.b16 %v402
    %v1295 = vunpack.c.l.b16 %v403
    %v1296 = vunpack.c.h.b16 %v403
    %v1297 = vunpack.c.l.b16 %v404
    %v1298 = vunpack.c.h.b16 %v404
    %v1299 = vunpack.c.l.b16 %v405
    %v1300 = vunpack.c.h.b16 %v405
    %v1301 = vunpack.c.l.b16 %v406
    %v1302 = vunpack.c.h.b16 %v406
    %v1303 = vunpack.c.l.b16 %v407
    %v1304 = vunpack.c.h.b16 %v407
    %v1305 = vunpack.c.l.b16 %v408
    %v1306 = vunpack.c.h.b16 %v408
    %v1307 = vunpack.c.l.b16 %v409
    %v1308 = vunpack.c.h.b16 %v409
    %v1309 = vunpack.c.l.b16 %v410
    %v1310 = vunpack.c.h.b16 %v410
    %v1311 = vunpack.c.l.b16 %v411
    %v1312 = vunpack.c.h.b16 %v411
    %v1313 = vunpack.c.l.b16 %v412
    %v1314 = vunpack.c.h.b16 %v412
    %v1315 = vunpack.c.l.b16 %v413
    %v1316 = vunpack.c.h.b16 %v413
    %v1317 = vunpack.c.l.b16 %v414
    %v1318 = vunpack.c.h.b16 %v414
    %v1319 = vunpack.c.l.b16 %v415
    %v1320 = vunpack.c.h.b16 %v415
    %v1321 = vunpack.c.l.b16 %v416
    %v1322 = vunpack.c.h.b16 %v416
    %v1323 = vunpack.c.l.b16 %v417
    %v1324 = vunpack.c.h.b16 %v417
    %v1325 = vunpack.c.l.b16 %v418
    %v1326 = vunpack.c.h.b16 %v418
    %v1327 = vunpack.c.l.b16 %v419
    %v1328 = vunpack.c.h.b16 %v419
    %v1329 = vunpack.c.l.b16 %v420
    %v1330 = vunpack.c.h.b16 %v420
    %v1331 = vunpack.c.l.b16 %v421
    %v1332 = vunpack.c.h.b16 %v421
    %v1333 = vunpack.c.l.b16 %v422
    %v1334 = vunpack.c.h.b16 %v422
    %v1335 = vunpack.c.l.b16 %v423
    %v1336 = vunpack.c.h.b16 %v423
    %v1337 = vunpack.c.l.b16 %v424
    %v1338 = vunpack.c.h.b16 %v424
    %v1339 = vunpack.c.l.b16 %v425
    %v1340 = vunpack.c.h.b16 %v425
    %v1341 = vunpack.c.l.b16 %v426
    %v1342 = vunpack.c.h.b16 %v426
    %v1343 = vunpack.c.l.b16 %v427
    %v1344 = vunpack.c.h.b16 %v427
    %v1345 = vunpack.c.l.b16 %v428
    %v1346 = vunpack.c.h.b16 %v428
    %v1347 = vunpack.c.l.b16 %v429
    %v1348 = vunpack.c.h.b16 %v429
    %v1349 = vunpack.c.l.b16 %v430
    %v1350 = vunpack.c.h.b16 %v430
    %v1351 = vunpack.c.l.b16 %v431
    %v1352 = vunpack.c.h.b16 %v431
    %v1353 = vunpack.c.l.b16 %v432
    %v1354 = vunpack.c.h.b16 %v432
    %v1355 = vunpack.c.l.b16 %v433
    %v1356 = vunpack.c.h.b16 %v433
    %v1357 = vunpack.c.l.b16 %v434
    %v1358 = vunpack.c.h.b16 %v434
    %v1359 = vunpack.c.l.b16 %v435
    %v1360 = vunpack.c.h.b16 %v435
    %v1361 = vunpack.c.l.b16 %v436
    %v1362 = vunpack.c.h.b16 %v436
    %v1363 = vunpack.c.l.b16 %v437
    %v1364 = vunpack.c.h.b16 %v437
    %v1365 = vunpack.c.l.b16 %v438
    %v1366 = vunpack.c.h.b16 %v438
    %v1367 = vunpack.c.l.b16 %v439
    %v1368 = vunpack.c.h.b16 %v439
    %v1369 = vunpack.c.l.b16 %v440
    %v1370 = vunpack.c.h.b16 %v440
    %v1371 = vunpack.c.l.b16 %v441
    %v1372 = vunpack.c.h.b16 %v441
    %v1373 = vunpack.c.l.b16 %v442
    %v1374 = vunpack.c.h.b16 %v442
    %v1375 = vunpack.c.l.b16 %v443
    %v1376 = vunpack.c.h.b16 %v443
    %v1377 = vunpack.c.l.b16 %v444
    %v1378 = vunpack.c.h.b16 %v444
    %v1379 = vunpack.c.l.b16 %v445
    %v1380 = vunpack.c.h.b16 %v445
    %v1381 = vunpack.c.l.b16 %v446
    %v1382 = vunpack.c.h.b16 %v446
    %v1383 = vunpack.c.l.b16 %v447
    %v1384 = vunpack.c.h.b16 %v447
    %v1385 = vunpack.c.l.b16 %v448
    %v1386 = vunpack.c.h.b16 %v448
    %v1387 = vunpack.c.l.b16 %v449
    %v1388 = vunpack.c.h.b16 %v449
    %v1389 = vunpack.c.l.b16 %v450
    %v1390 = vunpack.c.h.b16 %v450
    %v1391 = vunpack.c.l.b16 %v451
    %v1392 = vunpack.c.h.b16 %v451
    %v1393 = vunpack.c.l.b16 %v452
    %v1394 = vunpack.c.h.b16 %v452
    %v1395 = vunpack.c.l.b16 %v453
    %v1396 = vunpack.c.h.b16 %v453
    %v1397 = vunpack.c.l.b16 %v454
    %v1398 = vunpack.c.h.b16 %v454
    %v1399 = vunpack.c.l.b16 %v455
    %v1400 = vunpack.c.h.b16 %v455
    %v1401 = vunpack.c.l.b16 %v456
    %v1402 = vunpack.c.h.b16 %v456
    %v1403 = vunpack.c.l.b16 %v457
    %v1404 = vunpack.c.h.b16 %v457
    %v1405 = vunpack.c.l.b16 %v458
    %v1406 = vunpack.c.h.b16 %v458
    %v1407 = vunpack.c.l.b16 %v459
    %v1408 = vunpack.c.h.b16 %v459
    %v1409 = vunpack.c.l.b16 %v460
    %v1410 = vunpack.c.h.b16 %v460
    %v1411 = vunpack.c.l.b16 %v461
    %v1412 = vunpack.c.h.b16 %v461
    %v1413 = vunpack.c.l.b16 %v462
    %v1414 = vunpack.c.h.b16 %v462
    %v1415 = vunpack.c.l.b16 %v463
    %v1416 = vunpack.c.h.b16 %v463
    %v1417 = vunpack.c.l.b16 %v464
    %v1418 = vunpack.c.h.b16 %v464
    %v1419 = vunpack.c.l.b16 %v465
    %v1420 = vunpack.c.h.b16 %v465
    %v1421 = vunpack.c.l.b16 %v466
    %v1422 = vunpack.c.h.b16 %v466
    %v1423 = vunpack.c.l.b16 %v467
    %v1424 = vunpack.c.h.b16 %v467
    %v1425 = vunpack.c.l.b16 %v468
    %v1426 = vunpack.c.h.b16 %v468
    %v1427 = vunpack.c.l.b16 %v469
    %v1428 = vunpack.c.h.b16 %v469
    %v1429 = vunpack.c.l.b16 %v470
    %v1430 = vunpack.c.h.b16 %v470
    %v1431 = vpack.c.b16 %v987, %v983
    %v1432 = vpack.c.b16 %v988, %v984
    %v1433 = vpack.c.b16 %v989, %v985
    %v1434 = vpack.c.b16 %v990, %v986
    %v1435 = vpack.c.b16 %v995, %v991
    %v1436 = vpack.c.b16 %v996, %v992
    %v1437 = vpack.c.b16 %v997, %v993
    %v1438 = vpack.c.b16 %v998, %v994
    %v1439 = vpack.c.b16 %v1003, %v999
    %v1440 = vpack.c.b16 %v1004, %v1000
    %v1441 = vpack.c.b16 %v1005, %v1001
    %v1442 = vpack.c.b16 %v1006, %v1002
    %v1443 = vpack.c.b16 %v1011, %v1007
    %v1444 = vpack.c.b16 %v1012, %v1008
    %v1445 = vpack.c.b16 %v1013, %v1009
    %v1446 = vpack.c.b16 %v1014, %v1010
    %v1447 = vpack.c.b16 %v1019, %v1015
    %v1448 = vpack.c.b16 %v1020, %v1016
    %v1449 = vpack.c.b16 %v1021, %v1017
    %v1450 = vpack.c.b16 %v1022, %v1018
    %v1451 = vpack.c.b16 %v1027, %v1023
    %v1452 = vpack.c.b16 %v1028, %v1024
    %v1453 = vpack.c.b16 %v1029, %v1025
    %v1454 = vpack.c.b16 %v1030, %v1026
    %v1455 = vpack.c.b16 %v1035, %v1031
    %v1456 = vpack.c.b16 %v1036, %v1032
    %v1457 = vpack.c.b16 %v1037, %v1033
    %v1458 = vpack.c.b16 %v1038, %v1034
    %v1459 = vpack.c.b16 %v1043, %v1039
    %v1460 = vpack.c.b16 %v1044, %v1040
    %v1461 = vpack.c.b16 %v1045, %v1041
    %v1462 = vpack.c.b16 %v1046, %v1042
    %v1463 = vpack.c.b16 %v1051, %v1047
    %v1464 = vpack.c.b16 %v1052, %v1048
    %v1465 = vpack.c.b16 %v1053, %v1049
    %v1466 = vpack.c.b16 %v1054, %v1050
    %v1467 = vpack.c.b16 %v1059, %v1055
    %v1468 = vpack.c.b16 %v1060, %v1056
    %v1469 = vpack.c.b16 %v1061, %v1057
    %v1470 = vpack.c.b16 %v1062, %v1058
    %v1471 = vpack.c.b16 %v1067, %v1063
    %v1472 = vpack.c.b16 %v1068, %v1064
    %v1473 = vpack.c.b16 %v1069, %v1065
    %v1474 = vpack.c.b16 %v1070, %v1066
    %v1475 = vpack.c.b16 %v1075, %v1071
    %v1476 = vpack.c.b16 %v1076, %v1072
    %v1477 = vpack.c.b16 %v1077, %v1073
    %v1478 = vpack.c.b16 %v1078, %v1074
    %v1479 = vpack.c.b16 %v1083, %v1079
    %v1480 = vpack.c.b16 %v1084, %v1080
    %v1481 = vpack.c.b16 %v1085, %v1081
    %v1482 = vpack.c.b16 %v1086, %v1082
    %v1483 = vpack.c.b16 %v1091, %v1087
    %v1484 = vpack.c.b16 %v1092, %v1088
    %v1485 = vpack.c.b16 %v1093, %v1089
    %v1486 = vpack.c.b16 %v1094, %v1090
    %v1487 = vpack.c.b16 %v1099, %v1095
    %v1488 = vpack.c.b16 %v1100, %v1096
    %v1489 = vpack.c.b16 %v1101, %v1097
    %v1490 = vpack.c.b16 %v1102, %v1098
    %v1491 = vpack.c.b16 %v1107, %v1103
    %v1492 = vpack.c.b16 %v1108, %v1104
    %v1493 = vpack.c.b16 %v1109, %v1105
    %v1494 = vpack.c.b16 %v1110, %v1106
    %v1495 = vpack.c.b16 %v1115, %v1111
    %v1496 = vpack.c.b16 %v1116, %v1112
    %v1497 = vpack.c.b16 %v1117, %v1113
    %v1498 = vpack.c.b16 %v1118, %v1114
    %v1499 = vpack.c.b16 %v1123, %v1119
    %v1500 = vpack.c.b16 %v1124, %v1120
    %v1501 = vpack.c.b16 %v1125, %v1121
    %v1502 = vpack.c.b16 %v1126, %v1122
    %v1503 = vpack.c.b16 %v1131, %v1127
    %v1504 = vpack.c.b16 %v1132, %v1128
    %v1505 = vpack.c.b16 %v1133, %v1129
    %v1506 = vpack.c.b16 %v1134, %v1130
    %v1507 = vpack.c.b16 %v1139, %v1135
    %v1508 = vpack.c.b16 %v1140, %v1136
    %v1509 = vpack.c.b16 %v1141, %v1137
    %v1510 = vpack.c.b16 %v1142, %v1138
    %v1511 = vpack.c.b16 %v1147, %v1143
    %v1512 = vpack.c.b16 %v1148, %v1144
    %v1513 = vpack.c.b16 %v1149, %v1145
    %v1514 = vpack.c.b16 %v1150, %v1146
    %v1515 = vpack.c.b16 %v1155, %v1151
    %v1516 = vpack.c.b16 %v1156, %v1152
    %v1517 = vpack.c.b16 %v1157, %v1153
    %v1518 = vpack.c.b16 %v1158, %v1154
    %v1519 = vpack.c.b16 %v1163, %v1159
    %v1520 = vpack.c.b16 %v1164, %v1160
    %v1521 = vpack.c.b16 %v1165, %v1161
    %v1522 = vpack.c.b16 %v1166, %v1162
    %v1523 = vpack.c.b16 %v1171, %v1167
    %v1524 = vpack.c.b16 %v1172, %v1168
    %v1525 = vpack.c.b16 %v1173, %v1169
    %v1526 = vpack.c.b16 %v1174, %v1170
    %v1527 = vpack.c.b16 %v1179, %v1175
    %v1528 = vpack.c.b16 %v1180, %v1176
    %v1529 = vpack.c.b16 %v1181, %v1177
    %v1530 = vpack.c.b16 %v1182, %v1178
    %v1531 = vpack.c.b16 %v1187, %v1183
    %v1532 = vpack.c.b16 %v1188, %v1184
    %v1533 = vpack.c.b16 %v1189, %v1185
    %v1534 = vpack.c.b16 %v1190, %v1186
    %v1535 = vpack.c.b16 %v1195, %v1191
    %v1536 = vpack.c.b16 %v1196, %v1192
    %v1537 = vpack.c.b16 %v1197, %v1193
    %v1538 = vpack.c.b16 %v1198, %v1194
    %v1539 = vpack.c.b16 %v1203, %v1199
    %v1540 = vpack.c.b16 %v1204, %v1200
    %v1541 = vpack.c.b16 %v1205, %v1201
    %v1542 = vpack.c.b16 %v1206, %v1202
    %v1543 = vpack.c.b16 %v1211, %v1207
    %v1544 = vpack.c.b16 %v1212, %v1208
    %v1545 = vpack.c.b16 %v1213, %v1209
    %v1546 = vpack.c.b16 %v1214, %v1210
    %v1547 = vpack.c.b16 %v1219, %v1215
    %v1548 = vpack.c.b16 %v1220, %v1216
    %v1549 = vpack.c.b16 %v1221, %v1217
    %v1550 = vpack.c.b16 %v1222, %v1218
    %v1551 = vpack.c.b16 %v1227, %v1223
    %v1552 = vpack.c.b16 %v1228, %v1224
    %v1553 = vpack.c.b16 %v1229, %v1225
    %v1554 = vpack.c.b16 %v1230, %v1226
    %v1555 = vpack.c.b16 %v1235, %v1231
    %v1556 = vpack.c.b16 %v1236, %v1232
    %v1557 = vpack.c.b16 %v1237, %v1233
    %v1558 = vpack.c.b16 %v1238, %v1234
    %v1559 = vpack.c.b16 %v1243, %v1239
    %v1560 = vpack.c.b16 %v1244, %v1240
    %v1561 = vpack.c.b16 %v1245, %v1241
    %v1562 = vpack.c.b16 %v1246, %v1242
    %v1563 = vpack.c.b16 %v1251, %v1247
    %v1564 = vpack.c.b16 %v1252, %v1248
    %v1565 = vpack.c.b16 %v1253, %v1249
    %v1566 = vpack.c.b16 %v1254, %v1250
    %v1567 = vpack.c.b16 %v1259, %v1255
    %v1568 = vpack.c.b16 %v1260, %v1256
    %v1569 = vpack.c.b16 %v1261, %v1257
    %v1570 = vpack.c.b16 %v1262, %v1258
    %v1571 = vpack.c.b16 %v1267, %v1263
    %v1572 = vpack.c.b16 %v1268, %v1264
    %v1573 = vpack.c.b16 %v1269, %v1265
    %v1574 = vpack.c.b16 %v1270, %v1266
    %v1575 = vpack.c.b16 %v1275, %v1271
    %v1576 = vpack.c.b16 %v1276, %v1272
    %v1577 = vpack.c.b16 %v1277, %v1273
    %v1578 = vpack.c.b16 %v1278, %v1274
    %v1579 = vpack.c.b16 %v1283, %v1279
    %v1580 = vpack.c.b16 %v1284, %v1280
    %v1581 = vpack.c.b16 %v1285, %v1281
    %v1582 = vpack.c.b16 %v1286, %v1282
    %v1583 = vpack.c.b16 %v1291, %v1287
    %v1584 = vpack.c.b16 %v1292, %v1288
    %v1585 = vpack.c.b16 %v1293, %v1289
    %v1586 = vpack.c.b16 %v1294, %v1290
    %v1587 = vpack.c.b16 %v1299, %v1295
    %v1588 = vpack.c.b16 %v1300, %v1296
    %v1589 = vpack.c.b16 %v1301, %v1297
    %v1590 = vpack.c.b16 %v1302, %v1298
    %v1591 = vpack.c.b16 %v1307, %v1303
    %v1592 = vpack.c.b16 %v1308, %v1304
    %v1593 = vpack.c.b16 %v1309, %v1305
    %v1594 = vpack.c.b16 %v1310, %v1306
    %v1595 = vpack.c.b16 %v1315, %v1311
    %v1596 = vpack.c.b16 %v1316, %v1312
    %v1597 = vpack.c.b16 %v1317, %v1313
    %v1598 = vpack.c.b16 %v1318, %v1314
    %v1599 = vpack.c.b16 %v1323, %v1319
    %v1600 = vpack.c.b16 %v1324, %v1320
    %v1601 = vpack.c.b16 %v1325, %v1321
    %v1602 = vpack.c.b16 %v1326, %v1322
    %v1603 = vpack.c.b16 %v1331, %v1327
    %v1604 = vpack.c.b16 %v1332, %v1328
    %v1605 = vpack.c.b16 %v1333, %v1329
    %v1606 = vpack.c.b16 %v1334, %v1330
    %v1607 = vpack.c.b16 %v1339, %v1335
    %v1608 = vpack.c.b16 %v1340, %v1336
    %v1609 = vpack.c.b16 %v1341, %v1337
    %v1610 = vpack.c.b16 %v1342, %v1338
    %v1611 = vpack.c.b16 %v1347, %v1343
    %v1612 = vpack.c.b16 %v1348, %v1344
    %v1613 = vpack.c.b16 %v1349, %v1345
    %v1614 = vpack.c.b16 %v1350, %v1346
    %v1615 = vpack.c.b16 %v1355, %v1351
    %v1616 = vpack.c.b16 %v1356, %v1352
    %v1617 = vpack.c.b16 %v1357, %v1353
    %v1618 = vpack.c.b16 %v1358, %v1354
    %v1619 = vpack.c.b16 %v1363, %v1359
    %v1620 = vpack.c.b16 %v1364, %v1360
    %v1621 = vpack.c.b16 %v1365, %v1361
    %v1622 = vpack.c.b16 %v1366, %v1362
    %v1623 = vpack.c.b16 %v1371, %v1367
    %v1624 = vpack.c.b16 %v1372, %v1368
    %v1625 = vpack.c.b16 %v1373, %v1369
    %v1626 = vpack.c.b16 %v1374, %v1370
    %v1627 = vpack.c.b16 %v1379, %v1375
    %v1628 = vpack.c.b16 %v1380, %v1376
    %v1629 = vpack.c.b16 %v1381, %v1377
    %v1630 = vpack.c.b16 %v1382, %v1378
    %v1631 = vpack.c.b16 %v1387, %v1383
    %v1632 = vpack.c.b16 %v1388, %v1384
    %v1633 = vpack.c.b16 %v1389, %v1385
    %v1634 = vpack.c.b16 %v1390, %v1386
    %v1635 = vpack.c.b16 %v1395, %v1391
    %v1636 = vpack.c.b16 %v1396, %v1392
    %v1637 = vpack.c.b16 %v1397, %v1393
    %v1638 = vpack.c.b16 %v1398, %v1394
    %v1639 = vpack.c.b16 %v1403, %v1399
    %v1640 = vpack.c.b16 %v1404, %v1400
    %v1641 = vpack.c.b16 %v1405, %v1401
    %v1642 = vpack.c.b16 %v1406, %v1402
    %v1643 = vpack.c.b16 %v1411, %v1407
    %v1644 = vpack.c.b16 %v1412, %v1408
    %v1645 = vpack.c.b16 %v1413, %v1409
    %v1646 = vpack.c.b16 %v1414, %v1410
    %v1647 = vpack.c.b16 %v1419, %v1415
    %v1648 = vpack.c.b16 %v1420, %v1416
    %v1649 = vpack.c.b16 %v1421, %v1417
    %v1650 = vpack.c.b16 %v1422, %v1418
    %v1651 = vpack.c.b16 %v1427, %v1423
    %v1652 = vpack.c.b16 %v1428, %v1424
    %v1653 = vpack.c.b16 %v1429, %v1425
    %v1654 = vpack.c.b16 %v1430, %v1426
    %1879 = vmatprep.subr.bf16.mxu0 %v1460
    %1880 = vmatpush1.bf16.msra.mxu0 %v1459
    %1881 = vmatprep.subr.bf16.mxu0 %v1456
    %1882 = vmatpush1.bf16.msra.mxu0 %v1455
    %1883 = vmatprep.subr.bf16.mxu0 %v1452
    %1884 = vmatpush1.bf16.msra.mxu0 %v1451
    %1885 = vmatprep.subr.bf16.mxu0 %v1448
    %1886 = vmatpush1.bf16.msra.mxu0 %v1447
    %1887 = vmatprep.subr.bf16.mxu0 %v1444
    %1888 = vmatpush1.bf16.msra.mxu0 %v1443
    %1889 = vmatprep.subr.bf16.mxu0 %v1440
    %1890 = vmatpush1.bf16.msra.mxu0 %v1439
    %1891 = vmatprep.subr.bf16.mxu0 %v1436
    %1892 = vmatpush1.bf16.msra.mxu0 %v1435
    %1893 = vmatprep.subr.bf16.mxu0 %v1432
    %1894 = vmatpush1.bf16.msra.mxu0 %v1431
    %1895 = vmatprep.subr.bf16.mxu0 %v1492
    %1896 = vmatpush2.bf16.msra.mxu0 %v1491
    %1897 = vmatprep.subr.bf16.mxu0 %v1488
    %1898 = vmatpush2.bf16.msra.mxu0 %v1487
    %1899 = vmatprep.subr.bf16.mxu0 %v1484
    %1900 = vmatpush2.bf16.msra.mxu0 %v1483
    %1901 = vmatprep.subr.bf16.mxu0 %v1480
    %1902 = vmatpush2.bf16.msra.mxu0 %v1479
    %1903 = vmatprep.subr.bf16.mxu0 %v1476
    %1904 = vmatpush2.bf16.msra.mxu0 %v1475
    %1905 = vmatprep.subr.bf16.mxu0 %v1472
    %1906 = vmatpush2.bf16.msra.mxu0 %v1471
    %1907 = vmatprep.subr.bf16.mxu0 %v1468
    %1908 = vmatpush2.bf16.msra.mxu0 %v1467
    %1909 = vmatprep.subr.bf16.mxu0 %v1464
    %1910 = vmatpush2.bf16.msra.mxu0 %v1463
    %1911 = vmatprep.mubr.bf16.mxu0 %v648
    %1912 = vmatmul.mubr.bf16.gmra.mxu0 %v647
    %v1913 = vpop.f32.mrf.mxu0
    %v1914 = vadd.f32 0.0, %v1913
    %v1915 = vpop.f32.mrf.mxu0
    %v1916 = vadd.f32 0.0, %v1915
    %v1917 = vpop.f32.mrf.mxu0
    %v1918 = vadd.f32 0.0, %v1917
    %v1919 = vpop.f32.mrf.mxu0
    %v1920 = vadd.f32 0.0, %v1919
    %1921 = vmatprep.mubr.bf16.mxu0 %v655
    %1922 = vmatmul.mubr.bf16.gmra.mxu0 %v654
    %v1923 = vpop.f32.mrf.mxu0
    %v1924 = vadd.f32 0.0, %v1923
    %v1925 = vpop.f32.mrf.mxu0
    %v1926 = vadd.f32 0.0, %v1925
    %v1927 = vpop.f32.mrf.mxu0
    %v1928 = vadd.f32 0.0, %v1927
    %v1929 = vpop.f32.mrf.mxu0
    %v1930 = vadd.f32 0.0, %v1929
    %1931 = vmatprep.mubr.bf16.mxu0 %v662
    %1932 = vmatmul.mubr.bf16.gmra.mxu0 %v661
    %v1933 = vpop.f32.mrf.mxu0
    %v1934 = vadd.f32 0.0, %v1933
    %v1935 = vpop.f32.mrf.mxu0
    %v1936 = vadd.f32 0.0, %v1935
    %v1937 = vpop.f32.mrf.mxu0
    %v1938 = vadd.f32 0.0, %v1937
    %v1939 = vpop.f32.mrf.mxu0
    %v1940 = vadd.f32 0.0, %v1939
    %1941 = vmatprep.mubr.bf16.mxu0 %v669
    %1942 = vmatmul.mubr.bf16.gmra.mxu0 %v668
    %v1943 = vpop.f32.mrf.mxu0
    %v1944 = vadd.f32 0.0, %v1943
    %v1945 = vpop.f32.mrf.mxu0
    %v1946 = vadd.f32 0.0, %v1945
    %v1947 = vpop.f32.mrf.mxu0
    %v1948 = vadd.f32 0.0, %v1947
    %v1949 = vpop.f32.mrf.mxu0
    %v1950 = vadd.f32 0.0, %v1949
    %1951 = vmatprep.mubr.bf16.mxu0 %v676
    %1952 = vmatmul.mubr.bf16.gmra.mxu0 %v675
    %v1953 = vpop.f32.mrf.mxu0
    %v1954 = vadd.f32 0.0, %v1953
    %v1955 = vpop.f32.mrf.mxu0
    %v1956 = vadd.f32 0.0, %v1955
    %v1957 = vpop.f32.mrf.mxu0
    %v1958 = vadd.f32 0.0, %v1957
    %v1959 = vpop.f32.mrf.mxu0
    %v1960 = vadd.f32 0.0, %v1959
    %1961 = vmatprep.mubr.bf16.mxu0 %v683
    %1962 = vmatmul.mubr.bf16.gmra.mxu0 %v682
    %v1963 = vpop.f32.mrf.mxu0
    %v1964 = vadd.f32 0.0, %v1963
    %v1965 = vpop.f32.mrf.mxu0
    %v1966 = vadd.f32 0.0, %v1965
    %v1967 = vpop.f32.mrf.mxu0
    %v1968 = vadd.f32 0.0, %v1967
    %v1969 = vpop.f32.mrf.mxu0
    %v1970 = vadd.f32 0.0, %v1969
    %1971 = vmatprep.mubr.bf16.mxu0 %v690
    %1972 = vmatmul.mubr.bf16.gmra.mxu0 %v689
    %v1973 = vpop.f32.mrf.mxu0
    %v1974 = vadd.f32 0.0, %v1973
    %v1975 = vpop.f32.mrf.mxu0
    %v1976 = vadd.f32 0.0, %v1975
    %v1977 = vpop.f32.mrf.mxu0
    %v1978 = vadd.f32 0.0, %v1977
    %v1979 = vpop.f32.mrf.mxu0
    %v1980 = vadd.f32 0.0, %v1979
    %1981 = vmatprep.mubr.bf16.mxu0 %v697
    %1982 = vmatmul.mubr.bf16.gmra.mxu0 %v696
    %v1983 = vpop.f32.mrf.mxu0
    %v1984 = vadd.f32 0.0, %v1983
    %v1985 = vpop.f32.mrf.mxu0
    %v1986 = vadd.f32 0.0, %v1985
    %v1987 = vpop.f32.mrf.mxu0
    %v1988 = vadd.f32 0.0, %v1987
    %v1989 = vpop.f32.mrf.mxu0
    %v1990 = vadd.f32 0.0, %v1989
    %1991 = vdwg.mxu0
    %1992 = vmatprep.subr.bf16.mxu0 %v1524
    %1993 = vmatpush1.bf16.msra.mxu0 %v1523
    %1994 = vmatprep.subr.bf16.mxu0 %v1520
    %1995 = vmatpush1.bf16.msra.mxu0 %v1519
    %1996 = vmatprep.subr.bf16.mxu0 %v1516
    %1997 = vmatpush1.bf16.msra.mxu0 %v1515
    %1998 = vmatprep.subr.bf16.mxu0 %v1512
    %1999 = vmatpush1.bf16.msra.mxu0 %v1511
    %2000 = vmatprep.subr.bf16.mxu0 %v1508
    %2001 = vmatpush1.bf16.msra.mxu0 %v1507
    %2002 = vmatprep.subr.bf16.mxu0 %v1504
    %2003 = vmatpush1.bf16.msra.mxu0 %v1503
    %2004 = vmatprep.subr.bf16.mxu0 %v1500
    %2005 = vmatpush1.bf16.msra.mxu0 %v1499
    %2006 = vmatprep.subr.bf16.mxu0 %v1496
    %2007 = vmatpush1.bf16.msra.mxu0 %v1495
    %2008 = vmatprep.subr.bf16.mxu0 %v1556
    %2009 = vmatpush2.bf16.msra.mxu0 %v1555
    %2010 = vmatprep.subr.bf16.mxu0 %v1552
    %2011 = vmatpush2.bf16.msra.mxu0 %v1551
    %2012 = vmatprep.subr.bf16.mxu0 %v1548
    %2013 = vmatpush2.bf16.msra.mxu0 %v1547
    %2014 = vmatprep.subr.bf16.mxu0 %v1544
    %2015 = vmatpush2.bf16.msra.mxu0 %v1543
    %2016 = vmatprep.subr.bf16.mxu0 %v1540
    %2017 = vmatpush2.bf16.msra.mxu0 %v1539
    %2018 = vmatprep.subr.bf16.mxu0 %v1536
    %2019 = vmatpush2.bf16.msra.mxu0 %v1535
    %2020 = vmatprep.subr.bf16.mxu0 %v1532
    %2021 = vmatpush2.bf16.msra.mxu0 %v1531
    %2022 = vmatprep.subr.bf16.mxu0 %v1528
    %2023 = vmatpush2.bf16.msra.mxu0 %v1527
    %2024 = vmatprep.mubr.bf16.mxu0 %v650
    %2025 = vmatmul.mubr.bf16.gmra.mxu0 %v649
    %v2026 = vpop.f32.mrf.mxu0
    %v2027 = vadd.f32 %v1914, %v2026
    %v2028 = vpop.f32.mrf.mxu0
    %v2029 = vadd.f32 %v1916, %v2028
    %v2030 = vpop.f32.mrf.mxu0
    %v2031 = vadd.f32 %v1918, %v2030
    %v2032 = vpop.f32.mrf.mxu0
    %v2033 = vadd.f32 %v1920, %v2032
    %2034 = vmatprep.mubr.bf16.mxu0 %v657
    %2035 = vmatmul.mubr.bf16.gmra.mxu0 %v656
    %v2036 = vpop.f32.mrf.mxu0
    %v2037 = vadd.f32 %v1924, %v2036
    %v2038 = vpop.f32.mrf.mxu0
    %v2039 = vadd.f32 %v1926, %v2038
    %v2040 = vpop.f32.mrf.mxu0
    %v2041 = vadd.f32 %v1928, %v2040
    %v2042 = vpop.f32.mrf.mxu0
    %v2043 = vadd.f32 %v1930, %v2042
    %2044 = vmatprep.mubr.bf16.mxu0 %v664
    %2045 = vmatmul.mubr.bf16.gmra.mxu0 %v663
    %v2046 = vpop.f32.mrf.mxu0
    %v2047 = vadd.f32 %v1934, %v2046
    %v2048 = vpop.f32.mrf.mxu0
    %v2049 = vadd.f32 %v1936, %v2048
    %v2050 = vpop.f32.mrf.mxu0
    %v2051 = vadd.f32 %v1938, %v2050
    %v2052 = vpop.f32.mrf.mxu0
    %v2053 = vadd.f32 %v1940, %v2052
    %2054 = vmatprep.mubr.bf16.mxu0 %v671
    %2055 = vmatmul.mubr.bf16.gmra.mxu0 %v670
    %v2056 = vpop.f32.mrf.mxu0
    %v2057 = vadd.f32 %v1944, %v2056
    %v2058 = vpop.f32.mrf.mxu0
    %v2059 = vadd.f32 %v1946, %v2058
    %v2060 = vpop.f32.mrf.mxu0
    %v2061 = vadd.f32 %v1948, %v2060
    %v2062 = vpop.f32.mrf.mxu0
    %v2063 = vadd.f32 %v1950, %v2062
    %2064 = vmatprep.mubr.bf16.mxu0 %v678
    %2065 = vmatmul.mubr.bf16.gmra.mxu0 %v677
    %v2066 = vpop.f32.mrf.mxu0
    %v2067 = vadd.f32 %v1954, %v2066
    %v2068 = vpop.f32.mrf.mxu0
    %v2069 = vadd.f32 %v1956, %v2068
    %v2070 = vpop.f32.mrf.mxu0
    %v2071 = vadd.f32 %v1958, %v2070
    %v2072 = vpop.f32.mrf.mxu0
    %v2073 = vadd.f32 %v1960, %v2072
    %2074 = vmatprep.mubr.bf16.mxu0 %v685
    %2075 = vmatmul.mubr.bf16.gmra.mxu0 %v684
    %v2076 = vpop.f32.mrf.mxu0
    %v2077 = vadd.f32 %v1964, %v2076
    %v2078 = vpop.f32.mrf.mxu0
    %v2079 = vadd.f32 %v1966, %v2078
    %v2080 = vpop.f32.mrf.mxu0
    %v2081 = vadd.f32 %v1968, %v2080
    %v2082 = vpop.f32.mrf.mxu0
    %v2083 = vadd.f32 %v1970, %v2082
    %2084 = vmatprep.mubr.bf16.mxu0 %v692
    %2085 = vmatmul.mubr.bf16.gmra.mxu0 %v691
    %v2086 = vpop.f32.mrf.mxu0
    %v2087 = vadd.f32 %v1974, %v2086
    %v2088 = vpop.f32.mrf.mxu0
    %v2089 = vadd.f32 %v1976, %v2088
    %v2090 = vpop.f32.mrf.mxu0
    %v2091 = vadd.f32 %v1978, %v2090
    %v2092 = vpop.f32.mrf.mxu0
    %v2093 = vadd.f32 %v1980, %v2092
    %2094 = vmatprep.mubr.bf16.mxu0 %v699
    %2095 = vmatmul.mubr.bf16.gmra.mxu0 %v698
    %v2096 = vpop.f32.mrf.mxu0
    %v2097 = vadd.f32 %v1984, %v2096
    %v2098 = vpop.f32.mrf.mxu0
    %v2099 = vadd.f32 %v1986, %v2098
    %v2100 = vpop.f32.mrf.mxu0
    %v2101 = vadd.f32 %v1988, %v2100
    %v2102 = vpop.f32.mrf.mxu0
    %v2103 = vadd.f32 %v1990, %v2102
    %2104 = vdwg.mxu0
    %2105 = vmatprep.subr.bf16.mxu0 %v1588
    %2106 = vmatpush1.bf16.msra.mxu0 %v1587
    %2107 = vmatprep.subr.bf16.mxu0 %v1584
    %2108 = vmatpush1.bf16.msra.mxu0 %v1583
    %2109 = vmatprep.subr.bf16.mxu0 %v1580
    %2110 = vmatpush1.bf16.msra.mxu0 %v1579
    %2111 = vmatprep.subr.bf16.mxu0 %v1576
    %2112 = vmatpush1.bf16.msra.mxu0 %v1575
    %2113 = vmatprep.subr.bf16.mxu0 %v1572
    %2114 = vmatpush1.bf16.msra.mxu0 %v1571
    %2115 = vmatprep.subr.bf16.mxu0 %v1568
    %2116 = vmatpush1.bf16.msra.mxu0 %v1567
    %2117 = vmatprep.subr.bf16.mxu0 %v1564
    %2118 = vmatpush1.bf16.msra.mxu0 %v1563
    %2119 = vmatprep.subr.bf16.mxu0 %v1560
    %2120 = vmatpush1.bf16.msra.mxu0 %v1559
    %2121 = vmatprep.subr.bf16.mxu0 %v1620
    %2122 = vmatpush2.bf16.msra.mxu0 %v1619
    %2123 = vmatprep.subr.bf16.mxu0 %v1616
    %2124 = vmatpush2.bf16.msra.mxu0 %v1615
    %2125 = vmatprep.subr.bf16.mxu0 %v1612
    %2126 = vmatpush2.bf16.msra.mxu0 %v1611
    %2127 = vmatprep.subr.bf16.mxu0 %v1608
    %2128 = vmatpush2.bf16.msra.mxu0 %v1607
    %2129 = vmatprep.subr.bf16.mxu0 %v1604
    %2130 = vmatpush2.bf16.msra.mxu0 %v1603
    %2131 = vmatprep.subr.bf16.mxu0 %v1600
    %2132 = vmatpush2.bf16.msra.mxu0 %v1599
    %2133 = vmatprep.subr.bf16.mxu0 %v1596
    %2134 = vmatpush2.bf16.msra.mxu0 %v1595
    %2135 = vmatprep.subr.bf16.mxu0 %v1592
    %2136 = vmatpush2.bf16.msra.mxu0 %v1591
    %2137 = vmatprep.mubr.bf16.mxu0 %v652
    %2138 = vmatmul.mubr.bf16.gmra.mxu0 %v651
    %v2139 = vpop.f32.mrf.mxu0
    %v2140 = vadd.f32 %v2027, %v2139
    %v2141 = vpop.f32.mrf.mxu0
    %v2142 = vadd.f32 %v2029, %v2141
    %v2143 = vpop.f32.mrf.mxu0
    %v2144 = vadd.f32 %v2031, %v2143
    %v2145 = vpop.f32.mrf.mxu0
    %v2146 = vadd.f32 %v2033, %v2145
    %2147 = vmatprep.mubr.bf16.mxu0 %v659
    %2148 = vmatmul.mubr.bf16.gmra.mxu0 %v658
    %v2149 = vpop.f32.mrf.mxu0
    %v2150 = vadd.f32 %v2037, %v2149
    %v2151 = vpop.f32.mrf.mxu0
    %v2152 = vadd.f32 %v2039, %v2151
    %v2153 = vpop.f32.mrf.mxu0
    %v2154 = vadd.f32 %v2041, %v2153
    %v2155 = vpop.f32.mrf.mxu0
    %v2156 = vadd.f32 %v2043, %v2155
    %2157 = vmatprep.mubr.bf16.mxu0 %v666
    %2158 = vmatmul.mubr.bf16.gmra.mxu0 %v665
    %v2159 = vpop.f32.mrf.mxu0
    %v2160 = vadd.f32 %v2047, %v2159
    %v2161 = vpop.f32.mrf.mxu0
    %v2162 = vadd.f32 %v2049, %v2161
    %v2163 = vpop.f32.mrf.mxu0
    %v2164 = vadd.f32 %v2051, %v2163
    %v2165 = vpop.f32.mrf.mxu0
    %v2166 = vadd.f32 %v2053, %v2165
    %2167 = vmatprep.mubr.bf16.mxu0 %v673
    %2168 = vmatmul.mubr.bf16.gmra.mxu0 %v672
    %v2169 = vpop.f32.mrf.mxu0
    %v2170 = vadd.f32 %v2057, %v2169
    %v2171 = vpop.f32.mrf.mxu0
    %v2172 = vadd.f32 %v2059, %v2171
    %v2173 = vpop.f32.mrf.mxu0
    %v2174 = vadd.f32 %v2061, %v2173
    %v2175 = vpop.f32.mrf.mxu0
    %v2176 = vadd.f32 %v2063, %v2175
    %2177 = vmatprep.mubr.bf16.mxu0 %v680
    %2178 = vmatmul.mubr.bf16.gmra.mxu0 %v679
    %v2179 = vpop.f32.mrf.mxu0
    %v2180 = vadd.f32 %v2067, %v2179
    %v2181 = vpop.f32.mrf.mxu0
    %v2182 = vadd.f32 %v2069, %v2181
    %v2183 = vpop.f32.mrf.mxu0
    %v2184 = vadd.f32 %v2071, %v2183
    %v2185 = vpop.f32.mrf.mxu0
    %v2186 = vadd.f32 %v2073, %v2185
    %2187 = vmatprep.mubr.bf16.mxu0 %v687
    %2188 = vmatmul.mubr.bf16.gmra.mxu0 %v686
    %v2189 = vpop.f32.mrf.mxu0
    %v2190 = vadd.f32 %v2077, %v2189
    %v2191 = vpop.f32.mrf.mxu0
    %v2192 = vadd.f32 %v2079, %v2191
    %v2193 = vpop.f32.mrf.mxu0
    %v2194 = vadd.f32 %v2081, %v2193
    %v2195 = vpop.f32.mrf.mxu0
    %v2196 = vadd.f32 %v2083, %v2195
    %2197 = vmatprep.mubr.bf16.mxu0 %v694
    %2198 = vmatmul.mubr.bf16.gmra.mxu0 %v693
    %v2199 = vpop.f32.mrf.mxu0
    %v2200 = vadd.f32 %v2087, %v2199
    %v2201 = vpop.f32.mrf.mxu0
    %v2202 = vadd.f32 %v2089, %v2201
    %v2203 = vpop.f32.mrf.mxu0
    %v2204 = vadd.f32 %v2091, %v2203
    %v2205 = vpop.f32.mrf.mxu0
    %v2206 = vadd.f32 %v2093, %v2205
    %2207 = vmatprep.mubr.bf16.mxu0 %v701
    %2208 = vmatmul.mubr.bf16.gmra.mxu0 %v700
    %v2209 = vpop.f32.mrf.mxu0
    %v2210 = vadd.f32 %v2097, %v2209
    %v2211 = vpop.f32.mrf.mxu0
    %v2212 = vadd.f32 %v2099, %v2211
    %v2213 = vpop.f32.mrf.mxu0
    %v2214 = vadd.f32 %v2101, %v2213
    %v2215 = vpop.f32.mrf.mxu0
    %v2216 = vadd.f32 %v2103, %v2215
    %2217 = vdwg.mxu0
    %2218 = vmatprep.subr.bf16.mxu0 %v1652
    %2219 = vmatpush1.bf16.msra.mxu0 %v1651
    %2220 = vmatprep.subr.bf16.mxu0 %v1648
    %2221 = vmatpush1.bf16.msra.mxu0 %v1647
    %2222 = vmatprep.subr.bf16.mxu0 %v1644
    %2223 = vmatpush1.bf16.msra.mxu0 %v1643
    %2224 = vmatprep.subr.bf16.mxu0 %v1640
    %2225 = vmatpush1.bf16.msra.mxu0 %v1639
    %2226 = vmatprep.subr.bf16.mxu0 %v1636
    %2227 = vmatpush1.bf16.msra.mxu0 %v1635
    %2228 = vmatprep.subr.bf16.mxu0 %v1632
    %2229 = vmatpush1.bf16.msra.mxu0 %v1631
    %2230 = vmatprep.subr.bf16.mxu0 %v1628
    %2231 = vmatpush1.bf16.msra.mxu0 %v1627
    %2232 = vmatprep.subr.bf16.mxu0 %v1624
    %2233 = vmatpush1.bf16.msra.mxu0 %v1623
    %2234 = vmatprep.subr.bf16.mxu0 0
    %2235 = vmatpush2.bf16.msra.mxu0 0
    %2236 = vmatprep.subr.bf16.mxu0 0
    %2237 = vmatpush2.bf16.msra.mxu0 0
    %2238 = vmatprep.subr.bf16.mxu0 0
    %2239 = vmatpush2.bf16.msra.mxu0 0
    %2240 = vmatprep.subr.bf16.mxu0 0
    %2241 = vmatpush2.bf16.msra.mxu0 0
    %2242 = vmatprep.subr.bf16.mxu0 0
    %2243 = vmatpush2.bf16.msra.mxu0 0
    %2244 = vmatprep.subr.bf16.mxu0 0
    %2245 = vmatpush2.bf16.msra.mxu0 0
    %2246 = vmatprep.subr.bf16.mxu0 0
    %2247 = vmatpush2.bf16.msra.mxu0 0
    %2248 = vmatprep.subr.bf16.mxu0 0
    %2249 = vmatpush2.bf16.msra.mxu0 0
    %2250 = vmatprep.mubr.bf16.mxu0 0
    %2251 = vmatmul.mubr.bf16.gmra.mxu0 %v653
    %v2252 = vpop.f32.mrf.mxu0
    %v2253 = vadd.f32 %v2140, %v2252
    %v2254 = vpop.f32.mrf.mxu0
    %v2255 = vadd.f32 %v2142, %v2254
    %v2256 = vpop.f32.mrf.mxu0
    %v2257 = vadd.f32 %v2144, %v2256
    %v2258 = vpop.f32.mrf.mxu0
    %v2259 = vadd.f32 %v2146, %v2258
    %2260 = vmatprep.mubr.bf16.mxu0 0
    %2261 = vmatmul.mubr.bf16.gmra.mxu0 %v660
    %v2262 = vpop.f32.mrf.mxu0
    %v2263 = vadd.f32 %v2150, %v2262
    %v2264 = vpop.f32.mrf.mxu0
    %v2265 = vadd.f32 %v2152, %v2264
    %v2266 = vpop.f32.mrf.mxu0
    %v2267 = vadd.f32 %v2154, %v2266
    %v2268 = vpop.f32.mrf.mxu0
    %v2269 = vadd.f32 %v2156, %v2268
    %2270 = vmatprep.mubr.bf16.mxu0 0
    %2271 = vmatmul.mubr.bf16.gmra.mxu0 %v667
    %v2272 = vpop.f32.mrf.mxu0
    %v2273 = vadd.f32 %v2160, %v2272
    %v2274 = vpop.f32.mrf.mxu0
    %v2275 = vadd.f32 %v2162, %v2274
    %v2276 = vpop.f32.mrf.mxu0
    %v2277 = vadd.f32 %v2164, %v2276
    %v2278 = vpop.f32.mrf.mxu0
    %v2279 = vadd.f32 %v2166, %v2278
    %2280 = vmatprep.mubr.bf16.mxu0 0
    %2281 = vmatmul.mubr.bf16.gmra.mxu0 %v674
    %v2282 = vpop.f32.mrf.mxu0
    %v2283 = vadd.f32 %v2170, %v2282
    %v2284 = vpop.f32.mrf.mxu0
    %v2285 = vadd.f32 %v2172, %v2284
    %v2286 = vpop.f32.mrf.mxu0
    %v2287 = vadd.f32 %v2174, %v2286
    %v2288 = vpop.f32.mrf.mxu0
    %v2289 = vadd.f32 %v2176, %v2288
    %2290 = vmatprep.mubr.bf16.mxu0 0
    %2291 = vmatmul.mubr.bf16.gmra.mxu0 %v681
    %v2292 = vpop.f32.mrf.mxu0
    %v2293 = vadd.f32 %v2180, %v2292
    %v2294 = vpop.f32.mrf.mxu0
    %v2295 = vadd.f32 %v2182, %v2294
    %v2296 = vpop.f32.mrf.mxu0
    %v2297 = vadd.f32 %v2184, %v2296
    %v2298 = vpop.f32.mrf.mxu0
    %v2299 = vadd.f32 %v2186, %v2298
    %2300 = vmatprep.mubr.bf16.mxu0 0
    %2301 = vmatmul.mubr.bf16.gmra.mxu0 %v688
    %v2302 = vpop.f32.mrf.mxu0
    %v2303 = vadd.f32 %v2190, %v2302
    %v2304 = vpop.f32.mrf.mxu0
    %v2305 = vadd.f32 %v2192, %v2304
    %v2306 = vpop.f32.mrf.mxu0
    %v2307 = vadd.f32 %v2194, %v2306
    %v2308 = vpop.f32.mrf.mxu0
    %v2309 = vadd.f32 %v2196, %v2308
    %2310 = vmatprep.mubr.bf16.mxu0 0
    %2311 = vmatmul.mubr.bf16.gmra.mxu0 %v695
    %v2312 = vpop.f32.mrf.mxu0
    %v2313 = vadd.f32 %v2200, %v2312
    %v2314 = vpop.f32.mrf.mxu0
    %v2315 = vadd.f32 %v2202, %v2314
    %v2316 = vpop.f32.mrf.mxu0
    %v2317 = vadd.f32 %v2204, %v2316
    %v2318 = vpop.f32.mrf.mxu0
    %v2319 = vadd.f32 %v2206, %v2318
    %2320 = vmatprep.mubr.bf16.mxu0 0
    %2321 = vmatmul.mubr.bf16.gmra.mxu0 %v702
    %v2322 = vpop.f32.mrf.mxu0
    %v2323 = vadd.f32 %v2210, %v2322
    %v2324 = vpop.f32.mrf.mxu0
    %v2325 = vadd.f32 %v2212, %v2324
    %v2326 = vpop.f32.mrf.mxu0
    %v2327 = vadd.f32 %v2214, %v2326
    %v2328 = vpop.f32.mrf.mxu0
    %v2329 = vadd.f32 %v2216, %v2328
    %2330 = vdwg.mxu0
    %2331 = vmatprep.subr.bf16.mxu0 %v1462
    %2332 = vmatpush1.bf16.msra.mxu0 %v1461
    %2333 = vmatprep.subr.bf16.mxu0 %v1458
    %2334 = vmatpush1.bf16.msra.mxu0 %v1457
    %2335 = vmatprep.subr.bf16.mxu0 %v1454
    %2336 = vmatpush1.bf16.msra.mxu0 %v1453
    %2337 = vmatprep.subr.bf16.mxu0 %v1450
    %2338 = vmatpush1.bf16.msra.mxu0 %v1449
    %2339 = vmatprep.subr.bf16.mxu0 %v1446
    %2340 = vmatpush1.bf16.msra.mxu0 %v1445
    %2341 = vmatprep.subr.bf16.mxu0 %v1442
    %2342 = vmatpush1.bf16.msra.mxu0 %v1441
    %2343 = vmatprep.subr.bf16.mxu0 %v1438
    %2344 = vmatpush1.bf16.msra.mxu0 %v1437
    %2345 = vmatprep.subr.bf16.mxu0 %v1434
    %2346 = vmatpush1.bf16.msra.mxu0 %v1433
    %2347 = vmatprep.subr.bf16.mxu0 %v1494
    %2348 = vmatpush2.bf16.msra.mxu0 %v1493
    %2349 = vmatprep.subr.bf16.mxu0 %v1490
    %2350 = vmatpush2.bf16.msra.mxu0 %v1489
    %2351 = vmatprep.subr.bf16.mxu0 %v1486
    %2352 = vmatpush2.bf16.msra.mxu0 %v1485
    %2353 = vmatprep.subr.bf16.mxu0 %v1482
    %2354 = vmatpush2.bf16.msra.mxu0 %v1481
    %2355 = vmatprep.subr.bf16.mxu0 %v1478
    %2356 = vmatpush2.bf16.msra.mxu0 %v1477
    %2357 = vmatprep.subr.bf16.mxu0 %v1474
    %2358 = vmatpush2.bf16.msra.mxu0 %v1473
    %2359 = vmatprep.subr.bf16.mxu0 %v1470
    %2360 = vmatpush2.bf16.msra.mxu0 %v1469
    %2361 = vmatprep.subr.bf16.mxu0 %v1466
    %2362 = vmatpush2.bf16.msra.mxu0 %v1465
    %2363 = vmatprep.mubr.bf16.mxu0 %v648
    %2364 = vmatmul.mubr.bf16.gmra.mxu0 %v647
    %v2365 = vpop.f32.mrf.mxu0
    %v2366 = vadd.f32 0.0, %v2365
    %v2367 = vpop.f32.mrf.mxu0
    %v2368 = vadd.f32 0.0, %v2367
    %v2369 = vpop.f32.mrf.mxu0
    %v2370 = vadd.f32 0.0, %v2369
    %v2371 = vpop.f32.mrf.mxu0
    %v2372 = vadd.f32 0.0, %v2371
    %2373 = vmatprep.mubr.bf16.mxu0 %v655
    %2374 = vmatmul.mubr.bf16.gmra.mxu0 %v654
    %v2375 = vpop.f32.mrf.mxu0
    %v2376 = vadd.f32 0.0, %v2375
    %v2377 = vpop.f32.mrf.mxu0
    %v2378 = vadd.f32 0.0, %v2377
    %v2379 = vpop.f32.mrf.mxu0
    %v2380 = vadd.f32 0.0, %v2379
    %v2381 = vpop.f32.mrf.mxu0
    %v2382 = vadd.f32 0.0, %v2381
    %2383 = vmatprep.mubr.bf16.mxu0 %v662
    %2384 = vmatmul.mubr.bf16.gmra.mxu0 %v661
    %v2385 = vpop.f32.mrf.mxu0
    %v2386 = vadd.f32 0.0, %v2385
    %v2387 = vpop.f32.mrf.mxu0
    %v2388 = vadd.f32 0.0, %v2387
    %v2389 = vpop.f32.mrf.mxu0
    %v2390 = vadd.f32 0.0, %v2389
    %v2391 = vpop.f32.mrf.mxu0
    %v2392 = vadd.f32 0.0, %v2391
    %2393 = vmatprep.mubr.bf16.mxu0 %v669
    %2394 = vmatmul.mubr.bf16.gmra.mxu0 %v668
    %v2395 = vpop.f32.mrf.mxu0
    %v2396 = vadd.f32 0.0, %v2395
    %v2397 = vpop.f32.mrf.mxu0
    %v2398 = vadd.f32 0.0, %v2397
    %v2399 = vpop.f32.mrf.mxu0
    %v2400 = vadd.f32 0.0, %v2399
    %v2401 = vpop.f32.mrf.mxu0
    %v2402 = vadd.f32 0.0, %v2401
    %2403 = vmatprep.mubr.bf16.mxu0 %v676
    %2404 = vmatmul.mubr.bf16.gmra.mxu0 %v675
    %v2405 = vpop.f32.mrf.mxu0
    %v2406 = vadd.f32 0.0, %v2405
    %v2407 = vpop.f32.mrf.mxu0
    %v2408 = vadd.f32 0.0, %v2407
    %v2409 = vpop.f32.mrf.mxu0
    %v2410 = vadd.f32 0.0, %v2409
    %v2411 = vpop.f32.mrf.mxu0
    %v2412 = vadd.f32 0.0, %v2411
    %2413 = vmatprep.mubr.bf16.mxu0 %v683
    %2414 = vmatmul.mubr.bf16.gmra.mxu0 %v682
    %v2415 = vpop.f32.mrf.mxu0
    %v2416 = vadd.f32 0.0, %v2415
    %v2417 = vpop.f32.mrf.mxu0
    %v2418 = vadd.f32 0.0, %v2417
    %v2419 = vpop.f32.mrf.mxu0
    %v2420 = vadd.f32 0.0, %v2419
    %v2421 = vpop.f32.mrf.mxu0
    %v2422 = vadd.f32 0.0, %v2421
    %2423 = vmatprep.mubr.bf16.mxu0 %v690
    %2424 = vmatmul.mubr.bf16.gmra.mxu0 %v689
    %v2425 = vpop.f32.mrf.mxu0
    %v2426 = vadd.f32 0.0, %v2425
    %v2427 = vpop.f32.mrf.mxu0
    %v2428 = vadd.f32 0.0, %v2427
    %v2429 = vpop.f32.mrf.mxu0
    %v2430 = vadd.f32 0.0, %v2429
    %v2431 = vpop.f32.mrf.mxu0
    %v2432 = vadd.f32 0.0, %v2431
    %2433 = vmatprep.mubr.bf16.mxu0 %v697
    %2434 = vmatmul.mubr.bf16.gmra.mxu0 %v696
    %v2435 = vpop.f32.mrf.mxu0
    %v2436 = vadd.f32 0.0, %v2435
    %v2437 = vpop.f32.mrf.mxu0
    %v2438 = vadd.f32 0.0, %v2437
    %v2439 = vpop.f32.mrf.mxu0
    %v2440 = vadd.f32 0.0, %v2439
    %v2441 = vpop.f32.mrf.mxu0
    %v2442 = vadd.f32 0.0, %v2441
    %2443 = vdwg.mxu0
    %2444 = vmatprep.subr.bf16.mxu0 %v1526
    %2445 = vmatpush1.bf16.msra.mxu0 %v1525
    %2446 = vmatprep.subr.bf16.mxu0 %v1522
    %2447 = vmatpush1.bf16.msra.mxu0 %v1521
    %2448 = vmatprep.subr.bf16.mxu0 %v1518
    %2449 = vmatpush1.bf16.msra.mxu0 %v1517
    %2450 = vmatprep.subr.bf16.mxu0 %v1514
    %2451 = vmatpush1.bf16.msra.mxu0 %v1513
    %2452 = vmatprep.subr.bf16.mxu0 %v1510
    %2453 = vmatpush1.bf16.msra.mxu0 %v1509
    %2454 = vmatprep.subr.bf16.mxu0 %v1506
    %2455 = vmatpush1.bf16.msra.mxu0 %v1505
    %2456 = vmatprep.subr.bf16.mxu0 %v1502
    %2457 = vmatpush1.bf16.msra.mxu0 %v1501
    %2458 = vmatprep.subr.bf16.mxu0 %v1498
    %2459 = vmatpush1.bf16.msra.mxu0 %v1497
    %2460 = vmatprep.subr.bf16.mxu0 %v1558
    %2461 = vmatpush2.bf16.msra.mxu0 %v1557
    %2462 = vmatprep.subr.bf16.mxu0 %v1554
    %2463 = vmatpush2.bf16.msra.mxu0 %v1553
    %2464 = vmatprep.subr.bf16.mxu0 %v1550
    %2465 = vmatpush2.bf16.msra.mxu0 %v1549
    %2466 = vmatprep.subr.bf16.mxu0 %v1546
    %2467 = vmatpush2.bf16.msra.mxu0 %v1545
    %2468 = vmatprep.subr.bf16.mxu0 %v1542
    %2469 = vmatpush2.bf16.msra.mxu0 %v1541
    %2470 = vmatprep.subr.bf16.mxu0 %v1538
    %2471 = vmatpush2.bf16.msra.mxu0 %v1537
    %2472 = vmatprep.subr.bf16.mxu0 %v1534
    %2473 = vmatpush2.bf16.msra.mxu0 %v1533
    %2474 = vmatprep.subr.bf16.mxu0 %v1530
    %2475 = vmatpush2.bf16.msra.mxu0 %v1529
    %2476 = vmatprep.mubr.bf16.mxu0 %v650
    %2477 = vmatmul.mubr.bf16.gmra.mxu0 %v649
    %v2478 = vpop.f32.mrf.mxu0
    %v2479 = vadd.f32 %v2366, %v2478
    %v2480 = vpop.f32.mrf.mxu0
    %v2481 = vadd.f32 %v2368, %v2480
    %v2482 = vpop.f32.mrf.mxu0
    %v2483 = vadd.f32 %v2370, %v2482
    %v2484 = vpop.f32.mrf.mxu0
    %v2485 = vadd.f32 %v2372, %v2484
    %2486 = vmatprep.mubr.bf16.mxu0 %v657
    %2487 = vmatmul.mubr.bf16.gmra.mxu0 %v656
    %v2488 = vpop.f32.mrf.mxu0
    %v2489 = vadd.f32 %v2376, %v2488
    %v2490 = vpop.f32.mrf.mxu0
    %v2491 = vadd.f32 %v2378, %v2490
    %v2492 = vpop.f32.mrf.mxu0
    %v2493 = vadd.f32 %v2380, %v2492
    %v2494 = vpop.f32.mrf.mxu0
    %v2495 = vadd.f32 %v2382, %v2494
    %2496 = vmatprep.mubr.bf16.mxu0 %v664
    %2497 = vmatmul.mubr.bf16.gmra.mxu0 %v663
    %v2498 = vpop.f32.mrf.mxu0
    %v2499 = vadd.f32 %v2386, %v2498
    %v2500 = vpop.f32.mrf.mxu0
    %v2501 = vadd.f32 %v2388, %v2500
    %v2502 = vpop.f32.mrf.mxu0
    %v2503 = vadd.f32 %v2390, %v2502
    %v2504 = vpop.f32.mrf.mxu0
    %v2505 = vadd.f32 %v2392, %v2504
    %2506 = vmatprep.mubr.bf16.mxu0 %v671
    %2507 = vmatmul.mubr.bf16.gmra.mxu0 %v670
    %v2508 = vpop.f32.mrf.mxu0
    %v2509 = vadd.f32 %v2396, %v2508
    %v2510 = vpop.f32.mrf.mxu0
    %v2511 = vadd.f32 %v2398, %v2510
    %v2512 = vpop.f32.mrf.mxu0
    %v2513 = vadd.f32 %v2400, %v2512
    %v2514 = vpop.f32.mrf.mxu0
    %v2515 = vadd.f32 %v2402, %v2514
    %2516 = vmatprep.mubr.bf16.mxu0 %v678
    %2517 = vmatmul.mubr.bf16.gmra.mxu0 %v677
    %v2518 = vpop.f32.mrf.mxu0
    %v2519 = vadd.f32 %v2406, %v2518
    %v2520 = vpop.f32.mrf.mxu0
    %v2521 = vadd.f32 %v2408, %v2520
    %v2522 = vpop.f32.mrf.mxu0
    %v2523 = vadd.f32 %v2410, %v2522
    %v2524 = vpop.f32.mrf.mxu0
    %v2525 = vadd.f32 %v2412, %v2524
    %2526 = vmatprep.mubr.bf16.mxu0 %v685
    %2527 = vmatmul.mubr.bf16.gmra.mxu0 %v684
    %v2528 = vpop.f32.mrf.mxu0
    %v2529 = vadd.f32 %v2416, %v2528
    %v2530 = vpop.f32.mrf.mxu0
    %v2531 = vadd.f32 %v2418, %v2530
    %v2532 = vpop.f32.mrf.mxu0
    %v2533 = vadd.f32 %v2420, %v2532
    %v2534 = vpop.f32.mrf.mxu0
    %v2535 = vadd.f32 %v2422, %v2534
    %2536 = vmatprep.mubr.bf16.mxu0 %v692
    %2537 = vmatmul.mubr.bf16.gmra.mxu0 %v691
    %v2538 = vpop.f32.mrf.mxu0
    %v2539 = vadd.f32 %v2426, %v2538
    %v2540 = vpop.f32.mrf.mxu0
    %v2541 = vadd.f32 %v2428, %v2540
    %v2542 = vpop.f32.mrf.mxu0
    %v2543 = vadd.f32 %v2430, %v2542
    %v2544 = vpop.f32.mrf.mxu0
    %v2545 = vadd.f32 %v2432, %v2544
    %2546 = vmatprep.mubr.bf16.mxu0 %v699
    %2547 = vmatmul.mubr.bf16.gmra.mxu0 %v698
    %v2548 = vpop.f32.mrf.mxu0
    %v2549 = vadd.f32 %v2436, %v2548
    %v2550 = vpop.f32.mrf.mxu0
    %v2551 = vadd.f32 %v2438, %v2550
    %v2552 = vpop.f32.mrf.mxu0
    %v2553 = vadd.f32 %v2440, %v2552
    %v2554 = vpop.f32.mrf.mxu0
    %v2555 = vadd.f32 %v2442, %v2554
    %2556 = vdwg.mxu0
    %2557 = vmatprep.subr.bf16.mxu0 %v1590
    %2558 = vmatpush1.bf16.msra.mxu0 %v1589
    %2559 = vmatprep.subr.bf16.mxu0 %v1586
    %2560 = vmatpush1.bf16.msra.mxu0 %v1585
    %2561 = vmatprep.subr.bf16.mxu0 %v1582
    %2562 = vmatpush1.bf16.msra.mxu0 %v1581
    %2563 = vmatprep.subr.bf16.mxu0 %v1578
    %2564 = vmatpush1.bf16.msra.mxu0 %v1577
    %2565 = vmatprep.subr.bf16.mxu0 %v1574
    %2566 = vmatpush1.bf16.msra.mxu0 %v1573
    %2567 = vmatprep.subr.bf16.mxu0 %v1570
    %2568 = vmatpush1.bf16.msra.mxu0 %v1569
    %2569 = vmatprep.subr.bf16.mxu0 %v1566
    %2570 = vmatpush1.bf16.msra.mxu0 %v1565
    %2571 = vmatprep.subr.bf16.mxu0 %v1562
    %2572 = vmatpush1.bf16.msra.mxu0 %v1561
    %2573 = vmatprep.subr.bf16.mxu0 %v1622
    %2574 = vmatpush2.bf16.msra.mxu0 %v1621
    %2575 = vmatprep.subr.bf16.mxu0 %v1618
    %2576 = vmatpush2.bf16.msra.mxu0 %v1617
    %2577 = vmatprep.subr.bf16.mxu0 %v1614
    %2578 = vmatpush2.bf16.msra.mxu0 %v1613
    %2579 = vmatprep.subr.bf16.mxu0 %v1610
    %2580 = vmatpush2.bf16.msra.mxu0 %v1609
    %2581 = vmatprep.subr.bf16.mxu0 %v1606
    %2582 = vmatpush2.bf16.msra.mxu0 %v1605
    %2583 = vmatprep.subr.bf16.mxu0 %v1602
    %2584 = vmatpush2.bf16.msra.mxu0 %v1601
    %2585 = vmatprep.subr.bf16.mxu0 %v1598
    %2586 = vmatpush2.bf16.msra.mxu0 %v1597
    %2587 = vmatprep.subr.bf16.mxu0 %v1594
    %2588 = vmatpush2.bf16.msra.mxu0 %v1593
    %2589 = vmatprep.mubr.bf16.mxu0 %v652
    %2590 = vmatmul.mubr.bf16.gmra.mxu0 %v651
    %v2591 = vpop.f32.mrf.mxu0
    %v2592 = vadd.f32 %v2479, %v2591
    %v2593 = vpop.f32.mrf.mxu0
    %v2594 = vadd.f32 %v2481, %v2593
    %v2595 = vpop.f32.mrf.mxu0
    %v2596 = vadd.f32 %v2483, %v2595
    %v2597 = vpop.f32.mrf.mxu0
    %v2598 = vadd.f32 %v2485, %v2597
    %2599 = vmatprep.mubr.bf16.mxu0 %v659
    %2600 = vmatmul.mubr.bf16.gmra.mxu0 %v658
    %v2601 = vpop.f32.mrf.mxu0
    %v2602 = vadd.f32 %v2489, %v2601
    %v2603 = vpop.f32.mrf.mxu0
    %v2604 = vadd.f32 %v2491, %v2603
    %v2605 = vpop.f32.mrf.mxu0
    %v2606 = vadd.f32 %v2493, %v2605
    %v2607 = vpop.f32.mrf.mxu0
    %v2608 = vadd.f32 %v2495, %v2607
    %2609 = vmatprep.mubr.bf16.mxu0 %v666
    %2610 = vmatmul.mubr.bf16.gmra.mxu0 %v665
    %v2611 = vpop.f32.mrf.mxu0
    %v2612 = vadd.f32 %v2499, %v2611
    %v2613 = vpop.f32.mrf.mxu0
    %v2614 = vadd.f32 %v2501, %v2613
    %v2615 = vpop.f32.mrf.mxu0
    %v2616 = vadd.f32 %v2503, %v2615
    %v2617 = vpop.f32.mrf.mxu0
    %v2618 = vadd.f32 %v2505, %v2617
    %2619 = vmatprep.mubr.bf16.mxu0 %v673
    %2620 = vmatmul.mubr.bf16.gmra.mxu0 %v672
    %v2621 = vpop.f32.mrf.mxu0
    %v2622 = vadd.f32 %v2509, %v2621
    %v2623 = vpop.f32.mrf.mxu0
    %v2624 = vadd.f32 %v2511, %v2623
    %v2625 = vpop.f32.mrf.mxu0
    %v2626 = vadd.f32 %v2513, %v2625
    %v2627 = vpop.f32.mrf.mxu0
    %v2628 = vadd.f32 %v2515, %v2627
    %2629 = vmatprep.mubr.bf16.mxu0 %v680
    %2630 = vmatmul.mubr.bf16.gmra.mxu0 %v679
    %v2631 = vpop.f32.mrf.mxu0
    %v2632 = vadd.f32 %v2519, %v2631
    %v2633 = vpop.f32.mrf.mxu0
    %v2634 = vadd.f32 %v2521, %v2633
    %v2635 = vpop.f32.mrf.mxu0
    %v2636 = vadd.f32 %v2523, %v2635
    %v2637 = vpop.f32.mrf.mxu0
    %v2638 = vadd.f32 %v2525, %v2637
    %2639 = vmatprep.mubr.bf16.mxu0 %v687
    %2640 = vmatmul.mubr.bf16.gmra.mxu0 %v686
    %v2641 = vpop.f32.mrf.mxu0
    %v2642 = vadd.f32 %v2529, %v2641
    %v2643 = vpop.f32.mrf.mxu0
    %v2644 = vadd.f32 %v2531, %v2643
    %v2645 = vpop.f32.mrf.mxu0
    %v2646 = vadd.f32 %v2533, %v2645
    %v2647 = vpop.f32.mrf.mxu0
    %v2648 = vadd.f32 %v2535, %v2647
    %2649 = vmatprep.mubr.bf16.mxu0 %v694
    %2650 = vmatmul.mubr.bf16.gmra.mxu0 %v693
    %v2651 = vpop.f32.mrf.mxu0
    %v2652 = vadd.f32 %v2539, %v2651
    %v2653 = vpop.f32.mrf.mxu0
    %v2654 = vadd.f32 %v2541, %v2653
    %v2655 = vpop.f32.mrf.mxu0
    %v2656 = vadd.f32 %v2543, %v2655
    %v2657 = vpop.f32.mrf.mxu0
    %v2658 = vadd.f32 %v2545, %v2657
    %2659 = vmatprep.mubr.bf16.mxu0 %v701
    %2660 = vmatmul.mubr.bf16.gmra.mxu0 %v700
    %v2661 = vpop.f32.mrf.mxu0
    %v2662 = vadd.f32 %v2549, %v2661
    %v2663 = vpop.f32.mrf.mxu0
    %v2664 = vadd.f32 %v2551, %v2663
    %v2665 = vpop.f32.mrf.mxu0
    %v2666 = vadd.f32 %v2553, %v2665
    %v2667 = vpop.f32.mrf.mxu0
    %v2668 = vadd.f32 %v2555, %v2667
    %2669 = vdwg.mxu0
    %2670 = vmatprep.subr.bf16.mxu0 %v1654
    %2671 = vmatpush1.bf16.msra.mxu0 %v1653
    %2672 = vmatprep.subr.bf16.mxu0 %v1650
    %2673 = vmatpush1.bf16.msra.mxu0 %v1649
    %2674 = vmatprep.subr.bf16.mxu0 %v1646
    %2675 = vmatpush1.bf16.msra.mxu0 %v1645
    %2676 = vmatprep.subr.bf16.mxu0 %v1642
    %2677 = vmatpush1.bf16.msra.mxu0 %v1641
    %2678 = vmatprep.subr.bf16.mxu0 %v1638
    %2679 = vmatpush1.bf16.msra.mxu0 %v1637
    %2680 = vmatprep.subr.bf16.mxu0 %v1634
    %2681 = vmatpush1.bf16.msra.mxu0 %v1633
    %2682 = vmatprep.subr.bf16.mxu0 %v1630
    %2683 = vmatpush1.bf16.msra.mxu0 %v1629
    %2684 = vmatprep.subr.bf16.mxu0 %v1626
    %2685 = vmatpush1.bf16.msra.mxu0 %v1625
    %2686 = vmatprep.subr.bf16.mxu0 0
    %2687 = vmatpush2.bf16.msra.mxu0 0
    %2688 = vmatprep.subr.bf16.mxu0 0
    %2689 = vmatpush2.bf16.msra.mxu0 0
    %2690 = vmatprep.subr.bf16.mxu0 0
    %2691 = vmatpush2.bf16.msra.mxu0 0
    %2692 = vmatprep.subr.bf16.mxu0 0
    %2693 = vmatpush2.bf16.msra.mxu0 0
    %2694 = vmatprep.subr.bf16.mxu0 0
    %2695 = vmatpush2.bf16.msra.mxu0 0
    %2696 = vmatprep.subr.bf16.mxu0 0
    %2697 = vmatpush2.bf16.msra.mxu0 0
    %2698 = vmatprep.subr.bf16.mxu0 0
    %2699 = vmatpush2.bf16.msra.mxu0 0
    %2700 = vmatprep.subr.bf16.mxu0 0
    %2701 = vmatpush2.bf16.msra.mxu0 0
    %2702 = vmatprep.mubr.bf16.mxu0 0
    %2703 = vmatmul.mubr.bf16.gmra.mxu0 %v653
    %v2704 = vpop.f32.mrf.mxu0
    %v2705 = vadd.f32 %v2592, %v2704
    %v2706 = vpop.f32.mrf.mxu0
    %v2707 = vadd.f32 %v2594, %v2706
    %v2708 = vpop.f32.mrf.mxu0
    %v2709 = vadd.f32 %v2596, %v2708
    %v2710 = vpop.f32.mrf.mxu0
    %v2711 = vadd.f32 %v2598, %v2710
    %2712 = vmatprep.mubr.bf16.mxu0 0
    %2713 = vmatmul.mubr.bf16.gmra.mxu0 %v660
    %v2714 = vpop.f32.mrf.mxu0
    %v2715 = vadd.f32 %v2602, %v2714
    %v2716 = vpop.f32.mrf.mxu0
    %v2717 = vadd.f32 %v2604, %v2716
    %v2718 = vpop.f32.mrf.mxu0
    %v2719 = vadd.f32 %v2606, %v2718
    %v2720 = vpop.f32.mrf.mxu0
    %v2721 = vadd.f32 %v2608, %v2720
    %2722 = vmatprep.mubr.bf16.mxu0 0
    %2723 = vmatmul.mubr.bf16.gmra.mxu0 %v667
    %v2724 = vpop.f32.mrf.mxu0
    %v2725 = vadd.f32 %v2612, %v2724
    %v2726 = vpop.f32.mrf.mxu0
    %v2727 = vadd.f32 %v2614, %v2726
    %v2728 = vpop.f32.mrf.mxu0
    %v2729 = vadd.f32 %v2616, %v2728
    %v2730 = vpop.f32.mrf.mxu0
    %v2731 = vadd.f32 %v2618, %v2730
    %2732 = vmatprep.mubr.bf16.mxu0 0
    %2733 = vmatmul.mubr.bf16.gmra.mxu0 %v674
    %v2734 = vpop.f32.mrf.mxu0
    %v2735 = vadd.f32 %v2622, %v2734
    %v2736 = vpop.f32.mrf.mxu0
    %v2737 = vadd.f32 %v2624, %v2736
    %v2738 = vpop.f32.mrf.mxu0
    %v2739 = vadd.f32 %v2626, %v2738
    %v2740 = vpop.f32.mrf.mxu0
    %v2741 = vadd.f32 %v2628, %v2740
    %2742 = vmatprep.mubr.bf16.mxu0 0
    %2743 = vmatmul.mubr.bf16.gmra.mxu0 %v681
    %v2744 = vpop.f32.mrf.mxu0
    %v2745 = vadd.f32 %v2632, %v2744
    %v2746 = vpop.f32.mrf.mxu0
    %v2747 = vadd.f32 %v2634, %v2746
    %v2748 = vpop.f32.mrf.mxu0
    %v2749 = vadd.f32 %v2636, %v2748
    %v2750 = vpop.f32.mrf.mxu0
    %v2751 = vadd.f32 %v2638, %v2750
    %2752 = vmatprep.mubr.bf16.mxu0 0
    %2753 = vmatmul.mubr.bf16.gmra.mxu0 %v688
    %v2754 = vpop.f32.mrf.mxu0
    %v2755 = vadd.f32 %v2642, %v2754
    %v2756 = vpop.f32.mrf.mxu0
    %v2757 = vadd.f32 %v2644, %v2756
    %v2758 = vpop.f32.mrf.mxu0
    %v2759 = vadd.f32 %v2646, %v2758
    %v2760 = vpop.f32.mrf.mxu0
    %v2761 = vadd.f32 %v2648, %v2760
    %2762 = vmatprep.mubr.bf16.mxu0 0
    %2763 = vmatmul.mubr.bf16.gmra.mxu0 %v695
    %v2764 = vpop.f32.mrf.mxu0
    %v2765 = vadd.f32 %v2652, %v2764
    %v2766 = vpop.f32.mrf.mxu0
    %v2767 = vadd.f32 %v2654, %v2766
    %v2768 = vpop.f32.mrf.mxu0
    %v2769 = vadd.f32 %v2656, %v2768
    %v2770 = vpop.f32.mrf.mxu0
    %v2771 = vadd.f32 %v2658, %v2770
    %2772 = vmatprep.mubr.bf16.mxu0 0
    %2773 = vmatmul.mubr.bf16.gmra.mxu0 %v702
    %v2774 = vpop.f32.mrf.mxu0
    %v2775 = vadd.f32 %v2662, %v2774
    %v2776 = vpop.f32.mrf.mxu0
    %v2777 = vadd.f32 %v2664, %v2776
    %v2778 = vpop.f32.mrf.mxu0
    %v2779 = vadd.f32 %v2666, %v2778
    %v2780 = vpop.f32.mrf.mxu0
    %v2781 = vadd.f32 %v2668, %v2780
    %2782 = vdwg.mxu0
    %v2783 = vpack.c.bf16 %v2257, %v2253
    %v2784 = vpack.c.bf16 %v2259, %v2255
    %v2785 = vpack.c.bf16 %v2709, %v2705
    %v2786 = vpack.c.bf16 %v2711, %v2707
    %v2787 = vpack.c.bf16 %v2267, %v2263
    %v2788 = vpack.c.bf16 %v2269, %v2265
    %v2789 = vpack.c.bf16 %v2719, %v2715
    %v2790 = vpack.c.bf16 %v2721, %v2717
    %v2791 = vpack.c.bf16 %v2277, %v2273
    %v2792 = vpack.c.bf16 %v2279, %v2275
    %v2793 = vpack.c.bf16 %v2729, %v2725
    %v2794 = vpack.c.bf16 %v2731, %v2727
    %v2795 = vpack.c.bf16 %v2287, %v2283
    %v2796 = vpack.c.bf16 %v2289, %v2285
    %v2797 = vpack.c.bf16 %v2739, %v2735
    %v2798 = vpack.c.bf16 %v2741, %v2737
    %v2799 = vpack.c.bf16 %v2297, %v2293
    %v2800 = vpack.c.bf16 %v2299, %v2295
    %v2801 = vpack.c.bf16 %v2749, %v2745
    %v2802 = vpack.c.bf16 %v2751, %v2747
    %v2803 = vpack.c.bf16 %v2307, %v2303
    %v2804 = vpack.c.bf16 %v2309, %v2305
    %v2805 = vpack.c.bf16 %v2759, %v2755
    %v2806 = vpack.c.bf16 %v2761, %v2757
    %v2807 = vpack.c.bf16 %v2317, %v2313
    %v2808 = vpack.c.bf16 %v2319, %v2315
    %v2809 = vpack.c.bf16 %v2769, %v2765
    %v2810 = vpack.c.bf16 %v2771, %v2767
    %v2811 = vpack.c.bf16 %v2327, %v2323
    %v2812 = vpack.c.bf16 %v2329, %v2325
    %v2813 = vpack.c.bf16 %v2779, %v2775
    %v2814 = vpack.c.bf16 %v2781, %v2777
    %v2815 = vld [vmem:[%s9] sm:$0xf]
    %v2818 = vunpack.c.l.s4 1966171168
    %v2819 = vunpack.c.0.s8 %v2818
    %v2820 = vlaneseq
    %v2821 = vshrl.u32 %v2820, 7
    %v2822 = vsub.s32 %v2819, %v2821
    %v2823 = vrot.slane %v2815, %v2822
    %v2824 = vcombine.high %v2823, %v2823
    %v2826 = vunpack.c.l.s4 1966171168
    %v2827 = vunpack.c.0.s8 %v2826
    %v2828 = vlaneseq
    %v2829 = vshrl.u32 %v2828, 7
    %v2830 = vsub.s32 %v2827, %v2829
    %v2831 = vrot.slane %v2823, %v2830
    %v2833 = vunpack.c.l.s4 1966171168
    %v2834 = vunpack.c.0.s8 %v2833
    %v2835 = vlaneseq
    %v2836 = vshrl.u32 %v2835, 7
    %v2837 = vsub.s32 %v2834, %v2836
    %v2838 = vrot.slane %v2824, %v2837
    %v2839 = vcombine.high %v2831, %v2831
    %v2840 = vcombine.high %v2838, %v2838
    %v2842 = vpack.i.b16 %v2831, %v2831
    %v2844 = vlaneseq
    %v2845 = vshrl.u32 %v2844, 7
    %v2846 = vsub.s32 0, %v2845
    %v2847 = vrot.slane %v2842, %v2846
    %v2849 = vpack.i.b16 %v2838, %v2838
    %v2851 = vlaneseq
    %v2852 = vshrl.u32 %v2851, 7
    %v2853 = vsub.s32 0, %v2852
    %v2854 = vrot.slane %v2849, %v2853
    %v2856 = vpack.i.b16 %v2839, %v2839
    %v2858 = vlaneseq
    %v2859 = vshrl.u32 %v2858, 7
    %v2860 = vsub.s32 0, %v2859
    %v2861 = vrot.slane %v2856, %v2860
    %v2863 = vpack.i.b16 %v2840, %v2840
    %v2865 = vlaneseq
    %v2866 = vshrl.u32 %v2865, 7
    %v2867 = vsub.s32 0, %v2866
    %v2868 = vrot.slane %v2863, %v2867
    %v2869 = vadd.bf16 %v2783, %v2847
    %v2870 = vadd.bf16 %v2784, %v2854
    %v2871 = vadd.bf16 %v2785, %v2861
    %v2872 = vadd.bf16 %v2786, %v2868
    %v2873 = vadd.bf16 %v2787, %v2847
    %v2874 = vadd.bf16 %v2788, %v2854
    %v2875 = vadd.bf16 %v2789, %v2861
    %v2876 = vadd.bf16 %v2790, %v2868
    %v2877 = vadd.bf16 %v2791, %v2847
    %v2878 = vadd.bf16 %v2792, %v2854
    %v2879 = vadd.bf16 %v2793, %v2861
    %v2880 = vadd.bf16 %v2794, %v2868
    %v2881 = vadd.bf16 %v2795, %v2847
    %v2882 = vadd.bf16 %v2796, %v2854
    %v2883 = vadd.bf16 %v2797, %v2861
    %v2884 = vadd.bf16 %v2798, %v2868
    %v2885 = vadd.bf16 %v2799, %v2847
    %v2886 = vadd.bf16 %v2800, %v2854
    %v2887 = vadd.bf16 %v2801, %v2861
    %v2888 = vadd.bf16 %v2802, %v2868
    %v2889 = vadd.bf16 %v2803, %v2847
    %v2890 = vadd.bf16 %v2804, %v2854
    %v2891 = vadd.bf16 %v2805, %v2861
    %v2892 = vadd.bf16 %v2806, %v2868
    %v2893 = vadd.bf16 %v2807, %v2847
    %v2894 = vadd.bf16 %v2808, %v2854
    %v2895 = vadd.bf16 %v2809, %v2861
    %v2896 = vadd.bf16 %v2810, %v2868
    %v2897 = vadd.bf16 %v2811, %v2847
    %v2898 = vadd.bf16 %v2812, %v2854
    %v2899 = vadd.bf16 %v2813, %v2861
    %v2900 = vadd.bf16 %v2814, %v2868
    %v2901 = vmax.bf16 %v2869, 0
    %v2902 = vmax.bf16 %v2870, 0
    %v2903 = vmax.bf16 %v2871, 0
    %v2904 = vmax.bf16 %v2872, 0
    %v2905 = vmax.bf16 %v2873, 0
    %v2906 = vmax.bf16 %v2874, 0
    %v2907 = vmax.bf16 %v2875, 0
    %v2908 = vmax.bf16 %v2876, 0
    %v2909 = vmax.bf16 %v2877, 0
    %v2910 = vmax.bf16 %v2878, 0
    %v2911 = vmax.bf16 %v2879, 0
    %v2912 = vmax.bf16 %v2880, 0
    %v2913 = vmax.bf16 %v2881, 0
    %v2914 = vmax.bf16 %v2882, 0
    %v2915 = vmax.bf16 %v2883, 0
    %v2916 = vmax.bf16 %v2884, 0
    %v2917 = vmax.bf16 %v2885, 0
    %v2918 = vmax.bf16 %v2886, 0
    %v2919 = vmax.bf16 %v2887, 0
    %v2920 = vmax.bf16 %v2888, 0
    %v2921 = vmax.bf16 %v2889, 0
    %v2922 = vmax.bf16 %v2890, 0
    %v2923 = vmax.bf16 %v2891, 0
    %v2924 = vmax.bf16 %v2892, 0
    %v2925 = vmax.bf16 %v2893, 0
    %v2926 = vmax.bf16 %v2894, 0
    %v2927 = vmax.bf16 %v2895, 0
    %v2928 = vmax.bf16 %v2896, 0
    %v2929 = vmax.bf16 %v2897, 0
    %v2930 = vmax.bf16 %v2898, 0
    %v2931 = vmax.bf16 %v2899, 0
    %v2932 = vmax.bf16 %v2900, 0
    %v2933 = vld [vmem:[#allocation7] sm:$0xff]
    %v2934 = vld [vmem:[#allocation7 + $0x8] sm:$0xff]
    %v2935 = vld [vmem:[#allocation7 + $0x10] sm:$0xff]
    %v2936 = vld [vmem:[#allocation7 + $0x18] sm:$0xff]
    %v2937 = vld [vmem:[#allocation7 + $0x20] sm:$0xff]
    %v2938 = vld [vmem:[#allocation7 + $0x28] sm:$0xff]
    %v2939 = vld [vmem:[#allocation7 + $0x30] sm:$0xff]
    %v2940 = vld [vmem:[#allocation7 + $0x38] sm:$0xff]
    %v2941 = vld [vmem:[#allocation7 + $0x40] sm:$0xff]
    %v2942 = vld [vmem:[#allocation7 + $0x48] sm:$0xff]
    %v2943 = vld [vmem:[#allocation7 + $0x50] sm:$0xff]
    %v2944 = vld [vmem:[#allocation7 + $0x58] sm:$0xff]
    %v2945 = vld [vmem:[#allocation7 + $0x60] sm:$0xff]
    %v2946 = vld [vmem:[#allocation7 + $0x68] sm:$0xff]
    %v2947 = vld [vmem:[#allocation7 + $0x70] sm:$0xff]
    %v2948 = vld [vmem:[#allocation7 + $0x78] sm:$0xff]
    %v2949 = vld [vmem:[#allocation7 + $0x80] sm:$0xff]
    %v2950 = vld [vmem:[#allocation7 + $0x88] sm:$0xff]
    %v2951 = vld [vmem:[#allocation7 + $0x90] sm:$0xff]
    %v2952 = vld [vmem:[#allocation7 + $0x98] sm:$0xff]
    %v2953 = vld [vmem:[#allocation7 + $0xa0] sm:$0xff]
    %v2954 = vld [vmem:[#allocation7 + $0xa8] sm:$0xff]
    %v2955 = vld [vmem:[#allocation7 + $0xb0] sm:$0xff]
    %v2956 = vld [vmem:[#allocation7 + $0xb8] sm:$0xff]
    %v2957 = vld [vmem:[#allocation7 + $0xc0] sm:$0xff]
    %v2958 = vld [vmem:[#allocation7 + $0xc8] sm:$0xff]
    %v2959 = vld [vmem:[#allocation7 + $0xd0] sm:$0xff]
    %v2960 = vld [vmem:[#allocation7 + $0xd8] sm:$0xff]
    %v2961 = vld [vmem:[#allocation7 + $0xe0] sm:$0xff]
    %v2962 = vld [vmem:[#allocation7 + $0xe8] sm:$0xff]
    %v2963 = vld [vmem:[#allocation7 + $0xf0] sm:$0xff]
    %v2964 = vld [vmem:[#allocation7 + $0xf8] sm:$0xff]
    %v2965 = vld [vmem:[#allocation7 + $0x100] sm:$0xff]
    %v2966 = vld [vmem:[#allocation7 + $0x108] sm:$0xff]
    %v2967 = vld [vmem:[#allocation7 + $0x110] sm:$0xff]
    %v2968 = vld [vmem:[#allocation7 + $0x118] sm:$0xff]
    %v2969 = vld [vmem:[#allocation7 + $0x120] sm:$0xff]
    %v2970 = vld [vmem:[#allocation7 + $0x128] sm:$0xff]
    %v2971 = vld [vmem:[#allocation7 + $0x130] sm:$0xff]
    %v2972 = vld [vmem:[#allocation7 + $0x138] sm:$0xff]
    %v2973 = vld [vmem:[#allocation7 + $0x140] sm:$0xff]
    %v2974 = vld [vmem:[#allocation7 + $0x148] sm:$0xff]
    %v2975 = vld [vmem:[#allocation7 + $0x150] sm:$0xff]
    %v2976 = vld [vmem:[#allocation7 + $0x158] sm:$0xff]
    %v2977 = vld [vmem:[#allocation7 + $0x160] sm:$0xff]
    %v2978 = vld [vmem:[#allocation7 + $0x168] sm:$0xff]
    %v2979 = vld [vmem:[#allocation7 + $0x170] sm:$0xff]
    %v2980 = vld [vmem:[#allocation7 + $0x178] sm:$0xff]
    %v2981 = vld [vmem:[#allocation7 + $0x180] sm:$0xff]
    %v2982 = vld [vmem:[#allocation7 + $0x188] sm:$0xff]
    %v2983 = vld [vmem:[#allocation7 + $0x190] sm:$0xff]
    %v2984 = vld [vmem:[#allocation7 + $0x198] sm:$0xff]
    %v2985 = vld [vmem:[#allocation7 + $0x1a0] sm:$0xff]
    %v2986 = vld [vmem:[#allocation7 + $0x1a8] sm:$0xff]
    %v2987 = vld [vmem:[#allocation7 + $0x1b0] sm:$0xff]
    %v2988 = vld [vmem:[#allocation7 + $0x1b8] sm:$0xff]
    %v2989 = vld [vmem:[#allocation7 + $0x1c0] sm:$0xff]
    %v2990 = vld [vmem:[#allocation7 + $0x1c8] sm:$0xff]
    %v2991 = vld [vmem:[#allocation7 + $0x1d0] sm:$0xff]
    %v2992 = vld [vmem:[#allocation7 + $0x1d8] sm:$0xff]
    %v2993 = vld [vmem:[#allocation7 + $0x1e0] sm:$0xff]
    %v2994 = vld [vmem:[#allocation7 + $0x1e8] sm:$0xff]
    %v2995 = vld [vmem:[#allocation7 + $0x1f0] sm:$0xff]
    %v2996 = vld [vmem:[#allocation7 + $0x1f8] sm:$0xff]
    %v3061 = vunpack.c.l.b16 %v2933
    %v3062 = vunpack.c.h.b16 %v2933
    %v3063 = vunpack.c.l.b16 %v2934
    %v3064 = vunpack.c.h.b16 %v2934
    %v3065 = vunpack.c.l.b16 %v2935
    %v3066 = vunpack.c.h.b16 %v2935
    %v3067 = vunpack.c.l.b16 %v2936
    %v3068 = vunpack.c.h.b16 %v2936
    %v3069 = vunpack.c.l.b16 %v2937
    %v3070 = vunpack.c.h.b16 %v2937
    %v3071 = vunpack.c.l.b16 %v2938
    %v3072 = vunpack.c.h.b16 %v2938
    %v3073 = vunpack.c.l.b16 %v2939
    %v3074 = vunpack.c.h.b16 %v2939
    %v3075 = vunpack.c.l.b16 %v2940
    %v3076 = vunpack.c.h.b16 %v2940
    %v3077 = vunpack.c.l.b16 %v2941
    %v3078 = vunpack.c.h.b16 %v2941
    %v3079 = vunpack.c.l.b16 %v2942
    %v3080 = vunpack.c.h.b16 %v2942
    %v3081 = vunpack.c.l.b16 %v2943
    %v3082 = vunpack.c.h.b16 %v2943
    %v3083 = vunpack.c.l.b16 %v2944
    %v3084 = vunpack.c.h.b16 %v2944
    %v3085 = vunpack.c.l.b16 %v2945
    %v3086 = vunpack.c.h.b16 %v2945
    %v3087 = vunpack.c.l.b16 %v2946
    %v3088 = vunpack.c.h.b16 %v2946
    %v3089 = vunpack.c.l.b16 %v2947
    %v3090 = vunpack.c.h.b16 %v2947
    %v3091 = vunpack.c.l.b16 %v2948
    %v3092 = vunpack.c.h.b16 %v2948
    %v3093 = vunpack.c.l.b16 %v2949
    %v3094 = vunpack.c.h.b16 %v2949
    %v3095 = vunpack.c.l.b16 %v2950
    %v3096 = vunpack.c.h.b16 %v2950
    %v3097 = vunpack.c.l.b16 %v2951
    %v3098 = vunpack.c.h.b16 %v2951
    %v3099 = vunpack.c.l.b16 %v2952
    %v3100 = vunpack.c.h.b16 %v2952
    %v3101 = vunpack.c.l.b16 %v2953
    %v3102 = vunpack.c.h.b16 %v2953
    %v3103 = vunpack.c.l.b16 %v2954
    %v3104 = vunpack.c.h.b16 %v2954
    %v3105 = vunpack.c.l.b16 %v2955
    %v3106 = vunpack.c.h.b16 %v2955
    %v3107 = vunpack.c.l.b16 %v2956
    %v3108 = vunpack.c.h.b16 %v2956
    %v3109 = vunpack.c.l.b16 %v2957
    %v3110 = vunpack.c.h.b16 %v2957
    %v3111 = vunpack.c.l.b16 %v2958
    %v3112 = vunpack.c.h.b16 %v2958
    %v3113 = vunpack.c.l.b16 %v2959
    %v3114 = vunpack.c.h.b16 %v2959
    %v3115 = vunpack.c.l.b16 %v2960
    %v3116 = vunpack.c.h.b16 %v2960
    %v3117 = vunpack.c.l.b16 %v2961
    %v3118 = vunpack.c.h.b16 %v2961
    %v3119 = vunpack.c.l.b16 %v2962
    %v3120 = vunpack.c.h.b16 %v2962
    %v3121 = vunpack.c.l.b16 %v2963
    %v3122 = vunpack.c.h.b16 %v2963
    %v3123 = vunpack.c.l.b16 %v2964
    %v3124 = vunpack.c.h.b16 %v2964
    %v3125 = vunpack.c.l.b16 %v2965
    %v3126 = vunpack.c.h.b16 %v2965
    %v3127 = vunpack.c.l.b16 %v2966
    %v3128 = vunpack.c.h.b16 %v2966
    %v3129 = vunpack.c.l.b16 %v2967
    %v3130 = vunpack.c.h.b16 %v2967
    %v3131 = vunpack.c.l.b16 %v2968
    %v3132 = vunpack.c.h.b16 %v2968
    %v3133 = vunpack.c.l.b16 %v2969
    %v3134 = vunpack.c.h.b16 %v2969
    %v3135 = vunpack.c.l.b16 %v2970
    %v3136 = vunpack.c.h.b16 %v2970
    %v3137 = vunpack.c.l.b16 %v2971
    %v3138 = vunpack.c.h.b16 %v2971
    %v3139 = vunpack.c.l.b16 %v2972
    %v3140 = vunpack.c.h.b16 %v2972
    %v3141 = vunpack.c.l.b16 %v2973
    %v3142 = vunpack.c.h.b16 %v2973
    %v3143 = vunpack.c.l.b16 %v2974
    %v3144 = vunpack.c.h.b16 %v2974
    %v3145 = vunpack.c.l.b16 %v2975
    %v3146 = vunpack.c.h.b16 %v2975
    %v3147 = vunpack.c.l.b16 %v2976
    %v3148 = vunpack.c.h.b16 %v2976
    %v3149 = vunpack.c.l.b16 %v2977
    %v3150 = vunpack.c.h.b16 %v2977
    %v3151 = vunpack.c.l.b16 %v2978
    %v3152 = vunpack.c.h.b16 %v2978
    %v3153 = vunpack.c.l.b16 %v2979
    %v3154 = vunpack.c.h.b16 %v2979
    %v3155 = vunpack.c.l.b16 %v2980
    %v3156 = vunpack.c.h.b16 %v2980
    %v3157 = vunpack.c.l.b16 %v2981
    %v3158 = vunpack.c.h.b16 %v2981
    %v3159 = vunpack.c.l.b16 %v2982
    %v3160 = vunpack.c.h.b16 %v2982
    %v3161 = vunpack.c.l.b16 %v2983
    %v3162 = vunpack.c.h.b16 %v2983
    %v3163 = vunpack.c.l.b16 %v2984
    %v3164 = vunpack.c.h.b16 %v2984
    %v3165 = vunpack.c.l.b16 %v2985
    %v3166 = vunpack.c.h.b16 %v2985
    %v3167 = vunpack.c.l.b16 %v2986
    %v3168 = vunpack.c.h.b16 %v2986
    %v3169 = vunpack.c.l.b16 %v2987
    %v3170 = vunpack.c.h.b16 %v2987
    %v3171 = vunpack.c.l.b16 %v2988
    %v3172 = vunpack.c.h.b16 %v2988
    %v3173 = vunpack.c.l.b16 %v2989
    %v3174 = vunpack.c.h.b16 %v2989
    %v3175 = vunpack.c.l.b16 %v2990
    %v3176 = vunpack.c.h.b16 %v2990
    %v3177 = vunpack.c.l.b16 %v2991
    %v3178 = vunpack.c.h.b16 %v2991
    %v3179 = vunpack.c.l.b16 %v2992
    %v3180 = vunpack.c.h.b16 %v2992
    %v3181 = vunpack.c.l.b16 %v2993
    %v3182 = vunpack.c.h.b16 %v2993
    %v3183 = vunpack.c.l.b16 %v2994
    %v3184 = vunpack.c.h.b16 %v2994
    %v3185 = vunpack.c.l.b16 %v2995
    %v3186 = vunpack.c.h.b16 %v2995
    %v3187 = vunpack.c.l.b16 %v2996
    %v3188 = vunpack.c.h.b16 %v2996
    %v3189 = vpack.c.b16 %v3063, %v3061
    %v3190 = vpack.c.b16 %v3064, %v3062
    %v3191 = vpack.c.b16 %v3067, %v3065
    %v3192 = vpack.c.b16 %v3068, %v3066
    %v3193 = vpack.c.b16 %v3071, %v3069
    %v3194 = vpack.c.b16 %v3072, %v3070
    %v3195 = vpack.c.b16 %v3075, %v3073
    %v3196 = vpack.c.b16 %v3076, %v3074
    %v3197 = vpack.c.b16 %v3079, %v3077
    %v3198 = vpack.c.b16 %v3080, %v3078
    %v3199 = vpack.c.b16 %v3083, %v3081
    %v3200 = vpack.c.b16 %v3084, %v3082
    %v3201 = vpack.c.b16 %v3087, %v3085
    %v3202 = vpack.c.b16 %v3088, %v3086
    %v3203 = vpack.c.b16 %v3091, %v3089
    %v3204 = vpack.c.b16 %v3092, %v3090
    %v3205 = vpack.c.b16 %v3095, %v3093
    %v3206 = vpack.c.b16 %v3096, %v3094
    %v3207 = vpack.c.b16 %v3099, %v3097
    %v3208 = vpack.c.b16 %v3100, %v3098
    %v3209 = vpack.c.b16 %v3103, %v3101
    %v3210 = vpack.c.b16 %v3104, %v3102
    %v3211 = vpack.c.b16 %v3107, %v3105
    %v3212 = vpack.c.b16 %v3108, %v3106
    %v3213 = vpack.c.b16 %v3111, %v3109
    %v3214 = vpack.c.b16 %v3112, %v3110
    %v3215 = vpack.c.b16 %v3115, %v3113
    %v3216 = vpack.c.b16 %v3116, %v3114
    %v3217 = vpack.c.b16 %v3119, %v3117
    %v3218 = vpack.c.b16 %v3120, %v3118
    %v3219 = vpack.c.b16 %v3123, %v3121
    %v3220 = vpack.c.b16 %v3124, %v3122
    %v3221 = vpack.c.b16 %v3127, %v3125
    %v3222 = vpack.c.b16 %v3128, %v3126
    %v3223 = vpack.c.b16 %v3131, %v3129
    %v3224 = vpack.c.b16 %v3132, %v3130
    %v3225 = vpack.c.b16 %v3135, %v3133
    %v3226 = vpack.c.b16 %v3136, %v3134
    %v3227 = vpack.c.b16 %v3139, %v3137
    %v3228 = vpack.c.b16 %v3140, %v3138
    %v3229 = vpack.c.b16 %v3143, %v3141
    %v3230 = vpack.c.b16 %v3144, %v3142
    %v3231 = vpack.c.b16 %v3147, %v3145
    %v3232 = vpack.c.b16 %v3148, %v3146
    %v3233 = vpack.c.b16 %v3151, %v3149
    %v3234 = vpack.c.b16 %v3152, %v3150
    %v3235 = vpack.c.b16 %v3155, %v3153
    %v3236 = vpack.c.b16 %v3156, %v3154
    %v3237 = vpack.c.b16 %v3159, %v3157
    %v3238 = vpack.c.b16 %v3160, %v3158
    %v3239 = vpack.c.b16 %v3163, %v3161
    %v3240 = vpack.c.b16 %v3164, %v3162
    %v3241 = vpack.c.b16 %v3167, %v3165
    %v3242 = vpack.c.b16 %v3168, %v3166
    %v3243 = vpack.c.b16 %v3171, %v3169
    %v3244 = vpack.c.b16 %v3172, %v3170
    %v3245 = vpack.c.b16 %v3175, %v3173
    %v3246 = vpack.c.b16 %v3176, %v3174
    %v3247 = vpack.c.b16 %v3179, %v3177
    %v3248 = vpack.c.b16 %v3180, %v3178
    %v3249 = vpack.c.b16 %v3183, %v3181
    %v3250 = vpack.c.b16 %v3184, %v3182
    %v3251 = vpack.c.b16 %v3187, %v3185
    %v3252 = vpack.c.b16 %v3188, %v3186
    %3317 = vmatprep.subr.bf16.mxu0 %v3204
    %3318 = vmatpush1.bf16.msra.mxu0 %v3203
    %3319 = vmatprep.subr.bf16.mxu0 %v3202
    %3320 = vmatpush1.bf16.msra.mxu0 %v3201
    %3321 = vmatprep.subr.bf16.mxu0 %v3200
    %3322 = vmatpush1.bf16.msra.mxu0 %v3199
    %3323 = vmatprep.subr.bf16.mxu0 %v3198
    %3324 = vmatpush1.bf16.msra.mxu0 %v3197
    %3325 = vmatprep.subr.bf16.mxu0 %v3196
    %3326 = vmatpush1.bf16.msra.mxu0 %v3195
    %3327 = vmatprep.subr.bf16.mxu0 %v3194
    %3328 = vmatpush1.bf16.msra.mxu0 %v3193
    %3329 = vmatprep.subr.bf16.mxu0 %v3192
    %3330 = vmatpush1.bf16.msra.mxu0 %v3191
    %3331 = vmatprep.subr.bf16.mxu0 %v3190
    %3332 = vmatpush1.bf16.msra.mxu0 %v3189
    %3333 = vmatprep.subr.bf16.mxu0 %v3220
    %3334 = vmatpush2.bf16.msra.mxu0 %v3219
    %3335 = vmatprep.subr.bf16.mxu0 %v3218
    %3336 = vmatpush2.bf16.msra.mxu0 %v3217
    %3337 = vmatprep.subr.bf16.mxu0 %v3216
    %3338 = vmatpush2.bf16.msra.mxu0 %v3215
    %3339 = vmatprep.subr.bf16.mxu0 %v3214
    %3340 = vmatpush2.bf16.msra.mxu0 %v3213
    %3341 = vmatprep.subr.bf16.mxu0 %v3212
    %3342 = vmatpush2.bf16.msra.mxu0 %v3211
    %3343 = vmatprep.subr.bf16.mxu0 %v3210
    %3344 = vmatpush2.bf16.msra.mxu0 %v3209
    %3345 = vmatprep.subr.bf16.mxu0 %v3208
    %3346 = vmatpush2.bf16.msra.mxu0 %v3207
    %3347 = vmatprep.subr.bf16.mxu0 %v3206
    %3348 = vmatpush2.bf16.msra.mxu0 %v3205
    %3349 = vmatprep.mubr.bf16.mxu0 %v2902
    %3350 = vmatmul.mubr.bf16.gmra.mxu0 %v2901
    %v3351 = vpop.f32.mrf.mxu0
    %v3352 = vadd.f32 0.0, %v3351
    %v3353 = vpop.f32.mrf.mxu0
    %v3354 = vadd.f32 0.0, %v3353
    %v3355 = vpop.f32.mrf.mxu0
    %v3356 = vadd.f32 0.0, %v3355
    %v3357 = vpop.f32.mrf.mxu0
    %v3358 = vadd.f32 0.0, %v3357
    %3359 = vmatprep.mubr.bf16.mxu0 %v2906
    %3360 = vmatmul.mubr.bf16.gmra.mxu0 %v2905
    %v3361 = vpop.f32.mrf.mxu0
    %v3362 = vadd.f32 0.0, %v3361
    %v3363 = vpop.f32.mrf.mxu0
    %v3364 = vadd.f32 0.0, %v3363
    %v3365 = vpop.f32.mrf.mxu0
    %v3366 = vadd.f32 0.0, %v3365
    %v3367 = vpop.f32.mrf.mxu0
    %v3368 = vadd.f32 0.0, %v3367
    %3369 = vmatprep.mubr.bf16.mxu0 %v2910
    %3370 = vmatmul.mubr.bf16.gmra.mxu0 %v2909
    %v3371 = vpop.f32.mrf.mxu0
    %v3372 = vadd.f32 0.0, %v3371
    %v3373 = vpop.f32.mrf.mxu0
    %v3374 = vadd.f32 0.0, %v3373
    %v3375 = vpop.f32.mrf.mxu0
    %v3376 = vadd.f32 0.0, %v3375
    %v3377 = vpop.f32.mrf.mxu0
    %v3378 = vadd.f32 0.0, %v3377
    %3379 = vmatprep.mubr.bf16.mxu0 %v2914
    %3380 = vmatmul.mubr.bf16.gmra.mxu0 %v2913
    %v3381 = vpop.f32.mrf.mxu0
    %v3382 = vadd.f32 0.0, %v3381
    %v3383 = vpop.f32.mrf.mxu0
    %v3384 = vadd.f32 0.0, %v3383
    %v3385 = vpop.f32.mrf.mxu0
    %v3386 = vadd.f32 0.0, %v3385
    %v3387 = vpop.f32.mrf.mxu0
    %v3388 = vadd.f32 0.0, %v3387
    %3389 = vmatprep.mubr.bf16.mxu0 %v2918
    %3390 = vmatmul.mubr.bf16.gmra.mxu0 %v2917
    %v3391 = vpop.f32.mrf.mxu0
    %v3392 = vadd.f32 0.0, %v3391
    %v3393 = vpop.f32.mrf.mxu0
    %v3394 = vadd.f32 0.0, %v3393
    %v3395 = vpop.f32.mrf.mxu0
    %v3396 = vadd.f32 0.0, %v3395
    %v3397 = vpop.f32.mrf.mxu0
    %v3398 = vadd.f32 0.0, %v3397
    %3399 = vmatprep.mubr.bf16.mxu0 %v2922
    %3400 = vmatmul.mubr.bf16.gmra.mxu0 %v2921
    %v3401 = vpop.f32.mrf.mxu0
    %v3402 = vadd.f32 0.0, %v3401
    %v3403 = vpop.f32.mrf.mxu0
    %v3404 = vadd.f32 0.0, %v3403
    %v3405 = vpop.f32.mrf.mxu0
    %v3406 = vadd.f32 0.0, %v3405
    %v3407 = vpop.f32.mrf.mxu0
    %v3408 = vadd.f32 0.0, %v3407
    %3409 = vmatprep.mubr.bf16.mxu0 %v2926
    %3410 = vmatmul.mubr.bf16.gmra.mxu0 %v2925
    %v3411 = vpop.f32.mrf.mxu0
    %v3412 = vadd.f32 0.0, %v3411
    %v3413 = vpop.f32.mrf.mxu0
    %v3414 = vadd.f32 0.0, %v3413
    %v3415 = vpop.f32.mrf.mxu0
    %v3416 = vadd.f32 0.0, %v3415
    %v3417 = vpop.f32.mrf.mxu0
    %v3418 = vadd.f32 0.0, %v3417
    %3419 = vmatprep.mubr.bf16.mxu0 %v2930
    %3420 = vmatmul.mubr.bf16.gmra.mxu0 %v2929
    %v3421 = vpop.f32.mrf.mxu0
    %v3422 = vadd.f32 0.0, %v3421
    %v3423 = vpop.f32.mrf.mxu0
    %v3424 = vadd.f32 0.0, %v3423
    %v3425 = vpop.f32.mrf.mxu0
    %v3426 = vadd.f32 0.0, %v3425
    %v3427 = vpop.f32.mrf.mxu0
    %v3428 = vadd.f32 0.0, %v3427
    %3429 = vdwg.mxu0
    %3430 = vmatprep.subr.bf16.mxu0 %v3236
    %3431 = vmatpush1.bf16.msra.mxu0 %v3235
    %3432 = vmatprep.subr.bf16.mxu0 %v3234
    %3433 = vmatpush1.bf16.msra.mxu0 %v3233
    %3434 = vmatprep.subr.bf16.mxu0 %v3232
    %3435 = vmatpush1.bf16.msra.mxu0 %v3231
    %3436 = vmatprep.subr.bf16.mxu0 %v3230
    %3437 = vmatpush1.bf16.msra.mxu0 %v3229
    %3438 = vmatprep.subr.bf16.mxu0 %v3228
    %3439 = vmatpush1.bf16.msra.mxu0 %v3227
    %3440 = vmatprep.subr.bf16.mxu0 %v3226
    %3441 = vmatpush1.bf16.msra.mxu0 %v3225
    %3442 = vmatprep.subr.bf16.mxu0 %v3224
    %3443 = vmatpush1.bf16.msra.mxu0 %v3223
    %3444 = vmatprep.subr.bf16.mxu0 %v3222
    %3445 = vmatpush1.bf16.msra.mxu0 %v3221
    %3446 = vmatprep.subr.bf16.mxu0 %v3252
    %3447 = vmatpush2.bf16.msra.mxu0 %v3251
    %3448 = vmatprep.subr.bf16.mxu0 %v3250
    %3449 = vmatpush2.bf16.msra.mxu0 %v3249
    %3450 = vmatprep.subr.bf16.mxu0 %v3248
    %3451 = vmatpush2.bf16.msra.mxu0 %v3247
    %3452 = vmatprep.subr.bf16.mxu0 %v3246
    %3453 = vmatpush2.bf16.msra.mxu0 %v3245
    %3454 = vmatprep.subr.bf16.mxu0 %v3244
    %3455 = vmatpush2.bf16.msra.mxu0 %v3243
    %3456 = vmatprep.subr.bf16.mxu0 %v3242
    %3457 = vmatpush2.bf16.msra.mxu0 %v3241
    %3458 = vmatprep.subr.bf16.mxu0 %v3240
    %3459 = vmatpush2.bf16.msra.mxu0 %v3239
    %3460 = vmatprep.subr.bf16.mxu0 %v3238
    %3461 = vmatpush2.bf16.msra.mxu0 %v3237
    %3462 = vmatprep.mubr.bf16.mxu0 %v2904
    %3463 = vmatmul.mubr.bf16.gmra.mxu0 %v2903
    %v3464 = vpop.f32.mrf.mxu0
    %v3465 = vadd.f32 %v3352, %v3464
    %v3466 = vpop.f32.mrf.mxu0
    %v3467 = vadd.f32 %v3354, %v3466
    %v3468 = vpop.f32.mrf.mxu0
    %v3469 = vadd.f32 %v3356, %v3468
    %v3470 = vpop.f32.mrf.mxu0
    %v3471 = vadd.f32 %v3358, %v3470
    %3472 = vmatprep.mubr.bf16.mxu0 %v2908
    %3473 = vmatmul.mubr.bf16.gmra.mxu0 %v2907
    %v3474 = vpop.f32.mrf.mxu0
    %v3475 = vadd.f32 %v3362, %v3474
    %v3476 = vpop.f32.mrf.mxu0
    %v3477 = vadd.f32 %v3364, %v3476
    %v3478 = vpop.f32.mrf.mxu0
    %v3479 = vadd.f32 %v3366, %v3478
    %v3480 = vpop.f32.mrf.mxu0
    %v3481 = vadd.f32 %v3368, %v3480
    %3482 = vmatprep.mubr.bf16.mxu0 %v2912
    %3483 = vmatmul.mubr.bf16.gmra.mxu0 %v2911
    %v3484 = vpop.f32.mrf.mxu0
    %v3485 = vadd.f32 %v3372, %v3484
    %v3486 = vpop.f32.mrf.mxu0
    %v3487 = vadd.f32 %v3374, %v3486
    %v3488 = vpop.f32.mrf.mxu0
    %v3489 = vadd.f32 %v3376, %v3488
    %v3490 = vpop.f32.mrf.mxu0
    %v3491 = vadd.f32 %v3378, %v3490
    %3492 = vmatprep.mubr.bf16.mxu0 %v2916
    %3493 = vmatmul.mubr.bf16.gmra.mxu0 %v2915
    %v3494 = vpop.f32.mrf.mxu0
    %v3495 = vadd.f32 %v3382, %v3494
    %v3496 = vpop.f32.mrf.mxu0
    %v3497 = vadd.f32 %v3384, %v3496
    %v3498 = vpop.f32.mrf.mxu0
    %v3499 = vadd.f32 %v3386, %v3498
    %v3500 = vpop.f32.mrf.mxu0
    %v3501 = vadd.f32 %v3388, %v3500
    %3502 = vmatprep.mubr.bf16.mxu0 %v2920
    %3503 = vmatmul.mubr.bf16.gmra.mxu0 %v2919
    %v3504 = vpop.f32.mrf.mxu0
    %v3505 = vadd.f32 %v3392, %v3504
    %v3506 = vpop.f32.mrf.mxu0
    %v3507 = vadd.f32 %v3394, %v3506
    %v3508 = vpop.f32.mrf.mxu0
    %v3509 = vadd.f32 %v3396, %v3508
    %v3510 = vpop.f32.mrf.mxu0
    %v3511 = vadd.f32 %v3398, %v3510
    %3512 = vmatprep.mubr.bf16.mxu0 %v2924
    %3513 = vmatmul.mubr.bf16.gmra.mxu0 %v2923
    %v3514 = vpop.f32.mrf.mxu0
    %v3515 = vadd.f32 %v3402, %v3514
    %v3516 = vpop.f32.mrf.mxu0
    %v3517 = vadd.f32 %v3404, %v3516
    %v3518 = vpop.f32.mrf.mxu0
    %v3519 = vadd.f32 %v3406, %v3518
    %v3520 = vpop.f32.mrf.mxu0
    %v3521 = vadd.f32 %v3408, %v3520
    %3522 = vmatprep.mubr.bf16.mxu0 %v2928
    %3523 = vmatmul.mubr.bf16.gmra.mxu0 %v2927
    %v3524 = vpop.f32.mrf.mxu0
    %v3525 = vadd.f32 %v3412, %v3524
    %v3526 = vpop.f32.mrf.mxu0
    %v3527 = vadd.f32 %v3414, %v3526
    %v3528 = vpop.f32.mrf.mxu0
    %v3529 = vadd.f32 %v3416, %v3528
    %v3530 = vpop.f32.mrf.mxu0
    %v3531 = vadd.f32 %v3418, %v3530
    %3532 = vmatprep.mubr.bf16.mxu0 %v2932
    %3533 = vmatmul.mubr.bf16.gmra.mxu0 %v2931
    %v3534 = vpop.f32.mrf.mxu0
    %v3535 = vadd.f32 %v3422, %v3534
    %v3536 = vpop.f32.mrf.mxu0
    %v3537 = vadd.f32 %v3424, %v3536
    %v3538 = vpop.f32.mrf.mxu0
    %v3539 = vadd.f32 %v3426, %v3538
    %v3540 = vpop.f32.mrf.mxu0
    %v3541 = vadd.f32 %v3428, %v3540
    %3542 = vdwg.mxu0
    %v3543 = vpack.c.bf16 %v3469, %v3465
    %v3544 = vpack.c.bf16 %v3471, %v3467
    %v3545 = vpack.c.bf16 %v3479, %v3475
    %v3546 = vpack.c.bf16 %v3481, %v3477
    %v3547 = vpack.c.bf16 %v3489, %v3485
    %v3548 = vpack.c.bf16 %v3491, %v3487
    %v3549 = vpack.c.bf16 %v3499, %v3495
    %v3550 = vpack.c.bf16 %v3501, %v3497
    %v3551 = vpack.c.bf16 %v3509, %v3505
    %v3552 = vpack.c.bf16 %v3511, %v3507
    %v3553 = vpack.c.bf16 %v3519, %v3515
    %v3554 = vpack.c.bf16 %v3521, %v3517
    %v3555 = vpack.c.bf16 %v3529, %v3525
    %v3556 = vpack.c.bf16 %v3531, %v3527
    %v3557 = vpack.c.bf16 %v3539, %v3535
    %v3558 = vpack.c.bf16 %v3541, %v3537
    %v3559 = vld [vmem:[%s10] sm:$0x3]
    %v3562 = vunpack.c.l.s4 1966171168
    %v3563 = vunpack.c.0.s8 %v3562
    %v3564 = vlaneseq
    %v3565 = vshrl.u32 %v3564, 7
    %v3566 = vsub.s32 %v3563, %v3565
    %v3567 = vrot.slane %v3559, %v3566
    %v3568 = vcombine.high %v3567, %v3567
    %v3570 = vunpack.c.l.s4 1966171168
    %v3571 = vunpack.c.0.s8 %v3570
    %v3572 = vlaneseq
    %v3573 = vshrl.u32 %v3572, 7
    %v3574 = vsub.s32 %v3571, %v3573
    %v3575 = vrot.slane %v3567, %v3574
    %v3577 = vunpack.c.l.s4 1966171168
    %v3578 = vunpack.c.0.s8 %v3577
    %v3579 = vlaneseq
    %v3580 = vshrl.u32 %v3579, 7
    %v3581 = vsub.s32 %v3578, %v3580
    %v3582 = vrot.slane %v3568, %v3581
    %v3584 = vpack.i.b16 %v3575, %v3575
    %v3586 = vlaneseq
    %v3587 = vshrl.u32 %v3586, 7
    %v3588 = vsub.s32 0, %v3587
    %v3589 = vrot.slane %v3584, %v3588
    %v3591 = vpack.i.b16 %v3582, %v3582
    %v3593 = vlaneseq
    %v3594 = vshrl.u32 %v3593, 7
    %v3595 = vsub.s32 0, %v3594
    %v3596 = vrot.slane %v3591, %v3595
    %v3597 = vadd.bf16 %v3543, %v3589
    %v3598 = vadd.bf16 %v3544, %v3596
    %v3599 = vadd.bf16 %v3545, %v3589
    %v3600 = vadd.bf16 %v3546, %v3596
    %v3601 = vadd.bf16 %v3547, %v3589
    %v3602 = vadd.bf16 %v3548, %v3596
    %v3603 = vadd.bf16 %v3549, %v3589
    %v3604 = vadd.bf16 %v3550, %v3596
    %v3605 = vadd.bf16 %v3551, %v3589
    %v3606 = vadd.bf16 %v3552, %v3596
    %v3607 = vadd.bf16 %v3553, %v3589
    %v3608 = vadd.bf16 %v3554, %v3596
    %v3609 = vadd.bf16 %v3555, %v3589
    %v3610 = vadd.bf16 %v3556, %v3596
    %v3611 = vadd.bf16 %v3557, %v3589
    %v3612 = vadd.bf16 %v3558, %v3596
    %v3613 = vmax.bf16 %v3597, 0
    %v3614 = vmax.bf16 %v3598, 0
    %v3615 = vmax.bf16 %v3599, 0
    %v3616 = vmax.bf16 %v3600, 0
    %v3617 = vmax.bf16 %v3601, 0
    %v3618 = vmax.bf16 %v3602, 0
    %v3619 = vmax.bf16 %v3603, 0
    %v3620 = vmax.bf16 %v3604, 0
    %v3621 = vmax.bf16 %v3605, 0
    %v3622 = vmax.bf16 %v3606, 0
    %v3623 = vmax.bf16 %v3607, 0
    %v3624 = vmax.bf16 %v3608, 0
    %v3625 = vmax.bf16 %v3609, 0
    %v3626 = vmax.bf16 %v3610, 0
    %v3627 = vmax.bf16 %v3611, 0
    %v3628 = vmax.bf16 %v3612, 0
    %v3629 = vld [vmem:[#allocation8] sm:$0xf]
    %v3630 = vld [vmem:[#allocation8 + $0x4] sm:$0xf]
    %v3631 = vld [vmem:[#allocation8 + $0x8] sm:$0xf]
    %v3632 = vld [vmem:[#allocation8 + $0xc] sm:$0xf]
    %v3633 = vld [vmem:[#allocation8 + $0x10] sm:$0xf]
    %v3634 = vld [vmem:[#allocation8 + $0x14] sm:$0xf]
    %v3635 = vld [vmem:[#allocation8 + $0x18] sm:$0xf]
    %v3636 = vld [vmem:[#allocation8 + $0x1c] sm:$0xf]
    %v3637 = vld [vmem:[#allocation8 + $0x20] sm:$0xf]
    %v3638 = vld [vmem:[#allocation8 + $0x24] sm:$0xf]
    %v3639 = vld [vmem:[#allocation8 + $0x28] sm:$0xf]
    %v3640 = vld [vmem:[#allocation8 + $0x2c] sm:$0xf]
    %v3641 = vld [vmem:[#allocation8 + $0x30] sm:$0xf]
    %v3642 = vld [vmem:[#allocation8 + $0x34] sm:$0xf]
    %v3643 = vld [vmem:[#allocation8 + $0x38] sm:$0xf]
    %v3644 = vld [vmem:[#allocation8 + $0x3c] sm:$0xf]
    %v3645 = vld [vmem:[#allocation8 + $0x40] sm:$0xf]
    %v3646 = vld [vmem:[#allocation8 + $0x44] sm:$0xf]
    %v3647 = vld [vmem:[#allocation8 + $0x48] sm:$0xf]
    %v3648 = vld [vmem:[#allocation8 + $0x4c] sm:$0xf]
    %v3649 = vld [vmem:[#allocation8 + $0x50] sm:$0xf]
    %v3650 = vld [vmem:[#allocation8 + $0x54] sm:$0xf]
    %v3651 = vld [vmem:[#allocation8 + $0x58] sm:$0xf]
    %v3652 = vld [vmem:[#allocation8 + $0x5c] sm:$0xf]
    %v3653 = vld [vmem:[#allocation8 + $0x60] sm:$0xf]
    %v3654 = vld [vmem:[#allocation8 + $0x64] sm:$0xf]
    %v3655 = vld [vmem:[#allocation8 + $0x68] sm:$0xf]
    %v3656 = vld [vmem:[#allocation8 + $0x6c] sm:$0xf]
    %v3657 = vld [vmem:[#allocation8 + $0x70] sm:$0xf]
    %v3658 = vld [vmem:[#allocation8 + $0x74] sm:$0xf]
    %v3659 = vld [vmem:[#allocation8 + $0x78] sm:$0xf]
    %v3660 = vld [vmem:[#allocation8 + $0x7c] sm:$0xf]
    %v3693 = vunpack.c.l.b16 %v3629
    %v3694 = vunpack.c.l.b16 %v3630
    %v3695 = vunpack.c.l.b16 %v3631
    %v3696 = vunpack.c.l.b16 %v3632
    %v3697 = vunpack.c.l.b16 %v3633
    %v3698 = vunpack.c.l.b16 %v3634
    %v3699 = vunpack.c.l.b16 %v3635
    %v3700 = vunpack.c.l.b16 %v3636
    %v3701 = vunpack.c.l.b16 %v3637
    %v3702 = vunpack.c.l.b16 %v3638
    %v3703 = vunpack.c.l.b16 %v3639
    %v3704 = vunpack.c.l.b16 %v3640
    %v3705 = vunpack.c.l.b16 %v3641
    %v3706 = vunpack.c.l.b16 %v3642
    %v3707 = vunpack.c.l.b16 %v3643
    %v3708 = vunpack.c.l.b16 %v3644
    %v3709 = vunpack.c.l.b16 %v3645
    %v3710 = vunpack.c.l.b16 %v3646
    %v3711 = vunpack.c.l.b16 %v3647
    %v3712 = vunpack.c.l.b16 %v3648
    %v3713 = vunpack.c.l.b16 %v3649
    %v3714 = vunpack.c.l.b16 %v3650
    %v3715 = vunpack.c.l.b16 %v3651
    %v3716 = vunpack.c.l.b16 %v3652
    %v3717 = vunpack.c.l.b16 %v3653
    %v3718 = vunpack.c.l.b16 %v3654
    %v3719 = vunpack.c.l.b16 %v3655
    %v3720 = vunpack.c.l.b16 %v3656
    %v3721 = vunpack.c.l.b16 %v3657
    %v3722 = vunpack.c.l.b16 %v3658
    %v3723 = vunpack.c.l.b16 %v3659
    %v3724 = vunpack.c.l.b16 %v3660
    %v3725 = vpack.c.b16 %v3694, %v3693
    %v3726 = vpack.c.b16 %v3696, %v3695
    %v3727 = vpack.c.b16 %v3698, %v3697
    %v3728 = vpack.c.b16 %v3700, %v3699
    %v3729 = vpack.c.b16 %v3702, %v3701
    %v3730 = vpack.c.b16 %v3704, %v3703
    %v3731 = vpack.c.b16 %v3706, %v3705
    %v3732 = vpack.c.b16 %v3708, %v3707
    %v3733 = vpack.c.b16 %v3710, %v3709
    %v3734 = vpack.c.b16 %v3712, %v3711
    %v3735 = vpack.c.b16 %v3714, %v3713
    %v3736 = vpack.c.b16 %v3716, %v3715
    %v3737 = vpack.c.b16 %v3718, %v3717
    %v3738 = vpack.c.b16 %v3720, %v3719
    %v3739 = vpack.c.b16 %v3722, %v3721
    %v3740 = vpack.c.b16 %v3724, %v3723
    %3757 = vmatprep.subr.bf16.mxu0 0
    %3758 = vmatpush1.bf16.msra.mxu0 %v3732
    %3759 = vmatprep.subr.bf16.mxu0 0
    %3760 = vmatpush1.bf16.msra.mxu0 %v3731
    %3761 = vmatprep.subr.bf16.mxu0 0
    %3762 = vmatpush1.bf16.msra.mxu0 %v3730
    %3763 = vmatprep.subr.bf16.mxu0 0
    %3764 = vmatpush1.bf16.msra.mxu0 %v3729
    %3765 = vmatprep.subr.bf16.mxu0 0
    %3766 = vmatpush1.bf16.msra.mxu0 %v3728
    %3767 = vmatprep.subr.bf16.mxu0 0
    %3768 = vmatpush1.bf16.msra.mxu0 %v3727
    %3769 = vmatprep.subr.bf16.mxu0 0
    %3770 = vmatpush1.bf16.msra.mxu0 %v3726
    %3771 = vmatprep.subr.bf16.mxu0 0
    %3772 = vmatpush1.bf16.msra.mxu0 %v3725
    %3773 = vmatprep.subr.bf16.mxu0 0
    %3774 = vmatpush2.bf16.msra.mxu0 %v3740
    %3775 = vmatprep.subr.bf16.mxu0 0
    %3776 = vmatpush2.bf16.msra.mxu0 %v3739
    %3777 = vmatprep.subr.bf16.mxu0 0
    %3778 = vmatpush2.bf16.msra.mxu0 %v3738
    %3779 = vmatprep.subr.bf16.mxu0 0
    %3780 = vmatpush2.bf16.msra.mxu0 %v3737
    %3781 = vmatprep.subr.bf16.mxu0 0
    %3782 = vmatpush2.bf16.msra.mxu0 %v3736
    %3783 = vmatprep.subr.bf16.mxu0 0
    %3784 = vmatpush2.bf16.msra.mxu0 %v3735
    %3785 = vmatprep.subr.bf16.mxu0 0
    %3786 = vmatpush2.bf16.msra.mxu0 %v3734
    %3787 = vmatprep.subr.bf16.mxu0 0
    %3788 = vmatpush2.bf16.msra.mxu0 %v3733
    %3789 = vmatprep.mubr.bf16.mxu0 %v3614
    %3790 = vmatmul.mubr.bf16.gmra.mxu0 %v3613
    %v3791 = vpop.f32.mrf.mxu0
    %v3792 = vadd.f32 0.0, %v3791
    %v3793 = vpop.f32.mrf.mxu0
    %v3794 = vpop.f32.mrf.mxu0
    %v3795 = vadd.f32 0.0, %v3794
    %v3796 = vpop.f32.mrf.mxu0
    %3797 = vmatprep.mubr.bf16.mxu0 %v3616
    %3798 = vmatmul.mubr.bf16.gmra.mxu0 %v3615
    %v3799 = vpop.f32.mrf.mxu0
    %v3800 = vadd.f32 0.0, %v3799
    %v3801 = vpop.f32.mrf.mxu0
    %v3802 = vpop.f32.mrf.mxu0
    %v3803 = vadd.f32 0.0, %v3802
    %v3804 = vpop.f32.mrf.mxu0
    %3805 = vmatprep.mubr.bf16.mxu0 %v3618
    %3806 = vmatmul.mubr.bf16.gmra.mxu0 %v3617
    %v3807 = vpop.f32.mrf.mxu0
    %v3808 = vadd.f32 0.0, %v3807
    %v3809 = vpop.f32.mrf.mxu0
    %v3810 = vpop.f32.mrf.mxu0
    %v3811 = vadd.f32 0.0, %v3810
    %v3812 = vpop.f32.mrf.mxu0
    %3813 = vmatprep.mubr.bf16.mxu0 %v3620
    %3814 = vmatmul.mubr.bf16.gmra.mxu0 %v3619
    %v3815 = vpop.f32.mrf.mxu0
    %v3816 = vadd.f32 0.0, %v3815
    %v3817 = vpop.f32.mrf.mxu0
    %v3818 = vpop.f32.mrf.mxu0
    %v3819 = vadd.f32 0.0, %v3818
    %v3820 = vpop.f32.mrf.mxu0
    %3821 = vmatprep.mubr.bf16.mxu0 %v3622
    %3822 = vmatmul.mubr.bf16.gmra.mxu0 %v3621
    %v3823 = vpop.f32.mrf.mxu0
    %v3824 = vadd.f32 0.0, %v3823
    %v3825 = vpop.f32.mrf.mxu0
    %v3826 = vpop.f32.mrf.mxu0
    %v3827 = vadd.f32 0.0, %v3826
    %v3828 = vpop.f32.mrf.mxu0
    %3829 = vmatprep.mubr.bf16.mxu0 %v3624
    %3830 = vmatmul.mubr.bf16.gmra.mxu0 %v3623
    %v3831 = vpop.f32.mrf.mxu0
    %v3832 = vadd.f32 0.0, %v3831
    %v3833 = vpop.f32.mrf.mxu0
    %v3834 = vpop.f32.mrf.mxu0
    %v3835 = vadd.f32 0.0, %v3834
    %v3836 = vpop.f32.mrf.mxu0
    %3837 = vmatprep.mubr.bf16.mxu0 %v3626
    %3838 = vmatmul.mubr.bf16.gmra.mxu0 %v3625
    %v3839 = vpop.f32.mrf.mxu0
    %v3840 = vadd.f32 0.0, %v3839
    %v3841 = vpop.f32.mrf.mxu0
    %v3842 = vpop.f32.mrf.mxu0
    %v3843 = vadd.f32 0.0, %v3842
    %v3844 = vpop.f32.mrf.mxu0
    %3845 = vmatprep.mubr.bf16.mxu0 %v3628
    %3846 = vmatmul.mubr.bf16.gmra.mxu0 %v3627
    %v3847 = vpop.f32.mrf.mxu0
    %v3848 = vadd.f32 0.0, %v3847
    %v3849 = vpop.f32.mrf.mxu0
    %v3850 = vpop.f32.mrf.mxu0
    %v3851 = vadd.f32 0.0, %v3850
    %v3852 = vpop.f32.mrf.mxu0
    %3853 = vdwg.mxu0
    %v3854 = vpack.c.bf16 %v3795, %v3792
    %v3855 = vpack.c.bf16 %v3803, %v3800
    %v3856 = vpack.c.bf16 %v3811, %v3808
    %v3857 = vpack.c.bf16 %v3819, %v3816
    %v3858 = vpack.c.bf16 %v3827, %v3824
    %v3859 = vpack.c.bf16 %v3835, %v3832
    %v3860 = vpack.c.bf16 %v3843, %v3840
    %v3861 = vpack.c.bf16 %v3851, %v3848
    %v3862 = vld [vmem:[%s11] sm:$0x1]
    %v3864 = vpack.i.b16 %v3862, %v3862
    %v3866 = vlaneseq
    %v3867 = vshrl.u32 %v3866, 7
    %v3868 = vsub.s32 0, %v3867
    %v3869 = vrot.slane %v3864, %v3868
    %v3870 = vadd.bf16 %v3854, %v3869
    %v3871 = vadd.bf16 %v3855, %v3869
    %v3872 = vadd.bf16 %v3856, %v3869
    %v3873 = vadd.bf16 %v3857, %v3869
    %v3874 = vadd.bf16 %v3858, %v3869
    %v3875 = vadd.bf16 %v3859, %v3869
    %v3876 = vadd.bf16 %v3860, %v3869
    %v3877 = vadd.bf16 %v3861, %v3869
    %v3878 = vmax.bf16 %v3870, 0
    %v3879 = vmax.bf16 %v3871, 0
    %v3880 = vmax.bf16 %v3872, 0
    %v3881 = vmax.bf16 %v3873, 0
    %v3882 = vmax.bf16 %v3874, 0
    %v3883 = vmax.bf16 %v3875, 0
    %v3884 = vmax.bf16 %v3876, 0
    %v3885 = vmax.bf16 %v3877, 0
    %v3886 = vld [vmem:[#allocation10] sm:$0xf]
    %v3887 = vld [vmem:[#allocation10 + $0x4] sm:$0xf]
    %v3888 = vld [vmem:[#allocation10 + $0x8] sm:$0xf]
    %v3889 = vld [vmem:[#allocation10 + $0xc] sm:$0xf]
    %v3890 = vld [vmem:[#allocation10 + $0x10] sm:$0xf]
    %v3891 = vld [vmem:[#allocation10 + $0x14] sm:$0xf]
    %v3892 = vld [vmem:[#allocation10 + $0x18] sm:$0xf]
    %v3893 = vld [vmem:[#allocation10 + $0x1c] sm:$0xf]
    %v3894 = vld [vmem:[#allocation10 + $0x20] sm:$0xf]
    %v3895 = vld [vmem:[#allocation10 + $0x24] sm:$0xf]
    %v3896 = vld [vmem:[#allocation10 + $0x28] sm:$0xf]
    %v3897 = vld [vmem:[#allocation10 + $0x2c] sm:$0xf]
    %v3898 = vld [vmem:[#allocation10 + $0x30] sm:$0xf]
    %v3899 = vld [vmem:[#allocation10 + $0x34] sm:$0xf]
    %v3900 = vld [vmem:[#allocation10 + $0x38] sm:$0xf]
    %v3901 = vld [vmem:[#allocation10 + $0x3c] sm:$0xf]
    %v3918 = vunpack.c.l.b16 %v3886
    %v3919 = vunpack.c.l.b16 %v3887
    %v3920 = vunpack.c.l.b16 %v3888
    %v3921 = vunpack.c.l.b16 %v3889
    %v3922 = vunpack.c.l.b16 %v3890
    %v3923 = vunpack.c.l.b16 %v3891
    %v3924 = vunpack.c.l.b16 %v3892
    %v3925 = vunpack.c.l.b16 %v3893
    %v3926 = vunpack.c.l.b16 %v3894
    %v3927 = vunpack.c.l.b16 %v3895
    %v3928 = vunpack.c.l.b16 %v3896
    %v3929 = vunpack.c.l.b16 %v3897
    %v3930 = vunpack.c.l.b16 %v3898
    %v3931 = vunpack.c.l.b16 %v3899
    %v3932 = vunpack.c.l.b16 %v3900
    %v3933 = vunpack.c.l.b16 %v3901
    %v3934 = vpack.c.b16 %v3919, %v3918
    %v3935 = vpack.c.b16 %v3921, %v3920
    %v3936 = vpack.c.b16 %v3923, %v3922
    %v3937 = vpack.c.b16 %v3925, %v3924
    %v3938 = vpack.c.b16 %v3927, %v3926
    %v3939 = vpack.c.b16 %v3929, %v3928
    %v3940 = vpack.c.b16 %v3931, %v3930
    %v3941 = vpack.c.b16 %v3933, %v3932
    %3950 = vmatprep.subr.bf16.mxu0 0
    %3951 = vmatpush1.bf16.msra.mxu0 %v3941
    %3952 = vmatprep.subr.bf16.mxu0 0
    %3953 = vmatpush1.bf16.msra.mxu0 %v3940
    %3954 = vmatprep.subr.bf16.mxu0 0
    %3955 = vmatpush1.bf16.msra.mxu0 %v3939
    %3956 = vmatprep.subr.bf16.mxu0 0
    %3957 = vmatpush1.bf16.msra.mxu0 %v3938
    %3958 = vmatprep.subr.bf16.mxu0 0
    %3959 = vmatpush1.bf16.msra.mxu0 %v3937
    %3960 = vmatprep.subr.bf16.mxu0 0
    %3961 = vmatpush1.bf16.msra.mxu0 %v3936
    %3962 = vmatprep.subr.bf16.mxu0 0
    %3963 = vmatpush1.bf16.msra.mxu0 %v3935
    %3964 = vmatprep.subr.bf16.mxu0 0
    %3965 = vmatpush1.bf16.msra.mxu0 %v3934
    %3966 = vmatprep.subr.bf16.mxu0 0
    %3967 = vmatpush2.bf16.msra.mxu0 0
    %3968 = vmatprep.subr.bf16.mxu0 0
    %3969 = vmatpush2.bf16.msra.mxu0 0
    %3970 = vmatprep.subr.bf16.mxu0 0
    %3971 = vmatpush2.bf16.msra.mxu0 0
    %3972 = vmatprep.subr.bf16.mxu0 0
    %3973 = vmatpush2.bf16.msra.mxu0 0
    %3974 = vmatprep.subr.bf16.mxu0 0
    %3975 = vmatpush2.bf16.msra.mxu0 0
    %3976 = vmatprep.subr.bf16.mxu0 0
    %3977 = vmatpush2.bf16.msra.mxu0 0
    %3978 = vmatprep.subr.bf16.mxu0 0
    %3979 = vmatpush2.bf16.msra.mxu0 0
    %3980 = vmatprep.subr.bf16.mxu0 0
    %3981 = vmatpush2.bf16.msra.mxu0 0
    %3982 = vmatprep.mubr.bf16.mxu0 0
    %3983 = vmatmul.mubr.bf16.gmra.mxu0 %v3878
    %v3984 = vpop.f32.mrf.mxu0
    %v3985 = vadd.f32 0.0, %v3984
    %v3986 = vpop.f32.mrf.mxu0
    %v3987 = vpop.f32.mrf.mxu0
    %v3988 = vadd.f32 0.0, %v3987
    %v3989 = vpop.f32.mrf.mxu0
    %3990 = vmatprep.mubr.bf16.mxu0 0
    %3991 = vmatmul.mubr.bf16.gmra.mxu0 %v3879
    %v3992 = vpop.f32.mrf.mxu0
    %v3993 = vadd.f32 0.0, %v3992
    %v3994 = vpop.f32.mrf.mxu0
    %v3995 = vpop.f32.mrf.mxu0
    %v3996 = vadd.f32 0.0, %v3995
    %v3997 = vpop.f32.mrf.mxu0
    %3998 = vmatprep.mubr.bf16.mxu0 0
    %3999 = vmatmul.mubr.bf16.gmra.mxu0 %v3880
    %v4000 = vpop.f32.mrf.mxu0
    %v4001 = vadd.f32 0.0, %v4000
    %v4002 = vpop.f32.mrf.mxu0
    %v4003 = vpop.f32.mrf.mxu0
    %v4004 = vadd.f32 0.0, %v4003
    %v4005 = vpop.f32.mrf.mxu0
    %4006 = vmatprep.mubr.bf16.mxu0 0
    %4007 = vmatmul.mubr.bf16.gmra.mxu0 %v3881
    %v4008 = vpop.f32.mrf.mxu0
    %v4009 = vadd.f32 0.0, %v4008
    %v4010 = vpop.f32.mrf.mxu0
    %v4011 = vpop.f32.mrf.mxu0
    %v4012 = vadd.f32 0.0, %v4011
    %v4013 = vpop.f32.mrf.mxu0
    %4014 = vmatprep.mubr.bf16.mxu0 0
    %4015 = vmatmul.mubr.bf16.gmra.mxu0 %v3882
    %v4016 = vpop.f32.mrf.mxu0
    %v4017 = vadd.f32 0.0, %v4016
    %v4018 = vpop.f32.mrf.mxu0
    %v4019 = vpop.f32.mrf.mxu0
    %v4020 = vadd.f32 0.0, %v4019
    %v4021 = vpop.f32.mrf.mxu0
    %4022 = vmatprep.mubr.bf16.mxu0 0
    %4023 = vmatmul.mubr.bf16.gmra.mxu0 %v3883
    %v4024 = vpop.f32.mrf.mxu0
    %v4025 = vadd.f32 0.0, %v4024
    %v4026 = vpop.f32.mrf.mxu0
    %v4027 = vpop.f32.mrf.mxu0
    %v4028 = vadd.f32 0.0, %v4027
    %v4029 = vpop.f32.mrf.mxu0
    %4030 = vmatprep.mubr.bf16.mxu0 0
    %4031 = vmatmul.mubr.bf16.gmra.mxu0 %v3884
    %v4032 = vpop.f32.mrf.mxu0
    %v4033 = vadd.f32 0.0, %v4032
    %v4034 = vpop.f32.mrf.mxu0
    %v4035 = vpop.f32.mrf.mxu0
    %v4036 = vadd.f32 0.0, %v4035
    %v4037 = vpop.f32.mrf.mxu0
    %4038 = vmatprep.mubr.bf16.mxu0 0
    %4039 = vmatmul.mubr.bf16.gmra.mxu0 %v3885
    %v4040 = vpop.f32.mrf.mxu0
    %v4041 = vadd.f32 0.0, %v4040
    %v4042 = vpop.f32.mrf.mxu0
    %v4043 = vpop.f32.mrf.mxu0
    %v4044 = vadd.f32 0.0, %v4043
    %v4045 = vpop.f32.mrf.mxu0
    %4046 = vdwg.mxu0
    %v4047 = vpack.c.bf16 %v3988, %v3985
    %v4048 = vpack.c.bf16 %v3996, %v3993
    %v4049 = vpack.c.bf16 %v4004, %v4001
    %v4050 = vpack.c.bf16 %v4012, %v4009
    %v4051 = vpack.c.bf16 %v4020, %v4017
    %v4052 = vpack.c.bf16 %v4028, %v4025
    %v4053 = vpack.c.bf16 %v4036, %v4033
    %v4054 = vpack.c.bf16 %v4044, %v4041
    %v4055 = vld [vmem:[%s12] sm:$0x1]
    %v4057 = vpack.i.b16 %v4055, %v4055
    %v4059 = vlaneseq
    %v4060 = vshrl.u32 %v4059, 7
    %v4061 = vsub.s32 0, %v4060
    %v4062 = vrot.slane %v4057, %v4061
    %v4063 = vadd.bf16 %v4047, %v4062
    %v4064 = vadd.bf16 %v4048, %v4062
    %v4065 = vadd.bf16 %v4049, %v4062
    %v4066 = vadd.bf16 %v4050, %v4062
    %v4067 = vadd.bf16 %v4051, %v4062
    %v4068 = vadd.bf16 %v4052, %v4062
    %v4069 = vadd.bf16 %v4053, %v4062
    %v4070 = vadd.bf16 %v4054, %v4062
    %v4071 = vmax.bf16 %v4063, 0
    %v4072 = vmax.bf16 %v4064, 0
    %v4073 = vmax.bf16 %v4065, 0
    %v4074 = vmax.bf16 %v4066, 0
    %v4075 = vmax.bf16 %v4067, 0
    %v4076 = vmax.bf16 %v4068, 0
    %v4077 = vmax.bf16 %v4069, 0
    %v4078 = vmax.bf16 %v4070, 0
    %v4087 = vunpack.c.l.b16 %v4071
    %v4088 = vunpack.c.h.b16 %v4071
    %v4089 = vunpack.c.l.b16 %v4072
    %v4090 = vunpack.c.h.b16 %v4072
    %v4091 = vunpack.c.l.b16 %v4073
    %v4092 = vunpack.c.h.b16 %v4073
    %v4093 = vunpack.c.l.b16 %v4074
    %v4094 = vunpack.c.h.b16 %v4074
    %v4095 = vunpack.c.l.b16 %v4075
    %v4096 = vunpack.c.h.b16 %v4075
    %v4097 = vunpack.c.l.b16 %v4076
    %v4098 = vunpack.c.h.b16 %v4076
    %v4099 = vunpack.c.l.b16 %v4077
    %v4100 = vunpack.c.h.b16 %v4077
    %v4101 = vunpack.c.l.b16 %v4078
    %v4102 = vunpack.c.h.b16 %v4078
    %v4103 = vpack.c.b16 %v4087, %v4087
    %v4104 = vpack.c.b16 %v4088, %v4088
    %v4105 = vpack.c.b16 %v4089, %v4089
    %v4106 = vpack.c.b16 %v4090, %v4090
    %v4107 = vpack.c.b16 %v4091, %v4091
    %v4108 = vpack.c.b16 %v4092, %v4092
    %v4109 = vpack.c.b16 %v4093, %v4093
    %v4110 = vpack.c.b16 %v4094, %v4094
    %v4111 = vpack.c.b16 %v4095, %v4095
    %v4112 = vpack.c.b16 %v4096, %v4096
    %v4113 = vpack.c.b16 %v4097, %v4097
    %v4114 = vpack.c.b16 %v4098, %v4098
    %v4115 = vpack.c.b16 %v4099, %v4099
    %v4116 = vpack.c.b16 %v4100, %v4100
    %v4117 = vpack.c.b16 %v4101, %v4101
    %v4118 = vpack.c.b16 %v4102, %v4102
    %4135 = vst [vmem:[#allocation17] sm:$0xf] %v4103
    %4136 = vst [vmem:[#allocation17 + $0x4] sm:$0xf] %v4104
    %4137 = vst [vmem:[#allocation17 + $0x8] sm:$0xf] %v4105
    %4138 = vst [vmem:[#allocation17 + $0xc] sm:$0xf] %v4106
    %4139 = vst [vmem:[#allocation17 + $0x10] sm:$0xf] %v4107
    %4140 = vst [vmem:[#allocation17 + $0x14] sm:$0xf] %v4108
    %4141 = vst [vmem:[#allocation17 + $0x18] sm:$0xf] %v4109
    %4142 = vst [vmem:[#allocation17 + $0x1c] sm:$0xf] %v4110
    %4143 = vst [vmem:[#allocation17 + $0x20] sm:$0xf] %v4111
    %4144 = vst [vmem:[#allocation17 + $0x24] sm:$0xf] %v4112
    %4145 = vst [vmem:[#allocation17 + $0x28] sm:$0xf] %v4113
    %4146 = vst [vmem:[#allocation17 + $0x2c] sm:$0xf] %v4114
    %4147 = vst [vmem:[#allocation17 + $0x30] sm:$0xf] %v4115
    %4148 = vst [vmem:[#allocation17 + $0x34] sm:$0xf] %v4116
    %4149 = vst [vmem:[#allocation17 + $0x38] sm:$0xf] %v4117
    %4150 = vst [vmem:[#allocation17 + $0x3c] sm:$0xf] %v4118
    %v4151 = vld [vmem:[#allocation11] sm:$0xf]
    %v4152 = vld [vmem:[#allocation11 + $0x4] sm:$0xf]
    %v4153 = vld [vmem:[#allocation11 + $0x8] sm:$0xf]
    %v4154 = vld [vmem:[#allocation11 + $0xc] sm:$0xf]
    %v4155 = vld [vmem:[#allocation11 + $0x10] sm:$0xf]
    %v4156 = vld [vmem:[#allocation11 + $0x14] sm:$0xf]
    %v4157 = vld [vmem:[#allocation11 + $0x18] sm:$0xf]
    %v4158 = vld [vmem:[#allocation11 + $0x1c] sm:$0xf]
    %v4159 = vld [vmem:[#allocation11 + $0x20] sm:$0xf]
    %v4160 = vld [vmem:[#allocation11 + $0x24] sm:$0xf]
    %v4161 = vld [vmem:[#allocation11 + $0x28] sm:$0xf]
    %v4162 = vld [vmem:[#allocation11 + $0x2c] sm:$0xf]
    %v4163 = vld [vmem:[#allocation11 + $0x30] sm:$0xf]
    %v4164 = vld [vmem:[#allocation11 + $0x34] sm:$0xf]
    %v4165 = vld [vmem:[#allocation11 + $0x38] sm:$0xf]
    %v4166 = vld [vmem:[#allocation11 + $0x3c] sm:$0xf]
    %v4183 = vunpack.c.l.b16 %v4151
    %v4184 = vunpack.c.l.b16 %v4152
    %v4185 = vunpack.c.l.b16 %v4153
    %v4186 = vunpack.c.l.b16 %v4154
    %v4187 = vunpack.c.l.b16 %v4155
    %v4188 = vunpack.c.l.b16 %v4156
    %v4189 = vunpack.c.l.b16 %v4157
    %v4190 = vunpack.c.l.b16 %v4158
    %v4191 = vunpack.c.l.b16 %v4159
    %v4192 = vunpack.c.l.b16 %v4160
    %v4193 = vunpack.c.l.b16 %v4161
    %v4194 = vunpack.c.l.b16 %v4162
    %v4195 = vunpack.c.l.b16 %v4163
    %v4196 = vunpack.c.l.b16 %v4164
    %v4197 = vunpack.c.l.b16 %v4165
    %v4198 = vunpack.c.l.b16 %v4166
    %v4199 = vpack.c.b16 %v4184, %v4183
    %v4200 = vpack.c.b16 %v4186, %v4185
    %v4201 = vpack.c.b16 %v4188, %v4187
    %v4202 = vpack.c.b16 %v4190, %v4189
    %v4203 = vpack.c.b16 %v4192, %v4191
    %v4204 = vpack.c.b16 %v4194, %v4193
    %v4205 = vpack.c.b16 %v4196, %v4195
    %v4206 = vpack.c.b16 %v4198, %v4197
    %4215 = vmatprep.subr.bf16.mxu0 0
    %4216 = vmatpush1.bf16.msra.mxu0 %v4206
    %4217 = vmatprep.subr.bf16.mxu0 0
    %4218 = vmatpush1.bf16.msra.mxu0 %v4205
    %4219 = vmatprep.subr.bf16.mxu0 0
    %4220 = vmatpush1.bf16.msra.mxu0 %v4204
    %4221 = vmatprep.subr.bf16.mxu0 0
    %4222 = vmatpush1.bf16.msra.mxu0 %v4203
    %4223 = vmatprep.subr.bf16.mxu0 0
    %4224 = vmatpush1.bf16.msra.mxu0 %v4202
    %4225 = vmatprep.subr.bf16.mxu0 0
    %4226 = vmatpush1.bf16.msra.mxu0 %v4201
    %4227 = vmatprep.subr.bf16.mxu0 0
    %4228 = vmatpush1.bf16.msra.mxu0 %v4200
    %4229 = vmatprep.subr.bf16.mxu0 0
    %4230 = vmatpush1.bf16.msra.mxu0 %v4199
    %4231 = vmatprep.subr.bf16.mxu0 0
    %4232 = vmatpush2.bf16.msra.mxu0 0
    %4233 = vmatprep.subr.bf16.mxu0 0
    %4234 = vmatpush2.bf16.msra.mxu0 0
    %4235 = vmatprep.subr.bf16.mxu0 0
    %4236 = vmatpush2.bf16.msra.mxu0 0
    %4237 = vmatprep.subr.bf16.mxu0 0
    %4238 = vmatpush2.bf16.msra.mxu0 0
    %4239 = vmatprep.subr.bf16.mxu0 0
    %4240 = vmatpush2.bf16.msra.mxu0 0
    %4241 = vmatprep.subr.bf16.mxu0 0
    %4242 = vmatpush2.bf16.msra.mxu0 0
    %4243 = vmatprep.subr.bf16.mxu0 0
    %4244 = vmatpush2.bf16.msra.mxu0 0
    %4245 = vmatprep.subr.bf16.mxu0 0
    %4246 = vmatpush2.bf16.msra.mxu0 0
    %4247 = vmatprep.mubr.bf16.mxu0 0
    %4248 = vmatmul.mubr.bf16.gmra.mxu0 %v4071
    %v4249 = vpop.f32.mrf.mxu0
    %v4250 = vadd.f32 0.0, %v4249
    %v4251 = vpop.f32.mrf.mxu0
    %v4252 = vpop.f32.mrf.mxu0
    %v4253 = vadd.f32 0.0, %v4252
    %v4254 = vpop.f32.mrf.mxu0
    %4255 = vmatprep.mubr.bf16.mxu0 0
    %4256 = vmatmul.mubr.bf16.gmra.mxu0 %v4072
    %v4257 = vpop.f32.mrf.mxu0
    %v4258 = vadd.f32 0.0, %v4257
    %v4259 = vpop.f32.mrf.mxu0
    %v4260 = vpop.f32.mrf.mxu0
    %v4261 = vadd.f32 0.0, %v4260
    %v4262 = vpop.f32.mrf.mxu0
    %4263 = vmatprep.mubr.bf16.mxu0 0
    %4264 = vmatmul.mubr.bf16.gmra.mxu0 %v4073
    %v4265 = vpop.f32.mrf.mxu0
    %v4266 = vadd.f32 0.0, %v4265
    %v4267 = vpop.f32.mrf.mxu0
    %v4268 = vpop.f32.mrf.mxu0
    %v4269 = vadd.f32 0.0, %v4268
    %v4270 = vpop.f32.mrf.mxu0
    %4271 = vmatprep.mubr.bf16.mxu0 0
    %4272 = vmatmul.mubr.bf16.gmra.mxu0 %v4074
    %v4273 = vpop.f32.mrf.mxu0
    %v4274 = vadd.f32 0.0, %v4273
    %v4275 = vpop.f32.mrf.mxu0
    %v4276 = vpop.f32.mrf.mxu0
    %v4277 = vadd.f32 0.0, %v4276
    %v4278 = vpop.f32.mrf.mxu0
    %4279 = vmatprep.mubr.bf16.mxu0 0
    %4280 = vmatmul.mubr.bf16.gmra.mxu0 %v4075
    %v4281 = vpop.f32.mrf.mxu0
    %v4282 = vadd.f32 0.0, %v4281
    %v4283 = vpop.f32.mrf.mxu0
    %v4284 = vpop.f32.mrf.mxu0
    %v4285 = vadd.f32 0.0, %v4284
    %v4286 = vpop.f32.mrf.mxu0
    %4287 = vmatprep.mubr.bf16.mxu0 0
    %4288 = vmatmul.mubr.bf16.gmra.mxu0 %v4076
    %v4289 = vpop.f32.mrf.mxu0
    %v4290 = vadd.f32 0.0, %v4289
    %v4291 = vpop.f32.mrf.mxu0
    %v4292 = vpop.f32.mrf.mxu0
    %v4293 = vadd.f32 0.0, %v4292
    %v4294 = vpop.f32.mrf.mxu0
    %4295 = vmatprep.mubr.bf16.mxu0 0
    %4296 = vmatmul.mubr.bf16.gmra.mxu0 %v4077
    %v4297 = vpop.f32.mrf.mxu0
    %v4298 = vadd.f32 0.0, %v4297
    %v4299 = vpop.f32.mrf.mxu0
    %v4300 = vpop.f32.mrf.mxu0
    %v4301 = vadd.f32 0.0, %v4300
    %v4302 = vpop.f32.mrf.mxu0
    %4303 = vmatprep.mubr.bf16.mxu0 0
    %4304 = vmatmul.mubr.bf16.gmra.mxu0 %v4078
    %v4305 = vpop.f32.mrf.mxu0
    %v4306 = vadd.f32 0.0, %v4305
    %v4307 = vpop.f32.mrf.mxu0
    %v4308 = vpop.f32.mrf.mxu0
    %v4309 = vadd.f32 0.0, %v4308
    %v4310 = vpop.f32.mrf.mxu0
    %4311 = vdwg.mxu0
    %v4312 = vpack.c.bf16 %v4253, %v4250
    %v4313 = vpack.c.bf16 %v4261, %v4258
    %v4314 = vpack.c.bf16 %v4269, %v4266
    %v4315 = vpack.c.bf16 %v4277, %v4274
    %v4316 = vpack.c.bf16 %v4285, %v4282
    %v4317 = vpack.c.bf16 %v4293, %v4290
    %v4318 = vpack.c.bf16 %v4301, %v4298
    %v4319 = vpack.c.bf16 %v4309, %v4306
    %v4320 = vld [vmem:[%s13] sm:$0x1]
    %v4322 = vpack.i.b16 %v4320, %v4320
    %v4324 = vlaneseq
    %v4325 = vshrl.u32 %v4324, 7
    %v4326 = vsub.s32 0, %v4325
    %v4327 = vrot.slane %v4322, %v4326
    %v4328 = vadd.bf16 %v4312, %v4327
    %v4329 = vadd.bf16 %v4313, %v4327
    %v4330 = vadd.bf16 %v4314, %v4327
    %v4331 = vadd.bf16 %v4315, %v4327
    %v4332 = vadd.bf16 %v4316, %v4327
    %v4333 = vadd.bf16 %v4317, %v4327
    %v4334 = vadd.bf16 %v4318, %v4327
    %v4335 = vadd.bf16 %v4319, %v4327
    %v4336 = vmax.bf16 %v4328, 0
    %v4337 = vmax.bf16 %v4329, 0
    %v4338 = vmax.bf16 %v4330, 0
    %v4339 = vmax.bf16 %v4331, 0
    %v4340 = vmax.bf16 %v4332, 0
    %v4341 = vmax.bf16 %v4333, 0
    %v4342 = vmax.bf16 %v4334, 0
    %v4343 = vmax.bf16 %v4335, 0
    %v4344 = vld [vmem:[#allocation13] sm:$0xff]
    %v4345 = vld [vmem:[#allocation13 + $0x8] sm:$0xff]
    %v4346 = vld [vmem:[#allocation13 + $0x10] sm:$0xff]
    %v4347 = vld [vmem:[#allocation13 + $0x18] sm:$0xff]
    %v4348 = vld [vmem:[#allocation13 + $0x20] sm:$0xff]
    %v4349 = vld [vmem:[#allocation13 + $0x28] sm:$0xff]
    %v4350 = vld [vmem:[#allocation13 + $0x30] sm:$0xff]
    %v4351 = vld [vmem:[#allocation13 + $0x38] sm:$0xff]
    %v4352 = vld [vmem:[#allocation13 + $0x40] sm:$0xff]
    %v4353 = vld [vmem:[#allocation13 + $0x48] sm:$0xff]
    %v4354 = vld [vmem:[#allocation13 + $0x50] sm:$0xff]
    %v4355 = vld [vmem:[#allocation13 + $0x58] sm:$0xff]
    %v4356 = vld [vmem:[#allocation13 + $0x60] sm:$0xff]
    %v4357 = vld [vmem:[#allocation13 + $0x68] sm:$0xff]
    %v4358 = vld [vmem:[#allocation13 + $0x70] sm:$0xff]
    %v4359 = vld [vmem:[#allocation13 + $0x78] sm:$0xff]
    %v4376 = vunpack.c.l.b16 %v4344
    %v4377 = vunpack.c.h.b16 %v4344
    %v4378 = vunpack.c.l.b16 %v4345
    %v4379 = vunpack.c.h.b16 %v4345
    %v4380 = vunpack.c.l.b16 %v4346
    %v4381 = vunpack.c.h.b16 %v4346
    %v4382 = vunpack.c.l.b16 %v4347
    %v4383 = vunpack.c.h.b16 %v4347
    %v4384 = vunpack.c.l.b16 %v4348
    %v4385 = vunpack.c.h.b16 %v4348
    %v4386 = vunpack.c.l.b16 %v4349
    %v4387 = vunpack.c.h.b16 %v4349
    %v4388 = vunpack.c.l.b16 %v4350
    %v4389 = vunpack.c.h.b16 %v4350
    %v4390 = vunpack.c.l.b16 %v4351
    %v4391 = vunpack.c.h.b16 %v4351
    %v4392 = vunpack.c.l.b16 %v4352
    %v4393 = vunpack.c.h.b16 %v4352
    %v4394 = vunpack.c.l.b16 %v4353
    %v4395 = vunpack.c.h.b16 %v4353
    %v4396 = vunpack.c.l.b16 %v4354
    %v4397 = vunpack.c.h.b16 %v4354
    %v4398 = vunpack.c.l.b16 %v4355
    %v4399 = vunpack.c.h.b16 %v4355
    %v4400 = vunpack.c.l.b16 %v4356
    %v4401 = vunpack.c.h.b16 %v4356
    %v4402 = vunpack.c.l.b16 %v4357
    %v4403 = vunpack.c.h.b16 %v4357
    %v4404 = vunpack.c.l.b16 %v4358
    %v4405 = vunpack.c.h.b16 %v4358
    %v4406 = vunpack.c.l.b16 %v4359
    %v4407 = vunpack.c.h.b16 %v4359
    %v4408 = vpack.c.b16 %v4378, %v4376
    %v4409 = vpack.c.b16 %v4379, %v4377
    %v4410 = vpack.c.b16 %v4382, %v4380
    %v4411 = vpack.c.b16 %v4383, %v4381
    %v4412 = vpack.c.b16 %v4386, %v4384
    %v4413 = vpack.c.b16 %v4387, %v4385
    %v4414 = vpack.c.b16 %v4390, %v4388
    %v4415 = vpack.c.b16 %v4391, %v4389
    %v4416 = vpack.c.b16 %v4394, %v4392
    %v4417 = vpack.c.b16 %v4395, %v4393
    %v4418 = vpack.c.b16 %v4398, %v4396
    %v4419 = vpack.c.b16 %v4399, %v4397
    %v4420 = vpack.c.b16 %v4402, %v4400
    %v4421 = vpack.c.b16 %v4403, %v4401
    %v4422 = vpack.c.b16 %v4406, %v4404
    %v4423 = vpack.c.b16 %v4407, %v4405
    %4440 = vmatprep.subr.bf16.mxu0 %v4423
    %4441 = vmatpush1.bf16.msra.mxu0 %v4422
    %4442 = vmatprep.subr.bf16.mxu0 %v4421
    %4443 = vmatpush1.bf16.msra.mxu0 %v4420
    %4444 = vmatprep.subr.bf16.mxu0 %v4419
    %4445 = vmatpush1.bf16.msra.mxu0 %v4418
    %4446 = vmatprep.subr.bf16.mxu0 %v4417
    %4447 = vmatpush1.bf16.msra.mxu0 %v4416
    %4448 = vmatprep.subr.bf16.mxu0 %v4415
    %4449 = vmatpush1.bf16.msra.mxu0 %v4414
    %4450 = vmatprep.subr.bf16.mxu0 %v4413
    %4451 = vmatpush1.bf16.msra.mxu0 %v4412
    %4452 = vmatprep.subr.bf16.mxu0 %v4411
    %4453 = vmatpush1.bf16.msra.mxu0 %v4410
    %4454 = vmatprep.subr.bf16.mxu0 %v4409
    %4455 = vmatpush1.bf16.msra.mxu0 %v4408
    %4456 = vmatprep.subr.bf16.mxu0 0
    %4457 = vmatpush2.bf16.msra.mxu0 0
    %4458 = vmatprep.subr.bf16.mxu0 0
    %4459 = vmatpush2.bf16.msra.mxu0 0
    %4460 = vmatprep.subr.bf16.mxu0 0
    %4461 = vmatpush2.bf16.msra.mxu0 0
    %4462 = vmatprep.subr.bf16.mxu0 0
    %4463 = vmatpush2.bf16.msra.mxu0 0
    %4464 = vmatprep.subr.bf16.mxu0 0
    %4465 = vmatpush2.bf16.msra.mxu0 0
    %4466 = vmatprep.subr.bf16.mxu0 0
    %4467 = vmatpush2.bf16.msra.mxu0 0
    %4468 = vmatprep.subr.bf16.mxu0 0
    %4469 = vmatpush2.bf16.msra.mxu0 0
    %4470 = vmatprep.subr.bf16.mxu0 0
    %4471 = vmatpush2.bf16.msra.mxu0 0
    %4472 = vmatprep.mubr.bf16.mxu0 0
    %4473 = vmatmul.mubr.bf16.gmra.mxu0 %v4336
    %v4474 = vpop.f32.mrf.mxu0
    %v4475 = vadd.f32 0.0, %v4474
    %v4476 = vpop.f32.mrf.mxu0
    %v4477 = vadd.f32 0.0, %v4476
    %v4478 = vpop.f32.mrf.mxu0
    %v4479 = vadd.f32 0.0, %v4478
    %v4480 = vpop.f32.mrf.mxu0
    %v4481 = vadd.f32 0.0, %v4480
    %4482 = vmatprep.mubr.bf16.mxu0 0
    %4483 = vmatmul.mubr.bf16.gmra.mxu0 %v4337
    %v4484 = vpop.f32.mrf.mxu0
    %v4485 = vadd.f32 0.0, %v4484
    %v4486 = vpop.f32.mrf.mxu0
    %v4487 = vadd.f32 0.0, %v4486
    %v4488 = vpop.f32.mrf.mxu0
    %v4489 = vadd.f32 0.0, %v4488
    %v4490 = vpop.f32.mrf.mxu0
    %v4491 = vadd.f32 0.0, %v4490
    %4492 = vmatprep.mubr.bf16.mxu0 0
    %4493 = vmatmul.mubr.bf16.gmra.mxu0 %v4338
    %v4494 = vpop.f32.mrf.mxu0
    %v4495 = vadd.f32 0.0, %v4494
    %v4496 = vpop.f32.mrf.mxu0
    %v4497 = vadd.f32 0.0, %v4496
    %v4498 = vpop.f32.mrf.mxu0
    %v4499 = vadd.f32 0.0, %v4498
    %v4500 = vpop.f32.mrf.mxu0
    %v4501 = vadd.f32 0.0, %v4500
    %4502 = vmatprep.mubr.bf16.mxu0 0
    %4503 = vmatmul.mubr.bf16.gmra.mxu0 %v4339
    %v4504 = vpop.f32.mrf.mxu0
    %v4505 = vadd.f32 0.0, %v4504
    %v4506 = vpop.f32.mrf.mxu0
    %v4507 = vadd.f32 0.0, %v4506
    %v4508 = vpop.f32.mrf.mxu0
    %v4509 = vadd.f32 0.0, %v4508
    %v4510 = vpop.f32.mrf.mxu0
    %v4511 = vadd.f32 0.0, %v4510
    %4512 = vmatprep.mubr.bf16.mxu0 0
    %4513 = vmatmul.mubr.bf16.gmra.mxu0 %v4340
    %v4514 = vpop.f32.mrf.mxu0
    %v4515 = vadd.f32 0.0, %v4514
    %v4516 = vpop.f32.mrf.mxu0
    %v4517 = vadd.f32 0.0, %v4516
    %v4518 = vpop.f32.mrf.mxu0
    %v4519 = vadd.f32 0.0, %v4518
    %v4520 = vpop.f32.mrf.mxu0
    %v4521 = vadd.f32 0.0, %v4520
    %4522 = vmatprep.mubr.bf16.mxu0 0
    %4523 = vmatmul.mubr.bf16.gmra.mxu0 %v4341
    %v4524 = vpop.f32.mrf.mxu0
    %v4525 = vadd.f32 0.0, %v4524
    %v4526 = vpop.f32.mrf.mxu0
    %v4527 = vadd.f32 0.0, %v4526
    %v4528 = vpop.f32.mrf.mxu0
    %v4529 = vadd.f32 0.0, %v4528
    %v4530 = vpop.f32.mrf.mxu0
    %v4531 = vadd.f32 0.0, %v4530
    %4532 = vmatprep.mubr.bf16.mxu0 0
    %4533 = vmatmul.mubr.bf16.gmra.mxu0 %v4342
    %v4534 = vpop.f32.mrf.mxu0
    %v4535 = vadd.f32 0.0, %v4534
    %v4536 = vpop.f32.mrf.mxu0
    %v4537 = vadd.f32 0.0, %v4536
    %v4538 = vpop.f32.mrf.mxu0
    %v4539 = vadd.f32 0.0, %v4538
    %v4540 = vpop.f32.mrf.mxu0
    %v4541 = vadd.f32 0.0, %v4540
    %4542 = vmatprep.mubr.bf16.mxu0 0
    %4543 = vmatmul.mubr.bf16.gmra.mxu0 %v4343
    %v4544 = vpop.f32.mrf.mxu0
    %v4545 = vadd.f32 0.0, %v4544
    %v4546 = vpop.f32.mrf.mxu0
    %v4547 = vadd.f32 0.0, %v4546
    %v4548 = vpop.f32.mrf.mxu0
    %v4549 = vadd.f32 0.0, %v4548
    %v4550 = vpop.f32.mrf.mxu0
    %v4551 = vadd.f32 0.0, %v4550
    %4552 = vdwg.mxu0
    %v4553 = vpack.c.bf16 %v4479, %v4475
    %v4554 = vpack.c.bf16 %v4481, %v4477
    %v4555 = vpack.c.bf16 %v4489, %v4485
    %v4556 = vpack.c.bf16 %v4491, %v4487
    %v4557 = vpack.c.bf16 %v4499, %v4495
    %v4558 = vpack.c.bf16 %v4501, %v4497
    %v4559 = vpack.c.bf16 %v4509, %v4505
    %v4560 = vpack.c.bf16 %v4511, %v4507
    %v4561 = vpack.c.bf16 %v4519, %v4515
    %v4562 = vpack.c.bf16 %v4521, %v4517
    %v4563 = vpack.c.bf16 %v4529, %v4525
    %v4564 = vpack.c.bf16 %v4531, %v4527
    %v4565 = vpack.c.bf16 %v4539, %v4535
    %v4566 = vpack.c.bf16 %v4541, %v4537
    %v4567 = vpack.c.bf16 %v4549, %v4545
    %v4568 = vpack.c.bf16 %v4551, %v4547
    %v4569 = vld [vmem:[%s14] sm:$0x3]
    %v4572 = vunpack.c.l.s4 1966171168
    %v4573 = vunpack.c.0.s8 %v4572
    %v4574 = vlaneseq
    %v4575 = vshrl.u32 %v4574, 7
    %v4576 = vsub.s32 %v4573, %v4575
    %v4577 = vrot.slane %v4569, %v4576
    %v4578 = vcombine.high %v4577, %v4577
    %v4580 = vunpack.c.l.s4 1966171168
    %v4581 = vunpack.c.0.s8 %v4580
    %v4582 = vlaneseq
    %v4583 = vshrl.u32 %v4582, 7
    %v4584 = vsub.s32 %v4581, %v4583
    %v4585 = vrot.slane %v4577, %v4584
    %v4587 = vunpack.c.l.s4 1966171168
    %v4588 = vunpack.c.0.s8 %v4587
    %v4589 = vlaneseq
    %v4590 = vshrl.u32 %v4589, 7
    %v4591 = vsub.s32 %v4588, %v4590
    %v4592 = vrot.slane %v4578, %v4591
    %v4594 = vpack.i.b16 %v4585, %v4585
    %v4596 = vlaneseq
    %v4597 = vshrl.u32 %v4596, 7
    %v4598 = vsub.s32 0, %v4597
    %v4599 = vrot.slane %v4594, %v4598
    %v4601 = vpack.i.b16 %v4592, %v4592
    %v4603 = vlaneseq
    %v4604 = vshrl.u32 %v4603, 7
    %v4605 = vsub.s32 0, %v4604
    %v4606 = vrot.slane %v4601, %v4605
    %v4607 = vadd.bf16 %v4553, %v4599
    %v4608 = vadd.bf16 %v4554, %v4606
    %v4609 = vadd.bf16 %v4555, %v4599
    %v4610 = vadd.bf16 %v4556, %v4606
    %v4611 = vadd.bf16 %v4557, %v4599
    %v4612 = vadd.bf16 %v4558, %v4606
    %v4613 = vadd.bf16 %v4559, %v4599
    %v4614 = vadd.bf16 %v4560, %v4606
    %v4615 = vadd.bf16 %v4561, %v4599
    %v4616 = vadd.bf16 %v4562, %v4606
    %v4617 = vadd.bf16 %v4563, %v4599
    %v4618 = vadd.bf16 %v4564, %v4606
    %v4619 = vadd.bf16 %v4565, %v4599
    %v4620 = vadd.bf16 %v4566, %v4606
    %v4621 = vadd.bf16 %v4567, %v4599
    %v4622 = vadd.bf16 %v4568, %v4606
    %v4623 = vmax.bf16 %v4607, 0
    %v4624 = vmax.bf16 %v4608, 0
    %v4625 = vmax.bf16 %v4609, 0
    %v4626 = vmax.bf16 %v4610, 0
    %v4627 = vmax.bf16 %v4611, 0
    %v4628 = vmax.bf16 %v4612, 0
    %v4629 = vmax.bf16 %v4613, 0
    %v4630 = vmax.bf16 %v4614, 0
    %v4631 = vmax.bf16 %v4615, 0
    %v4632 = vmax.bf16 %v4616, 0
    %v4633 = vmax.bf16 %v4617, 0
    %v4634 = vmax.bf16 %v4618, 0
    %v4635 = vmax.bf16 %v4619, 0
    %v4636 = vmax.bf16 %v4620, 0
    %v4637 = vmax.bf16 %v4621, 0
    %v4638 = vmax.bf16 %v4622, 0
    %v4639 = vld [vmem:[#allocation14] sm:$0xff]
    %v4640 = vld [vmem:[#allocation14 + $0x8] sm:$0xff]
    %v4641 = vld [vmem:[#allocation14 + $0x10] sm:$0xff]
    %v4642 = vld [vmem:[#allocation14 + $0x18] sm:$0xff]
    %v4643 = vld [vmem:[#allocation14 + $0x20] sm:$0xff]
    %v4644 = vld [vmem:[#allocation14 + $0x28] sm:$0xff]
    %v4645 = vld [vmem:[#allocation14 + $0x30] sm:$0xff]
    %v4646 = vld [vmem:[#allocation14 + $0x38] sm:$0xff]
    %v4647 = vld [vmem:[#allocation14 + $0x40] sm:$0xff]
    %v4648 = vld [vmem:[#allocation14 + $0x48] sm:$0xff]
    %v4649 = vld [vmem:[#allocation14 + $0x50] sm:$0xff]
    %v4650 = vld [vmem:[#allocation14 + $0x58] sm:$0xff]
    %v4651 = vld [vmem:[#allocation14 + $0x60] sm:$0xff]
    %v4652 = vld [vmem:[#allocation14 + $0x68] sm:$0xff]
    %v4653 = vld [vmem:[#allocation14 + $0x70] sm:$0xff]
    %v4654 = vld [vmem:[#allocation14 + $0x78] sm:$0xff]
    %v4655 = vld [vmem:[#allocation14 + $0x80] sm:$0xff]
    %v4656 = vld [vmem:[#allocation14 + $0x88] sm:$0xff]
    %v4657 = vld [vmem:[#allocation14 + $0x90] sm:$0xff]
    %v4658 = vld [vmem:[#allocation14 + $0x98] sm:$0xff]
    %v4659 = vld [vmem:[#allocation14 + $0xa0] sm:$0xff]
    %v4660 = vld [vmem:[#allocation14 + $0xa8] sm:$0xff]
    %v4661 = vld [vmem:[#allocation14 + $0xb0] sm:$0xff]
    %v4662 = vld [vmem:[#allocation14 + $0xb8] sm:$0xff]
    %v4663 = vld [vmem:[#allocation14 + $0xc0] sm:$0xff]
    %v4664 = vld [vmem:[#allocation14 + $0xc8] sm:$0xff]
    %v4665 = vld [vmem:[#allocation14 + $0xd0] sm:$0xff]
    %v4666 = vld [vmem:[#allocation14 + $0xd8] sm:$0xff]
    %v4667 = vld [vmem:[#allocation14 + $0xe0] sm:$0xff]
    %v4668 = vld [vmem:[#allocation14 + $0xe8] sm:$0xff]
    %v4669 = vld [vmem:[#allocation14 + $0xf0] sm:$0xff]
    %v4670 = vld [vmem:[#allocation14 + $0xf8] sm:$0xff]
    %v4671 = vld [vmem:[#allocation14 + $0x100] sm:$0xff]
    %v4672 = vld [vmem:[#allocation14 + $0x108] sm:$0xff]
    %v4673 = vld [vmem:[#allocation14 + $0x110] sm:$0xff]
    %v4674 = vld [vmem:[#allocation14 + $0x118] sm:$0xff]
    %v4675 = vld [vmem:[#allocation14 + $0x120] sm:$0xff]
    %v4676 = vld [vmem:[#allocation14 + $0x128] sm:$0xff]
    %v4677 = vld [vmem:[#allocation14 + $0x130] sm:$0xff]
    %v4678 = vld [vmem:[#allocation14 + $0x138] sm:$0xff]
    %v4679 = vld [vmem:[#allocation14 + $0x140] sm:$0xff]
    %v4680 = vld [vmem:[#allocation14 + $0x148] sm:$0xff]
    %v4681 = vld [vmem:[#allocation14 + $0x150] sm:$0xff]
    %v4682 = vld [vmem:[#allocation14 + $0x158] sm:$0xff]
    %v4683 = vld [vmem:[#allocation14 + $0x160] sm:$0xff]
    %v4684 = vld [vmem:[#allocation14 + $0x168] sm:$0xff]
    %v4685 = vld [vmem:[#allocation14 + $0x170] sm:$0xff]
    %v4686 = vld [vmem:[#allocation14 + $0x178] sm:$0xff]
    %v4687 = vld [vmem:[#allocation14 + $0x180] sm:$0xff]
    %v4688 = vld [vmem:[#allocation14 + $0x188] sm:$0xff]
    %v4689 = vld [vmem:[#allocation14 + $0x190] sm:$0xff]
    %v4690 = vld [vmem:[#allocation14 + $0x198] sm:$0xff]
    %v4691 = vld [vmem:[#allocation14 + $0x1a0] sm:$0xff]
    %v4692 = vld [vmem:[#allocation14 + $0x1a8] sm:$0xff]
    %v4693 = vld [vmem:[#allocation14 + $0x1b0] sm:$0xff]
    %v4694 = vld [vmem:[#allocation14 + $0x1b8] sm:$0xff]
    %v4695 = vld [vmem:[#allocation14 + $0x1c0] sm:$0xff]
    %v4696 = vld [vmem:[#allocation14 + $0x1c8] sm:$0xff]
    %v4697 = vld [vmem:[#allocation14 + $0x1d0] sm:$0xff]
    %v4698 = vld [vmem:[#allocation14 + $0x1d8] sm:$0xff]
    %v4699 = vld [vmem:[#allocation14 + $0x1e0] sm:$0xff]
    %v4700 = vld [vmem:[#allocation14 + $0x1e8] sm:$0xff]
    %v4701 = vld [vmem:[#allocation14 + $0x1f0] sm:$0xff]
    %v4702 = vld [vmem:[#allocation14 + $0x1f8] sm:$0xff]
    %v4767 = vunpack.c.l.b16 %v4639
    %v4768 = vunpack.c.h.b16 %v4639
    %v4769 = vunpack.c.l.b16 %v4640
    %v4770 = vunpack.c.h.b16 %v4640
    %v4771 = vunpack.c.l.b16 %v4641
    %v4772 = vunpack.c.h.b16 %v4641
    %v4773 = vunpack.c.l.b16 %v4642
    %v4774 = vunpack.c.h.b16 %v4642
    %v4775 = vunpack.c.l.b16 %v4643
    %v4776 = vunpack.c.h.b16 %v4643
    %v4777 = vunpack.c.l.b16 %v4644
    %v4778 = vunpack.c.h.b16 %v4644
    %v4779 = vunpack.c.l.b16 %v4645
    %v4780 = vunpack.c.h.b16 %v4645
    %v4781 = vunpack.c.l.b16 %v4646
    %v4782 = vunpack.c.h.b16 %v4646
    %v4783 = vunpack.c.l.b16 %v4647
    %v4784 = vunpack.c.h.b16 %v4647
    %v4785 = vunpack.c.l.b16 %v4648
    %v4786 = vunpack.c.h.b16 %v4648
    %v4787 = vunpack.c.l.b16 %v4649
    %v4788 = vunpack.c.h.b16 %v4649
    %v4789 = vunpack.c.l.b16 %v4650
    %v4790 = vunpack.c.h.b16 %v4650
    %v4791 = vunpack.c.l.b16 %v4651
    %v4792 = vunpack.c.h.b16 %v4651
    %v4793 = vunpack.c.l.b16 %v4652
    %v4794 = vunpack.c.h.b16 %v4652
    %v4795 = vunpack.c.l.b16 %v4653
    %v4796 = vunpack.c.h.b16 %v4653
    %v4797 = vunpack.c.l.b16 %v4654
    %v4798 = vunpack.c.h.b16 %v4654
    %v4799 = vunpack.c.l.b16 %v4655
    %v4800 = vunpack.c.h.b16 %v4655
    %v4801 = vunpack.c.l.b16 %v4656
    %v4802 = vunpack.c.h.b16 %v4656
    %v4803 = vunpack.c.l.b16 %v4657
    %v4804 = vunpack.c.h.b16 %v4657
    %v4805 = vunpack.c.l.b16 %v4658
    %v4806 = vunpack.c.h.b16 %v4658
    %v4807 = vunpack.c.l.b16 %v4659
    %v4808 = vunpack.c.h.b16 %v4659
    %v4809 = vunpack.c.l.b16 %v4660
    %v4810 = vunpack.c.h.b16 %v4660
    %v4811 = vunpack.c.l.b16 %v4661
    %v4812 = vunpack.c.h.b16 %v4661
    %v4813 = vunpack.c.l.b16 %v4662
    %v4814 = vunpack.c.h.b16 %v4662
    %v4815 = vunpack.c.l.b16 %v4663
    %v4816 = vunpack.c.h.b16 %v4663
    %v4817 = vunpack.c.l.b16 %v4664
    %v4818 = vunpack.c.h.b16 %v4664
    %v4819 = vunpack.c.l.b16 %v4665
    %v4820 = vunpack.c.h.b16 %v4665
    %v4821 = vunpack.c.l.b16 %v4666
    %v4822 = vunpack.c.h.b16 %v4666
    %v4823 = vunpack.c.l.b16 %v4667
    %v4824 = vunpack.c.h.b16 %v4667
    %v4825 = vunpack.c.l.b16 %v4668
    %v4826 = vunpack.c.h.b16 %v4668
    %v4827 = vunpack.c.l.b16 %v4669
    %v4828 = vunpack.c.h.b16 %v4669
    %v4829 = vunpack.c.l.b16 %v4670
    %v4830 = vunpack.c.h.b16 %v4670
    %v4831 = vunpack.c.l.b16 %v4671
    %v4832 = vunpack.c.h.b16 %v4671
    %v4833 = vunpack.c.l.b16 %v4672
    %v4834 = vunpack.c.h.b16 %v4672
    %v4835 = vunpack.c.l.b16 %v4673
    %v4836 = vunpack.c.h.b16 %v4673
    %v4837 = vunpack.c.l.b16 %v4674
    %v4838 = vunpack.c.h.b16 %v4674
    %v4839 = vunpack.c.l.b16 %v4675
    %v4840 = vunpack.c.h.b16 %v4675
    %v4841 = vunpack.c.l.b16 %v4676
    %v4842 = vunpack.c.h.b16 %v4676
    %v4843 = vunpack.c.l.b16 %v4677
    %v4844 = vunpack.c.h.b16 %v4677
    %v4845 = vunpack.c.l.b16 %v4678
    %v4846 = vunpack.c.h.b16 %v4678
    %v4847 = vunpack.c.l.b16 %v4679
    %v4848 = vunpack.c.h.b16 %v4679
    %v4849 = vunpack.c.l.b16 %v4680
    %v4850 = vunpack.c.h.b16 %v4680
    %v4851 = vunpack.c.l.b16 %v4681
    %v4852 = vunpack.c.h.b16 %v4681
    %v4853 = vunpack.c.l.b16 %v4682
    %v4854 = vunpack.c.h.b16 %v4682
    %v4855 = vunpack.c.l.b16 %v4683
    %v4856 = vunpack.c.h.b16 %v4683
    %v4857 = vunpack.c.l.b16 %v4684
    %v4858 = vunpack.c.h.b16 %v4684
    %v4859 = vunpack.c.l.b16 %v4685
    %v4860 = vunpack.c.h.b16 %v4685
    %v4861 = vunpack.c.l.b16 %v4686
    %v4862 = vunpack.c.h.b16 %v4686
    %v4863 = vunpack.c.l.b16 %v4687
    %v4864 = vunpack.c.h.b16 %v4687
    %v4865 = vunpack.c.l.b16 %v4688
    %v4866 = vunpack.c.h.b16 %v4688
    %v4867 = vunpack.c.l.b16 %v4689
    %v4868 = vunpack.c.h.b16 %v4689
    %v4869 = vunpack.c.l.b16 %v4690
    %v4870 = vunpack.c.h.b16 %v4690
    %v4871 = vunpack.c.l.b16 %v4691
    %v4872 = vunpack.c.h.b16 %v4691
    %v4873 = vunpack.c.l.b16 %v4692
    %v4874 = vunpack.c.h.b16 %v4692
    %v4875 = vunpack.c.l.b16 %v4693
    %v4876 = vunpack.c.h.b16 %v4693
    %v4877 = vunpack.c.l.b16 %v4694
    %v4878 = vunpack.c.h.b16 %v4694
    %v4879 = vunpack.c.l.b16 %v4695
    %v4880 = vunpack.c.h.b16 %v4695
    %v4881 = vunpack.c.l.b16 %v4696
    %v4882 = vunpack.c.h.b16 %v4696
    %v4883 = vunpack.c.l.b16 %v4697
    %v4884 = vunpack.c.h.b16 %v4697
    %v4885 = vunpack.c.l.b16 %v4698
    %v4886 = vunpack.c.h.b16 %v4698
    %v4887 = vunpack.c.l.b16 %v4699
    %v4888 = vunpack.c.h.b16 %v4699
    %v4889 = vunpack.c.l.b16 %v4700
    %v4890 = vunpack.c.h.b16 %v4700
    %v4891 = vunpack.c.l.b16 %v4701
    %v4892 = vunpack.c.h.b16 %v4701
    %v4893 = vunpack.c.l.b16 %v4702
    %v4894 = vunpack.c.h.b16 %v4702
    %v4895 = vpack.c.b16 %v4771, %v4767
    %v4896 = vpack.c.b16 %v4772, %v4768
    %v4897 = vpack.c.b16 %v4773, %v4769
    %v4898 = vpack.c.b16 %v4774, %v4770
    %v4899 = vpack.c.b16 %v4779, %v4775
    %v4900 = vpack.c.b16 %v4780, %v4776
    %v4901 = vpack.c.b16 %v4781, %v4777
    %v4902 = vpack.c.b16 %v4782, %v4778
    %v4903 = vpack.c.b16 %v4787, %v4783
    %v4904 = vpack.c.b16 %v4788, %v4784
    %v4905 = vpack.c.b16 %v4789, %v4785
    %v4906 = vpack.c.b16 %v4790, %v4786
    %v4907 = vpack.c.b16 %v4795, %v4791
    %v4908 = vpack.c.b16 %v4796, %v4792
    %v4909 = vpack.c.b16 %v4797, %v4793
    %v4910 = vpack.c.b16 %v4798, %v4794
    %v4911 = vpack.c.b16 %v4803, %v4799
    %v4912 = vpack.c.b16 %v4804, %v4800
    %v4913 = vpack.c.b16 %v4805, %v4801
    %v4914 = vpack.c.b16 %v4806, %v4802
    %v4915 = vpack.c.b16 %v4811, %v4807
    %v4916 = vpack.c.b16 %v4812, %v4808
    %v4917 = vpack.c.b16 %v4813, %v4809
    %v4918 = vpack.c.b16 %v4814, %v4810
    %v4919 = vpack.c.b16 %v4819, %v4815
    %v4920 = vpack.c.b16 %v4820, %v4816
    %v4921 = vpack.c.b16 %v4821, %v4817
    %v4922 = vpack.c.b16 %v4822, %v4818
    %v4923 = vpack.c.b16 %v4827, %v4823
    %v4924 = vpack.c.b16 %v4828, %v4824
    %v4925 = vpack.c.b16 %v4829, %v4825
    %v4926 = vpack.c.b16 %v4830, %v4826
    %v4927 = vpack.c.b16 %v4835, %v4831
    %v4928 = vpack.c.b16 %v4836, %v4832
    %v4929 = vpack.c.b16 %v4837, %v4833
    %v4930 = vpack.c.b16 %v4838, %v4834
    %v4931 = vpack.c.b16 %v4843, %v4839
    %v4932 = vpack.c.b16 %v4844, %v4840
    %v4933 = vpack.c.b16 %v4845, %v4841
    %v4934 = vpack.c.b16 %v4846, %v4842
    %v4935 = vpack.c.b16 %v4851, %v4847
    %v4936 = vpack.c.b16 %v4852, %v4848
    %v4937 = vpack.c.b16 %v4853, %v4849
    %v4938 = vpack.c.b16 %v4854, %v4850
    %v4939 = vpack.c.b16 %v4859, %v4855
    %v4940 = vpack.c.b16 %v4860, %v4856
    %v4941 = vpack.c.b16 %v4861, %v4857
    %v4942 = vpack.c.b16 %v4862, %v4858
    %v4943 = vpack.c.b16 %v4867, %v4863
    %v4944 = vpack.c.b16 %v4868, %v4864
    %v4945 = vpack.c.b16 %v4869, %v4865
    %v4946 = vpack.c.b16 %v4870, %v4866
    %v4947 = vpack.c.b16 %v4875, %v4871
    %v4948 = vpack.c.b16 %v4876, %v4872
    %v4949 = vpack.c.b16 %v4877, %v4873
    %v4950 = vpack.c.b16 %v4878, %v4874
    %v4951 = vpack.c.b16 %v4883, %v4879
    %v4952 = vpack.c.b16 %v4884, %v4880
    %v4953 = vpack.c.b16 %v4885, %v4881
    %v4954 = vpack.c.b16 %v4886, %v4882
    %v4955 = vpack.c.b16 %v4891, %v4887
    %v4956 = vpack.c.b16 %v4892, %v4888
    %v4957 = vpack.c.b16 %v4893, %v4889
    %v4958 = vpack.c.b16 %v4894, %v4890
    %5023 = vmatprep.subr.bf16.mxu0 %v4924
    %5024 = vmatpush1.bf16.msra.mxu0 %v4923
    %5025 = vmatprep.subr.bf16.mxu0 %v4920
    %5026 = vmatpush1.bf16.msra.mxu0 %v4919
    %5027 = vmatprep.subr.bf16.mxu0 %v4916
    %5028 = vmatpush1.bf16.msra.mxu0 %v4915
    %5029 = vmatprep.subr.bf16.mxu0 %v4912
    %5030 = vmatpush1.bf16.msra.mxu0 %v4911
    %5031 = vmatprep.subr.bf16.mxu0 %v4908
    %5032 = vmatpush1.bf16.msra.mxu0 %v4907
    %5033 = vmatprep.subr.bf16.mxu0 %v4904
    %5034 = vmatpush1.bf16.msra.mxu0 %v4903
    %5035 = vmatprep.subr.bf16.mxu0 %v4900
    %5036 = vmatpush1.bf16.msra.mxu0 %v4899
    %5037 = vmatprep.subr.bf16.mxu0 %v4896
    %5038 = vmatpush1.bf16.msra.mxu0 %v4895
    %5039 = vmatprep.subr.bf16.mxu0 %v4956
    %5040 = vmatpush2.bf16.msra.mxu0 %v4955
    %5041 = vmatprep.subr.bf16.mxu0 %v4952
    %5042 = vmatpush2.bf16.msra.mxu0 %v4951
    %5043 = vmatprep.subr.bf16.mxu0 %v4948
    %5044 = vmatpush2.bf16.msra.mxu0 %v4947
    %5045 = vmatprep.subr.bf16.mxu0 %v4944
    %5046 = vmatpush2.bf16.msra.mxu0 %v4943
    %5047 = vmatprep.subr.bf16.mxu0 %v4940
    %5048 = vmatpush2.bf16.msra.mxu0 %v4939
    %5049 = vmatprep.subr.bf16.mxu0 %v4936
    %5050 = vmatpush2.bf16.msra.mxu0 %v4935
    %5051 = vmatprep.subr.bf16.mxu0 %v4932
    %5052 = vmatpush2.bf16.msra.mxu0 %v4931
    %5053 = vmatprep.subr.bf16.mxu0 %v4928
    %5054 = vmatpush2.bf16.msra.mxu0 %v4927
    %5055 = vmatprep.mubr.bf16.mxu0 %v4624
    %5056 = vmatmul.mubr.bf16.gmra.mxu0 %v4623
    %v5057 = vpop.f32.mrf.mxu0
    %v5058 = vadd.f32 0.0, %v5057
    %v5059 = vpop.f32.mrf.mxu0
    %v5060 = vadd.f32 0.0, %v5059
    %v5061 = vpop.f32.mrf.mxu0
    %v5062 = vadd.f32 0.0, %v5061
    %v5063 = vpop.f32.mrf.mxu0
    %v5064 = vadd.f32 0.0, %v5063
    %5065 = vmatprep.mubr.bf16.mxu0 %v4626
    %5066 = vmatmul.mubr.bf16.gmra.mxu0 %v4625
    %v5067 = vpop.f32.mrf.mxu0
    %v5068 = vadd.f32 0.0, %v5067
    %v5069 = vpop.f32.mrf.mxu0
    %v5070 = vadd.f32 0.0, %v5069
    %v5071 = vpop.f32.mrf.mxu0
    %v5072 = vadd.f32 0.0, %v5071
    %v5073 = vpop.f32.mrf.mxu0
    %v5074 = vadd.f32 0.0, %v5073
    %5075 = vmatprep.mubr.bf16.mxu0 %v4628
    %5076 = vmatmul.mubr.bf16.gmra.mxu0 %v4627
    %v5077 = vpop.f32.mrf.mxu0
    %v5078 = vadd.f32 0.0, %v5077
    %v5079 = vpop.f32.mrf.mxu0
    %v5080 = vadd.f32 0.0, %v5079
    %v5081 = vpop.f32.mrf.mxu0
    %v5082 = vadd.f32 0.0, %v5081
    %v5083 = vpop.f32.mrf.mxu0
    %v5084 = vadd.f32 0.0, %v5083
    %5085 = vmatprep.mubr.bf16.mxu0 %v4630
    %5086 = vmatmul.mubr.bf16.gmra.mxu0 %v4629
    %v5087 = vpop.f32.mrf.mxu0
    %v5088 = vadd.f32 0.0, %v5087
    %v5089 = vpop.f32.mrf.mxu0
    %v5090 = vadd.f32 0.0, %v5089
    %v5091 = vpop.f32.mrf.mxu0
    %v5092 = vadd.f32 0.0, %v5091
    %v5093 = vpop.f32.mrf.mxu0
    %v5094 = vadd.f32 0.0, %v5093
    %5095 = vmatprep.mubr.bf16.mxu0 %v4632
    %5096 = vmatmul.mubr.bf16.gmra.mxu0 %v4631
    %v5097 = vpop.f32.mrf.mxu0
    %v5098 = vadd.f32 0.0, %v5097
    %v5099 = vpop.f32.mrf.mxu0
    %v5100 = vadd.f32 0.0, %v5099
    %v5101 = vpop.f32.mrf.mxu0
    %v5102 = vadd.f32 0.0, %v5101
    %v5103 = vpop.f32.mrf.mxu0
    %v5104 = vadd.f32 0.0, %v5103
    %5105 = vmatprep.mubr.bf16.mxu0 %v4634
    %5106 = vmatmul.mubr.bf16.gmra.mxu0 %v4633
    %v5107 = vpop.f32.mrf.mxu0
    %v5108 = vadd.f32 0.0, %v5107
    %v5109 = vpop.f32.mrf.mxu0
    %v5110 = vadd.f32 0.0, %v5109
    %v5111 = vpop.f32.mrf.mxu0
    %v5112 = vadd.f32 0.0, %v5111
    %v5113 = vpop.f32.mrf.mxu0
    %v5114 = vadd.f32 0.0, %v5113
    %5115 = vmatprep.mubr.bf16.mxu0 %v4636
    %5116 = vmatmul.mubr.bf16.gmra.mxu0 %v4635
    %v5117 = vpop.f32.mrf.mxu0
    %v5118 = vadd.f32 0.0, %v5117
    %v5119 = vpop.f32.mrf.mxu0
    %v5120 = vadd.f32 0.0, %v5119
    %v5121 = vpop.f32.mrf.mxu0
    %v5122 = vadd.f32 0.0, %v5121
    %v5123 = vpop.f32.mrf.mxu0
    %v5124 = vadd.f32 0.0, %v5123
    %5125 = vmatprep.mubr.bf16.mxu0 %v4638
    %5126 = vmatmul.mubr.bf16.gmra.mxu0 %v4637
    %v5127 = vpop.f32.mrf.mxu0
    %v5128 = vadd.f32 0.0, %v5127
    %v5129 = vpop.f32.mrf.mxu0
    %v5130 = vadd.f32 0.0, %v5129
    %v5131 = vpop.f32.mrf.mxu0
    %v5132 = vadd.f32 0.0, %v5131
    %v5133 = vpop.f32.mrf.mxu0
    %v5134 = vadd.f32 0.0, %v5133
    %5135 = vdwg.mxu0
    %5136 = vmatprep.subr.bf16.mxu0 %v4926
    %5137 = vmatpush1.bf16.msra.mxu0 %v4925
    %5138 = vmatprep.subr.bf16.mxu0 %v4922
    %5139 = vmatpush1.bf16.msra.mxu0 %v4921
    %5140 = vmatprep.subr.bf16.mxu0 %v4918
    %5141 = vmatpush1.bf16.msra.mxu0 %v4917
    %5142 = vmatprep.subr.bf16.mxu0 %v4914
    %5143 = vmatpush1.bf16.msra.mxu0 %v4913
    %5144 = vmatprep.subr.bf16.mxu0 %v4910
    %5145 = vmatpush1.bf16.msra.mxu0 %v4909
    %5146 = vmatprep.subr.bf16.mxu0 %v4906
    %5147 = vmatpush1.bf16.msra.mxu0 %v4905
    %5148 = vmatprep.subr.bf16.mxu0 %v4902
    %5149 = vmatpush1.bf16.msra.mxu0 %v4901
    %5150 = vmatprep.subr.bf16.mxu0 %v4898
    %5151 = vmatpush1.bf16.msra.mxu0 %v4897
    %5152 = vmatprep.subr.bf16.mxu0 %v4958
    %5153 = vmatpush2.bf16.msra.mxu0 %v4957
    %5154 = vmatprep.subr.bf16.mxu0 %v4954
    %5155 = vmatpush2.bf16.msra.mxu0 %v4953
    %5156 = vmatprep.subr.bf16.mxu0 %v4950
    %5157 = vmatpush2.bf16.msra.mxu0 %v4949
    %5158 = vmatprep.subr.bf16.mxu0 %v4946
    %5159 = vmatpush2.bf16.msra.mxu0 %v4945
    %5160 = vmatprep.subr.bf16.mxu0 %v4942
    %5161 = vmatpush2.bf16.msra.mxu0 %v4941
    %5162 = vmatprep.subr.bf16.mxu0 %v4938
    %5163 = vmatpush2.bf16.msra.mxu0 %v4937
    %5164 = vmatprep.subr.bf16.mxu0 %v4934
    %5165 = vmatpush2.bf16.msra.mxu0 %v4933
    %5166 = vmatprep.subr.bf16.mxu0 %v4930
    %5167 = vmatpush2.bf16.msra.mxu0 %v4929
    %5168 = vmatprep.mubr.bf16.mxu0 %v4624
    %5169 = vmatmul.mubr.bf16.gmra.mxu0 %v4623
    %v5170 = vpop.f32.mrf.mxu0
    %v5171 = vadd.f32 0.0, %v5170
    %v5172 = vpop.f32.mrf.mxu0
    %v5173 = vadd.f32 0.0, %v5172
    %v5174 = vpop.f32.mrf.mxu0
    %v5175 = vadd.f32 0.0, %v5174
    %v5176 = vpop.f32.mrf.mxu0
    %v5177 = vadd.f32 0.0, %v5176
    %5178 = vmatprep.mubr.bf16.mxu0 %v4626
    %5179 = vmatmul.mubr.bf16.gmra.mxu0 %v4625
    %v5180 = vpop.f32.mrf.mxu0
    %v5181 = vadd.f32 0.0, %v5180
    %v5182 = vpop.f32.mrf.mxu0
    %v5183 = vadd.f32 0.0, %v5182
    %v5184 = vpop.f32.mrf.mxu0
    %v5185 = vadd.f32 0.0, %v5184
    %v5186 = vpop.f32.mrf.mxu0
    %v5187 = vadd.f32 0.0, %v5186
    %5188 = vmatprep.mubr.bf16.mxu0 %v4628
    %5189 = vmatmul.mubr.bf16.gmra.mxu0 %v4627
    %v5190 = vpop.f32.mrf.mxu0
    %v5191 = vadd.f32 0.0, %v5190
    %v5192 = vpop.f32.mrf.mxu0
    %v5193 = vadd.f32 0.0, %v5192
    %v5194 = vpop.f32.mrf.mxu0
    %v5195 = vadd.f32 0.0, %v5194
    %v5196 = vpop.f32.mrf.mxu0
    %v5197 = vadd.f32 0.0, %v5196
    %5198 = vmatprep.mubr.bf16.mxu0 %v4630
    %5199 = vmatmul.mubr.bf16.gmra.mxu0 %v4629
    %v5200 = vpop.f32.mrf.mxu0
    %v5201 = vadd.f32 0.0, %v5200
    %v5202 = vpop.f32.mrf.mxu0
    %v5203 = vadd.f32 0.0, %v5202
    %v5204 = vpop.f32.mrf.mxu0
    %v5205 = vadd.f32 0.0, %v5204
    %v5206 = vpop.f32.mrf.mxu0
    %v5207 = vadd.f32 0.0, %v5206
    %5208 = vmatprep.mubr.bf16.mxu0 %v4632
    %5209 = vmatmul.mubr.bf16.gmra.mxu0 %v4631
    %v5210 = vpop.f32.mrf.mxu0
    %v5211 = vadd.f32 0.0, %v5210
    %v5212 = vpop.f32.mrf.mxu0
    %v5213 = vadd.f32 0.0, %v5212
    %v5214 = vpop.f32.mrf.mxu0
    %v5215 = vadd.f32 0.0, %v5214
    %v5216 = vpop.f32.mrf.mxu0
    %v5217 = vadd.f32 0.0, %v5216
    %5218 = vmatprep.mubr.bf16.mxu0 %v4634
    %5219 = vmatmul.mubr.bf16.gmra.mxu0 %v4633
    %v5220 = vpop.f32.mrf.mxu0
    %v5221 = vadd.f32 0.0, %v5220
    %v5222 = vpop.f32.mrf.mxu0
    %v5223 = vadd.f32 0.0, %v5222
    %v5224 = vpop.f32.mrf.mxu0
    %v5225 = vadd.f32 0.0, %v5224
    %v5226 = vpop.f32.mrf.mxu0
    %v5227 = vadd.f32 0.0, %v5226
    %5228 = vmatprep.mubr.bf16.mxu0 %v4636
    %5229 = vmatmul.mubr.bf16.gmra.mxu0 %v4635
    %v5230 = vpop.f32.mrf.mxu0
    %v5231 = vadd.f32 0.0, %v5230
    %v5232 = vpop.f32.mrf.mxu0
    %v5233 = vadd.f32 0.0, %v5232
    %v5234 = vpop.f32.mrf.mxu0
    %v5235 = vadd.f32 0.0, %v5234
    %v5236 = vpop.f32.mrf.mxu0
    %v5237 = vadd.f32 0.0, %v5236
    %5238 = vmatprep.mubr.bf16.mxu0 %v4638
    %5239 = vmatmul.mubr.bf16.gmra.mxu0 %v4637
    %v5240 = vpop.f32.mrf.mxu0
    %v5241 = vadd.f32 0.0, %v5240
    %v5242 = vpop.f32.mrf.mxu0
    %v5243 = vadd.f32 0.0, %v5242
    %v5244 = vpop.f32.mrf.mxu0
    %v5245 = vadd.f32 0.0, %v5244
    %v5246 = vpop.f32.mrf.mxu0
    %v5247 = vadd.f32 0.0, %v5246
    %5248 = vdwg.mxu0
    %v5249 = vpack.c.bf16 %v5062, %v5058
    %v5250 = vpack.c.bf16 %v5064, %v5060
    %v5251 = vpack.c.bf16 %v5175, %v5171
    %v5252 = vpack.c.bf16 %v5177, %v5173
    %v5253 = vpack.c.bf16 %v5072, %v5068
    %v5254 = vpack.c.bf16 %v5074, %v5070
    %v5255 = vpack.c.bf16 %v5185, %v5181
    %v5256 = vpack.c.bf16 %v5187, %v5183
    %v5257 = vpack.c.bf16 %v5082, %v5078
    %v5258 = vpack.c.bf16 %v5084, %v5080
    %v5259 = vpack.c.bf16 %v5195, %v5191
    %v5260 = vpack.c.bf16 %v5197, %v5193
    %v5261 = vpack.c.bf16 %v5092, %v5088
    %v5262 = vpack.c.bf16 %v5094, %v5090
    %v5263 = vpack.c.bf16 %v5205, %v5201
    %v5264 = vpack.c.bf16 %v5207, %v5203
    %v5265 = vpack.c.bf16 %v5102, %v5098
    %v5266 = vpack.c.bf16 %v5104, %v5100
    %v5267 = vpack.c.bf16 %v5215, %v5211
    %v5268 = vpack.c.bf16 %v5217, %v5213
    %v5269 = vpack.c.bf16 %v5112, %v5108
    %v5270 = vpack.c.bf16 %v5114, %v5110
    %v5271 = vpack.c.bf16 %v5225, %v5221
    %v5272 = vpack.c.bf16 %v5227, %v5223
    %v5273 = vpack.c.bf16 %v5122, %v5118
    %v5274 = vpack.c.bf16 %v5124, %v5120
    %v5275 = vpack.c.bf16 %v5235, %v5231
    %v5276 = vpack.c.bf16 %v5237, %v5233
    %v5277 = vpack.c.bf16 %v5132, %v5128
    %v5278 = vpack.c.bf16 %v5134, %v5130
    %v5279 = vpack.c.bf16 %v5245, %v5241
    %v5280 = vpack.c.bf16 %v5247, %v5243
    %v5281 = vld [vmem:[%s15] sm:$0xf]
    %v5284 = vunpack.c.l.s4 1966171168
    %v5285 = vunpack.c.0.s8 %v5284
    %v5286 = vlaneseq
    %v5287 = vshrl.u32 %v5286, 7
    %v5288 = vsub.s32 %v5285, %v5287
    %v5289 = vrot.slane %v5281, %v5288
    %v5290 = vcombine.high %v5289, %v5289
    %v5292 = vunpack.c.l.s4 1966171168
    %v5293 = vunpack.c.0.s8 %v5292
    %v5294 = vlaneseq
    %v5295 = vshrl.u32 %v5294, 7
    %v5296 = vsub.s32 %v5293, %v5295
    %v5297 = vrot.slane %v5289, %v5296
    %v5299 = vunpack.c.l.s4 1966171168
    %v5300 = vunpack.c.0.s8 %v5299
    %v5301 = vlaneseq
    %v5302 = vshrl.u32 %v5301, 7
    %v5303 = vsub.s32 %v5300, %v5302
    %v5304 = vrot.slane %v5290, %v5303
    %v5305 = vcombine.high %v5297, %v5297
    %v5306 = vcombine.high %v5304, %v5304
    %v5308 = vpack.i.b16 %v5297, %v5297
    %v5310 = vlaneseq
    %v5311 = vshrl.u32 %v5310, 7
    %v5312 = vsub.s32 0, %v5311
    %v5313 = vrot.slane %v5308, %v5312
    %v5315 = vpack.i.b16 %v5304, %v5304
    %v5317 = vlaneseq
    %v5318 = vshrl.u32 %v5317, 7
    %v5319 = vsub.s32 0, %v5318
    %v5320 = vrot.slane %v5315, %v5319
    %v5322 = vpack.i.b16 %v5305, %v5305
    %v5324 = vlaneseq
    %v5325 = vshrl.u32 %v5324, 7
    %v5326 = vsub.s32 0, %v5325
    %v5327 = vrot.slane %v5322, %v5326
    %v5329 = vpack.i.b16 %v5306, %v5306
    %v5331 = vlaneseq
    %v5332 = vshrl.u32 %v5331, 7
    %v5333 = vsub.s32 0, %v5332
    %v5334 = vrot.slane %v5329, %v5333
    %v5335 = vadd.bf16 %v5249, %v5313
    %v5336 = vadd.bf16 %v5250, %v5320
    %v5337 = vadd.bf16 %v5251, %v5327
    %v5338 = vadd.bf16 %v5252, %v5334
    %v5339 = vadd.bf16 %v5253, %v5313
    %v5340 = vadd.bf16 %v5254, %v5320
    %v5341 = vadd.bf16 %v5255, %v5327
    %v5342 = vadd.bf16 %v5256, %v5334
    %v5343 = vadd.bf16 %v5257, %v5313
    %v5344 = vadd.bf16 %v5258, %v5320
    %v5345 = vadd.bf16 %v5259, %v5327
    %v5346 = vadd.bf16 %v5260, %v5334
    %v5347 = vadd.bf16 %v5261, %v5313
    %v5348 = vadd.bf16 %v5262, %v5320
    %v5349 = vadd.bf16 %v5263, %v5327
    %v5350 = vadd.bf16 %v5264, %v5334
    %v5351 = vadd.bf16 %v5265, %v5313
    %v5352 = vadd.bf16 %v5266, %v5320
    %v5353 = vadd.bf16 %v5267, %v5327
    %v5354 = vadd.bf16 %v5268, %v5334
    %v5355 = vadd.bf16 %v5269, %v5313
    %v5356 = vadd.bf16 %v5270, %v5320
    %v5357 = vadd.bf16 %v5271, %v5327
    %v5358 = vadd.bf16 %v5272, %v5334
    %v5359 = vadd.bf16 %v5273, %v5313
    %v5360 = vadd.bf16 %v5274, %v5320
    %v5361 = vadd.bf16 %v5275, %v5327
    %v5362 = vadd.bf16 %v5276, %v5334
    %v5363 = vadd.bf16 %v5277, %v5313
    %v5364 = vadd.bf16 %v5278, %v5320
    %v5365 = vadd.bf16 %v5279, %v5327
    %v5366 = vadd.bf16 %v5280, %v5334
    %v5367 = vmax.bf16 %v5335, 0
    %v5368 = vmax.bf16 %v5336, 0
    %v5369 = vmax.bf16 %v5337, 0
    %v5370 = vmax.bf16 %v5338, 0
    %v5371 = vmax.bf16 %v5339, 0
    %v5372 = vmax.bf16 %v5340, 0
    %v5373 = vmax.bf16 %v5341, 0
    %v5374 = vmax.bf16 %v5342, 0
    %v5375 = vmax.bf16 %v5343, 0
    %v5376 = vmax.bf16 %v5344, 0
    %v5377 = vmax.bf16 %v5345, 0
    %v5378 = vmax.bf16 %v5346, 0
    %v5379 = vmax.bf16 %v5347, 0
    %v5380 = vmax.bf16 %v5348, 0
    %v5381 = vmax.bf16 %v5349, 0
    %v5382 = vmax.bf16 %v5350, 0
    %v5383 = vmax.bf16 %v5351, 0
    %v5384 = vmax.bf16 %v5352, 0
    %v5385 = vmax.bf16 %v5353, 0
    %v5386 = vmax.bf16 %v5354, 0
    %v5387 = vmax.bf16 %v5355, 0
    %v5388 = vmax.bf16 %v5356, 0
    %v5389 = vmax.bf16 %v5357, 0
    %v5390 = vmax.bf16 %v5358, 0
    %v5391 = vmax.bf16 %v5359, 0
    %v5392 = vmax.bf16 %v5360, 0
    %v5393 = vmax.bf16 %v5361, 0
    %v5394 = vmax.bf16 %v5362, 0
    %v5395 = vmax.bf16 %v5363, 0
    %v5396 = vmax.bf16 %v5364, 0
    %v5397 = vmax.bf16 %v5365, 0
    %v5398 = vmax.bf16 %v5366, 0
    %v5399 = vld [vmem:[#allocation16] sm:$0xff]
    %v5400 = vld [vmem:[#allocation16 + $0x8] sm:$0xff]
    %v5401 = vld [vmem:[#allocation16 + $0x10] sm:$0xff]
    %v5402 = vld [vmem:[#allocation16 + $0x18] sm:$0xf]
    %v5403 = vld [vmem:[#allocation16 + $0x1c] sm:$0xff]
    %v5404 = vld [vmem:[#allocation16 + $0x24] sm:$0xff]
    %v5405 = vld [vmem:[#allocation16 + $0x2c] sm:$0xff]
    %v5406 = vld [vmem:[#allocation16 + $0x34] sm:$0xf]
    %v5407 = vld [vmem:[#allocation16 + $0x38] sm:$0xff]
    %v5408 = vld [vmem:[#allocation16 + $0x40] sm:$0xff]
    %v5409 = vld [vmem:[#allocation16 + $0x48] sm:$0xff]
    %v5410 = vld [vmem:[#allocation16 + $0x50] sm:$0xf]
    %v5411 = vld [vmem:[#allocation16 + $0x54] sm:$0xff]
    %v5412 = vld [vmem:[#allocation16 + $0x5c] sm:$0xff]
    %v5413 = vld [vmem:[#allocation16 + $0x64] sm:$0xff]
    %v5414 = vld [vmem:[#allocation16 + $0x6c] sm:$0xf]
    %v5415 = vld [vmem:[#allocation16 + $0x70] sm:$0xff]
    %v5416 = vld [vmem:[#allocation16 + $0x78] sm:$0xff]
    %v5417 = vld [vmem:[#allocation16 + $0x80] sm:$0xff]
    %v5418 = vld [vmem:[#allocation16 + $0x88] sm:$0xf]
    %v5419 = vld [vmem:[#allocation16 + $0x8c] sm:$0xff]
    %v5420 = vld [vmem:[#allocation16 + $0x94] sm:$0xff]
    %v5421 = vld [vmem:[#allocation16 + $0x9c] sm:$0xff]
    %v5422 = vld [vmem:[#allocation16 + $0xa4] sm:$0xf]
    %v5423 = vld [vmem:[#allocation16 + $0xa8] sm:$0xff]
    %v5424 = vld [vmem:[#allocation16 + $0xb0] sm:$0xff]
    %v5425 = vld [vmem:[#allocation16 + $0xb8] sm:$0xff]
    %v5426 = vld [vmem:[#allocation16 + $0xc0] sm:$0xf]
    %v5427 = vld [vmem:[#allocation16 + $0xc4] sm:$0xff]
    %v5428 = vld [vmem:[#allocation16 + $0xcc] sm:$0xff]
    %v5429 = vld [vmem:[#allocation16 + $0xd4] sm:$0xff]
    %v5430 = vld [vmem:[#allocation16 + $0xdc] sm:$0xf]
    %v5431 = vld [vmem:[#allocation16 + $0xe0] sm:$0xff]
    %v5432 = vld [vmem:[#allocation16 + $0xe8] sm:$0xff]
    %v5433 = vld [vmem:[#allocation16 + $0xf0] sm:$0xff]
    %v5434 = vld [vmem:[#allocation16 + $0xf8] sm:$0xf]
    %v5435 = vld [vmem:[#allocation16 + $0xfc] sm:$0xff]
    %v5436 = vld [vmem:[#allocation16 + $0x104] sm:$0xff]
    %v5437 = vld [vmem:[#allocation16 + $0x10c] sm:$0xff]
    %v5438 = vld [vmem:[#allocation16 + $0x114] sm:$0xf]
    %v5439 = vld [vmem:[#allocation16 + $0x118] sm:$0xff]
    %v5440 = vld [vmem:[#allocation16 + $0x120] sm:$0xff]
    %v5441 = vld [vmem:[#allocation16 + $0x128] sm:$0xff]
    %v5442 = vld [vmem:[#allocation16 + $0x130] sm:$0xf]
    %v5443 = vld [vmem:[#allocation16 + $0x134] sm:$0xff]
    %v5444 = vld [vmem:[#allocation16 + $0x13c] sm:$0xff]
    %v5445 = vld [vmem:[#allocation16 + $0x144] sm:$0xff]
    %v5446 = vld [vmem:[#allocation16 + $0x14c] sm:$0xf]
    %v5447 = vld [vmem:[#allocation16 + $0x150] sm:$0xff]
    %v5448 = vld [vmem:[#allocation16 + $0x158] sm:$0xff]
    %v5449 = vld [vmem:[#allocation16 + $0x160] sm:$0xff]
    %v5450 = vld [vmem:[#allocation16 + $0x168] sm:$0xf]
    %v5451 = vld [vmem:[#allocation16 + $0x16c] sm:$0xff]
    %v5452 = vld [vmem:[#allocation16 + $0x174] sm:$0xff]
    %v5453 = vld [vmem:[#allocation16 + $0x17c] sm:$0xff]
    %v5454 = vld [vmem:[#allocation16 + $0x184] sm:$0xf]
    %v5455 = vld [vmem:[#allocation16 + $0x188] sm:$0xff]
    %v5456 = vld [vmem:[#allocation16 + $0x190] sm:$0xff]
    %v5457 = vld [vmem:[#allocation16 + $0x198] sm:$0xff]
    %v5458 = vld [vmem:[#allocation16 + $0x1a0] sm:$0xf]
    %v5459 = vld [vmem:[#allocation16 + $0x1a4] sm:$0xff]
    %v5460 = vld [vmem:[#allocation16 + $0x1ac] sm:$0xff]
    %v5461 = vld [vmem:[#allocation16 + $0x1b4] sm:$0xff]
    %v5462 = vld [vmem:[#allocation16 + $0x1bc] sm:$0xf]
    %v5463 = vld [vmem:[#allocation16 + $0x1c0] sm:$0xff]
    %v5464 = vld [vmem:[#allocation16 + $0x1c8] sm:$0xff]
    %v5465 = vld [vmem:[#allocation16 + $0x1d0] sm:$0xff]
    %v5466 = vld [vmem:[#allocation16 + $0x1d8] sm:$0xf]
    %v5467 = vld [vmem:[#allocation16 + $0x1dc] sm:$0xff]
    %v5468 = vld [vmem:[#allocation16 + $0x1e4] sm:$0xff]
    %v5469 = vld [vmem:[#allocation16 + $0x1ec] sm:$0xff]
    %v5470 = vld [vmem:[#allocation16 + $0x1f4] sm:$0xf]
    %v5471 = vld [vmem:[#allocation16 + $0x1f8] sm:$0xff]
    %v5472 = vld [vmem:[#allocation16 + $0x200] sm:$0xff]
    %v5473 = vld [vmem:[#allocation16 + $0x208] sm:$0xff]
    %v5474 = vld [vmem:[#allocation16 + $0x210] sm:$0xf]
    %v5475 = vld [vmem:[#allocation16 + $0x214] sm:$0xff]
    %v5476 = vld [vmem:[#allocation16 + $0x21c] sm:$0xff]
    %v5477 = vld [vmem:[#allocation16 + $0x224] sm:$0xff]
    %v5478 = vld [vmem:[#allocation16 + $0x22c] sm:$0xf]
    %v5479 = vld [vmem:[#allocation16 + $0x230] sm:$0xff]
    %v5480 = vld [vmem:[#allocation16 + $0x238] sm:$0xff]
    %v5481 = vld [vmem:[#allocation16 + $0x240] sm:$0xff]
    %v5482 = vld [vmem:[#allocation16 + $0x248] sm:$0xf]
    %v5483 = vld [vmem:[#allocation16 + $0x24c] sm:$0xff]
    %v5484 = vld [vmem:[#allocation16 + $0x254] sm:$0xff]
    %v5485 = vld [vmem:[#allocation16 + $0x25c] sm:$0xff]
    %v5486 = vld [vmem:[#allocation16 + $0x264] sm:$0xf]
    %v5487 = vld [vmem:[#allocation16 + $0x268] sm:$0xff]
    %v5488 = vld [vmem:[#allocation16 + $0x270] sm:$0xff]
    %v5489 = vld [vmem:[#allocation16 + $0x278] sm:$0xff]
    %v5490 = vld [vmem:[#allocation16 + $0x280] sm:$0xf]
    %v5491 = vld [vmem:[#allocation16 + $0x284] sm:$0xff]
    %v5492 = vld [vmem:[#allocation16 + $0x28c] sm:$0xff]
    %v5493 = vld [vmem:[#allocation16 + $0x294] sm:$0xff]
    %v5494 = vld [vmem:[#allocation16 + $0x29c] sm:$0xf]
    %v5495 = vld [vmem:[#allocation16 + $0x2a0] sm:$0xff]
    %v5496 = vld [vmem:[#allocation16 + $0x2a8] sm:$0xff]
    %v5497 = vld [vmem:[#allocation16 + $0x2b0] sm:$0xff]
    %v5498 = vld [vmem:[#allocation16 + $0x2b8] sm:$0xf]
    %v5499 = vld [vmem:[#allocation16 + $0x2bc] sm:$0xff]
    %v5500 = vld [vmem:[#allocation16 + $0x2c4] sm:$0xff]
    %v5501 = vld [vmem:[#allocation16 + $0x2cc] sm:$0xff]
    %v5502 = vld [vmem:[#allocation16 + $0x2d4] sm:$0xf]
    %v5503 = vld [vmem:[#allocation16 + $0x2d8] sm:$0xff]
    %v5504 = vld [vmem:[#allocation16 + $0x2e0] sm:$0xff]
    %v5505 = vld [vmem:[#allocation16 + $0x2e8] sm:$0xff]
    %v5506 = vld [vmem:[#allocation16 + $0x2f0] sm:$0xf]
    %v5507 = vld [vmem:[#allocation16 + $0x2f4] sm:$0xff]
    %v5508 = vld [vmem:[#allocation16 + $0x2fc] sm:$0xff]
    %v5509 = vld [vmem:[#allocation16 + $0x304] sm:$0xff]
    %v5510 = vld [vmem:[#allocation16 + $0x30c] sm:$0xf]
    %v5511 = vld [vmem:[#allocation16 + $0x310] sm:$0xff]
    %v5512 = vld [vmem:[#allocation16 + $0x318] sm:$0xff]
    %v5513 = vld [vmem:[#allocation16 + $0x320] sm:$0xff]
    %v5514 = vld [vmem:[#allocation16 + $0x328] sm:$0xf]
    %v5515 = vld [vmem:[#allocation16 + $0x32c] sm:$0xff]
    %v5516 = vld [vmem:[#allocation16 + $0x334] sm:$0xff]
    %v5517 = vld [vmem:[#allocation16 + $0x33c] sm:$0xff]
    %v5518 = vld [vmem:[#allocation16 + $0x344] sm:$0xf]
    %v5519 = vld [vmem:[#allocation16 + $0x348] sm:$0xff]
    %v5520 = vld [vmem:[#allocation16 + $0x350] sm:$0xff]
    %v5521 = vld [vmem:[#allocation16 + $0x358] sm:$0xff]
    %v5522 = vld [vmem:[#allocation16 + $0x360] sm:$0xf]
    %v5523 = vld [vmem:[#allocation16 + $0x364] sm:$0xff]
    %v5524 = vld [vmem:[#allocation16 + $0x36c] sm:$0xff]
    %v5525 = vld [vmem:[#allocation16 + $0x374] sm:$0xff]
    %v5526 = vld [vmem:[#allocation16 + $0x37c] sm:$0xf]
    %v5527 = vld [vmem:[#allocation16 + $0x380] sm:$0xff]
    %v5528 = vld [vmem:[#allocation16 + $0x388] sm:$0xff]
    %v5529 = vld [vmem:[#allocation16 + $0x390] sm:$0xff]
    %v5530 = vld [vmem:[#allocation16 + $0x398] sm:$0xf]
    %v5531 = vld [vmem:[#allocation16 + $0x39c] sm:$0xff]
    %v5532 = vld [vmem:[#allocation16 + $0x3a4] sm:$0xff]
    %v5533 = vld [vmem:[#allocation16 + $0x3ac] sm:$0xff]
    %v5534 = vld [vmem:[#allocation16 + $0x3b4] sm:$0xf]
    %v5535 = vld [vmem:[#allocation16 + $0x3b8] sm:$0xff]
    %v5536 = vld [vmem:[#allocation16 + $0x3c0] sm:$0xff]
    %v5537 = vld [vmem:[#allocation16 + $0x3c8] sm:$0xff]
    %v5538 = vld [vmem:[#allocation16 + $0x3d0] sm:$0xf]
    %v5539 = vld [vmem:[#allocation16 + $0x3d4] sm:$0xff]
    %v5540 = vld [vmem:[#allocation16 + $0x3dc] sm:$0xff]
    %v5541 = vld [vmem:[#allocation16 + $0x3e4] sm:$0xff]
    %v5542 = vld [vmem:[#allocation16 + $0x3ec] sm:$0xf]
    %v5543 = vld [vmem:[#allocation16 + $0x3f0] sm:$0xff]
    %v5544 = vld [vmem:[#allocation16 + $0x3f8] sm:$0xff]
    %v5545 = vld [vmem:[#allocation16 + $0x400] sm:$0xff]
    %v5546 = vld [vmem:[#allocation16 + $0x408] sm:$0xf]
    %v5547 = vld [vmem:[#allocation16 + $0x40c] sm:$0xff]
    %v5548 = vld [vmem:[#allocation16 + $0x414] sm:$0xff]
    %v5549 = vld [vmem:[#allocation16 + $0x41c] sm:$0xff]
    %v5550 = vld [vmem:[#allocation16 + $0x424] sm:$0xf]
    %v5551 = vld [vmem:[#allocation16 + $0x428] sm:$0xff]
    %v5552 = vld [vmem:[#allocation16 + $0x430] sm:$0xff]
    %v5553 = vld [vmem:[#allocation16 + $0x438] sm:$0xff]
    %v5554 = vld [vmem:[#allocation16 + $0x440] sm:$0xf]
    %v5555 = vld [vmem:[#allocation16 + $0x444] sm:$0xff]
    %v5556 = vld [vmem:[#allocation16 + $0x44c] sm:$0xff]
    %v5557 = vld [vmem:[#allocation16 + $0x454] sm:$0xff]
    %v5558 = vld [vmem:[#allocation16 + $0x45c] sm:$0xf]
    %v5559 = vld [vmem:[#allocation16 + $0x460] sm:$0xff]
    %v5560 = vld [vmem:[#allocation16 + $0x468] sm:$0xff]
    %v5561 = vld [vmem:[#allocation16 + $0x470] sm:$0xff]
    %v5562 = vld [vmem:[#allocation16 + $0x478] sm:$0xf]
    %v5563 = vld [vmem:[#allocation16 + $0x47c] sm:$0xff]
    %v5564 = vld [vmem:[#allocation16 + $0x484] sm:$0xff]
    %v5565 = vld [vmem:[#allocation16 + $0x48c] sm:$0xff]
    %v5566 = vld [vmem:[#allocation16 + $0x494] sm:$0xf]
    %v5567 = vld [vmem:[#allocation16 + $0x498] sm:$0xff]
    %v5568 = vld [vmem:[#allocation16 + $0x4a0] sm:$0xff]
    %v5569 = vld [vmem:[#allocation16 + $0x4a8] sm:$0xff]
    %v5570 = vld [vmem:[#allocation16 + $0x4b0] sm:$0xf]
    %v5571 = vld [vmem:[#allocation16 + $0x4b4] sm:$0xff]
    %v5572 = vld [vmem:[#allocation16 + $0x4bc] sm:$0xff]
    %v5573 = vld [vmem:[#allocation16 + $0x4c4] sm:$0xff]
    %v5574 = vld [vmem:[#allocation16 + $0x4cc] sm:$0xf]
    %v5575 = vld [vmem:[#allocation16 + $0x4d0] sm:$0xff]
    %v5576 = vld [vmem:[#allocation16 + $0x4d8] sm:$0xff]
    %v5577 = vld [vmem:[#allocation16 + $0x4e0] sm:$0xff]
    %v5578 = vld [vmem:[#allocation16 + $0x4e8] sm:$0xf]
    %v5579 = vld [vmem:[#allocation16 + $0x4ec] sm:$0xff]
    %v5580 = vld [vmem:[#allocation16 + $0x4f4] sm:$0xff]
    %v5581 = vld [vmem:[#allocation16 + $0x4fc] sm:$0xff]
    %v5582 = vld [vmem:[#allocation16 + $0x504] sm:$0xf]
    %v5583 = vld [vmem:[#allocation16 + $0x508] sm:$0xff]
    %v5584 = vld [vmem:[#allocation16 + $0x510] sm:$0xff]
    %v5585 = vld [vmem:[#allocation16 + $0x518] sm:$0xff]
    %v5586 = vld [vmem:[#allocation16 + $0x520] sm:$0xf]
    %v5587 = vld [vmem:[#allocation16 + $0x524] sm:$0xff]
    %v5588 = vld [vmem:[#allocation16 + $0x52c] sm:$0xff]
    %v5589 = vld [vmem:[#allocation16 + $0x534] sm:$0xff]
    %v5590 = vld [vmem:[#allocation16 + $0x53c] sm:$0xf]
    %v5591 = vld [vmem:[#allocation16 + $0x540] sm:$0xff]
    %v5592 = vld [vmem:[#allocation16 + $0x548] sm:$0xff]
    %v5593 = vld [vmem:[#allocation16 + $0x550] sm:$0xff]
    %v5594 = vld [vmem:[#allocation16 + $0x558] sm:$0xf]
    %v5595 = vld [vmem:[#allocation16 + $0x55c] sm:$0xff]
    %v5596 = vld [vmem:[#allocation16 + $0x564] sm:$0xff]
    %v5597 = vld [vmem:[#allocation16 + $0x56c] sm:$0xff]
    %v5598 = vld [vmem:[#allocation16 + $0x574] sm:$0xf]
    %v5599 = vld [vmem:[#allocation16 + $0x578] sm:$0xff]
    %v5600 = vld [vmem:[#allocation16 + $0x580] sm:$0xff]
    %v5601 = vld [vmem:[#allocation16 + $0x588] sm:$0xff]
    %v5602 = vld [vmem:[#allocation16 + $0x590] sm:$0xf]
    %v5603 = vld [vmem:[#allocation16 + $0x594] sm:$0xff]
    %v5604 = vld [vmem:[#allocation16 + $0x59c] sm:$0xff]
    %v5605 = vld [vmem:[#allocation16 + $0x5a4] sm:$0xff]
    %v5606 = vld [vmem:[#allocation16 + $0x5ac] sm:$0xf]
    %v5607 = vld [vmem:[#allocation16 + $0x5b0] sm:$0xff]
    %v5608 = vld [vmem:[#allocation16 + $0x5b8] sm:$0xff]
    %v5609 = vld [vmem:[#allocation16 + $0x5c0] sm:$0xff]
    %v5610 = vld [vmem:[#allocation16 + $0x5c8] sm:$0xf]
    %v5611 = vld [vmem:[#allocation16 + $0x5cc] sm:$0xff]
    %v5612 = vld [vmem:[#allocation16 + $0x5d4] sm:$0xff]
    %v5613 = vld [vmem:[#allocation16 + $0x5dc] sm:$0xff]
    %v5614 = vld [vmem:[#allocation16 + $0x5e4] sm:$0xf]
    %v5615 = vld [vmem:[#allocation16 + $0x5e8] sm:$0xff]
    %v5616 = vld [vmem:[#allocation16 + $0x5f0] sm:$0xff]
    %v5617 = vld [vmem:[#allocation16 + $0x5f8] sm:$0xff]
    %v5618 = vld [vmem:[#allocation16 + $0x600] sm:$0xf]
    %v5619 = vld [vmem:[#allocation16 + $0x604] sm:$0xff]
    %v5620 = vld [vmem:[#allocation16 + $0x60c] sm:$0xff]
    %v5621 = vld [vmem:[#allocation16 + $0x614] sm:$0xff]
    %v5622 = vld [vmem:[#allocation16 + $0x61c] sm:$0xf]
    %v5623 = vld [vmem:[#allocation16 + $0x620] sm:$0xff]
    %v5624 = vld [vmem:[#allocation16 + $0x628] sm:$0xff]
    %v5625 = vld [vmem:[#allocation16 + $0x630] sm:$0xff]
    %v5626 = vld [vmem:[#allocation16 + $0x638] sm:$0xf]
    %v5627 = vld [vmem:[#allocation16 + $0x63c] sm:$0xff]
    %v5628 = vld [vmem:[#allocation16 + $0x644] sm:$0xff]
    %v5629 = vld [vmem:[#allocation16 + $0x64c] sm:$0xff]
    %v5630 = vld [vmem:[#allocation16 + $0x654] sm:$0xf]
    %v5631 = vld [vmem:[#allocation16 + $0x658] sm:$0xff]
    %v5632 = vld [vmem:[#allocation16 + $0x660] sm:$0xff]
    %v5633 = vld [vmem:[#allocation16 + $0x668] sm:$0xff]
    %v5634 = vld [vmem:[#allocation16 + $0x670] sm:$0xf]
    %v5635 = vld [vmem:[#allocation16 + $0x674] sm:$0xff]
    %v5636 = vld [vmem:[#allocation16 + $0x67c] sm:$0xff]
    %v5637 = vld [vmem:[#allocation16 + $0x684] sm:$0xff]
    %v5638 = vld [vmem:[#allocation16 + $0x68c] sm:$0xf]
    %v5639 = vld [vmem:[#allocation16 + $0x690] sm:$0xff]
    %v5640 = vld [vmem:[#allocation16 + $0x698] sm:$0xff]
    %v5641 = vld [vmem:[#allocation16 + $0x6a0] sm:$0xff]
    %v5642 = vld [vmem:[#allocation16 + $0x6a8] sm:$0xf]
    %v5643 = vld [vmem:[#allocation16 + $0x6ac] sm:$0xff]
    %v5644 = vld [vmem:[#allocation16 + $0x6b4] sm:$0xff]
    %v5645 = vld [vmem:[#allocation16 + $0x6bc] sm:$0xff]
    %v5646 = vld [vmem:[#allocation16 + $0x6c4] sm:$0xf]
    %v5647 = vld [vmem:[#allocation16 + $0x6c8] sm:$0xff]
    %v5648 = vld [vmem:[#allocation16 + $0x6d0] sm:$0xff]
    %v5649 = vld [vmem:[#allocation16 + $0x6d8] sm:$0xff]
    %v5650 = vld [vmem:[#allocation16 + $0x6e0] sm:$0xf]
    %v5651 = vld [vmem:[#allocation16 + $0x6e4] sm:$0xff]
    %v5652 = vld [vmem:[#allocation16 + $0x6ec] sm:$0xff]
    %v5653 = vld [vmem:[#allocation16 + $0x6f4] sm:$0xff]
    %v5654 = vld [vmem:[#allocation16 + $0x6fc] sm:$0xf]
    %v5911 = vunpack.c.l.b16 %v5399
    %v5912 = vunpack.c.h.b16 %v5399
    %v5913 = vunpack.c.l.b16 %v5400
    %v5914 = vunpack.c.h.b16 %v5400
    %v5915 = vunpack.c.l.b16 %v5401
    %v5916 = vunpack.c.h.b16 %v5401
    %v5917 = vunpack.c.l.b16 %v5402
    %v5918 = vunpack.c.l.b16 %v5403
    %v5919 = vunpack.c.h.b16 %v5403
    %v5920 = vunpack.c.l.b16 %v5404
    %v5921 = vunpack.c.h.b16 %v5404
    %v5922 = vunpack.c.l.b16 %v5405
    %v5923 = vunpack.c.h.b16 %v5405
    %v5924 = vunpack.c.l.b16 %v5406
    %v5925 = vunpack.c.l.b16 %v5407
    %v5926 = vunpack.c.h.b16 %v5407
    %v5927 = vunpack.c.l.b16 %v5408
    %v5928 = vunpack.c.h.b16 %v5408
    %v5929 = vunpack.c.l.b16 %v5409
    %v5930 = vunpack.c.h.b16 %v5409
    %v5931 = vunpack.c.l.b16 %v5410
    %v5932 = vunpack.c.l.b16 %v5411
    %v5933 = vunpack.c.h.b16 %v5411
    %v5934 = vunpack.c.l.b16 %v5412
    %v5935 = vunpack.c.h.b16 %v5412
    %v5936 = vunpack.c.l.b16 %v5413
    %v5937 = vunpack.c.h.b16 %v5413
    %v5938 = vunpack.c.l.b16 %v5414
    %v5939 = vunpack.c.l.b16 %v5415
    %v5940 = vunpack.c.h.b16 %v5415
    %v5941 = vunpack.c.l.b16 %v5416
    %v5942 = vunpack.c.h.b16 %v5416
    %v5943 = vunpack.c.l.b16 %v5417
    %v5944 = vunpack.c.h.b16 %v5417
    %v5945 = vunpack.c.l.b16 %v5418
    %v5946 = vunpack.c.l.b16 %v5419
    %v5947 = vunpack.c.h.b16 %v5419
    %v5948 = vunpack.c.l.b16 %v5420
    %v5949 = vunpack.c.h.b16 %v5420
    %v5950 = vunpack.c.l.b16 %v5421
    %v5951 = vunpack.c.h.b16 %v5421
    %v5952 = vunpack.c.l.b16 %v5422
    %v5953 = vunpack.c.l.b16 %v5423
    %v5954 = vunpack.c.h.b16 %v5423
    %v5955 = vunpack.c.l.b16 %v5424
    %v5956 = vunpack.c.h.b16 %v5424
    %v5957 = vunpack.c.l.b16 %v5425
    %v5958 = vunpack.c.h.b16 %v5425
    %v5959 = vunpack.c.l.b16 %v5426
    %v5960 = vunpack.c.l.b16 %v5427
    %v5961 = vunpack.c.h.b16 %v5427
    %v5962 = vunpack.c.l.b16 %v5428
    %v5963 = vunpack.c.h.b16 %v5428
    %v5964 = vunpack.c.l.b16 %v5429
    %v5965 = vunpack.c.h.b16 %v5429
    %v5966 = vunpack.c.l.b16 %v5430
    %v5967 = vunpack.c.l.b16 %v5431
    %v5968 = vunpack.c.h.b16 %v5431
    %v5969 = vunpack.c.l.b16 %v5432
    %v5970 = vunpack.c.h.b16 %v5432
    %v5971 = vunpack.c.l.b16 %v5433
    %v5972 = vunpack.c.h.b16 %v5433
    %v5973 = vunpack.c.l.b16 %v5434
    %v5974 = vunpack.c.l.b16 %v5435
    %v5975 = vunpack.c.h.b16 %v5435
    %v5976 = vunpack.c.l.b16 %v5436
    %v5977 = vunpack.c.h.b16 %v5436
    %v5978 = vunpack.c.l.b16 %v5437
    %v5979 = vunpack.c.h.b16 %v5437
    %v5980 = vunpack.c.l.b16 %v5438
    %v5981 = vunpack.c.l.b16 %v5439
    %v5982 = vunpack.c.h.b16 %v5439
    %v5983 = vunpack.c.l.b16 %v5440
    %v5984 = vunpack.c.h.b16 %v5440
    %v5985 = vunpack.c.l.b16 %v5441
    %v5986 = vunpack.c.h.b16 %v5441
    %v5987 = vunpack.c.l.b16 %v5442
    %v5988 = vunpack.c.l.b16 %v5443
    %v5989 = vunpack.c.h.b16 %v5443
    %v5990 = vunpack.c.l.b16 %v5444
    %v5991 = vunpack.c.h.b16 %v5444
    %v5992 = vunpack.c.l.b16 %v5445
    %v5993 = vunpack.c.h.b16 %v5445
    %v5994 = vunpack.c.l.b16 %v5446
    %v5995 = vunpack.c.l.b16 %v5447
    %v5996 = vunpack.c.h.b16 %v5447
    %v5997 = vunpack.c.l.b16 %v5448
    %v5998 = vunpack.c.h.b16 %v5448
    %v5999 = vunpack.c.l.b16 %v5449
    %v6000 = vunpack.c.h.b16 %v5449
    %v6001 = vunpack.c.l.b16 %v5450
    %v6002 = vunpack.c.l.b16 %v5451
    %v6003 = vunpack.c.h.b16 %v5451
    %v6004 = vunpack.c.l.b16 %v5452
    %v6005 = vunpack.c.h.b16 %v5452
    %v6006 = vunpack.c.l.b16 %v5453
    %v6007 = vunpack.c.h.b16 %v5453
    %v6008 = vunpack.c.l.b16 %v5454
    %v6009 = vunpack.c.l.b16 %v5455
    %v6010 = vunpack.c.h.b16 %v5455
    %v6011 = vunpack.c.l.b16 %v5456
    %v6012 = vunpack.c.h.b16 %v5456
    %v6013 = vunpack.c.l.b16 %v5457
    %v6014 = vunpack.c.h.b16 %v5457
    %v6015 = vunpack.c.l.b16 %v5458
    %v6016 = vunpack.c.l.b16 %v5459
    %v6017 = vunpack.c.h.b16 %v5459
    %v6018 = vunpack.c.l.b16 %v5460
    %v6019 = vunpack.c.h.b16 %v5460
    %v6020 = vunpack.c.l.b16 %v5461
    %v6021 = vunpack.c.h.b16 %v5461
    %v6022 = vunpack.c.l.b16 %v5462
    %v6023 = vunpack.c.l.b16 %v5463
    %v6024 = vunpack.c.h.b16 %v5463
    %v6025 = vunpack.c.l.b16 %v5464
    %v6026 = vunpack.c.h.b16 %v5464
    %v6027 = vunpack.c.l.b16 %v5465
    %v6028 = vunpack.c.h.b16 %v5465
    %v6029 = vunpack.c.l.b16 %v5466
    %v6030 = vunpack.c.l.b16 %v5467
    %v6031 = vunpack.c.h.b16 %v5467
    %v6032 = vunpack.c.l.b16 %v5468
    %v6033 = vunpack.c.h.b16 %v5468
    %v6034 = vunpack.c.l.b16 %v5469
    %v6035 = vunpack.c.h.b16 %v5469
    %v6036 = vunpack.c.l.b16 %v5470
    %v6037 = vunpack.c.l.b16 %v5471
    %v6038 = vunpack.c.h.b16 %v5471
    %v6039 = vunpack.c.l.b16 %v5472
    %v6040 = vunpack.c.h.b16 %v5472
    %v6041 = vunpack.c.l.b16 %v5473
    %v6042 = vunpack.c.h.b16 %v5473
    %v6043 = vunpack.c.l.b16 %v5474
    %v6044 = vunpack.c.l.b16 %v5475
    %v6045 = vunpack.c.h.b16 %v5475
    %v6046 = vunpack.c.l.b16 %v5476
    %v6047 = vunpack.c.h.b16 %v5476
    %v6048 = vunpack.c.l.b16 %v5477
    %v6049 = vunpack.c.h.b16 %v5477
    %v6050 = vunpack.c.l.b16 %v5478
    %v6051 = vunpack.c.l.b16 %v5479
    %v6052 = vunpack.c.h.b16 %v5479
    %v6053 = vunpack.c.l.b16 %v5480
    %v6054 = vunpack.c.h.b16 %v5480
    %v6055 = vunpack.c.l.b16 %v5481
    %v6056 = vunpack.c.h.b16 %v5481
    %v6057 = vunpack.c.l.b16 %v5482
    %v6058 = vunpack.c.l.b16 %v5483
    %v6059 = vunpack.c.h.b16 %v5483
    %v6060 = vunpack.c.l.b16 %v5484
    %v6061 = vunpack.c.h.b16 %v5484
    %v6062 = vunpack.c.l.b16 %v5485
    %v6063 = vunpack.c.h.b16 %v5485
    %v6064 = vunpack.c.l.b16 %v5486
    %v6065 = vunpack.c.l.b16 %v5487
    %v6066 = vunpack.c.h.b16 %v5487
    %v6067 = vunpack.c.l.b16 %v5488
    %v6068 = vunpack.c.h.b16 %v5488
    %v6069 = vunpack.c.l.b16 %v5489
    %v6070 = vunpack.c.h.b16 %v5489
    %v6071 = vunpack.c.l.b16 %v5490
    %v6072 = vunpack.c.l.b16 %v5491
    %v6073 = vunpack.c.h.b16 %v5491
    %v6074 = vunpack.c.l.b16 %v5492
    %v6075 = vunpack.c.h.b16 %v5492
    %v6076 = vunpack.c.l.b16 %v5493
    %v6077 = vunpack.c.h.b16 %v5493
    %v6078 = vunpack.c.l.b16 %v5494
    %v6079 = vunpack.c.l.b16 %v5495
    %v6080 = vunpack.c.h.b16 %v5495
    %v6081 = vunpack.c.l.b16 %v5496
    %v6082 = vunpack.c.h.b16 %v5496
    %v6083 = vunpack.c.l.b16 %v5497
    %v6084 = vunpack.c.h.b16 %v5497
    %v6085 = vunpack.c.l.b16 %v5498
    %v6086 = vunpack.c.l.b16 %v5499
    %v6087 = vunpack.c.h.b16 %v5499
    %v6088 = vunpack.c.l.b16 %v5500
    %v6089 = vunpack.c.h.b16 %v5500
    %v6090 = vunpack.c.l.b16 %v5501
    %v6091 = vunpack.c.h.b16 %v5501
    %v6092 = vunpack.c.l.b16 %v5502
    %v6093 = vunpack.c.l.b16 %v5503
    %v6094 = vunpack.c.h.b16 %v5503
    %v6095 = vunpack.c.l.b16 %v5504
    %v6096 = vunpack.c.h.b16 %v5504
    %v6097 = vunpack.c.l.b16 %v5505
    %v6098 = vunpack.c.h.b16 %v5505
    %v6099 = vunpack.c.l.b16 %v5506
    %v6100 = vunpack.c.l.b16 %v5507
    %v6101 = vunpack.c.h.b16 %v5507
    %v6102 = vunpack.c.l.b16 %v5508
    %v6103 = vunpack.c.h.b16 %v5508
    %v6104 = vunpack.c.l.b16 %v5509
    %v6105 = vunpack.c.h.b16 %v5509
    %v6106 = vunpack.c.l.b16 %v5510
    %v6107 = vunpack.c.l.b16 %v5511
    %v6108 = vunpack.c.h.b16 %v5511
    %v6109 = vunpack.c.l.b16 %v5512
    %v6110 = vunpack.c.h.b16 %v5512
    %v6111 = vunpack.c.l.b16 %v5513
    %v6112 = vunpack.c.h.b16 %v5513
    %v6113 = vunpack.c.l.b16 %v5514
    %v6114 = vunpack.c.l.b16 %v5515
    %v6115 = vunpack.c.h.b16 %v5515
    %v6116 = vunpack.c.l.b16 %v5516
    %v6117 = vunpack.c.h.b16 %v5516
    %v6118 = vunpack.c.l.b16 %v5517
    %v6119 = vunpack.c.h.b16 %v5517
    %v6120 = vunpack.c.l.b16 %v5518
    %v6121 = vunpack.c.l.b16 %v5519
    %v6122 = vunpack.c.h.b16 %v5519
    %v6123 = vunpack.c.l.b16 %v5520
    %v6124 = vunpack.c.h.b16 %v5520
    %v6125 = vunpack.c.l.b16 %v5521
    %v6126 = vunpack.c.h.b16 %v5521
    %v6127 = vunpack.c.l.b16 %v5522
    %v6128 = vunpack.c.l.b16 %v5523
    %v6129 = vunpack.c.h.b16 %v5523
    %v6130 = vunpack.c.l.b16 %v5524
    %v6131 = vunpack.c.h.b16 %v5524
    %v6132 = vunpack.c.l.b16 %v5525
    %v6133 = vunpack.c.h.b16 %v5525
    %v6134 = vunpack.c.l.b16 %v5526
    %v6135 = vunpack.c.l.b16 %v5527
    %v6136 = vunpack.c.h.b16 %v5527
    %v6137 = vunpack.c.l.b16 %v5528
    %v6138 = vunpack.c.h.b16 %v5528
    %v6139 = vunpack.c.l.b16 %v5529
    %v6140 = vunpack.c.h.b16 %v5529
    %v6141 = vunpack.c.l.b16 %v5530
    %v6142 = vunpack.c.l.b16 %v5531
    %v6143 = vunpack.c.h.b16 %v5531
    %v6144 = vunpack.c.l.b16 %v5532
    %v6145 = vunpack.c.h.b16 %v5532
    %v6146 = vunpack.c.l.b16 %v5533
    %v6147 = vunpack.c.h.b16 %v5533
    %v6148 = vunpack.c.l.b16 %v5534
    %v6149 = vunpack.c.l.b16 %v5535
    %v6150 = vunpack.c.h.b16 %v5535
    %v6151 = vunpack.c.l.b16 %v5536
    %v6152 = vunpack.c.h.b16 %v5536
    %v6153 = vunpack.c.l.b16 %v5537
    %v6154 = vunpack.c.h.b16 %v5537
    %v6155 = vunpack.c.l.b16 %v5538
    %v6156 = vunpack.c.l.b16 %v5539
    %v6157 = vunpack.c.h.b16 %v5539
    %v6158 = vunpack.c.l.b16 %v5540
    %v6159 = vunpack.c.h.b16 %v5540
    %v6160 = vunpack.c.l.b16 %v5541
    %v6161 = vunpack.c.h.b16 %v5541
    %v6162 = vunpack.c.l.b16 %v5542
    %v6163 = vunpack.c.l.b16 %v5543
    %v6164 = vunpack.c.h.b16 %v5543
    %v6165 = vunpack.c.l.b16 %v5544
    %v6166 = vunpack.c.h.b16 %v5544
    %v6167 = vunpack.c.l.b16 %v5545
    %v6168 = vunpack.c.h.b16 %v5545
    %v6169 = vunpack.c.l.b16 %v5546
    %v6170 = vunpack.c.l.b16 %v5547
    %v6171 = vunpack.c.h.b16 %v5547
    %v6172 = vunpack.c.l.b16 %v5548
    %v6173 = vunpack.c.h.b16 %v5548
    %v6174 = vunpack.c.l.b16 %v5549
    %v6175 = vunpack.c.h.b16 %v5549
    %v6176 = vunpack.c.l.b16 %v5550
    %v6177 = vunpack.c.l.b16 %v5551
    %v6178 = vunpack.c.h.b16 %v5551
    %v6179 = vunpack.c.l.b16 %v5552
    %v6180 = vunpack.c.h.b16 %v5552
    %v6181 = vunpack.c.l.b16 %v5553
    %v6182 = vunpack.c.h.b16 %v5553
    %v6183 = vunpack.c.l.b16 %v5554
    %v6184 = vunpack.c.l.b16 %v5555
    %v6185 = vunpack.c.h.b16 %v5555
    %v6186 = vunpack.c.l.b16 %v5556
    %v6187 = vunpack.c.h.b16 %v5556
    %v6188 = vunpack.c.l.b16 %v5557
    %v6189 = vunpack.c.h.b16 %v5557
    %v6190 = vunpack.c.l.b16 %v5558
    %v6191 = vunpack.c.l.b16 %v5559
    %v6192 = vunpack.c.h.b16 %v5559
    %v6193 = vunpack.c.l.b16 %v5560
    %v6194 = vunpack.c.h.b16 %v5560
    %v6195 = vunpack.c.l.b16 %v5561
    %v6196 = vunpack.c.h.b16 %v5561
    %v6197 = vunpack.c.l.b16 %v5562
    %v6198 = vunpack.c.l.b16 %v5563
    %v6199 = vunpack.c.h.b16 %v5563
    %v6200 = vunpack.c.l.b16 %v5564
    %v6201 = vunpack.c.h.b16 %v5564
    %v6202 = vunpack.c.l.b16 %v5565
    %v6203 = vunpack.c.h.b16 %v5565
    %v6204 = vunpack.c.l.b16 %v5566
    %v6205 = vunpack.c.l.b16 %v5567
    %v6206 = vunpack.c.h.b16 %v5567
    %v6207 = vunpack.c.l.b16 %v5568
    %v6208 = vunpack.c.h.b16 %v5568
    %v6209 = vunpack.c.l.b16 %v5569
    %v6210 = vunpack.c.h.b16 %v5569
    %v6211 = vunpack.c.l.b16 %v5570
    %v6212 = vunpack.c.l.b16 %v5571
    %v6213 = vunpack.c.h.b16 %v5571
    %v6214 = vunpack.c.l.b16 %v5572
    %v6215 = vunpack.c.h.b16 %v5572
    %v6216 = vunpack.c.l.b16 %v5573
    %v6217 = vunpack.c.h.b16 %v5573
    %v6218 = vunpack.c.l.b16 %v5574
    %v6219 = vunpack.c.l.b16 %v5575
    %v6220 = vunpack.c.h.b16 %v5575
    %v6221 = vunpack.c.l.b16 %v5576
    %v6222 = vunpack.c.h.b16 %v5576
    %v6223 = vunpack.c.l.b16 %v5577
    %v6224 = vunpack.c.h.b16 %v5577
    %v6225 = vunpack.c.l.b16 %v5578
    %v6226 = vunpack.c.l.b16 %v5579
    %v6227 = vunpack.c.h.b16 %v5579
    %v6228 = vunpack.c.l.b16 %v5580
    %v6229 = vunpack.c.h.b16 %v5580
    %v6230 = vunpack.c.l.b16 %v5581
    %v6231 = vunpack.c.h.b16 %v5581
    %v6232 = vunpack.c.l.b16 %v5582
    %v6233 = vunpack.c.l.b16 %v5583
    %v6234 = vunpack.c.h.b16 %v5583
    %v6235 = vunpack.c.l.b16 %v5584
    %v6236 = vunpack.c.h.b16 %v5584
    %v6237 = vunpack.c.l.b16 %v5585
    %v6238 = vunpack.c.h.b16 %v5585
    %v6239 = vunpack.c.l.b16 %v5586
    %v6240 = vunpack.c.l.b16 %v5587
    %v6241 = vunpack.c.h.b16 %v5587
    %v6242 = vunpack.c.l.b16 %v5588
    %v6243 = vunpack.c.h.b16 %v5588
    %v6244 = vunpack.c.l.b16 %v5589
    %v6245 = vunpack.c.h.b16 %v5589
    %v6246 = vunpack.c.l.b16 %v5590
    %v6247 = vunpack.c.l.b16 %v5591
    %v6248 = vunpack.c.h.b16 %v5591
    %v6249 = vunpack.c.l.b16 %v5592
    %v6250 = vunpack.c.h.b16 %v5592
    %v6251 = vunpack.c.l.b16 %v5593
    %v6252 = vunpack.c.h.b16 %v5593
    %v6253 = vunpack.c.l.b16 %v5594
    %v6254 = vunpack.c.l.b16 %v5595
    %v6255 = vunpack.c.h.b16 %v5595
    %v6256 = vunpack.c.l.b16 %v5596
    %v6257 = vunpack.c.h.b16 %v5596
    %v6258 = vunpack.c.l.b16 %v5597
    %v6259 = vunpack.c.h.b16 %v5597
    %v6260 = vunpack.c.l.b16 %v5598
    %v6261 = vunpack.c.l.b16 %v5599
    %v6262 = vunpack.c.h.b16 %v5599
    %v6263 = vunpack.c.l.b16 %v5600
    %v6264 = vunpack.c.h.b16 %v5600
    %v6265 = vunpack.c.l.b16 %v5601
    %v6266 = vunpack.c.h.b16 %v5601
    %v6267 = vunpack.c.l.b16 %v5602
    %v6268 = vunpack.c.l.b16 %v5603
    %v6269 = vunpack.c.h.b16 %v5603
    %v6270 = vunpack.c.l.b16 %v5604
    %v6271 = vunpack.c.h.b16 %v5604
    %v6272 = vunpack.c.l.b16 %v5605
    %v6273 = vunpack.c.h.b16 %v5605
    %v6274 = vunpack.c.l.b16 %v5606
    %v6275 = vunpack.c.l.b16 %v5607
    %v6276 = vunpack.c.h.b16 %v5607
    %v6277 = vunpack.c.l.b16 %v5608
    %v6278 = vunpack.c.h.b16 %v5608
    %v6279 = vunpack.c.l.b16 %v5609
    %v6280 = vunpack.c.h.b16 %v5609
    %v6281 = vunpack.c.l.b16 %v5610
    %v6282 = vunpack.c.l.b16 %v5611
    %v6283 = vunpack.c.h.b16 %v5611
    %v6284 = vunpack.c.l.b16 %v5612
    %v6285 = vunpack.c.h.b16 %v5612
    %v6286 = vunpack.c.l.b16 %v5613
    %v6287 = vunpack.c.h.b16 %v5613
    %v6288 = vunpack.c.l.b16 %v5614
    %v6289 = vunpack.c.l.b16 %v5615
    %v6290 = vunpack.c.h.b16 %v5615
    %v6291 = vunpack.c.l.b16 %v5616
    %v6292 = vunpack.c.h.b16 %v5616
    %v6293 = vunpack.c.l.b16 %v5617
    %v6294 = vunpack.c.h.b16 %v5617
    %v6295 = vunpack.c.l.b16 %v5618
    %v6296 = vunpack.c.l.b16 %v5619
    %v6297 = vunpack.c.h.b16 %v5619
    %v6298 = vunpack.c.l.b16 %v5620
    %v6299 = vunpack.c.h.b16 %v5620
    %v6300 = vunpack.c.l.b16 %v5621
    %v6301 = vunpack.c.h.b16 %v5621
    %v6302 = vunpack.c.l.b16 %v5622
    %v6303 = vunpack.c.l.b16 %v5623
    %v6304 = vunpack.c.h.b16 %v5623
    %v6305 = vunpack.c.l.b16 %v5624
    %v6306 = vunpack.c.h.b16 %v5624
    %v6307 = vunpack.c.l.b16 %v5625
    %v6308 = vunpack.c.h.b16 %v5625
    %v6309 = vunpack.c.l.b16 %v5626
    %v6310 = vunpack.c.l.b16 %v5627
    %v6311 = vunpack.c.h.b16 %v5627
    %v6312 = vunpack.c.l.b16 %v5628
    %v6313 = vunpack.c.h.b16 %v5628
    %v6314 = vunpack.c.l.b16 %v5629
    %v6315 = vunpack.c.h.b16 %v5629
    %v6316 = vunpack.c.l.b16 %v5630
    %v6317 = vunpack.c.l.b16 %v5631
    %v6318 = vunpack.c.h.b16 %v5631
    %v6319 = vunpack.c.l.b16 %v5632
    %v6320 = vunpack.c.h.b16 %v5632
    %v6321 = vunpack.c.l.b16 %v5633
    %v6322 = vunpack.c.h.b16 %v5633
    %v6323 = vunpack.c.l.b16 %v5634
    %v6324 = vunpack.c.l.b16 %v5635
    %v6325 = vunpack.c.h.b16 %v5635
    %v6326 = vunpack.c.l.b16 %v5636
    %v6327 = vunpack.c.h.b16 %v5636
    %v6328 = vunpack.c.l.b16 %v5637
    %v6329 = vunpack.c.h.b16 %v5637
    %v6330 = vunpack.c.l.b16 %v5638
    %v6331 = vunpack.c.l.b16 %v5639
    %v6332 = vunpack.c.h.b16 %v5639
    %v6333 = vunpack.c.l.b16 %v5640
    %v6334 = vunpack.c.h.b16 %v5640
    %v6335 = vunpack.c.l.b16 %v5641
    %v6336 = vunpack.c.h.b16 %v5641
    %v6337 = vunpack.c.l.b16 %v5642
    %v6338 = vunpack.c.l.b16 %v5643
    %v6339 = vunpack.c.h.b16 %v5643
    %v6340 = vunpack.c.l.b16 %v5644
    %v6341 = vunpack.c.h.b16 %v5644
    %v6342 = vunpack.c.l.b16 %v5645
    %v6343 = vunpack.c.h.b16 %v5645
    %v6344 = vunpack.c.l.b16 %v5646
    %v6345 = vunpack.c.l.b16 %v5647
    %v6346 = vunpack.c.h.b16 %v5647
    %v6347 = vunpack.c.l.b16 %v5648
    %v6348 = vunpack.c.h.b16 %v5648
    %v6349 = vunpack.c.l.b16 %v5649
    %v6350 = vunpack.c.h.b16 %v5649
    %v6351 = vunpack.c.l.b16 %v5650
    %v6352 = vunpack.c.l.b16 %v5651
    %v6353 = vunpack.c.h.b16 %v5651
    %v6354 = vunpack.c.l.b16 %v5652
    %v6355 = vunpack.c.h.b16 %v5652
    %v6356 = vunpack.c.l.b16 %v5653
    %v6357 = vunpack.c.h.b16 %v5653
    %v6358 = vunpack.c.l.b16 %v5654
    %v6359 = vpack.c.b16 %v5918, %v5911
    %v6360 = vpack.c.b16 %v5919, %v5912
    %v6361 = vpack.c.b16 %v5920, %v5913
    %v6362 = vpack.c.b16 %v5921, %v5914
    %v6363 = vpack.c.b16 %v5922, %v5915
    %v6364 = vpack.c.b16 %v5923, %v5916
    %v6365 = vpack.c.b16 %v5924, %v5917
    %v6366 = vpack.c.b16 %v5932, %v5925
    %v6367 = vpack.c.b16 %v5933, %v5926
    %v6368 = vpack.c.b16 %v5934, %v5927
    %v6369 = vpack.c.b16 %v5935, %v5928
    %v6370 = vpack.c.b16 %v5936, %v5929
    %v6371 = vpack.c.b16 %v5937, %v5930
    %v6372 = vpack.c.b16 %v5938, %v5931
    %v6373 = vpack.c.b16 %v5946, %v5939
    %v6374 = vpack.c.b16 %v5947, %v5940
    %v6375 = vpack.c.b16 %v5948, %v5941
    %v6376 = vpack.c.b16 %v5949, %v5942
    %v6377 = vpack.c.b16 %v5950, %v5943
    %v6378 = vpack.c.b16 %v5951, %v5944
    %v6379 = vpack.c.b16 %v5952, %v5945
    %v6380 = vpack.c.b16 %v5960, %v5953
    %v6381 = vpack.c.b16 %v5961, %v5954
    %v6382 = vpack.c.b16 %v5962, %v5955
    %v6383 = vpack.c.b16 %v5963, %v5956
    %v6384 = vpack.c.b16 %v5964, %v5957
    %v6385 = vpack.c.b16 %v5965, %v5958
    %v6386 = vpack.c.b16 %v5966, %v5959
    %v6387 = vpack.c.b16 %v5974, %v5967
    %v6388 = vpack.c.b16 %v5975, %v5968
    %v6389 = vpack.c.b16 %v5976, %v5969
    %v6390 = vpack.c.b16 %v5977, %v5970
    %v6391 = vpack.c.b16 %v5978, %v5971
    %v6392 = vpack.c.b16 %v5979, %v5972
    %v6393 = vpack.c.b16 %v5980, %v5973
    %v6394 = vpack.c.b16 %v5988, %v5981
    %v6395 = vpack.c.b16 %v5989, %v5982
    %v6396 = vpack.c.b16 %v5990, %v5983
    %v6397 = vpack.c.b16 %v5991, %v5984
    %v6398 = vpack.c.b16 %v5992, %v5985
    %v6399 = vpack.c.b16 %v5993, %v5986
    %v6400 = vpack.c.b16 %v5994, %v5987
    %v6401 = vpack.c.b16 %v6002, %v5995
    %v6402 = vpack.c.b16 %v6003, %v5996
    %v6403 = vpack.c.b16 %v6004, %v5997
    %v6404 = vpack.c.b16 %v6005, %v5998
    %v6405 = vpack.c.b16 %v6006, %v5999
    %v6406 = vpack.c.b16 %v6007, %v6000
    %v6407 = vpack.c.b16 %v6008, %v6001
    %v6408 = vpack.c.b16 %v6016, %v6009
    %v6409 = vpack.c.b16 %v6017, %v6010
    %v6410 = vpack.c.b16 %v6018, %v6011
    %v6411 = vpack.c.b16 %v6019, %v6012
    %v6412 = vpack.c.b16 %v6020, %v6013
    %v6413 = vpack.c.b16 %v6021, %v6014
    %v6414 = vpack.c.b16 %v6022, %v6015
    %v6415 = vpack.c.b16 %v6030, %v6023
    %v6416 = vpack.c.b16 %v6031, %v6024
    %v6417 = vpack.c.b16 %v6032, %v6025
    %v6418 = vpack.c.b16 %v6033, %v6026
    %v6419 = vpack.c.b16 %v6034, %v6027
    %v6420 = vpack.c.b16 %v6035, %v6028
    %v6421 = vpack.c.b16 %v6036, %v6029
    %v6422 = vpack.c.b16 %v6044, %v6037
    %v6423 = vpack.c.b16 %v6045, %v6038
    %v6424 = vpack.c.b16 %v6046, %v6039
    %v6425 = vpack.c.b16 %v6047, %v6040
    %v6426 = vpack.c.b16 %v6048, %v6041
    %v6427 = vpack.c.b16 %v6049, %v6042
    %v6428 = vpack.c.b16 %v6050, %v6043
    %v6429 = vpack.c.b16 %v6058, %v6051
    %v6430 = vpack.c.b16 %v6059, %v6052
    %v6431 = vpack.c.b16 %v6060, %v6053
    %v6432 = vpack.c.b16 %v6061, %v6054
    %v6433 = vpack.c.b16 %v6062, %v6055
    %v6434 = vpack.c.b16 %v6063, %v6056
    %v6435 = vpack.c.b16 %v6064, %v6057
    %v6436 = vpack.c.b16 %v6072, %v6065
    %v6437 = vpack.c.b16 %v6073, %v6066
    %v6438 = vpack.c.b16 %v6074, %v6067
    %v6439 = vpack.c.b16 %v6075, %v6068
    %v6440 = vpack.c.b16 %v6076, %v6069
    %v6441 = vpack.c.b16 %v6077, %v6070
    %v6442 = vpack.c.b16 %v6078, %v6071
    %v6443 = vpack.c.b16 %v6086, %v6079
    %v6444 = vpack.c.b16 %v6087, %v6080
    %v6445 = vpack.c.b16 %v6088, %v6081
    %v6446 = vpack.c.b16 %v6089, %v6082
    %v6447 = vpack.c.b16 %v6090, %v6083
    %v6448 = vpack.c.b16 %v6091, %v6084
    %v6449 = vpack.c.b16 %v6092, %v6085
    %v6450 = vpack.c.b16 %v6100, %v6093
    %v6451 = vpack.c.b16 %v6101, %v6094
    %v6452 = vpack.c.b16 %v6102, %v6095
    %v6453 = vpack.c.b16 %v6103, %v6096
    %v6454 = vpack.c.b16 %v6104, %v6097
    %v6455 = vpack.c.b16 %v6105, %v6098
    %v6456 = vpack.c.b16 %v6106, %v6099
    %v6457 = vpack.c.b16 %v6114, %v6107
    %v6458 = vpack.c.b16 %v6115, %v6108
    %v6459 = vpack.c.b16 %v6116, %v6109
    %v6460 = vpack.c.b16 %v6117, %v6110
    %v6461 = vpack.c.b16 %v6118, %v6111
    %v6462 = vpack.c.b16 %v6119, %v6112
    %v6463 = vpack.c.b16 %v6120, %v6113
    %v6464 = vpack.c.b16 %v6128, %v6121
    %v6465 = vpack.c.b16 %v6129, %v6122
    %v6466 = vpack.c.b16 %v6130, %v6123
    %v6467 = vpack.c.b16 %v6131, %v6124
    %v6468 = vpack.c.b16 %v6132, %v6125
    %v6469 = vpack.c.b16 %v6133, %v6126
    %v6470 = vpack.c.b16 %v6134, %v6127
    %v6471 = vpack.c.b16 %v6142, %v6135
    %v6472 = vpack.c.b16 %v6143, %v6136
    %v6473 = vpack.c.b16 %v6144, %v6137
    %v6474 = vpack.c.b16 %v6145, %v6138
    %v6475 = vpack.c.b16 %v6146, %v6139
    %v6476 = vpack.c.b16 %v6147, %v6140
    %v6477 = vpack.c.b16 %v6148, %v6141
    %v6478 = vpack.c.b16 %v6156, %v6149
    %v6479 = vpack.c.b16 %v6157, %v6150
    %v6480 = vpack.c.b16 %v6158, %v6151
    %v6481 = vpack.c.b16 %v6159, %v6152
    %v6482 = vpack.c.b16 %v6160, %v6153
    %v6483 = vpack.c.b16 %v6161, %v6154
    %v6484 = vpack.c.b16 %v6162, %v6155
    %v6485 = vpack.c.b16 %v6170, %v6163
    %v6486 = vpack.c.b16 %v6171, %v6164
    %v6487 = vpack.c.b16 %v6172, %v6165
    %v6488 = vpack.c.b16 %v6173, %v6166
    %v6489 = vpack.c.b16 %v6174, %v6167
    %v6490 = vpack.c.b16 %v6175, %v6168
    %v6491 = vpack.c.b16 %v6176, %v6169
    %v6492 = vpack.c.b16 %v6184, %v6177
    %v6493 = vpack.c.b16 %v6185, %v6178
    %v6494 = vpack.c.b16 %v6186, %v6179
    %v6495 = vpack.c.b16 %v6187, %v6180
    %v6496 = vpack.c.b16 %v6188, %v6181
    %v6497 = vpack.c.b16 %v6189, %v6182
    %v6498 = vpack.c.b16 %v6190, %v6183
    %v6499 = vpack.c.b16 %v6198, %v6191
    %v6500 = vpack.c.b16 %v6199, %v6192
    %v6501 = vpack.c.b16 %v6200, %v6193
    %v6502 = vpack.c.b16 %v6201, %v6194
    %v6503 = vpack.c.b16 %v6202, %v6195
    %v6504 = vpack.c.b16 %v6203, %v6196
    %v6505 = vpack.c.b16 %v6204, %v6197
    %v6506 = vpack.c.b16 %v6212, %v6205
    %v6507 = vpack.c.b16 %v6213, %v6206
    %v6508 = vpack.c.b16 %v6214, %v6207
    %v6509 = vpack.c.b16 %v6215, %v6208
    %v6510 = vpack.c.b16 %v6216, %v6209
    %v6511 = vpack.c.b16 %v6217, %v6210
    %v6512 = vpack.c.b16 %v6218, %v6211
    %v6513 = vpack.c.b16 %v6226, %v6219
    %v6514 = vpack.c.b16 %v6227, %v6220
    %v6515 = vpack.c.b16 %v6228, %v6221
    %v6516 = vpack.c.b16 %v6229, %v6222
    %v6517 = vpack.c.b16 %v6230, %v6223
    %v6518 = vpack.c.b16 %v6231, %v6224
    %v6519 = vpack.c.b16 %v6232, %v6225
    %v6520 = vpack.c.b16 %v6240, %v6233
    %v6521 = vpack.c.b16 %v6241, %v6234
    %v6522 = vpack.c.b16 %v6242, %v6235
    %v6523 = vpack.c.b16 %v6243, %v6236
    %v6524 = vpack.c.b16 %v6244, %v6237
    %v6525 = vpack.c.b16 %v6245, %v6238
    %v6526 = vpack.c.b16 %v6246, %v6239
    %v6527 = vpack.c.b16 %v6254, %v6247
    %v6528 = vpack.c.b16 %v6255, %v6248
    %v6529 = vpack.c.b16 %v6256, %v6249
    %v6530 = vpack.c.b16 %v6257, %v6250
    %v6531 = vpack.c.b16 %v6258, %v6251
    %v6532 = vpack.c.b16 %v6259, %v6252
    %v6533 = vpack.c.b16 %v6260, %v6253
    %v6534 = vpack.c.b16 %v6268, %v6261
    %v6535 = vpack.c.b16 %v6269, %v6262
    %v6536 = vpack.c.b16 %v6270, %v6263
    %v6537 = vpack.c.b16 %v6271, %v6264
    %v6538 = vpack.c.b16 %v6272, %v6265
    %v6539 = vpack.c.b16 %v6273, %v6266
    %v6540 = vpack.c.b16 %v6274, %v6267
    %v6541 = vpack.c.b16 %v6282, %v6275
    %v6542 = vpack.c.b16 %v6283, %v6276
    %v6543 = vpack.c.b16 %v6284, %v6277
    %v6544 = vpack.c.b16 %v6285, %v6278
    %v6545 = vpack.c.b16 %v6286, %v6279
    %v6546 = vpack.c.b16 %v6287, %v6280
    %v6547 = vpack.c.b16 %v6288, %v6281
    %v6548 = vpack.c.b16 %v6296, %v6289
    %v6549 = vpack.c.b16 %v6297, %v6290
    %v6550 = vpack.c.b16 %v6298, %v6291
    %v6551 = vpack.c.b16 %v6299, %v6292
    %v6552 = vpack.c.b16 %v6300, %v6293
    %v6553 = vpack.c.b16 %v6301, %v6294
    %v6554 = vpack.c.b16 %v6302, %v6295
    %v6555 = vpack.c.b16 %v6310, %v6303
    %v6556 = vpack.c.b16 %v6311, %v6304
    %v6557 = vpack.c.b16 %v6312, %v6305
    %v6558 = vpack.c.b16 %v6313, %v6306
    %v6559 = vpack.c.b16 %v6314, %v6307
    %v6560 = vpack.c.b16 %v6315, %v6308
    %v6561 = vpack.c.b16 %v6316, %v6309
    %v6562 = vpack.c.b16 %v6324, %v6317
    %v6563 = vpack.c.b16 %v6325, %v6318
    %v6564 = vpack.c.b16 %v6326, %v6319
    %v6565 = vpack.c.b16 %v6327, %v6320
    %v6566 = vpack.c.b16 %v6328, %v6321
    %v6567 = vpack.c.b16 %v6329, %v6322
    %v6568 = vpack.c.b16 %v6330, %v6323
    %v6569 = vpack.c.b16 %v6338, %v6331
    %v6570 = vpack.c.b16 %v6339, %v6332
    %v6571 = vpack.c.b16 %v6340, %v6333
    %v6572 = vpack.c.b16 %v6341, %v6334
    %v6573 = vpack.c.b16 %v6342, %v6335
    %v6574 = vpack.c.b16 %v6343, %v6336
    %v6575 = vpack.c.b16 %v6344, %v6337
    %v6576 = vpack.c.b16 %v6352, %v6345
    %v6577 = vpack.c.b16 %v6353, %v6346
    %v6578 = vpack.c.b16 %v6354, %v6347
    %v6579 = vpack.c.b16 %v6355, %v6348
    %v6580 = vpack.c.b16 %v6356, %v6349
    %v6581 = vpack.c.b16 %v6357, %v6350
    %v6582 = vpack.c.b16 %v6358, %v6351
    %6807 = vmatprep.subr.bf16.mxu0 %v6409
    %6808 = vmatpush1.bf16.msra.mxu0 %v6408
    %6809 = vmatprep.subr.bf16.mxu0 %v6402
    %6810 = vmatpush1.bf16.msra.mxu0 %v6401
    %6811 = vmatprep.subr.bf16.mxu0 %v6395
    %6812 = vmatpush1.bf16.msra.mxu0 %v6394
    %6813 = vmatprep.subr.bf16.mxu0 %v6388
    %6814 = vmatpush1.bf16.msra.mxu0 %v6387
    %6815 = vmatprep.subr.bf16.mxu0 %v6381
    %6816 = vmatpush1.bf16.msra.mxu0 %v6380
    %6817 = vmatprep.subr.bf16.mxu0 %v6374
    %6818 = vmatpush1.bf16.msra.mxu0 %v6373
    %6819 = vmatprep.subr.bf16.mxu0 %v6367
    %6820 = vmatpush1.bf16.msra.mxu0 %v6366
    %6821 = vmatprep.subr.bf16.mxu0 %v6360
    %6822 = vmatpush1.bf16.msra.mxu0 %v6359
    %6823 = vmatprep.subr.bf16.mxu0 %v6465
    %6824 = vmatpush2.bf16.msra.mxu0 %v6464
    %6825 = vmatprep.subr.bf16.mxu0 %v6458
    %6826 = vmatpush2.bf16.msra.mxu0 %v6457
    %6827 = vmatprep.subr.bf16.mxu0 %v6451
    %6828 = vmatpush2.bf16.msra.mxu0 %v6450
    %6829 = vmatprep.subr.bf16.mxu0 %v6444
    %6830 = vmatpush2.bf16.msra.mxu0 %v6443
    %6831 = vmatprep.subr.bf16.mxu0 %v6437
    %6832 = vmatpush2.bf16.msra.mxu0 %v6436
    %6833 = vmatprep.subr.bf16.mxu0 %v6430
    %6834 = vmatpush2.bf16.msra.mxu0 %v6429
    %6835 = vmatprep.subr.bf16.mxu0 %v6423
    %6836 = vmatpush2.bf16.msra.mxu0 %v6422
    %6837 = vmatprep.subr.bf16.mxu0 %v6416
    %6838 = vmatpush2.bf16.msra.mxu0 %v6415
    %6839 = vmatprep.mubr.bf16.mxu0 %v5368
    %6840 = vmatmul.mubr.bf16.gmra.mxu0 %v5367
    %v6841 = vpop.f32.mrf.mxu0
    %v6842 = vadd.f32 0.0, %v6841
    %v6843 = vpop.f32.mrf.mxu0
    %v6844 = vadd.f32 0.0, %v6843
    %v6845 = vpop.f32.mrf.mxu0
    %v6846 = vadd.f32 0.0, %v6845
    %v6847 = vpop.f32.mrf.mxu0
    %v6848 = vadd.f32 0.0, %v6847
    %6849 = vmatprep.mubr.bf16.mxu0 %v5372
    %6850 = vmatmul.mubr.bf16.gmra.mxu0 %v5371
    %v6851 = vpop.f32.mrf.mxu0
    %v6852 = vadd.f32 0.0, %v6851
    %v6853 = vpop.f32.mrf.mxu0
    %v6854 = vadd.f32 0.0, %v6853
    %v6855 = vpop.f32.mrf.mxu0
    %v6856 = vadd.f32 0.0, %v6855
    %v6857 = vpop.f32.mrf.mxu0
    %v6858 = vadd.f32 0.0, %v6857
    %6859 = vmatprep.mubr.bf16.mxu0 %v5376
    %6860 = vmatmul.mubr.bf16.gmra.mxu0 %v5375
    %v6861 = vpop.f32.mrf.mxu0
    %v6862 = vadd.f32 0.0, %v6861
    %v6863 = vpop.f32.mrf.mxu0
    %v6864 = vadd.f32 0.0, %v6863
    %v6865 = vpop.f32.mrf.mxu0
    %v6866 = vadd.f32 0.0, %v6865
    %v6867 = vpop.f32.mrf.mxu0
    %v6868 = vadd.f32 0.0, %v6867
    %6869 = vmatprep.mubr.bf16.mxu0 %v5380
    %6870 = vmatmul.mubr.bf16.gmra.mxu0 %v5379
    %v6871 = vpop.f32.mrf.mxu0
    %v6872 = vadd.f32 0.0, %v6871
    %v6873 = vpop.f32.mrf.mxu0
    %v6874 = vadd.f32 0.0, %v6873
    %v6875 = vpop.f32.mrf.mxu0
    %v6876 = vadd.f32 0.0, %v6875
    %v6877 = vpop.f32.mrf.mxu0
    %v6878 = vadd.f32 0.0, %v6877
    %6879 = vmatprep.mubr.bf16.mxu0 %v5384
    %6880 = vmatmul.mubr.bf16.gmra.mxu0 %v5383
    %v6881 = vpop.f32.mrf.mxu0
    %v6882 = vadd.f32 0.0, %v6881
    %v6883 = vpop.f32.mrf.mxu0
    %v6884 = vadd.f32 0.0, %v6883
    %v6885 = vpop.f32.mrf.mxu0
    %v6886 = vadd.f32 0.0, %v6885
    %v6887 = vpop.f32.mrf.mxu0
    %v6888 = vadd.f32 0.0, %v6887
    %6889 = vmatprep.mubr.bf16.mxu0 %v5388
    %6890 = vmatmul.mubr.bf16.gmra.mxu0 %v5387
    %v6891 = vpop.f32.mrf.mxu0
    %v6892 = vadd.f32 0.0, %v6891
    %v6893 = vpop.f32.mrf.mxu0
    %v6894 = vadd.f32 0.0, %v6893
    %v6895 = vpop.f32.mrf.mxu0
    %v6896 = vadd.f32 0.0, %v6895
    %v6897 = vpop.f32.mrf.mxu0
    %v6898 = vadd.f32 0.0, %v6897
    %6899 = vmatprep.mubr.bf16.mxu0 %v5392
    %6900 = vmatmul.mubr.bf16.gmra.mxu0 %v5391
    %v6901 = vpop.f32.mrf.mxu0
    %v6902 = vadd.f32 0.0, %v6901
    %v6903 = vpop.f32.mrf.mxu0
    %v6904 = vadd.f32 0.0, %v6903
    %v6905 = vpop.f32.mrf.mxu0
    %v6906 = vadd.f32 0.0, %v6905
    %v6907 = vpop.f32.mrf.mxu0
    %v6908 = vadd.f32 0.0, %v6907
    %6909 = vmatprep.mubr.bf16.mxu0 %v5396
    %6910 = vmatmul.mubr.bf16.gmra.mxu0 %v5395
    %v6911 = vpop.f32.mrf.mxu0
    %v6912 = vadd.f32 0.0, %v6911
    %v6913 = vpop.f32.mrf.mxu0
    %v6914 = vadd.f32 0.0, %v6913
    %v6915 = vpop.f32.mrf.mxu0
    %v6916 = vadd.f32 0.0, %v6915
    %v6917 = vpop.f32.mrf.mxu0
    %v6918 = vadd.f32 0.0, %v6917
    %6919 = vdwg.mxu0
    %6920 = vmatprep.subr.bf16.mxu0 %v6521
    %6921 = vmatpush1.bf16.msra.mxu0 %v6520
    %6922 = vmatprep.subr.bf16.mxu0 %v6514
    %6923 = vmatpush1.bf16.msra.mxu0 %v6513
    %6924 = vmatprep.subr.bf16.mxu0 %v6507
    %6925 = vmatpush1.bf16.msra.mxu0 %v6506
    %6926 = vmatprep.subr.bf16.mxu0 %v6500
    %6927 = vmatpush1.bf16.msra.mxu0 %v6499
    %6928 = vmatprep.subr.bf16.mxu0 %v6493
    %6929 = vmatpush1.bf16.msra.mxu0 %v6492
    %6930 = vmatprep.subr.bf16.mxu0 %v6486
    %6931 = vmatpush1.bf16.msra.mxu0 %v6485
    %6932 = vmatprep.subr.bf16.mxu0 %v6479
    %6933 = vmatpush1.bf16.msra.mxu0 %v6478
    %6934 = vmatprep.subr.bf16.mxu0 %v6472
    %6935 = vmatpush1.bf16.msra.mxu0 %v6471
    %6936 = vmatprep.subr.bf16.mxu0 %v6577
    %6937 = vmatpush2.bf16.msra.mxu0 %v6576
    %6938 = vmatprep.subr.bf16.mxu0 %v6570
    %6939 = vmatpush2.bf16.msra.mxu0 %v6569
    %6940 = vmatprep.subr.bf16.mxu0 %v6563
    %6941 = vmatpush2.bf16.msra.mxu0 %v6562
    %6942 = vmatprep.subr.bf16.mxu0 %v6556
    %6943 = vmatpush2.bf16.msra.mxu0 %v6555
    %6944 = vmatprep.subr.bf16.mxu0 %v6549
    %6945 = vmatpush2.bf16.msra.mxu0 %v6548
    %6946 = vmatprep.subr.bf16.mxu0 %v6542
    %6947 = vmatpush2.bf16.msra.mxu0 %v6541
    %6948 = vmatprep.subr.bf16.mxu0 %v6535
    %6949 = vmatpush2.bf16.msra.mxu0 %v6534
    %6950 = vmatprep.subr.bf16.mxu0 %v6528
    %6951 = vmatpush2.bf16.msra.mxu0 %v6527
    %6952 = vmatprep.mubr.bf16.mxu0 %v5370
    %6953 = vmatmul.mubr.bf16.gmra.mxu0 %v5369
    %v6954 = vpop.f32.mrf.mxu0
    %v6955 = vadd.f32 %v6842, %v6954
    %v6956 = vpop.f32.mrf.mxu0
    %v6957 = vadd.f32 %v6844, %v6956
    %v6958 = vpop.f32.mrf.mxu0
    %v6959 = vadd.f32 %v6846, %v6958
    %v6960 = vpop.f32.mrf.mxu0
    %v6961 = vadd.f32 %v6848, %v6960
    %6962 = vmatprep.mubr.bf16.mxu0 %v5374
    %6963 = vmatmul.mubr.bf16.gmra.mxu0 %v5373
    %v6964 = vpop.f32.mrf.mxu0
    %v6965 = vadd.f32 %v6852, %v6964
    %v6966 = vpop.f32.mrf.mxu0
    %v6967 = vadd.f32 %v6854, %v6966
    %v6968 = vpop.f32.mrf.mxu0
    %v6969 = vadd.f32 %v6856, %v6968
    %v6970 = vpop.f32.mrf.mxu0
    %v6971 = vadd.f32 %v6858, %v6970
    %6972 = vmatprep.mubr.bf16.mxu0 %v5378
    %6973 = vmatmul.mubr.bf16.gmra.mxu0 %v5377
    %v6974 = vpop.f32.mrf.mxu0
    %v6975 = vadd.f32 %v6862, %v6974
    %v6976 = vpop.f32.mrf.mxu0
    %v6977 = vadd.f32 %v6864, %v6976
    %v6978 = vpop.f32.mrf.mxu0
    %v6979 = vadd.f32 %v6866, %v6978
    %v6980 = vpop.f32.mrf.mxu0
    %v6981 = vadd.f32 %v6868, %v6980
    %6982 = vmatprep.mubr.bf16.mxu0 %v5382
    %6983 = vmatmul.mubr.bf16.gmra.mxu0 %v5381
    %v6984 = vpop.f32.mrf.mxu0
    %v6985 = vadd.f32 %v6872, %v6984
    %v6986 = vpop.f32.mrf.mxu0
    %v6987 = vadd.f32 %v6874, %v6986
    %v6988 = vpop.f32.mrf.mxu0
    %v6989 = vadd.f32 %v6876, %v6988
    %v6990 = vpop.f32.mrf.mxu0
    %v6991 = vadd.f32 %v6878, %v6990
    %6992 = vmatprep.mubr.bf16.mxu0 %v5386
    %6993 = vmatmul.mubr.bf16.gmra.mxu0 %v5385
    %v6994 = vpop.f32.mrf.mxu0
    %v6995 = vadd.f32 %v6882, %v6994
    %v6996 = vpop.f32.mrf.mxu0
    %v6997 = vadd.f32 %v6884, %v6996
    %v6998 = vpop.f32.mrf.mxu0
    %v6999 = vadd.f32 %v6886, %v6998
    %v7000 = vpop.f32.mrf.mxu0
    %v7001 = vadd.f32 %v6888, %v7000
    %7002 = vmatprep.mubr.bf16.mxu0 %v5390
    %7003 = vmatmul.mubr.bf16.gmra.mxu0 %v5389
    %v7004 = vpop.f32.mrf.mxu0
    %v7005 = vadd.f32 %v6892, %v7004
    %v7006 = vpop.f32.mrf.mxu0
    %v7007 = vadd.f32 %v6894, %v7006
    %v7008 = vpop.f32.mrf.mxu0
    %v7009 = vadd.f32 %v6896, %v7008
    %v7010 = vpop.f32.mrf.mxu0
    %v7011 = vadd.f32 %v6898, %v7010
    %7012 = vmatprep.mubr.bf16.mxu0 %v5394
    %7013 = vmatmul.mubr.bf16.gmra.mxu0 %v5393
    %v7014 = vpop.f32.mrf.mxu0
    %v7015 = vadd.f32 %v6902, %v7014
    %v7016 = vpop.f32.mrf.mxu0
    %v7017 = vadd.f32 %v6904, %v7016
    %v7018 = vpop.f32.mrf.mxu0
    %v7019 = vadd.f32 %v6906, %v7018
    %v7020 = vpop.f32.mrf.mxu0
    %v7021 = vadd.f32 %v6908, %v7020
    %7022 = vmatprep.mubr.bf16.mxu0 %v5398
    %7023 = vmatmul.mubr.bf16.gmra.mxu0 %v5397
    %v7024 = vpop.f32.mrf.mxu0
    %v7025 = vadd.f32 %v6912, %v7024
    %v7026 = vpop.f32.mrf.mxu0
    %v7027 = vadd.f32 %v6914, %v7026
    %v7028 = vpop.f32.mrf.mxu0
    %v7029 = vadd.f32 %v6916, %v7028
    %v7030 = vpop.f32.mrf.mxu0
    %v7031 = vadd.f32 %v6918, %v7030
    %7032 = vdwg.mxu0
    %7033 = vmatprep.subr.bf16.mxu0 %v6411
    %7034 = vmatpush1.bf16.msra.mxu0 %v6410
    %7035 = vmatprep.subr.bf16.mxu0 %v6404
    %7036 = vmatpush1.bf16.msra.mxu0 %v6403
    %7037 = vmatprep.subr.bf16.mxu0 %v6397
    %7038 = vmatpush1.bf16.msra.mxu0 %v6396
    %7039 = vmatprep.subr.bf16.mxu0 %v6390
    %7040 = vmatpush1.bf16.msra.mxu0 %v6389
    %7041 = vmatprep.subr.bf16.mxu0 %v6383
    %7042 = vmatpush1.bf16.msra.mxu0 %v6382
    %7043 = vmatprep.subr.bf16.mxu0 %v6376
    %7044 = vmatpush1.bf16.msra.mxu0 %v6375
    %7045 = vmatprep.subr.bf16.mxu0 %v6369
    %7046 = vmatpush1.bf16.msra.mxu0 %v6368
    %7047 = vmatprep.subr.bf16.mxu0 %v6362
    %7048 = vmatpush1.bf16.msra.mxu0 %v6361
    %7049 = vmatprep.subr.bf16.mxu0 %v6467
    %7050 = vmatpush2.bf16.msra.mxu0 %v6466
    %7051 = vmatprep.subr.bf16.mxu0 %v6460
    %7052 = vmatpush2.bf16.msra.mxu0 %v6459
    %7053 = vmatprep.subr.bf16.mxu0 %v6453
    %7054 = vmatpush2.bf16.msra.mxu0 %v6452
    %7055 = vmatprep.subr.bf16.mxu0 %v6446
    %7056 = vmatpush2.bf16.msra.mxu0 %v6445
    %7057 = vmatprep.subr.bf16.mxu0 %v6439
    %7058 = vmatpush2.bf16.msra.mxu0 %v6438
    %7059 = vmatprep.subr.bf16.mxu0 %v6432
    %7060 = vmatpush2.bf16.msra.mxu0 %v6431
    %7061 = vmatprep.subr.bf16.mxu0 %v6425
    %7062 = vmatpush2.bf16.msra.mxu0 %v6424
    %7063 = vmatprep.subr.bf16.mxu0 %v6418
    %7064 = vmatpush2.bf16.msra.mxu0 %v6417
    %7065 = vmatprep.mubr.bf16.mxu0 %v5368
    %7066 = vmatmul.mubr.bf16.gmra.mxu0 %v5367
    %v7067 = vpop.f32.mrf.mxu0
    %v7068 = vadd.f32 0.0, %v7067
    %v7069 = vpop.f32.mrf.mxu0
    %v7070 = vadd.f32 0.0, %v7069
    %v7071 = vpop.f32.mrf.mxu0
    %v7072 = vadd.f32 0.0, %v7071
    %v7073 = vpop.f32.mrf.mxu0
    %v7074 = vadd.f32 0.0, %v7073
    %7075 = vmatprep.mubr.bf16.mxu0 %v5372
    %7076 = vmatmul.mubr.bf16.gmra.mxu0 %v5371
    %v7077 = vpop.f32.mrf.mxu0
    %v7078 = vadd.f32 0.0, %v7077
    %v7079 = vpop.f32.mrf.mxu0
    %v7080 = vadd.f32 0.0, %v7079
    %v7081 = vpop.f32.mrf.mxu0
    %v7082 = vadd.f32 0.0, %v7081
    %v7083 = vpop.f32.mrf.mxu0
    %v7084 = vadd.f32 0.0, %v7083
    %7085 = vmatprep.mubr.bf16.mxu0 %v5376
    %7086 = vmatmul.mubr.bf16.gmra.mxu0 %v5375
    %v7087 = vpop.f32.mrf.mxu0
    %v7088 = vadd.f32 0.0, %v7087
    %v7089 = vpop.f32.mrf.mxu0
    %v7090 = vadd.f32 0.0, %v7089
    %v7091 = vpop.f32.mrf.mxu0
    %v7092 = vadd.f32 0.0, %v7091
    %v7093 = vpop.f32.mrf.mxu0
    %v7094 = vadd.f32 0.0, %v7093
    %7095 = vmatprep.mubr.bf16.mxu0 %v5380
    %7096 = vmatmul.mubr.bf16.gmra.mxu0 %v5379
    %v7097 = vpop.f32.mrf.mxu0
    %v7098 = vadd.f32 0.0, %v7097
    %v7099 = vpop.f32.mrf.mxu0
    %v7100 = vadd.f32 0.0, %v7099
    %v7101 = vpop.f32.mrf.mxu0
    %v7102 = vadd.f32 0.0, %v7101
    %v7103 = vpop.f32.mrf.mxu0
    %v7104 = vadd.f32 0.0, %v7103
    %7105 = vmatprep.mubr.bf16.mxu0 %v5384
    %7106 = vmatmul.mubr.bf16.gmra.mxu0 %v5383
    %v7107 = vpop.f32.mrf.mxu0
    %v7108 = vadd.f32 0.0, %v7107
    %v7109 = vpop.f32.mrf.mxu0
    %v7110 = vadd.f32 0.0, %v7109
    %v7111 = vpop.f32.mrf.mxu0
    %v7112 = vadd.f32 0.0, %v7111
    %v7113 = vpop.f32.mrf.mxu0
    %v7114 = vadd.f32 0.0, %v7113
    %7115 = vmatprep.mubr.bf16.mxu0 %v5388
    %7116 = vmatmul.mubr.bf16.gmra.mxu0 %v5387
    %v7117 = vpop.f32.mrf.mxu0
    %v7118 = vadd.f32 0.0, %v7117
    %v7119 = vpop.f32.mrf.mxu0
    %v7120 = vadd.f32 0.0, %v7119
    %v7121 = vpop.f32.mrf.mxu0
    %v7122 = vadd.f32 0.0, %v7121
    %v7123 = vpop.f32.mrf.mxu0
    %v7124 = vadd.f32 0.0, %v7123
    %7125 = vmatprep.mubr.bf16.mxu0 %v5392
    %7126 = vmatmul.mubr.bf16.gmra.mxu0 %v5391
    %v7127 = vpop.f32.mrf.mxu0
    %v7128 = vadd.f32 0.0, %v7127
    %v7129 = vpop.f32.mrf.mxu0
    %v7130 = vadd.f32 0.0, %v7129
    %v7131 = vpop.f32.mrf.mxu0
    %v7132 = vadd.f32 0.0, %v7131
    %v7133 = vpop.f32.mrf.mxu0
    %v7134 = vadd.f32 0.0, %v7133
    %7135 = vmatprep.mubr.bf16.mxu0 %v5396
    %7136 = vmatmul.mubr.bf16.gmra.mxu0 %v5395
    %v7137 = vpop.f32.mrf.mxu0
    %v7138 = vadd.f32 0.0, %v7137
    %v7139 = vpop.f32.mrf.mxu0
    %v7140 = vadd.f32 0.0, %v7139
    %v7141 = vpop.f32.mrf.mxu0
    %v7142 = vadd.f32 0.0, %v7141
    %v7143 = vpop.f32.mrf.mxu0
    %v7144 = vadd.f32 0.0, %v7143
    %7145 = vdwg.mxu0
    %7146 = vmatprep.subr.bf16.mxu0 %v6523
    %7147 = vmatpush1.bf16.msra.mxu0 %v6522
    %7148 = vmatprep.subr.bf16.mxu0 %v6516
    %7149 = vmatpush1.bf16.msra.mxu0 %v6515
    %7150 = vmatprep.subr.bf16.mxu0 %v6509
    %7151 = vmatpush1.bf16.msra.mxu0 %v6508
    %7152 = vmatprep.subr.bf16.mxu0 %v6502
    %7153 = vmatpush1.bf16.msra.mxu0 %v6501
    %7154 = vmatprep.subr.bf16.mxu0 %v6495
    %7155 = vmatpush1.bf16.msra.mxu0 %v6494
    %7156 = vmatprep.subr.bf16.mxu0 %v6488
    %7157 = vmatpush1.bf16.msra.mxu0 %v6487
    %7158 = vmatprep.subr.bf16.mxu0 %v6481
    %7159 = vmatpush1.bf16.msra.mxu0 %v6480
    %7160 = vmatprep.subr.bf16.mxu0 %v6474
    %7161 = vmatpush1.bf16.msra.mxu0 %v6473
    %7162 = vmatprep.subr.bf16.mxu0 %v6579
    %7163 = vmatpush2.bf16.msra.mxu0 %v6578
    %7164 = vmatprep.subr.bf16.mxu0 %v6572
    %7165 = vmatpush2.bf16.msra.mxu0 %v6571
    %7166 = vmatprep.subr.bf16.mxu0 %v6565
    %7167 = vmatpush2.bf16.msra.mxu0 %v6564
    %7168 = vmatprep.subr.bf16.mxu0 %v6558
    %7169 = vmatpush2.bf16.msra.mxu0 %v6557
    %7170 = vmatprep.subr.bf16.mxu0 %v6551
    %7171 = vmatpush2.bf16.msra.mxu0 %v6550
    %7172 = vmatprep.subr.bf16.mxu0 %v6544
    %7173 = vmatpush2.bf16.msra.mxu0 %v6543
    %7174 = vmatprep.subr.bf16.mxu0 %v6537
    %7175 = vmatpush2.bf16.msra.mxu0 %v6536
    %7176 = vmatprep.subr.bf16.mxu0 %v6530
    %7177 = vmatpush2.bf16.msra.mxu0 %v6529
    %7178 = vmatprep.mubr.bf16.mxu0 %v5370
    %7179 = vmatmul.mubr.bf16.gmra.mxu0 %v5369
    %v7180 = vpop.f32.mrf.mxu0
    %v7181 = vadd.f32 %v7068, %v7180
    %v7182 = vpop.f32.mrf.mxu0
    %v7183 = vadd.f32 %v7070, %v7182
    %v7184 = vpop.f32.mrf.mxu0
    %v7185 = vadd.f32 %v7072, %v7184
    %v7186 = vpop.f32.mrf.mxu0
    %v7187 = vadd.f32 %v7074, %v7186
    %7188 = vmatprep.mubr.bf16.mxu0 %v5374
    %7189 = vmatmul.mubr.bf16.gmra.mxu0 %v5373
    %v7190 = vpop.f32.mrf.mxu0
    %v7191 = vadd.f32 %v7078, %v7190
    %v7192 = vpop.f32.mrf.mxu0
    %v7193 = vadd.f32 %v7080, %v7192
    %v7194 = vpop.f32.mrf.mxu0
    %v7195 = vadd.f32 %v7082, %v7194
    %v7196 = vpop.f32.mrf.mxu0
    %v7197 = vadd.f32 %v7084, %v7196
    %7198 = vmatprep.mubr.bf16.mxu0 %v5378
    %7199 = vmatmul.mubr.bf16.gmra.mxu0 %v5377
    %v7200 = vpop.f32.mrf.mxu0
    %v7201 = vadd.f32 %v7088, %v7200
    %v7202 = vpop.f32.mrf.mxu0
    %v7203 = vadd.f32 %v7090, %v7202
    %v7204 = vpop.f32.mrf.mxu0
    %v7205 = vadd.f32 %v7092, %v7204
    %v7206 = vpop.f32.mrf.mxu0
    %v7207 = vadd.f32 %v7094, %v7206
    %7208 = vmatprep.mubr.bf16.mxu0 %v5382
    %7209 = vmatmul.mubr.bf16.gmra.mxu0 %v5381
    %v7210 = vpop.f32.mrf.mxu0
    %v7211 = vadd.f32 %v7098, %v7210
    %v7212 = vpop.f32.mrf.mxu0
    %v7213 = vadd.f32 %v7100, %v7212
    %v7214 = vpop.f32.mrf.mxu0
    %v7215 = vadd.f32 %v7102, %v7214
    %v7216 = vpop.f32.mrf.mxu0
    %v7217 = vadd.f32 %v7104, %v7216
    %7218 = vmatprep.mubr.bf16.mxu0 %v5386
    %7219 = vmatmul.mubr.bf16.gmra.mxu0 %v5385
    %v7220 = vpop.f32.mrf.mxu0
    %v7221 = vadd.f32 %v7108, %v7220
    %v7222 = vpop.f32.mrf.mxu0
    %v7223 = vadd.f32 %v7110, %v7222
    %v7224 = vpop.f32.mrf.mxu0
    %v7225 = vadd.f32 %v7112, %v7224
    %v7226 = vpop.f32.mrf.mxu0
    %v7227 = vadd.f32 %v7114, %v7226
    %7228 = vmatprep.mubr.bf16.mxu0 %v5390
    %7229 = vmatmul.mubr.bf16.gmra.mxu0 %v5389
    %v7230 = vpop.f32.mrf.mxu0
    %v7231 = vadd.f32 %v7118, %v7230
    %v7232 = vpop.f32.mrf.mxu0
    %v7233 = vadd.f32 %v7120, %v7232
    %v7234 = vpop.f32.mrf.mxu0
    %v7235 = vadd.f32 %v7122, %v7234
    %v7236 = vpop.f32.mrf.mxu0
    %v7237 = vadd.f32 %v7124, %v7236
    %7238 = vmatprep.mubr.bf16.mxu0 %v5394
    %7239 = vmatmul.mubr.bf16.gmra.mxu0 %v5393
    %v7240 = vpop.f32.mrf.mxu0
    %v7241 = vadd.f32 %v7128, %v7240
    %v7242 = vpop.f32.mrf.mxu0
    %v7243 = vadd.f32 %v7130, %v7242
    %v7244 = vpop.f32.mrf.mxu0
    %v7245 = vadd.f32 %v7132, %v7244
    %v7246 = vpop.f32.mrf.mxu0
    %v7247 = vadd.f32 %v7134, %v7246
    %7248 = vmatprep.mubr.bf16.mxu0 %v5398
    %7249 = vmatmul.mubr.bf16.gmra.mxu0 %v5397
    %v7250 = vpop.f32.mrf.mxu0
    %v7251 = vadd.f32 %v7138, %v7250
    %v7252 = vpop.f32.mrf.mxu0
    %v7253 = vadd.f32 %v7140, %v7252
    %v7254 = vpop.f32.mrf.mxu0
    %v7255 = vadd.f32 %v7142, %v7254
    %v7256 = vpop.f32.mrf.mxu0
    %v7257 = vadd.f32 %v7144, %v7256
    %7258 = vdwg.mxu0
    %7259 = vmatprep.subr.bf16.mxu0 %v6413
    %7260 = vmatpush1.bf16.msra.mxu0 %v6412
    %7261 = vmatprep.subr.bf16.mxu0 %v6406
    %7262 = vmatpush1.bf16.msra.mxu0 %v6405
    %7263 = vmatprep.subr.bf16.mxu0 %v6399
    %7264 = vmatpush1.bf16.msra.mxu0 %v6398
    %7265 = vmatprep.subr.bf16.mxu0 %v6392
    %7266 = vmatpush1.bf16.msra.mxu0 %v6391
    %7267 = vmatprep.subr.bf16.mxu0 %v6385
    %7268 = vmatpush1.bf16.msra.mxu0 %v6384
    %7269 = vmatprep.subr.bf16.mxu0 %v6378
    %7270 = vmatpush1.bf16.msra.mxu0 %v6377
    %7271 = vmatprep.subr.bf16.mxu0 %v6371
    %7272 = vmatpush1.bf16.msra.mxu0 %v6370
    %7273 = vmatprep.subr.bf16.mxu0 %v6364
    %7274 = vmatpush1.bf16.msra.mxu0 %v6363
    %7275 = vmatprep.subr.bf16.mxu0 %v6469
    %7276 = vmatpush2.bf16.msra.mxu0 %v6468
    %7277 = vmatprep.subr.bf16.mxu0 %v6462
    %7278 = vmatpush2.bf16.msra.mxu0 %v6461
    %7279 = vmatprep.subr.bf16.mxu0 %v6455
    %7280 = vmatpush2.bf16.msra.mxu0 %v6454
    %7281 = vmatprep.subr.bf16.mxu0 %v6448
    %7282 = vmatpush2.bf16.msra.mxu0 %v6447
    %7283 = vmatprep.subr.bf16.mxu0 %v6441
    %7284 = vmatpush2.bf16.msra.mxu0 %v6440
    %7285 = vmatprep.subr.bf16.mxu0 %v6434
    %7286 = vmatpush2.bf16.msra.mxu0 %v6433
    %7287 = vmatprep.subr.bf16.mxu0 %v6427
    %7288 = vmatpush2.bf16.msra.mxu0 %v6426
    %7289 = vmatprep.subr.bf16.mxu0 %v6420
    %7290 = vmatpush2.bf16.msra.mxu0 %v6419
    %7291 = vmatprep.mubr.bf16.mxu0 %v5368
    %7292 = vmatmul.mubr.bf16.gmra.mxu0 %v5367
    %v7293 = vpop.f32.mrf.mxu0
    %v7294 = vadd.f32 0.0, %v7293
    %v7295 = vpop.f32.mrf.mxu0
    %v7296 = vadd.f32 0.0, %v7295
    %v7297 = vpop.f32.mrf.mxu0
    %v7298 = vadd.f32 0.0, %v7297
    %v7299 = vpop.f32.mrf.mxu0
    %v7300 = vadd.f32 0.0, %v7299
    %7301 = vmatprep.mubr.bf16.mxu0 %v5372
    %7302 = vmatmul.mubr.bf16.gmra.mxu0 %v5371
    %v7303 = vpop.f32.mrf.mxu0
    %v7304 = vadd.f32 0.0, %v7303
    %v7305 = vpop.f32.mrf.mxu0
    %v7306 = vadd.f32 0.0, %v7305
    %v7307 = vpop.f32.mrf.mxu0
    %v7308 = vadd.f32 0.0, %v7307
    %v7309 = vpop.f32.mrf.mxu0
    %v7310 = vadd.f32 0.0, %v7309
    %7311 = vmatprep.mubr.bf16.mxu0 %v5376
    %7312 = vmatmul.mubr.bf16.gmra.mxu0 %v5375
    %v7313 = vpop.f32.mrf.mxu0
    %v7314 = vadd.f32 0.0, %v7313
    %v7315 = vpop.f32.mrf.mxu0
    %v7316 = vadd.f32 0.0, %v7315
    %v7317 = vpop.f32.mrf.mxu0
    %v7318 = vadd.f32 0.0, %v7317
    %v7319 = vpop.f32.mrf.mxu0
    %v7320 = vadd.f32 0.0, %v7319
    %7321 = vmatprep.mubr.bf16.mxu0 %v5380
    %7322 = vmatmul.mubr.bf16.gmra.mxu0 %v5379
    %v7323 = vpop.f32.mrf.mxu0
    %v7324 = vadd.f32 0.0, %v7323
    %v7325 = vpop.f32.mrf.mxu0
    %v7326 = vadd.f32 0.0, %v7325
    %v7327 = vpop.f32.mrf.mxu0
    %v7328 = vadd.f32 0.0, %v7327
    %v7329 = vpop.f32.mrf.mxu0
    %v7330 = vadd.f32 0.0, %v7329
    %7331 = vmatprep.mubr.bf16.mxu0 %v5384
    %7332 = vmatmul.mubr.bf16.gmra.mxu0 %v5383
    %v7333 = vpop.f32.mrf.mxu0
    %v7334 = vadd.f32 0.0, %v7333
    %v7335 = vpop.f32.mrf.mxu0
    %v7336 = vadd.f32 0.0, %v7335
    %v7337 = vpop.f32.mrf.mxu0
    %v7338 = vadd.f32 0.0, %v7337
    %v7339 = vpop.f32.mrf.mxu0
    %v7340 = vadd.f32 0.0, %v7339
    %7341 = vmatprep.mubr.bf16.mxu0 %v5388
    %7342 = vmatmul.mubr.bf16.gmra.mxu0 %v5387
    %v7343 = vpop.f32.mrf.mxu0
    %v7344 = vadd.f32 0.0, %v7343
    %v7345 = vpop.f32.mrf.mxu0
    %v7346 = vadd.f32 0.0, %v7345
    %v7347 = vpop.f32.mrf.mxu0
    %v7348 = vadd.f32 0.0, %v7347
    %v7349 = vpop.f32.mrf.mxu0
    %v7350 = vadd.f32 0.0, %v7349
    %7351 = vmatprep.mubr.bf16.mxu0 %v5392
    %7352 = vmatmul.mubr.bf16.gmra.mxu0 %v5391
    %v7353 = vpop.f32.mrf.mxu0
    %v7354 = vadd.f32 0.0, %v7353
    %v7355 = vpop.f32.mrf.mxu0
    %v7356 = vadd.f32 0.0, %v7355
    %v7357 = vpop.f32.mrf.mxu0
    %v7358 = vadd.f32 0.0, %v7357
    %v7359 = vpop.f32.mrf.mxu0
    %v7360 = vadd.f32 0.0, %v7359
    %7361 = vmatprep.mubr.bf16.mxu0 %v5396
    %7362 = vmatmul.mubr.bf16.gmra.mxu0 %v5395
    %v7363 = vpop.f32.mrf.mxu0
    %v7364 = vadd.f32 0.0, %v7363
    %v7365 = vpop.f32.mrf.mxu0
    %v7366 = vadd.f32 0.0, %v7365
    %v7367 = vpop.f32.mrf.mxu0
    %v7368 = vadd.f32 0.0, %v7367
    %v7369 = vpop.f32.mrf.mxu0
    %v7370 = vadd.f32 0.0, %v7369
    %7371 = vdwg.mxu0
    %7372 = vmatprep.subr.bf16.mxu0 %v6525
    %7373 = vmatpush1.bf16.msra.mxu0 %v6524
    %7374 = vmatprep.subr.bf16.mxu0 %v6518
    %7375 = vmatpush1.bf16.msra.mxu0 %v6517
    %7376 = vmatprep.subr.bf16.mxu0 %v6511
    %7377 = vmatpush1.bf16.msra.mxu0 %v6510
    %7378 = vmatprep.subr.bf16.mxu0 %v6504
    %7379 = vmatpush1.bf16.msra.mxu0 %v6503
    %7380 = vmatprep.subr.bf16.mxu0 %v6497
    %7381 = vmatpush1.bf16.msra.mxu0 %v6496
    %7382 = vmatprep.subr.bf16.mxu0 %v6490
    %7383 = vmatpush1.bf16.msra.mxu0 %v6489
    %7384 = vmatprep.subr.bf16.mxu0 %v6483
    %7385 = vmatpush1.bf16.msra.mxu0 %v6482
    %7386 = vmatprep.subr.bf16.mxu0 %v6476
    %7387 = vmatpush1.bf16.msra.mxu0 %v6475
    %7388 = vmatprep.subr.bf16.mxu0 %v6581
    %7389 = vmatpush2.bf16.msra.mxu0 %v6580
    %7390 = vmatprep.subr.bf16.mxu0 %v6574
    %7391 = vmatpush2.bf16.msra.mxu0 %v6573
    %7392 = vmatprep.subr.bf16.mxu0 %v6567
    %7393 = vmatpush2.bf16.msra.mxu0 %v6566
    %7394 = vmatprep.subr.bf16.mxu0 %v6560
    %7395 = vmatpush2.bf16.msra.mxu0 %v6559
    %7396 = vmatprep.subr.bf16.mxu0 %v6553
    %7397 = vmatpush2.bf16.msra.mxu0 %v6552
    %7398 = vmatprep.subr.bf16.mxu0 %v6546
    %7399 = vmatpush2.bf16.msra.mxu0 %v6545
    %7400 = vmatprep.subr.bf16.mxu0 %v6539
    %7401 = vmatpush2.bf16.msra.mxu0 %v6538
    %7402 = vmatprep.subr.bf16.mxu0 %v6532
    %7403 = vmatpush2.bf16.msra.mxu0 %v6531
    %7404 = vmatprep.mubr.bf16.mxu0 %v5370
    %7405 = vmatmul.mubr.bf16.gmra.mxu0 %v5369
    %v7406 = vpop.f32.mrf.mxu0
    %v7407 = vadd.f32 %v7294, %v7406
    %v7408 = vpop.f32.mrf.mxu0
    %v7409 = vadd.f32 %v7296, %v7408
    %v7410 = vpop.f32.mrf.mxu0
    %v7411 = vadd.f32 %v7298, %v7410
    %v7412 = vpop.f32.mrf.mxu0
    %v7413 = vadd.f32 %v7300, %v7412
    %7414 = vmatprep.mubr.bf16.mxu0 %v5374
    %7415 = vmatmul.mubr.bf16.gmra.mxu0 %v5373
    %v7416 = vpop.f32.mrf.mxu0
    %v7417 = vadd.f32 %v7304, %v7416
    %v7418 = vpop.f32.mrf.mxu0
    %v7419 = vadd.f32 %v7306, %v7418
    %v7420 = vpop.f32.mrf.mxu0
    %v7421 = vadd.f32 %v7308, %v7420
    %v7422 = vpop.f32.mrf.mxu0
    %v7423 = vadd.f32 %v7310, %v7422
    %7424 = vmatprep.mubr.bf16.mxu0 %v5378
    %7425 = vmatmul.mubr.bf16.gmra.mxu0 %v5377
    %v7426 = vpop.f32.mrf.mxu0
    %v7427 = vadd.f32 %v7314, %v7426
    %v7428 = vpop.f32.mrf.mxu0
    %v7429 = vadd.f32 %v7316, %v7428
    %v7430 = vpop.f32.mrf.mxu0
    %v7431 = vadd.f32 %v7318, %v7430
    %v7432 = vpop.f32.mrf.mxu0
    %v7433 = vadd.f32 %v7320, %v7432
    %7434 = vmatprep.mubr.bf16.mxu0 %v5382
    %7435 = vmatmul.mubr.bf16.gmra.mxu0 %v5381
    %v7436 = vpop.f32.mrf.mxu0
    %v7437 = vadd.f32 %v7324, %v7436
    %v7438 = vpop.f32.mrf.mxu0
    %v7439 = vadd.f32 %v7326, %v7438
    %v7440 = vpop.f32.mrf.mxu0
    %v7441 = vadd.f32 %v7328, %v7440
    %v7442 = vpop.f32.mrf.mxu0
    %v7443 = vadd.f32 %v7330, %v7442
    %7444 = vmatprep.mubr.bf16.mxu0 %v5386
    %7445 = vmatmul.mubr.bf16.gmra.mxu0 %v5385
    %v7446 = vpop.f32.mrf.mxu0
    %v7447 = vadd.f32 %v7334, %v7446
    %v7448 = vpop.f32.mrf.mxu0
    %v7449 = vadd.f32 %v7336, %v7448
    %v7450 = vpop.f32.mrf.mxu0
    %v7451 = vadd.f32 %v7338, %v7450
    %v7452 = vpop.f32.mrf.mxu0
    %v7453 = vadd.f32 %v7340, %v7452
    %7454 = vmatprep.mubr.bf16.mxu0 %v5390
    %7455 = vmatmul.mubr.bf16.gmra.mxu0 %v5389
    %v7456 = vpop.f32.mrf.mxu0
    %v7457 = vadd.f32 %v7344, %v7456
    %v7458 = vpop.f32.mrf.mxu0
    %v7459 = vadd.f32 %v7346, %v7458
    %v7460 = vpop.f32.mrf.mxu0
    %v7461 = vadd.f32 %v7348, %v7460
    %v7462 = vpop.f32.mrf.mxu0
    %v7463 = vadd.f32 %v7350, %v7462
    %7464 = vmatprep.mubr.bf16.mxu0 %v5394
    %7465 = vmatmul.mubr.bf16.gmra.mxu0 %v5393
    %v7466 = vpop.f32.mrf.mxu0
    %v7467 = vadd.f32 %v7354, %v7466
    %v7468 = vpop.f32.mrf.mxu0
    %v7469 = vadd.f32 %v7356, %v7468
    %v7470 = vpop.f32.mrf.mxu0
    %v7471 = vadd.f32 %v7358, %v7470
    %v7472 = vpop.f32.mrf.mxu0
    %v7473 = vadd.f32 %v7360, %v7472
    %7474 = vmatprep.mubr.bf16.mxu0 %v5398
    %7475 = vmatmul.mubr.bf16.gmra.mxu0 %v5397
    %v7476 = vpop.f32.mrf.mxu0
    %v7477 = vadd.f32 %v7364, %v7476
    %v7478 = vpop.f32.mrf.mxu0
    %v7479 = vadd.f32 %v7366, %v7478
    %v7480 = vpop.f32.mrf.mxu0
    %v7481 = vadd.f32 %v7368, %v7480
    %v7482 = vpop.f32.mrf.mxu0
    %v7483 = vadd.f32 %v7370, %v7482
    %7484 = vdwg.mxu0
    %7485 = vmatprep.subr.bf16.mxu0 0
    %7486 = vmatpush1.bf16.msra.mxu0 %v6414
    %7487 = vmatprep.subr.bf16.mxu0 0
    %7488 = vmatpush1.bf16.msra.mxu0 %v6407
    %7489 = vmatprep.subr.bf16.mxu0 0
    %7490 = vmatpush1.bf16.msra.mxu0 %v6400
    %7491 = vmatprep.subr.bf16.mxu0 0
    %7492 = vmatpush1.bf16.msra.mxu0 %v6393
    %7493 = vmatprep.subr.bf16.mxu0 0
    %7494 = vmatpush1.bf16.msra.mxu0 %v6386
    %7495 = vmatprep.subr.bf16.mxu0 0
    %7496 = vmatpush1.bf16.msra.mxu0 %v6379
    %7497 = vmatprep.subr.bf16.mxu0 0
    %7498 = vmatpush1.bf16.msra.mxu0 %v6372
    %7499 = vmatprep.subr.bf16.mxu0 0
    %7500 = vmatpush1.bf16.msra.mxu0 %v6365
    %7501 = vmatprep.subr.bf16.mxu0 0
    %7502 = vmatpush2.bf16.msra.mxu0 %v6470
    %7503 = vmatprep.subr.bf16.mxu0 0
    %7504 = vmatpush2.bf16.msra.mxu0 %v6463
    %7505 = vmatprep.subr.bf16.mxu0 0
    %7506 = vmatpush2.bf16.msra.mxu0 %v6456
    %7507 = vmatprep.subr.bf16.mxu0 0
    %7508 = vmatpush2.bf16.msra.mxu0 %v6449
    %7509 = vmatprep.subr.bf16.mxu0 0
    %7510 = vmatpush2.bf16.msra.mxu0 %v6442
    %7511 = vmatprep.subr.bf16.mxu0 0
    %7512 = vmatpush2.bf16.msra.mxu0 %v6435
    %7513 = vmatprep.subr.bf16.mxu0 0
    %7514 = vmatpush2.bf16.msra.mxu0 %v6428
    %7515 = vmatprep.subr.bf16.mxu0 0
    %7516 = vmatpush2.bf16.msra.mxu0 %v6421
    %7517 = vmatprep.mubr.bf16.mxu0 %v5368
    %7518 = vmatmul.mubr.bf16.gmra.mxu0 %v5367
    %v7519 = vpop.f32.mrf.mxu0
    %v7520 = vadd.f32 0.0, %v7519
    %v7521 = vpop.f32.mrf.mxu0
    %v7522 = vpop.f32.mrf.mxu0
    %v7523 = vadd.f32 0.0, %v7522
    %v7524 = vpop.f32.mrf.mxu0
    %7525 = vmatprep.mubr.bf16.mxu0 %v5372
    %7526 = vmatmul.mubr.bf16.gmra.mxu0 %v5371
    %v7527 = vpop.f32.mrf.mxu0
    %v7528 = vadd.f32 0.0, %v7527
    %v7529 = vpop.f32.mrf.mxu0
    %v7530 = vpop.f32.mrf.mxu0
    %v7531 = vadd.f32 0.0, %v7530
    %v7532 = vpop.f32.mrf.mxu0
    %7533 = vmatprep.mubr.bf16.mxu0 %v5376
    %7534 = vmatmul.mubr.bf16.gmra.mxu0 %v5375
    %v7535 = vpop.f32.mrf.mxu0
    %v7536 = vadd.f32 0.0, %v7535
    %v7537 = vpop.f32.mrf.mxu0
    %v7538 = vpop.f32.mrf.mxu0
    %v7539 = vadd.f32 0.0, %v7538
    %v7540 = vpop.f32.mrf.mxu0
    %7541 = vmatprep.mubr.bf16.mxu0 %v5380
    %7542 = vmatmul.mubr.bf16.gmra.mxu0 %v5379
    %v7543 = vpop.f32.mrf.mxu0
    %v7544 = vadd.f32 0.0, %v7543
    %v7545 = vpop.f32.mrf.mxu0
    %v7546 = vpop.f32.mrf.mxu0
    %v7547 = vadd.f32 0.0, %v7546
    %v7548 = vpop.f32.mrf.mxu0
    %7549 = vmatprep.mubr.bf16.mxu0 %v5384
    %7550 = vmatmul.mubr.bf16.gmra.mxu0 %v5383
    %v7551 = vpop.f32.mrf.mxu0
    %v7552 = vadd.f32 0.0, %v7551
    %v7553 = vpop.f32.mrf.mxu0
    %v7554 = vpop.f32.mrf.mxu0
    %v7555 = vadd.f32 0.0, %v7554
    %v7556 = vpop.f32.mrf.mxu0
    %7557 = vmatprep.mubr.bf16.mxu0 %v5388
    %7558 = vmatmul.mubr.bf16.gmra.mxu0 %v5387
    %v7559 = vpop.f32.mrf.mxu0
    %v7560 = vadd.f32 0.0, %v7559
    %v7561 = vpop.f32.mrf.mxu0
    %v7562 = vpop.f32.mrf.mxu0
    %v7563 = vadd.f32 0.0, %v7562
    %v7564 = vpop.f32.mrf.mxu0
    %7565 = vmatprep.mubr.bf16.mxu0 %v5392
    %7566 = vmatmul.mubr.bf16.gmra.mxu0 %v5391
    %v7567 = vpop.f32.mrf.mxu0
    %v7568 = vadd.f32 0.0, %v7567
    %v7569 = vpop.f32.mrf.mxu0
    %v7570 = vpop.f32.mrf.mxu0
    %v7571 = vadd.f32 0.0, %v7570
    %v7572 = vpop.f32.mrf.mxu0
    %7573 = vmatprep.mubr.bf16.mxu0 %v5396
    %7574 = vmatmul.mubr.bf16.gmra.mxu0 %v5395
    %v7575 = vpop.f32.mrf.mxu0
    %v7576 = vadd.f32 0.0, %v7575
    %v7577 = vpop.f32.mrf.mxu0
    %v7578 = vpop.f32.mrf.mxu0
    %v7579 = vadd.f32 0.0, %v7578
    %v7580 = vpop.f32.mrf.mxu0
    %7581 = vdwg.mxu0
    %7582 = vmatprep.subr.bf16.mxu0 0
    %7583 = vmatpush1.bf16.msra.mxu0 %v6526
    %7584 = vmatprep.subr.bf16.mxu0 0
    %7585 = vmatpush1.bf16.msra.mxu0 %v6519
    %7586 = vmatprep.subr.bf16.mxu0 0
    %7587 = vmatpush1.bf16.msra.mxu0 %v6512
    %7588 = vmatprep.subr.bf16.mxu0 0
    %7589 = vmatpush1.bf16.msra.mxu0 %v6505
    %7590 = vmatprep.subr.bf16.mxu0 0
    %7591 = vmatpush1.bf16.msra.mxu0 %v6498
    %7592 = vmatprep.subr.bf16.mxu0 0
    %7593 = vmatpush1.bf16.msra.mxu0 %v6491
    %7594 = vmatprep.subr.bf16.mxu0 0
    %7595 = vmatpush1.bf16.msra.mxu0 %v6484
    %7596 = vmatprep.subr.bf16.mxu0 0
    %7597 = vmatpush1.bf16.msra.mxu0 %v6477
    %7598 = vmatprep.subr.bf16.mxu0 0
    %7599 = vmatpush2.bf16.msra.mxu0 %v6582
    %7600 = vmatprep.subr.bf16.mxu0 0
    %7601 = vmatpush2.bf16.msra.mxu0 %v6575
    %7602 = vmatprep.subr.bf16.mxu0 0
    %7603 = vmatpush2.bf16.msra.mxu0 %v6568
    %7604 = vmatprep.subr.bf16.mxu0 0
    %7605 = vmatpush2.bf16.msra.mxu0 %v6561
    %7606 = vmatprep.subr.bf16.mxu0 0
    %7607 = vmatpush2.bf16.msra.mxu0 %v6554
    %7608 = vmatprep.subr.bf16.mxu0 0
    %7609 = vmatpush2.bf16.msra.mxu0 %v6547
    %7610 = vmatprep.subr.bf16.mxu0 0
    %7611 = vmatpush2.bf16.msra.mxu0 %v6540
    %7612 = vmatprep.subr.bf16.mxu0 0
    %7613 = vmatpush2.bf16.msra.mxu0 %v6533
    %7614 = vmatprep.mubr.bf16.mxu0 %v5370
    %7615 = vmatmul.mubr.bf16.gmra.mxu0 %v5369
    %v7616 = vpop.f32.mrf.mxu0
    %v7617 = vadd.f32 %v7520, %v7616
    %v7618 = vpop.f32.mrf.mxu0
    %v7619 = vpop.f32.mrf.mxu0
    %v7620 = vadd.f32 %v7523, %v7619
    %v7621 = vpop.f32.mrf.mxu0
    %7622 = vmatprep.mubr.bf16.mxu0 %v5374
    %7623 = vmatmul.mubr.bf16.gmra.mxu0 %v5373
    %v7624 = vpop.f32.mrf.mxu0
    %v7625 = vadd.f32 %v7528, %v7624
    %v7626 = vpop.f32.mrf.mxu0
    %v7627 = vpop.f32.mrf.mxu0
    %v7628 = vadd.f32 %v7531, %v7627
    %v7629 = vpop.f32.mrf.mxu0
    %7630 = vmatprep.mubr.bf16.mxu0 %v5378
    %7631 = vmatmul.mubr.bf16.gmra.mxu0 %v5377
    %v7632 = vpop.f32.mrf.mxu0
    %v7633 = vadd.f32 %v7536, %v7632
    %v7634 = vpop.f32.mrf.mxu0
    %v7635 = vpop.f32.mrf.mxu0
    %v7636 = vadd.f32 %v7539, %v7635
    %v7637 = vpop.f32.mrf.mxu0
    %7638 = vmatprep.mubr.bf16.mxu0 %v5382
    %7639 = vmatmul.mubr.bf16.gmra.mxu0 %v5381
    %v7640 = vpop.f32.mrf.mxu0
    %v7641 = vadd.f32 %v7544, %v7640
    %v7642 = vpop.f32.mrf.mxu0
    %v7643 = vpop.f32.mrf.mxu0
    %v7644 = vadd.f32 %v7547, %v7643
    %v7645 = vpop.f32.mrf.mxu0
    %7646 = vmatprep.mubr.bf16.mxu0 %v5386
    %7647 = vmatmul.mubr.bf16.gmra.mxu0 %v5385
    %v7648 = vpop.f32.mrf.mxu0
    %v7649 = vadd.f32 %v7552, %v7648
    %v7650 = vpop.f32.mrf.mxu0
    %v7651 = vpop.f32.mrf.mxu0
    %v7652 = vadd.f32 %v7555, %v7651
    %v7653 = vpop.f32.mrf.mxu0
    %7654 = vmatprep.mubr.bf16.mxu0 %v5390
    %7655 = vmatmul.mubr.bf16.gmra.mxu0 %v5389
    %v7656 = vpop.f32.mrf.mxu0
    %v7657 = vadd.f32 %v7560, %v7656
    %v7658 = vpop.f32.mrf.mxu0
    %v7659 = vpop.f32.mrf.mxu0
    %v7660 = vadd.f32 %v7563, %v7659
    %v7661 = vpop.f32.mrf.mxu0
    %7662 = vmatprep.mubr.bf16.mxu0 %v5394
    %7663 = vmatmul.mubr.bf16.gmra.mxu0 %v5393
    %v7664 = vpop.f32.mrf.mxu0
    %v7665 = vadd.f32 %v7568, %v7664
    %v7666 = vpop.f32.mrf.mxu0
    %v7667 = vpop.f32.mrf.mxu0
    %v7668 = vadd.f32 %v7571, %v7667
    %v7669 = vpop.f32.mrf.mxu0
    %7670 = vmatprep.mubr.bf16.mxu0 %v5398
    %7671 = vmatmul.mubr.bf16.gmra.mxu0 %v5397
    %v7672 = vpop.f32.mrf.mxu0
    %v7673 = vadd.f32 %v7576, %v7672
    %v7674 = vpop.f32.mrf.mxu0
    %v7675 = vpop.f32.mrf.mxu0
    %v7676 = vadd.f32 %v7579, %v7675
    %v7677 = vpop.f32.mrf.mxu0
    %7678 = vdwg.mxu0
    %v7679 = vpack.c.bf16 %v6959, %v6955
    %v7680 = vpack.c.bf16 %v6961, %v6957
    %v7681 = vpack.c.bf16 %v7185, %v7181
    %v7682 = vpack.c.bf16 %v7187, %v7183
    %v7683 = vpack.c.bf16 %v7411, %v7407
    %v7684 = vpack.c.bf16 %v7413, %v7409
    %v7685 = vpack.c.bf16 %v7620, %v7617
    %v7686 = vpack.c.bf16 %v6969, %v6965
    %v7687 = vpack.c.bf16 %v6971, %v6967
    %v7688 = vpack.c.bf16 %v7195, %v7191
    %v7689 = vpack.c.bf16 %v7197, %v7193
    %v7690 = vpack.c.bf16 %v7421, %v7417
    %v7691 = vpack.c.bf16 %v7423, %v7419
    %v7692 = vpack.c.bf16 %v7628, %v7625
    %v7693 = vpack.c.bf16 %v6979, %v6975
    %v7694 = vpack.c.bf16 %v6981, %v6977
    %v7695 = vpack.c.bf16 %v7205, %v7201
    %v7696 = vpack.c.bf16 %v7207, %v7203
    %v7697 = vpack.c.bf16 %v7431, %v7427
    %v7698 = vpack.c.bf16 %v7433, %v7429
    %v7699 = vpack.c.bf16 %v7636, %v7633
    %v7700 = vpack.c.bf16 %v6989, %v6985
    %v7701 = vpack.c.bf16 %v6991, %v6987
    %v7702 = vpack.c.bf16 %v7215, %v7211
    %v7703 = vpack.c.bf16 %v7217, %v7213
    %v7704 = vpack.c.bf16 %v7441, %v7437
    %v7705 = vpack.c.bf16 %v7443, %v7439
    %v7706 = vpack.c.bf16 %v7644, %v7641
    %v7707 = vpack.c.bf16 %v6999, %v6995
    %v7708 = vpack.c.bf16 %v7001, %v6997
    %v7709 = vpack.c.bf16 %v7225, %v7221
    %v7710 = vpack.c.bf16 %v7227, %v7223
    %v7711 = vpack.c.bf16 %v7451, %v7447
    %v7712 = vpack.c.bf16 %v7453, %v7449
    %v7713 = vpack.c.bf16 %v7652, %v7649
    %v7714 = vpack.c.bf16 %v7009, %v7005
    %v7715 = vpack.c.bf16 %v7011, %v7007
    %v7716 = vpack.c.bf16 %v7235, %v7231
    %v7717 = vpack.c.bf16 %v7237, %v7233
    %v7718 = vpack.c.bf16 %v7461, %v7457
    %v7719 = vpack.c.bf16 %v7463, %v7459
    %v7720 = vpack.c.bf16 %v7660, %v7657
    %v7721 = vpack.c.bf16 %v7019, %v7015
    %v7722 = vpack.c.bf16 %v7021, %v7017
    %v7723 = vpack.c.bf16 %v7245, %v7241
    %v7724 = vpack.c.bf16 %v7247, %v7243
    %v7725 = vpack.c.bf16 %v7471, %v7467
    %v7726 = vpack.c.bf16 %v7473, %v7469
    %v7727 = vpack.c.bf16 %v7668, %v7665
    %v7728 = vpack.c.bf16 %v7029, %v7025
    %v7729 = vpack.c.bf16 %v7031, %v7027
    %v7730 = vpack.c.bf16 %v7255, %v7251
    %v7731 = vpack.c.bf16 %v7257, %v7253
    %v7732 = vpack.c.bf16 %v7481, %v7477
    %v7733 = vpack.c.bf16 %v7483, %v7479
    %v7734 = vpack.c.bf16 %v7676, %v7673
    %v7735 = vld [vmem:[%s16] sm:$0x7f]
    %v7737 = vcombine.high %v7735, %v7735
    %v7739 = vunpack.c.l.s4 1966171168
    %v7740 = vunpack.c.0.s8 %v7739
    %v7741 = vlaneseq
    %v7742 = vshrl.u32 %v7741, 7
    %v7743 = vsub.s32 %v7740, %v7742
    %v7744 = vrot.slane %v7735, %v7743
    %v7746 = vunpack.c.l.s4 1966171168
    %v7747 = vunpack.c.0.s8 %v7746
    %v7748 = vlaneseq
    %v7749 = vshrl.u32 %v7748, 7
    %v7750 = vsub.s32 %v7747, %v7749
    %v7751 = vrot.slane %v7737, %v7750
    %v7752 = vcombine.high %v7744, %v7744
    %v7753 = vcombine.high %v7751, %v7751
    %v7755 = vunpack.c.l.s4 1966171168
    %v7756 = vunpack.c.0.s8 %v7755
    %v7757 = vlaneseq
    %v7758 = vshrl.u32 %v7757, 7
    %v7759 = vsub.s32 %v7756, %v7758
    %v7760 = vrot.slane %v7744, %v7759
    %v7762 = vunpack.c.l.s4 1966171168
    %v7763 = vunpack.c.0.s8 %v7762
    %v7764 = vlaneseq
    %v7765 = vshrl.u32 %v7764, 7
    %v7766 = vsub.s32 %v7763, %v7765
    %v7767 = vrot.slane %v7751, %v7766
    %v7769 = vunpack.c.l.s4 1966171168
    %v7770 = vunpack.c.0.s8 %v7769
    %v7771 = vlaneseq
    %v7772 = vshrl.u32 %v7771, 7
    %v7773 = vsub.s32 %v7770, %v7772
    %v7774 = vrot.slane %v7752, %v7773
    %v7776 = vunpack.c.l.s4 1966171168
    %v7777 = vunpack.c.0.s8 %v7776
    %v7778 = vlaneseq
    %v7779 = vshrl.u32 %v7778, 7
    %v7780 = vsub.s32 %v7777, %v7779
    %v7781 = vrot.slane %v7753, %v7780
    %v7782 = vcombine.high %v7760, %v7760
    %v7783 = vcombine.high %v7767, %v7767
    %v7784 = vcombine.high %v7774, %v7774
    %v7786 = vpack.i.b16 %v7760, %v7760
    %v7788 = vlaneseq
    %v7789 = vshrl.u32 %v7788, 7
    %v7790 = vsub.s32 0, %v7789
    %v7791 = vrot.slane %v7786, %v7790
    %v7793 = vpack.i.b16 %v7774, %v7774
    %v7795 = vlaneseq
    %v7796 = vshrl.u32 %v7795, 7
    %v7797 = vsub.s32 0, %v7796
    %v7798 = vrot.slane %v7793, %v7797
    %v7800 = vpack.i.b16 %v7782, %v7782
    %v7802 = vlaneseq
    %v7803 = vshrl.u32 %v7802, 7
    %v7804 = vsub.s32 0, %v7803
    %v7805 = vrot.slane %v7800, %v7804
    %v7807 = vpack.i.b16 %v7784, %v7784
    %v7809 = vlaneseq
    %v7810 = vshrl.u32 %v7809, 7
    %v7811 = vsub.s32 0, %v7810
    %v7812 = vrot.slane %v7807, %v7811
    %v7814 = vpack.i.b16 %v7767, %v7767
    %v7816 = vlaneseq
    %v7817 = vshrl.u32 %v7816, 7
    %v7818 = vsub.s32 0, %v7817
    %v7819 = vrot.slane %v7814, %v7818
    %v7821 = vpack.i.b16 %v7781, %v7781
    %v7823 = vlaneseq
    %v7824 = vshrl.u32 %v7823, 7
    %v7825 = vsub.s32 0, %v7824
    %v7826 = vrot.slane %v7821, %v7825
    %v7828 = vpack.i.b16 %v7783, %v7783
    %v7830 = vlaneseq
    %v7831 = vshrl.u32 %v7830, 7
    %v7832 = vsub.s32 0, %v7831
    %v7833 = vrot.slane %v7828, %v7832
    %v7834 = vadd.bf16 %v7679, %v7791
    %v7835 = vadd.bf16 %v7680, %v7798
    %v7836 = vadd.bf16 %v7681, %v7805
    %v7837 = vadd.bf16 %v7682, %v7812
    %v7838 = vadd.bf16 %v7683, %v7819
    %v7839 = vadd.bf16 %v7684, %v7826
    %v7840 = vadd.bf16 %v7685, %v7833
    %v7841 = vadd.bf16 %v7686, %v7791
    %v7842 = vadd.bf16 %v7687, %v7798
    %v7843 = vadd.bf16 %v7688, %v7805
    %v7844 = vadd.bf16 %v7689, %v7812
    %v7845 = vadd.bf16 %v7690, %v7819
    %v7846 = vadd.bf16 %v7691, %v7826
    %v7847 = vadd.bf16 %v7692, %v7833
    %v7848 = vadd.bf16 %v7693, %v7791
    %v7849 = vadd.bf16 %v7694, %v7798
    %v7850 = vadd.bf16 %v7695, %v7805
    %v7851 = vadd.bf16 %v7696, %v7812
    %v7852 = vadd.bf16 %v7697, %v7819
    %v7853 = vadd.bf16 %v7698, %v7826
    %v7854 = vadd.bf16 %v7699, %v7833
    %v7855 = vadd.bf16 %v7700, %v7791
    %v7856 = vadd.bf16 %v7701, %v7798
    %v7857 = vadd.bf16 %v7702, %v7805
    %v7858 = vadd.bf16 %v7703, %v7812
    %v7859 = vadd.bf16 %v7704, %v7819
    %v7860 = vadd.bf16 %v7705, %v7826
    %v7861 = vadd.bf16 %v7706, %v7833
    %v7862 = vadd.bf16 %v7707, %v7791
    %v7863 = vadd.bf16 %v7708, %v7798
    %v7864 = vadd.bf16 %v7709, %v7805
    %v7865 = vadd.bf16 %v7710, %v7812
    %v7866 = vadd.bf16 %v7711, %v7819
    %v7867 = vadd.bf16 %v7712, %v7826
    %v7868 = vadd.bf16 %v7713, %v7833
    %v7869 = vadd.bf16 %v7714, %v7791
    %v7870 = vadd.bf16 %v7715, %v7798
    %v7871 = vadd.bf16 %v7716, %v7805
    %v7872 = vadd.bf16 %v7717, %v7812
    %v7873 = vadd.bf16 %v7718, %v7819
    %v7874 = vadd.bf16 %v7719, %v7826
    %v7875 = vadd.bf16 %v7720, %v7833
    %v7876 = vadd.bf16 %v7721, %v7791
    %v7877 = vadd.bf16 %v7722, %v7798
    %v7878 = vadd.bf16 %v7723, %v7805
    %v7879 = vadd.bf16 %v7724, %v7812
    %v7880 = vadd.bf16 %v7725, %v7819
    %v7881 = vadd.bf16 %v7726, %v7826
    %v7882 = vadd.bf16 %v7727, %v7833
    %v7883 = vadd.bf16 %v7728, %v7791
    %v7884 = vadd.bf16 %v7729, %v7798
    %v7885 = vadd.bf16 %v7730, %v7805
    %v7886 = vadd.bf16 %v7731, %v7812
    %v7887 = vadd.bf16 %v7732, %v7819
    %v7888 = vadd.bf16 %v7733, %v7826
    %v7889 = vadd.bf16 %v7734, %v7833
    %v7890 = vmax.bf16 %v7834, 0
    %v7891 = vmax.bf16 %v7835, 0
    %v7892 = vmax.bf16 %v7836, 0
    %v7893 = vmax.bf16 %v7837, 0
    %v7894 = vmax.bf16 %v7838, 0
    %v7895 = vmax.bf16 %v7839, 0
    %v7896 = vmax.bf16 %v7840, 0
    %v7897 = vmax.bf16 %v7841, 0
    %v7898 = vmax.bf16 %v7842, 0
    %v7899 = vmax.bf16 %v7843, 0
    %v7900 = vmax.bf16 %v7844, 0
    %v7901 = vmax.bf16 %v7845, 0
    %v7902 = vmax.bf16 %v7846, 0
    %v7903 = vmax.bf16 %v7847, 0
    %v7904 = vmax.bf16 %v7848, 0
    %v7905 = vmax.bf16 %v7849, 0
    %v7906 = vmax.bf16 %v7850, 0
    %v7907 = vmax.bf16 %v7851, 0
    %v7908 = vmax.bf16 %v7852, 0
    %v7909 = vmax.bf16 %v7853, 0
    %v7910 = vmax.bf16 %v7854, 0
    %v7911 = vmax.bf16 %v7855, 0
    %v7912 = vmax.bf16 %v7856, 0
    %v7913 = vmax.bf16 %v7857, 0
    %v7914 = vmax.bf16 %v7858, 0
    %v7915 = vmax.bf16 %v7859, 0
    %v7916 = vmax.bf16 %v7860, 0
    %v7917 = vmax.bf16 %v7861, 0
    %v7918 = vmax.bf16 %v7862, 0
    %v7919 = vmax.bf16 %v7863, 0
    %v7920 = vmax.bf16 %v7864, 0
    %v7921 = vmax.bf16 %v7865, 0
    %v7922 = vmax.bf16 %v7866, 0
    %v7923 = vmax.bf16 %v7867, 0
    %v7924 = vmax.bf16 %v7868, 0
    %v7925 = vmax.bf16 %v7869, 0
    %v7926 = vmax.bf16 %v7870, 0
    %v7927 = vmax.bf16 %v7871, 0
    %v7928 = vmax.bf16 %v7872, 0
    %v7929 = vmax.bf16 %v7873, 0
    %v7930 = vmax.bf16 %v7874, 0
    %v7931 = vmax.bf16 %v7875, 0
    %v7932 = vmax.bf16 %v7876, 0
    %v7933 = vmax.bf16 %v7877, 0
    %v7934 = vmax.bf16 %v7878, 0
    %v7935 = vmax.bf16 %v7879, 0
    %v7936 = vmax.bf16 %v7880, 0
    %v7937 = vmax.bf16 %v7881, 0
    %v7938 = vmax.bf16 %v7882, 0
    %v7939 = vmax.bf16 %v7883, 0
    %v7940 = vmax.bf16 %v7884, 0
    %v7941 = vmax.bf16 %v7885, 0
    %v7942 = vmax.bf16 %v7886, 0
    %v7943 = vmax.bf16 %v7887, 0
    %v7944 = vmax.bf16 %v7888, 0
    %v7945 = vmax.bf16 %v7889, 0
    %v8002 = vunpack.c.l.b16 %v7890
    %v8003 = vunpack.c.l.b16 %v7891
    %v8004 = vunpack.c.l.b16 %v7892
    %v8005 = vunpack.c.l.b16 %v7893
    %v8006 = vunpack.c.l.b16 %v7894
    %v8007 = vunpack.c.l.b16 %v7895
    %v8008 = vunpack.c.l.b16 %v7896
    %v8009 = vunpack.c.h.b16 %v7890
    %v8010 = vunpack.c.h.b16 %v7891
    %v8011 = vunpack.c.h.b16 %v7892
    %v8012 = vunpack.c.h.b16 %v7893
    %v8013 = vunpack.c.h.b16 %v7894
    %v8014 = vunpack.c.h.b16 %v7895
    %v8015 = vunpack.c.h.b16 %v7896
    %v8016 = vunpack.c.l.b16 %v7897
    %v8017 = vunpack.c.l.b16 %v7898
    %v8018 = vunpack.c.l.b16 %v7899
    %v8019 = vunpack.c.l.b16 %v7900
    %v8020 = vunpack.c.l.b16 %v7901
    %v8021 = vunpack.c.l.b16 %v7902
    %v8022 = vunpack.c.l.b16 %v7903
    %v8023 = vunpack.c.h.b16 %v7897
    %v8024 = vunpack.c.h.b16 %v7898
    %v8025 = vunpack.c.h.b16 %v7899
    %v8026 = vunpack.c.h.b16 %v7900
    %v8027 = vunpack.c.h.b16 %v7901
    %v8028 = vunpack.c.h.b16 %v7902
    %v8029 = vunpack.c.h.b16 %v7903
    %v8030 = vunpack.c.l.b16 %v7904
    %v8031 = vunpack.c.l.b16 %v7905
    %v8032 = vunpack.c.l.b16 %v7906
    %v8033 = vunpack.c.l.b16 %v7907
    %v8034 = vunpack.c.l.b16 %v7908
    %v8035 = vunpack.c.l.b16 %v7909
    %v8036 = vunpack.c.l.b16 %v7910
    %v8037 = vunpack.c.h.b16 %v7904
    %v8038 = vunpack.c.h.b16 %v7905
    %v8039 = vunpack.c.h.b16 %v7906
    %v8040 = vunpack.c.h.b16 %v7907
    %v8041 = vunpack.c.h.b16 %v7908
    %v8042 = vunpack.c.h.b16 %v7909
    %v8043 = vunpack.c.h.b16 %v7910
    %v8044 = vunpack.c.l.b16 %v7911
    %v8045 = vunpack.c.l.b16 %v7912
    %v8046 = vunpack.c.l.b16 %v7913
    %v8047 = vunpack.c.l.b16 %v7914
    %v8048 = vunpack.c.l.b16 %v7915
    %v8049 = vunpack.c.l.b16 %v7916
    %v8050 = vunpack.c.l.b16 %v7917
    %v8051 = vunpack.c.h.b16 %v7911
    %v8052 = vunpack.c.h.b16 %v7912
    %v8053 = vunpack.c.h.b16 %v7913
    %v8054 = vunpack.c.h.b16 %v7914
    %v8055 = vunpack.c.h.b16 %v7915
    %v8056 = vunpack.c.h.b16 %v7916
    %v8057 = vunpack.c.h.b16 %v7917
    %v8058 = vunpack.c.l.b16 %v7918
    %v8059 = vunpack.c.l.b16 %v7919
    %v8060 = vunpack.c.l.b16 %v7920
    %v8061 = vunpack.c.l.b16 %v7921
    %v8062 = vunpack.c.l.b16 %v7922
    %v8063 = vunpack.c.l.b16 %v7923
    %v8064 = vunpack.c.l.b16 %v7924
    %v8065 = vunpack.c.h.b16 %v7918
    %v8066 = vunpack.c.h.b16 %v7919
    %v8067 = vunpack.c.h.b16 %v7920
    %v8068 = vunpack.c.h.b16 %v7921
    %v8069 = vunpack.c.h.b16 %v7922
    %v8070 = vunpack.c.h.b16 %v7923
    %v8071 = vunpack.c.h.b16 %v7924
    %v8072 = vunpack.c.l.b16 %v7925
    %v8073 = vunpack.c.l.b16 %v7926
    %v8074 = vunpack.c.l.b16 %v7927
    %v8075 = vunpack.c.l.b16 %v7928
    %v8076 = vunpack.c.l.b16 %v7929
    %v8077 = vunpack.c.l.b16 %v7930
    %v8078 = vunpack.c.l.b16 %v7931
    %v8079 = vunpack.c.h.b16 %v7925
    %v8080 = vunpack.c.h.b16 %v7926
    %v8081 = vunpack.c.h.b16 %v7927
    %v8082 = vunpack.c.h.b16 %v7928
    %v8083 = vunpack.c.h.b16 %v7929
    %v8084 = vunpack.c.h.b16 %v7930
    %v8085 = vunpack.c.h.b16 %v7931
    %v8086 = vunpack.c.l.b16 %v7932
    %v8087 = vunpack.c.l.b16 %v7933
    %v8088 = vunpack.c.l.b16 %v7934
    %v8089 = vunpack.c.l.b16 %v7935
    %v8090 = vunpack.c.l.b16 %v7936
    %v8091 = vunpack.c.l.b16 %v7937
    %v8092 = vunpack.c.l.b16 %v7938
    %v8093 = vunpack.c.h.b16 %v7932
    %v8094 = vunpack.c.h.b16 %v7933
    %v8095 = vunpack.c.h.b16 %v7934
    %v8096 = vunpack.c.h.b16 %v7935
    %v8097 = vunpack.c.h.b16 %v7936
    %v8098 = vunpack.c.h.b16 %v7937
    %v8099 = vunpack.c.h.b16 %v7938
    %v8100 = vunpack.c.l.b16 %v7939
    %v8101 = vunpack.c.l.b16 %v7940
    %v8102 = vunpack.c.l.b16 %v7941
    %v8103 = vunpack.c.l.b16 %v7942
    %v8104 = vunpack.c.l.b16 %v7943
    %v8105 = vunpack.c.l.b16 %v7944
    %v8106 = vunpack.c.l.b16 %v7945
    %v8107 = vunpack.c.h.b16 %v7939
    %v8108 = vunpack.c.h.b16 %v7940
    %v8109 = vunpack.c.h.b16 %v7941
    %v8110 = vunpack.c.h.b16 %v7942
    %v8111 = vunpack.c.h.b16 %v7943
    %v8112 = vunpack.c.h.b16 %v7944
    %v8113 = vunpack.c.h.b16 %v7945
    %v8114 = vpack.c.b16 %v8003, %v8002
    %v8115 = vpack.c.b16 %v8005, %v8004
    %v8116 = vpack.c.b16 %v8007, %v8006
    %v8117 = vpack.c.b16 %v8008, %v8008
    %v8118 = vpack.c.b16 %v8010, %v8009
    %v8119 = vpack.c.b16 %v8012, %v8011
    %v8120 = vpack.c.b16 %v8014, %v8013
    %v8121 = vpack.c.b16 %v8015, %v8015
    %v8122 = vpack.c.b16 %v8017, %v8016
    %v8123 = vpack.c.b16 %v8019, %v8018
    %v8124 = vpack.c.b16 %v8021, %v8020
    %v8125 = vpack.c.b16 %v8022, %v8022
    %v8126 = vpack.c.b16 %v8024, %v8023
    %v8127 = vpack.c.b16 %v8026, %v8025
    %v8128 = vpack.c.b16 %v8028, %v8027
    %v8129 = vpack.c.b16 %v8029, %v8029
    %v8130 = vpack.c.b16 %v8031, %v8030
    %v8131 = vpack.c.b16 %v8033, %v8032
    %v8132 = vpack.c.b16 %v8035, %v8034
    %v8133 = vpack.c.b16 %v8036, %v8036
    %v8134 = vpack.c.b16 %v8038, %v8037
    %v8135 = vpack.c.b16 %v8040, %v8039
    %v8136 = vpack.c.b16 %v8042, %v8041
    %v8137 = vpack.c.b16 %v8043, %v8043
    %v8138 = vpack.c.b16 %v8045, %v8044
    %v8139 = vpack.c.b16 %v8047, %v8046
    %v8140 = vpack.c.b16 %v8049, %v8048
    %v8141 = vpack.c.b16 %v8050, %v8050
    %v8142 = vpack.c.b16 %v8052, %v8051
    %v8143 = vpack.c.b16 %v8054, %v8053
    %v8144 = vpack.c.b16 %v8056, %v8055
    %v8145 = vpack.c.b16 %v8057, %v8057
    %v8146 = vpack.c.b16 %v8059, %v8058
    %v8147 = vpack.c.b16 %v8061, %v8060
    %v8148 = vpack.c.b16 %v8063, %v8062
    %v8149 = vpack.c.b16 %v8064, %v8064
    %v8150 = vpack.c.b16 %v8066, %v8065
    %v8151 = vpack.c.b16 %v8068, %v8067
    %v8152 = vpack.c.b16 %v8070, %v8069
    %v8153 = vpack.c.b16 %v8071, %v8071
    %v8154 = vpack.c.b16 %v8073, %v8072
    %v8155 = vpack.c.b16 %v8075, %v8074
    %v8156 = vpack.c.b16 %v8077, %v8076
    %v8157 = vpack.c.b16 %v8078, %v8078
    %v8158 = vpack.c.b16 %v8080, %v8079
    %v8159 = vpack.c.b16 %v8082, %v8081
    %v8160 = vpack.c.b16 %v8084, %v8083
    %v8161 = vpack.c.b16 %v8085, %v8085
    %v8162 = vpack.c.b16 %v8087, %v8086
    %v8163 = vpack.c.b16 %v8089, %v8088
    %v8164 = vpack.c.b16 %v8091, %v8090
    %v8165 = vpack.c.b16 %v8092, %v8092
    %v8166 = vpack.c.b16 %v8094, %v8093
    %v8167 = vpack.c.b16 %v8096, %v8095
    %v8168 = vpack.c.b16 %v8098, %v8097
    %v8169 = vpack.c.b16 %v8099, %v8099
    %v8170 = vpack.c.b16 %v8101, %v8100
    %v8171 = vpack.c.b16 %v8103, %v8102
    %v8172 = vpack.c.b16 %v8105, %v8104
    %v8173 = vpack.c.b16 %v8106, %v8106
    %v8174 = vpack.c.b16 %v8108, %v8107
    %v8175 = vpack.c.b16 %v8110, %v8109
    %v8176 = vpack.c.b16 %v8112, %v8111
    %v8177 = vpack.c.b16 %v8113, %v8113
    %8242 = vst [vmem:[#allocation18] sm:$0xff] %v8114
    %8243 = vst [vmem:[#allocation18 + $0x8] sm:$0xff] %v8115
    %8244 = vst [vmem:[#allocation18 + $0x10] sm:$0xff] %v8116
    %8245 = vst [vmem:[#allocation18 + $0x18] sm:$0xf] %v8117
    %8246 = vst [vmem:[#allocation18 + $0x1c] sm:$0xff] %v8118
    %8247 = vst [vmem:[#allocation18 + $0x24] sm:$0xff] %v8119
    %8248 = vst [vmem:[#allocation18 + $0x2c] sm:$0xff] %v8120
    %8249 = vst [vmem:[#allocation18 + $0x34] sm:$0xf] %v8121
    %8250 = vst [vmem:[#allocation18 + $0x38] sm:$0xff] %v8122
    %8251 = vst [vmem:[#allocation18 + $0x40] sm:$0xff] %v8123
    %8252 = vst [vmem:[#allocation18 + $0x48] sm:$0xff] %v8124
    %8253 = vst [vmem:[#allocation18 + $0x50] sm:$0xf] %v8125
    %8254 = vst [vmem:[#allocation18 + $0x54] sm:$0xff] %v8126
    %8255 = vst [vmem:[#allocation18 + $0x5c] sm:$0xff] %v8127
    %8256 = vst [vmem:[#allocation18 + $0x64] sm:$0xff] %v8128
    %8257 = vst [vmem:[#allocation18 + $0x6c] sm:$0xf] %v8129
    %8258 = vst [vmem:[#allocation18 + $0x70] sm:$0xff] %v8130
    %8259 = vst [vmem:[#allocation18 + $0x78] sm:$0xff] %v8131
    %8260 = vst [vmem:[#allocation18 + $0x80] sm:$0xff] %v8132
    %8261 = vst [vmem:[#allocation18 + $0x88] sm:$0xf] %v8133
    %8262 = vst [vmem:[#allocation18 + $0x8c] sm:$0xff] %v8134
    %8263 = vst [vmem:[#allocation18 + $0x94] sm:$0xff] %v8135
    %8264 = vst [vmem:[#allocation18 + $0x9c] sm:$0xff] %v8136
    %8265 = vst [vmem:[#allocation18 + $0xa4] sm:$0xf] %v8137
    %8266 = vst [vmem:[#allocation18 + $0xa8] sm:$0xff] %v8138
    %8267 = vst [vmem:[#allocation18 + $0xb0] sm:$0xff] %v8139
    %8268 = vst [vmem:[#allocation18 + $0xb8] sm:$0xff] %v8140
    %8269 = vst [vmem:[#allocation18 + $0xc0] sm:$0xf] %v8141
    %8270 = vst [vmem:[#allocation18 + $0xc4] sm:$0xff] %v8142
    %8271 = vst [vmem:[#allocation18 + $0xcc] sm:$0xff] %v8143
    %8272 = vst [vmem:[#allocation18 + $0xd4] sm:$0xff] %v8144
    %8273 = vst [vmem:[#allocation18 + $0xdc] sm:$0xf] %v8145
    %8274 = vst [vmem:[#allocation18 + $0xe0] sm:$0xff] %v8146
    %8275 = vst [vmem:[#allocation18 + $0xe8] sm:$0xff] %v8147
    %8276 = vst [vmem:[#allocation18 + $0xf0] sm:$0xff] %v8148
    %8277 = vst [vmem:[#allocation18 + $0xf8] sm:$0xf] %v8149
    %8278 = vst [vmem:[#allocation18 + $0xfc] sm:$0xff] %v8150
    %8279 = vst [vmem:[#allocation18 + $0x104] sm:$0xff] %v8151
    %8280 = vst [vmem:[#allocation18 + $0x10c] sm:$0xff] %v8152
    %8281 = vst [vmem:[#allocation18 + $0x114] sm:$0xf] %v8153
    %8282 = vst [vmem:[#allocation18 + $0x118] sm:$0xff] %v8154
    %8283 = vst [vmem:[#allocation18 + $0x120] sm:$0xff] %v8155
    %8284 = vst [vmem:[#allocation18 + $0x128] sm:$0xff] %v8156
    %8285 = vst [vmem:[#allocation18 + $0x130] sm:$0xf] %v8157
    %8286 = vst [vmem:[#allocation18 + $0x134] sm:$0xff] %v8158
    %8287 = vst [vmem:[#allocation18 + $0x13c] sm:$0xff] %v8159
    %8288 = vst [vmem:[#allocation18 + $0x144] sm:$0xff] %v8160
    %8289 = vst [vmem:[#allocation18 + $0x14c] sm:$0xf] %v8161
    %8290 = vst [vmem:[#allocation18 + $0x150] sm:$0xff] %v8162
    %8291 = vst [vmem:[#allocation18 + $0x158] sm:$0xff] %v8163
    %8292 = vst [vmem:[#allocation18 + $0x160] sm:$0xff] %v8164
    %8293 = vst [vmem:[#allocation18 + $0x168] sm:$0xf] %v8165
    %8294 = vst [vmem:[#allocation18 + $0x16c] sm:$0xff] %v8166
    %8295 = vst [vmem:[#allocation18 + $0x174] sm:$0xff] %v8167
    %8296 = vst [vmem:[#allocation18 + $0x17c] sm:$0xff] %v8168
    %8297 = vst [vmem:[#allocation18 + $0x184] sm:$0xf] %v8169
    %8298 = vst [vmem:[#allocation18 + $0x188] sm:$0xff] %v8170
    %8299 = vst [vmem:[#allocation18 + $0x190] sm:$0xff] %v8171
    %8300 = vst [vmem:[#allocation18 + $0x198] sm:$0xff] %v8172
    %8301 = vst [vmem:[#allocation18 + $0x1a0] sm:$0xf] %v8173
    %8302 = vst [vmem:[#allocation18 + $0x1a4] sm:$0xff] %v8174
    %8303 = vst [vmem:[#allocation18 + $0x1ac] sm:$0xff] %v8175
    %8304 = vst [vmem:[#allocation18 + $0x1b4] sm:$0xff] %v8176
    %8305 = vst [vmem:[#allocation18 + $0x1bc] sm:$0xf] %v8177
    // Predicated region
    $region106: #{tpu_custom_call.1} parent=1 // pred_check
      _
    $region107: #{tpu_custom_call.1} parent=1 // pred_check_branch
      %8307 = sbr.rel (0) target = $region109
    $region108: #{tpu_custom_call.1} parent=1 // pred_region
      %s8309 = ssub.s32 1024, 1024
      %8310 = vsyncadd [#allocation4], %s8309
      %s8311 = sshll.u32 [#allocation17], 4
      %s8312 = int_to_ptr.vmem [resolvable:$true] %s8311
      %8317 = dma.vmem_to_hbm [thread:$0]  %s8312, 1024, %s17, [#allocation4], 64, 64, 4
    $region109: #{tpu_custom_call.1} parent=1 // pred_fallthru
      _
    // Predicated region
    $region110: #{tpu_custom_call.1} parent=1 // pred_check
      _
    $region111: #{tpu_custom_call.1} parent=1 // pred_check_branch
      %8319 = sbr.rel (0) target = $region113
    $region112: #{tpu_custom_call.1} parent=1 // pred_region
      %s8321 = ssub.s32 7168, 7168
      %8322 = vsyncadd [#allocation19], %s8321
      %s8323 = sshll.u32 [#allocation18], 4
      %s8324 = int_to_ptr.vmem [resolvable:$true] %s8323
      %8329 = dma.vmem_to_hbm [thread:$0]  %s8324, 7168, %s18, [#allocation19], 448, 448, 28
    $region113: #{tpu_custom_call.1} parent=1 // pred_fallthru
      _
    // Predicated region
    $region114: #{tpu_custom_call.1} parent=1 // pred_check
      _
    $region115: #{tpu_custom_call.1} parent=1 // pred_check_branch
      %8331 = sbr.rel (0) target = $region117
    $region116: #{tpu_custom_call.1} parent=1 // pred_region
      %8332 = dma.done [#allocation4], 1024
    $region117: #{tpu_custom_call.1} parent=1 // pred_fallthru
      _
    // Predicated region
    $region118: #{tpu_custom_call.1} parent=1 // pred_check
      _
    $region119: #{tpu_custom_call.1} parent=1 // pred_check_branch
      %8334 = sbr.rel (0) target = $region121
    $region120: #{tpu_custom_call.1} parent=1 // pred_region
      %8335 = dma.done [#allocation19], 7168
    $region121: #{tpu_custom_call.1} parent=1 // pred_fallthru
      _
    %8336 = vsyncpa [#allocation3], 1
    %8337 = vsyncpa [#allocation6], 1
    %8338 = vsyncpa [#allocation9], 1
    %8339 = vsyncpa [#allocation12], 1
    %8340 = vsyncpa [#allocation15], 1
    %8341 = vsyncpa [#allocation4], 1
    %8342 = vsyncpa [#allocation19], 1

</llo_original>
